<compile_context>
chip_gen: v7x
topology: tpu7x:2x2x1
jax: 0.10.0
libtpu: 0.0.40
codegen_flags: <defaults>
</compile_context>

<pallas_src>
import math

import numpy as np
import jax
import jax.numpy as jnp
from jax.experimental import pallas as pl
from jax.experimental.pallas import tpu as pltpu

# ------------------------------- model config -------------------------------

NC = 3        # nc
NGF = 8       # ngf
NZ = 16       # nz
IMAGE_SIZE = 16
K = 4         # all convs are 4x4
KK = K * K
LEAKY_SLOPE = 0.2
BN_EPS = 1e-5
N_PYR = int(math.log2(IMAGE_SIZE)) - 3   # pyramid depth (1 for imageSize=16)


def _round_up(x, m):
    return (x + m - 1) // m * m


# ------------- per-image 0/1 gather / scatter matrices (O(1) in batch) -------------

def _conv_gather_taps(H, k, stride, pad):
    """Conv2d gather: (k*k, H*H, Ho*Ho); m[t, ih*H+iw, oh*Ho+ow]=1 iff input pixel
    (ih, iw) is tap t=(kh,kw) of output (oh, ow).  Built per image."""
    Ho = (H + 2 * pad - k) // stride + 1
    m = np.zeros((k * k, H * H, Ho * Ho), np.int8)
    for kh in range(k):
        for kw in range(k):
            t = kh * k + kw
            for oh in range(Ho):
                ih = oh * stride - pad + kh
                if ih < 0 or ih >= H:
                    continue
                for ow in range(Ho):
                    iw = ow * stride - pad + kw
                    if iw < 0 or iw >= H:
                        continue
                    m[t, ih * H + iw, oh * Ho + ow] = 1
    return m, Ho


def _convT_scatter_taps(H, k, stride, pad):
    """ConvTranspose2d scatter (PyTorch semantics), per image:
    input (ih, iw) contributes to output (ih*s - p + kh, iw*s - p + kw)."""
    Ho = (H - 1) * stride - 2 * pad + k
    m = np.zeros((k * k, H * H, Ho * Ho), np.int8)
    for kh in range(k):
        for kw in range(k):
            t = kh * k + kw
            for ih in range(H):
                oh = ih * stride - pad + kh
                if oh < 0 or oh >= Ho:
                    continue
                for iw in range(H):
                    ow = iw * stride - pad + kw
                    if ow < 0 or ow >= Ho:
                        continue
                    m[t, ih * H + iw, oh * Ho + ow] = 1
    return m, Ho


# ------------------------------ fused kernel ---------------------------------

def _make_netg_kernel(B, num_pyr):
    f32, bf16 = jnp.float32, jnp.bfloat16

    def mm(a, b):
        return jnp.dot(a, b, preferred_element_type=f32)

    def tap_to_bf16(v):
        if v.dtype == jnp.int8:          # big matrices ship as int8; widen in-kernel
            v = v.astype(f32)
        return v.astype(bf16)

    def conv_apply(x, w_bf, m_ref):
        # x: (R, HW_in) f32; w_bf: (B*Cout, KK*R) bf16; m_ref: (KK, HW_in, HW_out).
        xb = x.astype(bf16)                                       # one cast per layer
        taps = [mm(xb, tap_to_bf16(m_ref[t])) for t in range(KK)]  # 16 independent GEMMs
        xstack = jnp.concatenate(taps, axis=0).astype(bf16)        # (KK*R, HW_out)
        return mm(w_bf, xstack)                                    # one large-K GEMM

    def leaky(y):
        return jnp.where(y >= 0, y, LEAKY_SLOPE * y)

    def bn_leaky(x, c, gamma, beta):
        # x: (B*c, HW). BatchNorm2d training-mode forward (biased batch stats) + LeakyReLU.
        hw = x.shape[1]
        inv_n = 1.0 / (B * hw)
        rs = jnp.sum(x, axis=1, keepdims=True)                     # lane reduction
        s = rs[0:c, :]
        for b in range(1, B):
            s = s + rs[b * c:(b + 1) * c, :]
        mean = jnp.concatenate([s * inv_n] * B, axis=0) if B > 1 else s * inv_n
        xc = x - mean
        rs2 = jnp.sum(xc * xc, axis=1, keepdims=True)
        s2 = rs2[0:c, :]
        for b in range(1, B):
            s2 = s2 + rs2[b * c:(b + 1) * c, :]
        var = jnp.concatenate([s2 * inv_n] * B, axis=0) if B > 1 else s2 * inv_n
        y = xc * jax.lax.rsqrt(var + BN_EPS) * gamma + beta
        return leaky(y)

    def kernel(*refs):
        n_in = len(refs) - 3
        in_refs = refs[:n_in]
        out_ref = refs[n_in]
        mo_vmem = refs[n_in + 1]
        dma_sem = refs[n_in + 2]

        # Start the DMA of the (largest, last-used) output-layer scatter matrix now so
        # the HBM->VMEM transfer overlaps all encoder / sampler / decoder compute.
        mo_copy = pltpu.make_async_copy(in_refs[-1], mo_vmem, dma_sem)
        mo_copy.start()

        it = iter(in_refs[:-1])
        x_ref = next(it)       # (Rp0, 256) f32, rows (b, c) zero-padded to a multiple of 8
        eps_ref = next(it)     # (B*NZ, 1)  f32

        # ---- encoder input conv (im2col folded into gather matrix) + LeakyReLU ----
        w = next(it)[...]
        m = next(it)
        h = leaky(conv_apply(x_ref[...], w, m))               # (B*NGF, 64)

        # ---- encoder pyramid: conv(s2,p1) -> BN -> LeakyReLU ----
        for _ in range(num_pyr):
            w = next(it)[...]; m = next(it)
            g = next(it)[...]; be = next(it)[...]
            h = bn_leaky(conv_apply(h, w, m), w.shape[0] // B, g, be)

        # ---- fused mu/logvar heads (+bias) and reparameterization sampler ----
        w = next(it)[...]; m = next(it); bias = next(it)[...]
        ml = conv_apply(h, w, m) + bias                       # (B*2*NZ, 1)
        nz2 = ml.shape[0] // B
        nz = nz2 // 2
        eps_v = eps_ref[...]
        zs = []
        for b in range(B):
            mu = ml[b * nz2:b * nz2 + nz, :]
            logvar = ml[b * nz2 + nz:(b + 1) * nz2, :]
            e = eps_v[b * nz:(b + 1) * nz, :]
            zs.append(e * jnp.exp(0.5 * logvar) + mu)
        h = jnp.concatenate(zs, axis=0) if B > 1 else zs[0]   # (B*NZ, 1)

        # ---- decoder input conv-transpose -> BN -> LeakyReLU ----
        w = next(it)[...]; m = next(it)
        g = next(it)[...]; be = next(it)[...]
        h = bn_leaky(conv_apply(h, w, m), w.shape[0] // B, g, be)

        # ---- decoder pyramid conv-transpose -> BN -> LeakyReLU ----
        for _ in range(num_pyr):
            w = next(it)[...]; m = next(it)
            g = next(it)[...]; be = next(it)[...]
            h = bn_leaky(conv_apply(h, w, m), w.shape[0] // B, g, be)

        # ---- output conv-transpose + Tanh (scatter matrix arrives via overlapped DMA) ----
        w = next(it)[...]
        mo_copy.wait()
        out_ref[...] = jnp.tanh(conv_apply(h, w, mo_vmem)).astype(out_ref.dtype)

    return kernel


# --------------------------- host-side preparation ---------------------------

def init_params(key):
    n = int(math.log2(IMAGE_SIZE))
    assert 2 ** n == IMAGE_SIZE and n >= 3
    ks = iter(jax.random.split(key, 16))
    s = 0.05
    p = {}
    p["enc_w0"] = s * jax.random.normal(next(ks), (NGF, NC, K, K), jnp.float32)
    p["enc_pyr"] = [
        s * jax.random.normal(next(ks), (NGF * 2 ** (i + 1), NGF * 2 ** i, K, K), jnp.float32)
        for i in range(n - 3)
    ]
    p["enc_bn"] = [(jnp.ones((NGF * 2 ** (i + 1),), jnp.float32),
                    jnp.zeros((NGF * 2 ** (i + 1),), jnp.float32)) for i in range(n - 3)]
    cmid = NGF * 2 ** (n - 3)
    p["conv1_w"] = s * jax.random.normal(next(ks), (NZ, cmid, K, K), jnp.float32)
    p["conv1_b"] = s * jax.random.normal(next(ks), (NZ,), jnp.float32)
    p["conv2_w"] = s * jax.random.normal(next(ks), (NZ, cmid, K, K), jnp.float32)
    p["conv2_b"] = s * jax.random.normal(next(ks), (NZ,), jnp.float32)
    p["dec_w0"] = s * jax.random.normal(next(ks), (NZ, cmid, K, K), jnp.float32)
    p["dec_bn0"] = (jnp.ones((cmid,), jnp.float32), jnp.zeros((cmid,), jnp.float32))
    p["dec_pyr"] = [
        s * jax.random.normal(next(ks), (NGF * 2 ** i, NGF * 2 ** (i - 1), K, K), jnp.float32)
        for i in range(n - 3, 0, -1)
    ]
    p["dec_bn"] = [(jnp.ones((NGF * 2 ** (i - 1),), jnp.float32),
                    jnp.zeros((NGF * 2 ** (i - 1),), jnp.float32)) for i in range(n - 3, 0, -1)]
    p["dec_wout"] = s * jax.random.normal(next(ks), (NGF, NC, K, K), jnp.float32)
    return p


def prepare_operands(params, B):
    """Pack block-diagonal-over-batch bf16 weights, per-image 0/1 tap matrices, and BN/bias
    constants in the order the fused kernel consumes them (after x and eps)."""
    vops = []

    def conv_taps(w):    # (Cout, Cin, K, K) -> (KK, Cout, Cin)
        w = np.asarray(w, np.float32)
        return np.transpose(w, (2, 3, 0, 1)).reshape(KK, w.shape[0], w.shape[1])

    def convT_taps(w):   # (Cin, Cout, K, K) -> (KK, Cout, Cin)
        w = np.asarray(w, np.float32)
        return np.transpose(w, (2, 3, 1, 0)).reshape(KK, w.shape[1], w.shape[0])

    def pack_w(w_tap, cout, cin, rp):
        # Wcat[b*cout + co, t*rp + b*cin + ci] = W_t[co, ci]  (zeros elsewhere / pad rows)
        wc = np.zeros((B * cout, KK * rp), np.float32)
        for t in range(KK):
            for b in range(B):
                wc[b * cout:(b + 1) * cout, t * rp + b * cin:t * rp + b * cin + cin] = w_tap[t]
        return jnp.asarray(wc, jnp.bfloat16)

    def bn_ops(gamma, beta, c):
        g = np.tile(np.asarray(gamma, np.float32).reshape(1, c), (B, 1)).reshape(B * c, 1)
        be = np.tile(np.asarray(beta, np.float32).reshape(1, c), (B, 1)).reshape(B * c, 1)
        return [jnp.asarray(g), jnp.asarray(be)]

    # encoder input conv (nc -> ngf), k4 s2 p1 on the raw image (im2col folded into M)
    rp0 = _round_up(B * NC, 8)
    vops.append(pack_w(conv_taps(params["enc_w0"]), NGF, NC, rp0))
    m, H = _conv_gather_taps(IMAGE_SIZE, K, 2, 1)
    vops.append(jnp.asarray(m, jnp.int8))          # big matrix: int8 halves DMA bytes

    cin = NGF
    for w, (g, be) in zip(params["enc_pyr"], params["enc_bn"]):
        cout = w.shape[0]
        vops.append(pack_w(conv_taps(w), cout, cin, B * cin))
        m, H = _conv_gather_taps(H, K, 2, 1)
        vops.append(jnp.asarray(m, jnp.bfloat16))
        vops.extend(bn_ops(g, be, cout))
        cin = cout

    cmid = cin
    # fused mu/logvar heads: Conv2d(cmid, nz, 4), valid, bias=True (conv1 & conv2 concat)
    wh = np.concatenate([np.asarray(params["conv1_w"]), np.asarray(params["conv2_w"])], axis=0)
    vops.append(pack_w(conv_taps(wh), 2 * NZ, cmid, B * cmid))
    m, Ho = _conv_gather_taps(H, K, 1, 0)
    assert Ho == 1
    vops.append(jnp.asarray(m, jnp.bfloat16))
    bh = np.concatenate([np.asarray(params["conv1_b"]), np.asarray(params["conv2_b"])])
    vops.append(jnp.asarray(np.tile(bh.reshape(1, 2 * NZ), (B, 1)).reshape(B * 2 * NZ, 1),
                            jnp.float32))

    # decoder input conv-transpose (nz -> cmid), k4 s1 p0 (1x1 -> 4x4)
    vops.append(pack_w(convT_taps(params["dec_w0"]), cmid, NZ, B * NZ))
    m, H = _convT_scatter_taps(1, K, 1, 0)
    vops.append(jnp.asarray(m, jnp.bfloat16))
    vops.extend(bn_ops(params["dec_bn0"][0], params["dec_bn0"][1], cmid))
    cin = cmid

    # decoder pyramid conv-transposes, k4 s2 p1
    for w, (g, be) in zip(params["dec_pyr"], params["dec_bn"]):
        cout = w.shape[1]
        vops.append(pack_w(convT_taps(w), cout, cin, B * cin))
        m, H = _convT_scatter_taps(H, K, 2, 1)
        vops.append(jnp.asarray(m, jnp.bfloat16))
        vops.extend(bn_ops(g, be, cout))
        cin = cout

    # output conv-transpose (ngf -> nc) + tanh; its big scatter matrix goes through
    # pl.ANY + in-kernel async DMA (overlapped with compute), shipped as int8.
    vops.append(pack_w(convT_taps(params["dec_wout"]), NC, NGF, B * NGF))
    mo, H = _convT_scatter_taps(H, K, 2, 1)
    assert H == IMAGE_SIZE
    mo = jnp.asarray(mo, jnp.int8)

    return tuple(vops), mo


@jax.jit
def netG_forward(vops, mo, x, eps):
    B = x.shape[0]
    hw = IMAGE_SIZE * IMAGE_SIZE
    xt = x.reshape(B * NC, hw).astype(jnp.float32)     # rows (b, c), cols (h, w)
    rp0 = _round_up(B * NC, 8)
    if rp0 != B * NC:
        xt = jnp.pad(xt, ((0, rp0 - B * NC), (0, 0)))  # sublane-align the input slab
    eps_r = eps.reshape(B * NZ, 1).astype(jnp.float32)

    operands = [xt, eps_r, *vops, mo]
    in_specs = ([pl.BlockSpec(memory_space=pltpu.MemorySpace.VMEM)] * (len(operands) - 1)
                + [pl.BlockSpec(memory_space=pl.ANY)])   # last operand stays in HBM

    out = pl.pallas_call(
        _make_netg_kernel(B, N_PYR),
        out_shape=jax.ShapeDtypeStruct((B * NC, hw), jnp.float32),
        in_specs=in_specs,
        out_specs=pl.BlockSpec(memory_space=pltpu.MemorySpace.VMEM),
        scratch_shapes=[pltpu.VMEM(tuple(mo.shape), jnp.int8),
                        pltpu.SemaphoreType.DMA],
        compiler_params=pltpu.CompilerParams(vmem_limit_bytes=32 * 1024 * 1024),
    )(*operands)

    # (B*NC, H*W) rows (b, c), cols (h, w)  ->  NCHW with a pure reshape (no transpose)
    return out.reshape(B, NC, IMAGE_SIZE, IMAGE_SIZE)


if __name__ == "__main__":
    key = jax.random.PRNGKey(0)
    k_param, k_x, k_eps = jax.random.split(key, 3)
    params = init_params(k_param)

    B = 2
    x = jax.random.normal(k_x, (B, NC, IMAGE_SIZE, IMAGE_SIZE), jnp.float32)
    # deterministic stand-in for torch.FloatTensor(std.size()).normal_()
    eps = jax.random.normal(k_eps, (B, NZ, 1, 1), jnp.float32)

    vops, mo = prepare_operands(params, B)
    out = netG_forward(vops, mo, x, eps)
    out = jax.block_until_ready(out)

    assert out.shape == (B, NC, IMAGE_SIZE, IMAGE_SIZE), out.shape
    assert bool(jnp.all(jnp.isfinite(out)))
    print("KERNEL_OK")
</pallas_src>

<mosaic_0001>
module attributes {stable_mosaic.version = 11 : i64} {
  func.func @kernel(%arg0: memref<8x256xf32, #tpu.memory_space<vmem>>, %arg1: memref<32x1xf32, #tpu.memory_space<vmem>>, %arg2: memref<16x128xbf16, #tpu.memory_space<vmem>>, %arg3: memref<16x256x64xi8, #tpu.memory_space<vmem>>, %arg4: memref<32x256xbf16, #tpu.memory_space<vmem>>, %arg5: memref<16x64x16xbf16, #tpu.memory_space<vmem>>, %arg6: memref<32x1xf32, #tpu.memory_space<vmem>>, %arg7: memref<32x1xf32, #tpu.memory_space<vmem>>, %arg8: memref<64x512xbf16, #tpu.memory_space<vmem>>, %arg9: memref<16x16x1xbf16, #tpu.memory_space<vmem>>, %arg10: memref<64x1xf32, #tpu.memory_space<vmem>>, %arg11: memref<32x512xbf16, #tpu.memory_space<vmem>>, %arg12: memref<16x1x16xbf16, #tpu.memory_space<vmem>>, %arg13: memref<32x1xf32, #tpu.memory_space<vmem>>, %arg14: memref<32x1xf32, #tpu.memory_space<vmem>>, %arg15: memref<16x512xbf16, #tpu.memory_space<vmem>>, %arg16: memref<16x16x64xbf16, #tpu.memory_space<vmem>>, %arg17: memref<16x1xf32, #tpu.memory_space<vmem>>, %arg18: memref<16x1xf32, #tpu.memory_space<vmem>>, %arg19: memref<6x256xbf16, #tpu.memory_space<vmem>>, %arg20: memref<16x64x256xi8, #tpu.memory_space<any>>, %arg21: memref<6x256xf32, #tpu.memory_space<vmem>>, %arg22: memref<16x64x256xi8, #tpu.memory_space<vmem>>, %arg23: memref<!tpu.dma_semaphore, #tpu.memory_space<semaphore_mem>>) attributes {dimension_semantics = [], scalar_prefetch = 0 : i64, scratch_operands = 2 : i64, tpu.core_type = #tpu.core_type<tc>} {
    tpu.enqueue_dma source(%arg20 : memref<16x64x256xi8, #tpu.memory_space<any>>) target(%arg22 : memref<16x64x256xi8, #tpu.memory_space<vmem>>) target_semaphore(%arg23 : memref<!tpu.dma_semaphore, #tpu.memory_space<semaphore_mem>>)
    %c0 = arith.constant 0 : index
    %c0_0 = arith.constant 0 : index
    %0 = vector.load %arg2[%c0, %c0_0] : memref<16x128xbf16, #tpu.memory_space<vmem>>, vector<16x128xbf16>
    %c0_1 = arith.constant 0 : index
    %c0_2 = arith.constant 0 : index
    %1 = vector.load %arg0[%c0_1, %c0_2] : memref<8x256xf32, #tpu.memory_space<vmem>>, vector<8x256xf32>
    %2 = arith.truncf %1 : vector<8x256xf32> to vector<8x256xbf16>
    %c0_3 = arith.constant 0 : index
    %c0_4 = arith.constant 0 : index
    %c0_5 = arith.constant 0 : index
    %3 = vector.load %arg3[%c0_3, %c0_4, %c0_5] : memref<16x256x64xi8, #tpu.memory_space<vmem>>, vector<1x256x64xi8>
    %4 = vector.shape_cast %3 : vector<1x256x64xi8> to vector<256x64xi8>
    %5 = arith.sitofp %4 : vector<256x64xi8> to vector<256x64xf32>
    %6 = arith.truncf %5 : vector<256x64xf32> to vector<256x64xbf16>
    %cst = arith.constant dense<0.000000e+00> : vector<8x64xf32>
    %7 = tpu.matmul %2, %6, %cst {dimension_numbers = #tpu.dot_dimension_numbers<[1], [0], [0], [1], [0, 0, 1, 1], [], []>} : vector<8x256xbf16>, vector<256x64xbf16>, vector<8x64xf32> -> vector<8x64xf32>
    %c1 = arith.constant 1 : index
    %c0_6 = arith.constant 0 : index
    %c0_7 = arith.constant 0 : index
    %8 = vector.load %arg3[%c1, %c0_6, %c0_7] : memref<16x256x64xi8, #tpu.memory_space<vmem>>, vector<1x256x64xi8>
    %9 = vector.shape_cast %8 : vector<1x256x64xi8> to vector<256x64xi8>
    %10 = arith.sitofp %9 : vector<256x64xi8> to vector<256x64xf32>
    %11 = arith.truncf %10 : vector<256x64xf32> to vector<256x64xbf16>
    %cst_8 = arith.constant dense<0.000000e+00> : vector<8x64xf32>
    %12 = tpu.matmul %2, %11, %cst_8 {dimension_numbers = #tpu.dot_dimension_numbers<[1], [0], [0], [1], [0, 0, 1, 1], [], []>} : vector<8x256xbf16>, vector<256x64xbf16>, vector<8x64xf32> -> vector<8x64xf32>
    %c2 = arith.constant 2 : index
    %c0_9 = arith.constant 0 : index
    %c0_10 = arith.constant 0 : index
    %13 = vector.load %arg3[%c2, %c0_9, %c0_10] : memref<16x256x64xi8, #tpu.memory_space<vmem>>, vector<1x256x64xi8>
    %14 = vector.shape_cast %13 : vector<1x256x64xi8> to vector<256x64xi8>
    %15 = arith.sitofp %14 : vector<256x64xi8> to vector<256x64xf32>
    %16 = arith.truncf %15 : vector<256x64xf32> to vector<256x64xbf16>
    %cst_11 = arith.constant dense<0.000000e+00> : vector<8x64xf32>
    %17 = tpu.matmul %2, %16, %cst_11 {dimension_numbers = #tpu.dot_dimension_numbers<[1], [0], [0], [1], [0, 0, 1, 1], [], []>} : vector<8x256xbf16>, vector<256x64xbf16>, vector<8x64xf32> -> vector<8x64xf32>
    %c3 = arith.constant 3 : index
    %c0_12 = arith.constant 0 : index
    %c0_13 = arith.constant 0 : index
    %18 = vector.load %arg3[%c3, %c0_12, %c0_13] : memref<16x256x64xi8, #tpu.memory_space<vmem>>, vector<1x256x64xi8>
    %19 = vector.shape_cast %18 : vector<1x256x64xi8> to vector<256x64xi8>
    %20 = arith.sitofp %19 : vector<256x64xi8> to vector<256x64xf32>
    %21 = arith.truncf %20 : vector<256x64xf32> to vector<256x64xbf16>
    %cst_14 = arith.constant dense<0.000000e+00> : vector<8x64xf32>
    %22 = tpu.matmul %2, %21, %cst_14 {dimension_numbers = #tpu.dot_dimension_numbers<[1], [0], [0], [1], [0, 0, 1, 1], [], []>} : vector<8x256xbf16>, vector<256x64xbf16>, vector<8x64xf32> -> vector<8x64xf32>
    %c4 = arith.constant 4 : index
    %c0_15 = arith.constant 0 : index
    %c0_16 = arith.constant 0 : index
    %23 = vector.load %arg3[%c4, %c0_15, %c0_16] : memref<16x256x64xi8, #tpu.memory_space<vmem>>, vector<1x256x64xi8>
    %24 = vector.shape_cast %23 : vector<1x256x64xi8> to vector<256x64xi8>
    %25 = arith.sitofp %24 : vector<256x64xi8> to vector<256x64xf32>
    %26 = arith.truncf %25 : vector<256x64xf32> to vector<256x64xbf16>
    %cst_17 = arith.constant dense<0.000000e+00> : vector<8x64xf32>
    %27 = tpu.matmul %2, %26, %cst_17 {dimension_numbers = #tpu.dot_dimension_numbers<[1], [0], [0], [1], [0, 0, 1, 1], [], []>} : vector<8x256xbf16>, vector<256x64xbf16>, vector<8x64xf32> -> vector<8x64xf32>
    %c5 = arith.constant 5 : index
    %c0_18 = arith.constant 0 : index
    %c0_19 = arith.constant 0 : index
    %28 = vector.load %arg3[%c5, %c0_18, %c0_19] : memref<16x256x64xi8, #tpu.memory_space<vmem>>, vector<1x256x64xi8>
    %29 = vector.shape_cast %28 : vector<1x256x64xi8> to vector<256x64xi8>
    %30 = arith.sitofp %29 : vector<256x64xi8> to vector<256x64xf32>
    %31 = arith.truncf %30 : vector<256x64xf32> to vector<256x64xbf16>
    %cst_20 = arith.constant dense<0.000000e+00> : vector<8x64xf32>
    %32 = tpu.matmul %2, %31, %cst_20 {dimension_numbers = #tpu.dot_dimension_numbers<[1], [0], [0], [1], [0, 0, 1, 1], [], []>} : vector<8x256xbf16>, vector<256x64xbf16>, vector<8x64xf32> -> vector<8x64xf32>
    %c6 = arith.constant 6 : index
    %c0_21 = arith.constant 0 : index
    %c0_22 = arith.constant 0 : index
    %33 = vector.load %arg3[%c6, %c0_21, %c0_22] : memref<16x256x64xi8, #tpu.memory_space<vmem>>, vector<1x256x64xi8>
    %34 = vector.shape_cast %33 : vector<1x256x64xi8> to vector<256x64xi8>
    %35 = arith.sitofp %34 : vector<256x64xi8> to vector<256x64xf32>
    %36 = arith.truncf %35 : vector<256x64xf32> to vector<256x64xbf16>
    %cst_23 = arith.constant dense<0.000000e+00> : vector<8x64xf32>
    %37 = tpu.matmul %2, %36, %cst_23 {dimension_numbers = #tpu.dot_dimension_numbers<[1], [0], [0], [1], [0, 0, 1, 1], [], []>} : vector<8x256xbf16>, vector<256x64xbf16>, vector<8x64xf32> -> vector<8x64xf32>
    %c7 = arith.constant 7 : index
    %c0_24 = arith.constant 0 : index
    %c0_25 = arith.constant 0 : index
    %38 = vector.load %arg3[%c7, %c0_24, %c0_25] : memref<16x256x64xi8, #tpu.memory_space<vmem>>, vector<1x256x64xi8>
    %39 = vector.shape_cast %38 : vector<1x256x64xi8> to vector<256x64xi8>
    %40 = arith.sitofp %39 : vector<256x64xi8> to vector<256x64xf32>
    %41 = arith.truncf %40 : vector<256x64xf32> to vector<256x64xbf16>
    %cst_26 = arith.constant dense<0.000000e+00> : vector<8x64xf32>
    %42 = tpu.matmul %2, %41, %cst_26 {dimension_numbers = #tpu.dot_dimension_numbers<[1], [0], [0], [1], [0, 0, 1, 1], [], []>} : vector<8x256xbf16>, vector<256x64xbf16>, vector<8x64xf32> -> vector<8x64xf32>
    %c8 = arith.constant 8 : index
    %c0_27 = arith.constant 0 : index
    %c0_28 = arith.constant 0 : index
    %43 = vector.load %arg3[%c8, %c0_27, %c0_28] : memref<16x256x64xi8, #tpu.memory_space<vmem>>, vector<1x256x64xi8>
    %44 = vector.shape_cast %43 : vector<1x256x64xi8> to vector<256x64xi8>
    %45 = arith.sitofp %44 : vector<256x64xi8> to vector<256x64xf32>
    %46 = arith.truncf %45 : vector<256x64xf32> to vector<256x64xbf16>
    %cst_29 = arith.constant dense<0.000000e+00> : vector<8x64xf32>
    %47 = tpu.matmul %2, %46, %cst_29 {dimension_numbers = #tpu.dot_dimension_numbers<[1], [0], [0], [1], [0, 0, 1, 1], [], []>} : vector<8x256xbf16>, vector<256x64xbf16>, vector<8x64xf32> -> vector<8x64xf32>
    %c9 = arith.constant 9 : index
    %c0_30 = arith.constant 0 : index
    %c0_31 = arith.constant 0 : index
    %48 = vector.load %arg3[%c9, %c0_30, %c0_31] : memref<16x256x64xi8, #tpu.memory_space<vmem>>, vector<1x256x64xi8>
    %49 = vector.shape_cast %48 : vector<1x256x64xi8> to vector<256x64xi8>
    %50 = arith.sitofp %49 : vector<256x64xi8> to vector<256x64xf32>
    %51 = arith.truncf %50 : vector<256x64xf32> to vector<256x64xbf16>
    %cst_32 = arith.constant dense<0.000000e+00> : vector<8x64xf32>
    %52 = tpu.matmul %2, %51, %cst_32 {dimension_numbers = #tpu.dot_dimension_numbers<[1], [0], [0], [1], [0, 0, 1, 1], [], []>} : vector<8x256xbf16>, vector<256x64xbf16>, vector<8x64xf32> -> vector<8x64xf32>
    %c10 = arith.constant 10 : index
    %c0_33 = arith.constant 0 : index
    %c0_34 = arith.constant 0 : index
    %53 = vector.load %arg3[%c10, %c0_33, %c0_34] : memref<16x256x64xi8, #tpu.memory_space<vmem>>, vector<1x256x64xi8>
    %54 = vector.shape_cast %53 : vector<1x256x64xi8> to vector<256x64xi8>
    %55 = arith.sitofp %54 : vector<256x64xi8> to vector<256x64xf32>
    %56 = arith.truncf %55 : vector<256x64xf32> to vector<256x64xbf16>
    %cst_35 = arith.constant dense<0.000000e+00> : vector<8x64xf32>
    %57 = tpu.matmul %2, %56, %cst_35 {dimension_numbers = #tpu.dot_dimension_numbers<[1], [0], [0], [1], [0, 0, 1, 1], [], []>} : vector<8x256xbf16>, vector<256x64xbf16>, vector<8x64xf32> -> vector<8x64xf32>
    %c11 = arith.constant 11 : index
    %c0_36 = arith.constant 0 : index
    %c0_37 = arith.constant 0 : index
    %58 = vector.load %arg3[%c11, %c0_36, %c0_37] : memref<16x256x64xi8, #tpu.memory_space<vmem>>, vector<1x256x64xi8>
    %59 = vector.shape_cast %58 : vector<1x256x64xi8> to vector<256x64xi8>
    %60 = arith.sitofp %59 : vector<256x64xi8> to vector<256x64xf32>
    %61 = arith.truncf %60 : vector<256x64xf32> to vector<256x64xbf16>
    %cst_38 = arith.constant dense<0.000000e+00> : vector<8x64xf32>
    %62 = tpu.matmul %2, %61, %cst_38 {dimension_numbers = #tpu.dot_dimension_numbers<[1], [0], [0], [1], [0, 0, 1, 1], [], []>} : vector<8x256xbf16>, vector<256x64xbf16>, vector<8x64xf32> -> vector<8x64xf32>
    %c12 = arith.constant 12 : index
    %c0_39 = arith.constant 0 : index
    %c0_40 = arith.constant 0 : index
    %63 = vector.load %arg3[%c12, %c0_39, %c0_40] : memref<16x256x64xi8, #tpu.memory_space<vmem>>, vector<1x256x64xi8>
    %64 = vector.shape_cast %63 : vector<1x256x64xi8> to vector<256x64xi8>
    %65 = arith.sitofp %64 : vector<256x64xi8> to vector<256x64xf32>
    %66 = arith.truncf %65 : vector<256x64xf32> to vector<256x64xbf16>
    %cst_41 = arith.constant dense<0.000000e+00> : vector<8x64xf32>
    %67 = tpu.matmul %2, %66, %cst_41 {dimension_numbers = #tpu.dot_dimension_numbers<[1], [0], [0], [1], [0, 0, 1, 1], [], []>} : vector<8x256xbf16>, vector<256x64xbf16>, vector<8x64xf32> -> vector<8x64xf32>
    %c13 = arith.constant 13 : index
    %c0_42 = arith.constant 0 : index
    %c0_43 = arith.constant 0 : index
    %68 = vector.load %arg3[%c13, %c0_42, %c0_43] : memref<16x256x64xi8, #tpu.memory_space<vmem>>, vector<1x256x64xi8>
    %69 = vector.shape_cast %68 : vector<1x256x64xi8> to vector<256x64xi8>
    %70 = arith.sitofp %69 : vector<256x64xi8> to vector<256x64xf32>
    %71 = arith.truncf %70 : vector<256x64xf32> to vector<256x64xbf16>
    %cst_44 = arith.constant dense<0.000000e+00> : vector<8x64xf32>
    %72 = tpu.matmul %2, %71, %cst_44 {dimension_numbers = #tpu.dot_dimension_numbers<[1], [0], [0], [1], [0, 0, 1, 1], [], []>} : vector<8x256xbf16>, vector<256x64xbf16>, vector<8x64xf32> -> vector<8x64xf32>
    %c14 = arith.constant 14 : index
    %c0_45 = arith.constant 0 : index
    %c0_46 = arith.constant 0 : index
    %73 = vector.load %arg3[%c14, %c0_45, %c0_46] : memref<16x256x64xi8, #tpu.memory_space<vmem>>, vector<1x256x64xi8>
    %74 = vector.shape_cast %73 : vector<1x256x64xi8> to vector<256x64xi8>
    %75 = arith.sitofp %74 : vector<256x64xi8> to vector<256x64xf32>
    %76 = arith.truncf %75 : vector<256x64xf32> to vector<256x64xbf16>
    %cst_47 = arith.constant dense<0.000000e+00> : vector<8x64xf32>
    %77 = tpu.matmul %2, %76, %cst_47 {dimension_numbers = #tpu.dot_dimension_numbers<[1], [0], [0], [1], [0, 0, 1, 1], [], []>} : vector<8x256xbf16>, vector<256x64xbf16>, vector<8x64xf32> -> vector<8x64xf32>
    %c15 = arith.constant 15 : index
    %c0_48 = arith.constant 0 : index
    %c0_49 = arith.constant 0 : index
    %78 = vector.load %arg3[%c15, %c0_48, %c0_49] : memref<16x256x64xi8, #tpu.memory_space<vmem>>, vector<1x256x64xi8>
    %79 = vector.shape_cast %78 : vector<1x256x64xi8> to vector<256x64xi8>
    %80 = arith.sitofp %79 : vector<256x64xi8> to vector<256x64xf32>
    %81 = arith.truncf %80 : vector<256x64xf32> to vector<256x64xbf16>
    %cst_50 = arith.constant dense<0.000000e+00> : vector<8x64xf32>
    %82 = tpu.matmul %2, %81, %cst_50 {dimension_numbers = #tpu.dot_dimension_numbers<[1], [0], [0], [1], [0, 0, 1, 1], [], []>} : vector<8x256xbf16>, vector<256x64xbf16>, vector<8x64xf32> -> vector<8x64xf32>
    %83 = tpu.concatenate %7, %12, %17, %22, %27, %32, %37, %42, %47, %52, %57, %62, %67, %72, %77, %82 in 0 : vector<8x64xf32>, vector<8x64xf32>, vector<8x64xf32>, vector<8x64xf32>, vector<8x64xf32>, vector<8x64xf32>, vector<8x64xf32>, vector<8x64xf32>, vector<8x64xf32>, vector<8x64xf32>, vector<8x64xf32>, vector<8x64xf32>, vector<8x64xf32>, vector<8x64xf32>, vector<8x64xf32>, vector<8x64xf32> -> vector<128x64xf32>
    %84 = arith.truncf %83 : vector<128x64xf32> to vector<128x64xbf16>
    %cst_51 = arith.constant dense<0.000000e+00> : vector<16x64xf32>
    %85 = tpu.matmul %0, %84, %cst_51 {dimension_numbers = #tpu.dot_dimension_numbers<[1], [0], [0], [1], [0, 0, 1, 1], [], []>} : vector<16x128xbf16>, vector<128x64xbf16>, vector<16x64xf32> -> vector<16x64xf32>
    %cst_52 = arith.constant 0.000000e+00 : f32
    %86 = vector.broadcast %cst_52 : f32 to vector<16x64xf32>
    %87 = arith.cmpf oge, %85, %86 : vector<16x64xf32>
    %cst_53 = arith.constant 2.000000e-01 : f32
    %88 = vector.broadcast %cst_53 : f32 to vector<16x64xf32>
    %89 = arith.mulf %88, %85 : vector<16x64xf32>
    %90 = arith.select %87, %85, %89 : vector<16x64xi1>, vector<16x64xf32>
    %c0_54 = arith.constant 0 : index
    %c0_55 = arith.constant 0 : index
    %91 = vector.load %arg4[%c0_54, %c0_55] : memref<32x256xbf16, #tpu.memory_space<vmem>>, vector<32x256xbf16>
    %c0_56 = arith.constant 0 : index
    %c0_57 = arith.constant 0 : index
    %92 = vector.load %arg6[%c0_56, %c0_57] : memref<32x1xf32, #tpu.memory_space<vmem>>, vector<32x1xf32>
    %c0_58 = arith.constant 0 : index
    %c0_59 = arith.constant 0 : index
    %93 = vector.load %arg7[%c0_58, %c0_59] : memref<32x1xf32, #tpu.memory_space<vmem>>, vector<32x1xf32>
    %94 = arith.truncf %90 : vector<16x64xf32> to vector<16x64xbf16>
    %c0_60 = arith.constant 0 : index
    %c0_61 = arith.constant 0 : index
    %c0_62 = arith.constant 0 : index
    %95 = vector.load %arg5[%c0_60, %c0_61, %c0_62] : memref<16x64x16xbf16, #tpu.memory_space<vmem>>, vector<1x64x16xbf16>
    %96 = vector.shape_cast %95 : vector<1x64x16xbf16> to vector<64x16xbf16>
    %cst_63 = arith.constant dense<0.000000e+00> : vector<16x16xf32>
    %97 = tpu.matmul %94, %96, %cst_63 {dimension_numbers = #tpu.dot_dimension_numbers<[1], [0], [0], [1], [0, 0, 1, 1], [], []>} : vector<16x64xbf16>, vector<64x16xbf16>, vector<16x16xf32> -> vector<16x16xf32>
    %c1_64 = arith.constant 1 : index
    %c0_65 = arith.constant 0 : index
    %c0_66 = arith.constant 0 : index
    %98 = vector.load %arg5[%c1_64, %c0_65, %c0_66] : memref<16x64x16xbf16, #tpu.memory_space<vmem>>, vector<1x64x16xbf16>
    %99 = vector.shape_cast %98 : vector<1x64x16xbf16> to vector<64x16xbf16>
    %cst_67 = arith.constant dense<0.000000e+00> : vector<16x16xf32>
    %100 = tpu.matmul %94, %99, %cst_67 {dimension_numbers = #tpu.dot_dimension_numbers<[1], [0], [0], [1], [0, 0, 1, 1], [], []>} : vector<16x64xbf16>, vector<64x16xbf16>, vector<16x16xf32> -> vector<16x16xf32>
    %c2_68 = arith.constant 2 : index
    %c0_69 = arith.constant 0 : index
    %c0_70 = arith.constant 0 : index
    %101 = vector.load %arg5[%c2_68, %c0_69, %c0_70] : memref<16x64x16xbf16, #tpu.memory_space<vmem>>, vector<1x64x16xbf16>
    %102 = vector.shape_cast %101 : vector<1x64x16xbf16> to vector<64x16xbf16>
    %cst_71 = arith.constant dense<0.000000e+00> : vector<16x16xf32>
    %103 = tpu.matmul %94, %102, %cst_71 {dimension_numbers = #tpu.dot_dimension_numbers<[1], [0], [0], [1], [0, 0, 1, 1], [], []>} : vector<16x64xbf16>, vector<64x16xbf16>, vector<16x16xf32> -> vector<16x16xf32>
    %c3_72 = arith.constant 3 : index
    %c0_73 = arith.constant 0 : index
    %c0_74 = arith.constant 0 : index
    %104 = vector.load %arg5[%c3_72, %c0_73, %c0_74] : memref<16x64x16xbf16, #tpu.memory_space<vmem>>, vector<1x64x16xbf16>
    %105 = vector.shape_cast %104 : vector<1x64x16xbf16> to vector<64x16xbf16>
    %cst_75 = arith.constant dense<0.000000e+00> : vector<16x16xf32>
    %106 = tpu.matmul %94, %105, %cst_75 {dimension_numbers = #tpu.dot_dimension_numbers<[1], [0], [0], [1], [0, 0, 1, 1], [], []>} : vector<16x64xbf16>, vector<64x16xbf16>, vector<16x16xf32> -> vector<16x16xf32>
    %c4_76 = arith.constant 4 : index
    %c0_77 = arith.constant 0 : index
    %c0_78 = arith.constant 0 : index
    %107 = vector.load %arg5[%c4_76, %c0_77, %c0_78] : memref<16x64x16xbf16, #tpu.memory_space<vmem>>, vector<1x64x16xbf16>
    %108 = vector.shape_cast %107 : vector<1x64x16xbf16> to vector<64x16xbf16>
    %cst_79 = arith.constant dense<0.000000e+00> : vector<16x16xf32>
    %109 = tpu.matmul %94, %108, %cst_79 {dimension_numbers = #tpu.dot_dimension_numbers<[1], [0], [0], [1], [0, 0, 1, 1], [], []>} : vector<16x64xbf16>, vector<64x16xbf16>, vector<16x16xf32> -> vector<16x16xf32>
    %c5_80 = arith.constant 5 : index
    %c0_81 = arith.constant 0 : index
    %c0_82 = arith.constant 0 : index
    %110 = vector.load %arg5[%c5_80, %c0_81, %c0_82] : memref<16x64x16xbf16, #tpu.memory_space<vmem>>, vector<1x64x16xbf16>
    %111 = vector.shape_cast %110 : vector<1x64x16xbf16> to vector<64x16xbf16>
    %cst_83 = arith.constant dense<0.000000e+00> : vector<16x16xf32>
    %112 = tpu.matmul %94, %111, %cst_83 {dimension_numbers = #tpu.dot_dimension_numbers<[1], [0], [0], [1], [0, 0, 1, 1], [], []>} : vector<16x64xbf16>, vector<64x16xbf16>, vector<16x16xf32> -> vector<16x16xf32>
    %c6_84 = arith.constant 6 : index
    %c0_85 = arith.constant 0 : index
    %c0_86 = arith.constant 0 : index
    %113 = vector.load %arg5[%c6_84, %c0_85, %c0_86] : memref<16x64x16xbf16, #tpu.memory_space<vmem>>, vector<1x64x16xbf16>
    %114 = vector.shape_cast %113 : vector<1x64x16xbf16> to vector<64x16xbf16>
    %cst_87 = arith.constant dense<0.000000e+00> : vector<16x16xf32>
    %115 = tpu.matmul %94, %114, %cst_87 {dimension_numbers = #tpu.dot_dimension_numbers<[1], [0], [0], [1], [0, 0, 1, 1], [], []>} : vector<16x64xbf16>, vector<64x16xbf16>, vector<16x16xf32> -> vector<16x16xf32>
    %c7_88 = arith.constant 7 : index
    %c0_89 = arith.constant 0 : index
    %c0_90 = arith.constant 0 : index
    %116 = vector.load %arg5[%c7_88, %c0_89, %c0_90] : memref<16x64x16xbf16, #tpu.memory_space<vmem>>, vector<1x64x16xbf16>
    %117 = vector.shape_cast %116 : vector<1x64x16xbf16> to vector<64x16xbf16>
    %cst_91 = arith.constant dense<0.000000e+00> : vector<16x16xf32>
    %118 = tpu.matmul %94, %117, %cst_91 {dimension_numbers = #tpu.dot_dimension_numbers<[1], [0], [0], [1], [0, 0, 1, 1], [], []>} : vector<16x64xbf16>, vector<64x16xbf16>, vector<16x16xf32> -> vector<16x16xf32>
    %c8_92 = arith.constant 8 : index
    %c0_93 = arith.constant 0 : index
    %c0_94 = arith.constant 0 : index
    %119 = vector.load %arg5[%c8_92, %c0_93, %c0_94] : memref<16x64x16xbf16, #tpu.memory_space<vmem>>, vector<1x64x16xbf16>
    %120 = vector.shape_cast %119 : vector<1x64x16xbf16> to vector<64x16xbf16>
    %cst_95 = arith.constant dense<0.000000e+00> : vector<16x16xf32>
    %121 = tpu.matmul %94, %120, %cst_95 {dimension_numbers = #tpu.dot_dimension_numbers<[1], [0], [0], [1], [0, 0, 1, 1], [], []>} : vector<16x64xbf16>, vector<64x16xbf16>, vector<16x16xf32> -> vector<16x16xf32>
    %c9_96 = arith.constant 9 : index
    %c0_97 = arith.constant 0 : index
    %c0_98 = arith.constant 0 : index
    %122 = vector.load %arg5[%c9_96, %c0_97, %c0_98] : memref<16x64x16xbf16, #tpu.memory_space<vmem>>, vector<1x64x16xbf16>
    %123 = vector.shape_cast %122 : vector<1x64x16xbf16> to vector<64x16xbf16>
    %cst_99 = arith.constant dense<0.000000e+00> : vector<16x16xf32>
    %124 = tpu.matmul %94, %123, %cst_99 {dimension_numbers = #tpu.dot_dimension_numbers<[1], [0], [0], [1], [0, 0, 1, 1], [], []>} : vector<16x64xbf16>, vector<64x16xbf16>, vector<16x16xf32> -> vector<16x16xf32>
    %c10_100 = arith.constant 10 : index
    %c0_101 = arith.constant 0 : index
    %c0_102 = arith.constant 0 : index
    %125 = vector.load %arg5[%c10_100, %c0_101, %c0_102] : memref<16x64x16xbf16, #tpu.memory_space<vmem>>, vector<1x64x16xbf16>
    %126 = vector.shape_cast %125 : vector<1x64x16xbf16> to vector<64x16xbf16>
    %cst_103 = arith.constant dense<0.000000e+00> : vector<16x16xf32>
    %127 = tpu.matmul %94, %126, %cst_103 {dimension_numbers = #tpu.dot_dimension_numbers<[1], [0], [0], [1], [0, 0, 1, 1], [], []>} : vector<16x64xbf16>, vector<64x16xbf16>, vector<16x16xf32> -> vector<16x16xf32>
    %c11_104 = arith.constant 11 : index
    %c0_105 = arith.constant 0 : index
    %c0_106 = arith.constant 0 : index
    %128 = vector.load %arg5[%c11_104, %c0_105, %c0_106] : memref<16x64x16xbf16, #tpu.memory_space<vmem>>, vector<1x64x16xbf16>
    %129 = vector.shape_cast %128 : vector<1x64x16xbf16> to vector<64x16xbf16>
    %cst_107 = arith.constant dense<0.000000e+00> : vector<16x16xf32>
    %130 = tpu.matmul %94, %129, %cst_107 {dimension_numbers = #tpu.dot_dimension_numbers<[1], [0], [0], [1], [0, 0, 1, 1], [], []>} : vector<16x64xbf16>, vector<64x16xbf16>, vector<16x16xf32> -> vector<16x16xf32>
    %c12_108 = arith.constant 12 : index
    %c0_109 = arith.constant 0 : index
    %c0_110 = arith.constant 0 : index
    %131 = vector.load %arg5[%c12_108, %c0_109, %c0_110] : memref<16x64x16xbf16, #tpu.memory_space<vmem>>, vector<1x64x16xbf16>
    %132 = vector.shape_cast %131 : vector<1x64x16xbf16> to vector<64x16xbf16>
    %cst_111 = arith.constant dense<0.000000e+00> : vector<16x16xf32>
    %133 = tpu.matmul %94, %132, %cst_111 {dimension_numbers = #tpu.dot_dimension_numbers<[1], [0], [0], [1], [0, 0, 1, 1], [], []>} : vector<16x64xbf16>, vector<64x16xbf16>, vector<16x16xf32> -> vector<16x16xf32>
    %c13_112 = arith.constant 13 : index
    %c0_113 = arith.constant 0 : index
    %c0_114 = arith.constant 0 : index
    %134 = vector.load %arg5[%c13_112, %c0_113, %c0_114] : memref<16x64x16xbf16, #tpu.memory_space<vmem>>, vector<1x64x16xbf16>
    %135 = vector.shape_cast %134 : vector<1x64x16xbf16> to vector<64x16xbf16>
    %cst_115 = arith.constant dense<0.000000e+00> : vector<16x16xf32>
    %136 = tpu.matmul %94, %135, %cst_115 {dimension_numbers = #tpu.dot_dimension_numbers<[1], [0], [0], [1], [0, 0, 1, 1], [], []>} : vector<16x64xbf16>, vector<64x16xbf16>, vector<16x16xf32> -> vector<16x16xf32>
    %c14_116 = arith.constant 14 : index
    %c0_117 = arith.constant 0 : index
    %c0_118 = arith.constant 0 : index
    %137 = vector.load %arg5[%c14_116, %c0_117, %c0_118] : memref<16x64x16xbf16, #tpu.memory_space<vmem>>, vector<1x64x16xbf16>
    %138 = vector.shape_cast %137 : vector<1x64x16xbf16> to vector<64x16xbf16>
    %cst_119 = arith.constant dense<0.000000e+00> : vector<16x16xf32>
    %139 = tpu.matmul %94, %138, %cst_119 {dimension_numbers = #tpu.dot_dimension_numbers<[1], [0], [0], [1], [0, 0, 1, 1], [], []>} : vector<16x64xbf16>, vector<64x16xbf16>, vector<16x16xf32> -> vector<16x16xf32>
    %c15_120 = arith.constant 15 : index
    %c0_121 = arith.constant 0 : index
    %c0_122 = arith.constant 0 : index
    %140 = vector.load %arg5[%c15_120, %c0_121, %c0_122] : memref<16x64x16xbf16, #tpu.memory_space<vmem>>, vector<1x64x16xbf16>
    %141 = vector.shape_cast %140 : vector<1x64x16xbf16> to vector<64x16xbf16>
    %cst_123 = arith.constant dense<0.000000e+00> : vector<16x16xf32>
    %142 = tpu.matmul %94, %141, %cst_123 {dimension_numbers = #tpu.dot_dimension_numbers<[1], [0], [0], [1], [0, 0, 1, 1], [], []>} : vector<16x64xbf16>, vector<64x16xbf16>, vector<16x16xf32> -> vector<16x16xf32>
    %143 = tpu.concatenate %97, %100, %103, %106, %109, %112, %115, %118, %121, %124, %127, %130, %133, %136, %139, %142 in 0 : vector<16x16xf32>, vector<16x16xf32>, vector<16x16xf32>, vector<16x16xf32>, vector<16x16xf32>, vector<16x16xf32>, vector<16x16xf32>, vector<16x16xf32>, vector<16x16xf32>, vector<16x16xf32>, vector<16x16xf32>, vector<16x16xf32>, vector<16x16xf32>, vector<16x16xf32>, vector<16x16xf32>, vector<16x16xf32> -> vector<256x16xf32>
    %144 = arith.truncf %143 : vector<256x16xf32> to vector<256x16xbf16>
    %cst_124 = arith.constant dense<0.000000e+00> : vector<32x16xf32>
    %145 = tpu.matmul %91, %144, %cst_124 {dimension_numbers = #tpu.dot_dimension_numbers<[1], [0], [0], [1], [0, 0, 1, 1], [], []>} : vector<32x256xbf16>, vector<256x16xbf16>, vector<32x16xf32> -> vector<32x16xf32>
    %cst_125 = arith.constant dense<0.000000e+00> : vector<32xf32>
    %146 = vector.multi_reduction <add>, %145, %cst_125 [1] : vector<32x16xf32> to vector<32xf32>
    %147 = vector.shape_cast %146 : vector<32xf32> to vector<32x1xf32>
    %148 = vector.extract_strided_slice %147 {offsets = [0, 0], sizes = [16, 1], strides = [1, 1]} : vector<32x1xf32> to vector<16x1xf32>
    %149 = vector.extract_strided_slice %147 {offsets = [16, 0], sizes = [16, 1], strides = [1, 1]} : vector<32x1xf32> to vector<16x1xf32>
    %150 = arith.addf %148, %149 : vector<16x1xf32>
    %cst_126 = arith.constant 3.125000e-02 : f32
    %151 = vector.broadcast %cst_126 : f32 to vector<16x1xf32>
    %152 = arith.mulf %150, %151 : vector<16x1xf32>
    %153 = tpu.concatenate %152, %152 in 0 : vector<16x1xf32>, vector<16x1xf32> -> vector<32x1xf32>
    %154 = vector.broadcast %153 : vector<32x1xf32> to vector<32x16xf32>
    %155 = arith.subf %145, %154 : vector<32x16xf32>
    %156 = arith.mulf %155, %155 : vector<32x16xf32>
    %cst_127 = arith.constant dense<0.000000e+00> : vector<32xf32>
    %157 = vector.multi_reduction <add>, %156, %cst_127 [1] : vector<32x16xf32> to vector<32xf32>
    %158 = vector.shape_cast %157 : vector<32xf32> to vector<32x1xf32>
    %159 = vector.extract_strided_slice %158 {offsets = [0, 0], sizes = [16, 1], strides = [1, 1]} : vector<32x1xf32> to vector<16x1xf32>
    %160 = vector.extract_strided_slice %158 {offsets = [16, 0], sizes = [16, 1], strides = [1, 1]} : vector<32x1xf32> to vector<16x1xf32>
    %161 = arith.addf %159, %160 : vector<16x1xf32>
    %cst_128 = arith.constant 3.125000e-02 : f32
    %162 = vector.broadcast %cst_128 : f32 to vector<16x1xf32>
    %163 = arith.mulf %161, %162 : vector<16x1xf32>
    %164 = tpu.concatenate %163, %163 in 0 : vector<16x1xf32>, vector<16x1xf32> -> vector<32x1xf32>
    %cst_129 = arith.constant 9.99999974E-6 : f32
    %165 = vector.broadcast %cst_129 : f32 to vector<32x1xf32>
    %166 = arith.addf %164, %165 : vector<32x1xf32>
    %167 = math.rsqrt %166 : vector<32x1xf32>
    %168 = vector.broadcast %167 : vector<32x1xf32> to vector<32x16xf32>
    %169 = arith.mulf %155, %168 : vector<32x16xf32>
    %170 = vector.broadcast %92 : vector<32x1xf32> to vector<32x16xf32>
    %171 = arith.mulf %169, %170 : vector<32x16xf32>
    %172 = vector.broadcast %93 : vector<32x1xf32> to vector<32x16xf32>
    %173 = arith.addf %171, %172 : vector<32x16xf32>
    %cst_130 = arith.constant 0.000000e+00 : f32
    %174 = vector.broadcast %cst_130 : f32 to vector<32x16xf32>
    %175 = arith.cmpf oge, %173, %174 : vector<32x16xf32>
    %cst_131 = arith.constant 2.000000e-01 : f32
    %176 = vector.broadcast %cst_131 : f32 to vector<32x16xf32>
    %177 = arith.mulf %176, %173 : vector<32x16xf32>
    %178 = arith.select %175, %173, %177 : vector<32x16xi1>, vector<32x16xf32>
    %c0_132 = arith.constant 0 : index
    %c0_133 = arith.constant 0 : index
    %179 = vector.load %arg8[%c0_132, %c0_133] : memref<64x512xbf16, #tpu.memory_space<vmem>>, vector<64x512xbf16>
    %c0_134 = arith.constant 0 : index
    %c0_135 = arith.constant 0 : index
    %180 = vector.load %arg10[%c0_134, %c0_135] : memref<64x1xf32, #tpu.memory_space<vmem>>, vector<64x1xf32>
    %181 = arith.truncf %178 : vector<32x16xf32> to vector<32x16xbf16>
    %c0_136 = arith.constant 0 : index
    %c0_137 = arith.constant 0 : index
    %c0_138 = arith.constant 0 : index
    %182 = vector.load %arg9[%c0_136, %c0_137, %c0_138] : memref<16x16x1xbf16, #tpu.memory_space<vmem>>, vector<1x16x1xbf16>
    %183 = vector.shape_cast %182 : vector<1x16x1xbf16> to vector<16x1xbf16>
    %cst_139 = arith.constant dense<0.000000e+00> : vector<32x1xf32>
    %184 = tpu.matmul %181, %183, %cst_139 {dimension_numbers = #tpu.dot_dimension_numbers<[1], [0], [0], [1], [0, 0, 1, 1], [], []>} : vector<32x16xbf16>, vector<16x1xbf16>, vector<32x1xf32> -> vector<32x1xf32>
    %c1_140 = arith.constant 1 : index
    %c0_141 = arith.constant 0 : index
    %c0_142 = arith.constant 0 : index
    %185 = vector.load %arg9[%c1_140, %c0_141, %c0_142] : memref<16x16x1xbf16, #tpu.memory_space<vmem>>, vector<1x16x1xbf16>
    %186 = vector.shape_cast %185 : vector<1x16x1xbf16> to vector<16x1xbf16>
    %cst_143 = arith.constant dense<0.000000e+00> : vector<32x1xf32>
    %187 = tpu.matmul %181, %186, %cst_143 {dimension_numbers = #tpu.dot_dimension_numbers<[1], [0], [0], [1], [0, 0, 1, 1], [], []>} : vector<32x16xbf16>, vector<16x1xbf16>, vector<32x1xf32> -> vector<32x1xf32>
    %c2_144 = arith.constant 2 : index
    %c0_145 = arith.constant 0 : index
    %c0_146 = arith.constant 0 : index
    %188 = vector.load %arg9[%c2_144, %c0_145, %c0_146] : memref<16x16x1xbf16, #tpu.memory_space<vmem>>, vector<1x16x1xbf16>
    %189 = vector.shape_cast %188 : vector<1x16x1xbf16> to vector<16x1xbf16>
    %cst_147 = arith.constant dense<0.000000e+00> : vector<32x1xf32>
    %190 = tpu.matmul %181, %189, %cst_147 {dimension_numbers = #tpu.dot_dimension_numbers<[1], [0], [0], [1], [0, 0, 1, 1], [], []>} : vector<32x16xbf16>, vector<16x1xbf16>, vector<32x1xf32> -> vector<32x1xf32>
    %c3_148 = arith.constant 3 : index
    %c0_149 = arith.constant 0 : index
    %c0_150 = arith.constant 0 : index
    %191 = vector.load %arg9[%c3_148, %c0_149, %c0_150] : memref<16x16x1xbf16, #tpu.memory_space<vmem>>, vector<1x16x1xbf16>
    %192 = vector.shape_cast %191 : vector<1x16x1xbf16> to vector<16x1xbf16>
    %cst_151 = arith.constant dense<0.000000e+00> : vector<32x1xf32>
    %193 = tpu.matmul %181, %192, %cst_151 {dimension_numbers = #tpu.dot_dimension_numbers<[1], [0], [0], [1], [0, 0, 1, 1], [], []>} : vector<32x16xbf16>, vector<16x1xbf16>, vector<32x1xf32> -> vector<32x1xf32>
    %c4_152 = arith.constant 4 : index
    %c0_153 = arith.constant 0 : index
    %c0_154 = arith.constant 0 : index
    %194 = vector.load %arg9[%c4_152, %c0_153, %c0_154] : memref<16x16x1xbf16, #tpu.memory_space<vmem>>, vector<1x16x1xbf16>
    %195 = vector.shape_cast %194 : vector<1x16x1xbf16> to vector<16x1xbf16>
    %cst_155 = arith.constant dense<0.000000e+00> : vector<32x1xf32>
    %196 = tpu.matmul %181, %195, %cst_155 {dimension_numbers = #tpu.dot_dimension_numbers<[1], [0], [0], [1], [0, 0, 1, 1], [], []>} : vector<32x16xbf16>, vector<16x1xbf16>, vector<32x1xf32> -> vector<32x1xf32>
    %c5_156 = arith.constant 5 : index
    %c0_157 = arith.constant 0 : index
    %c0_158 = arith.constant 0 : index
    %197 = vector.load %arg9[%c5_156, %c0_157, %c0_158] : memref<16x16x1xbf16, #tpu.memory_space<vmem>>, vector<1x16x1xbf16>
    %198 = vector.shape_cast %197 : vector<1x16x1xbf16> to vector<16x1xbf16>
    %cst_159 = arith.constant dense<0.000000e+00> : vector<32x1xf32>
    %199 = tpu.matmul %181, %198, %cst_159 {dimension_numbers = #tpu.dot_dimension_numbers<[1], [0], [0], [1], [0, 0, 1, 1], [], []>} : vector<32x16xbf16>, vector<16x1xbf16>, vector<32x1xf32> -> vector<32x1xf32>
    %c6_160 = arith.constant 6 : index
    %c0_161 = arith.constant 0 : index
    %c0_162 = arith.constant 0 : index
    %200 = vector.load %arg9[%c6_160, %c0_161, %c0_162] : memref<16x16x1xbf16, #tpu.memory_space<vmem>>, vector<1x16x1xbf16>
    %201 = vector.shape_cast %200 : vector<1x16x1xbf16> to vector<16x1xbf16>
    %cst_163 = arith.constant dense<0.000000e+00> : vector<32x1xf32>
    %202 = tpu.matmul %181, %201, %cst_163 {dimension_numbers = #tpu.dot_dimension_numbers<[1], [0], [0], [1], [0, 0, 1, 1], [], []>} : vector<32x16xbf16>, vector<16x1xbf16>, vector<32x1xf32> -> vector<32x1xf32>
    %c7_164 = arith.constant 7 : index
    %c0_165 = arith.constant 0 : index
    %c0_166 = arith.constant 0 : index
    %203 = vector.load %arg9[%c7_164, %c0_165, %c0_166] : memref<16x16x1xbf16, #tpu.memory_space<vmem>>, vector<1x16x1xbf16>
    %204 = vector.shape_cast %203 : vector<1x16x1xbf16> to vector<16x1xbf16>
    %cst_167 = arith.constant dense<0.000000e+00> : vector<32x1xf32>
    %205 = tpu.matmul %181, %204, %cst_167 {dimension_numbers = #tpu.dot_dimension_numbers<[1], [0], [0], [1], [0, 0, 1, 1], [], []>} : vector<32x16xbf16>, vector<16x1xbf16>, vector<32x1xf32> -> vector<32x1xf32>
    %c8_168 = arith.constant 8 : index
    %c0_169 = arith.constant 0 : index
    %c0_170 = arith.constant 0 : index
    %206 = vector.load %arg9[%c8_168, %c0_169, %c0_170] : memref<16x16x1xbf16, #tpu.memory_space<vmem>>, vector<1x16x1xbf16>
    %207 = vector.shape_cast %206 : vector<1x16x1xbf16> to vector<16x1xbf16>
    %cst_171 = arith.constant dense<0.000000e+00> : vector<32x1xf32>
    %208 = tpu.matmul %181, %207, %cst_171 {dimension_numbers = #tpu.dot_dimension_numbers<[1], [0], [0], [1], [0, 0, 1, 1], [], []>} : vector<32x16xbf16>, vector<16x1xbf16>, vector<32x1xf32> -> vector<32x1xf32>
    %c9_172 = arith.constant 9 : index
    %c0_173 = arith.constant 0 : index
    %c0_174 = arith.constant 0 : index
    %209 = vector.load %arg9[%c9_172, %c0_173, %c0_174] : memref<16x16x1xbf16, #tpu.memory_space<vmem>>, vector<1x16x1xbf16>
    %210 = vector.shape_cast %209 : vector<1x16x1xbf16> to vector<16x1xbf16>
    %cst_175 = arith.constant dense<0.000000e+00> : vector<32x1xf32>
    %211 = tpu.matmul %181, %210, %cst_175 {dimension_numbers = #tpu.dot_dimension_numbers<[1], [0], [0], [1], [0, 0, 1, 1], [], []>} : vector<32x16xbf16>, vector<16x1xbf16>, vector<32x1xf32> -> vector<32x1xf32>
    %c10_176 = arith.constant 10 : index
    %c0_177 = arith.constant 0 : index
    %c0_178 = arith.constant 0 : index
    %212 = vector.load %arg9[%c10_176, %c0_177, %c0_178] : memref<16x16x1xbf16, #tpu.memory_space<vmem>>, vector<1x16x1xbf16>
    %213 = vector.shape_cast %212 : vector<1x16x1xbf16> to vector<16x1xbf16>
    %cst_179 = arith.constant dense<0.000000e+00> : vector<32x1xf32>
    %214 = tpu.matmul %181, %213, %cst_179 {dimension_numbers = #tpu.dot_dimension_numbers<[1], [0], [0], [1], [0, 0, 1, 1], [], []>} : vector<32x16xbf16>, vector<16x1xbf16>, vector<32x1xf32> -> vector<32x1xf32>
    %c11_180 = arith.constant 11 : index
    %c0_181 = arith.constant 0 : index
    %c0_182 = arith.constant 0 : index
    %215 = vector.load %arg9[%c11_180, %c0_181, %c0_182] : memref<16x16x1xbf16, #tpu.memory_space<vmem>>, vector<1x16x1xbf16>
    %216 = vector.shape_cast %215 : vector<1x16x1xbf16> to vector<16x1xbf16>
    %cst_183 = arith.constant dense<0.000000e+00> : vector<32x1xf32>
    %217 = tpu.matmul %181, %216, %cst_183 {dimension_numbers = #tpu.dot_dimension_numbers<[1], [0], [0], [1], [0, 0, 1, 1], [], []>} : vector<32x16xbf16>, vector<16x1xbf16>, vector<32x1xf32> -> vector<32x1xf32>
    %c12_184 = arith.constant 12 : index
    %c0_185 = arith.constant 0 : index
    %c0_186 = arith.constant 0 : index
    %218 = vector.load %arg9[%c12_184, %c0_185, %c0_186] : memref<16x16x1xbf16, #tpu.memory_space<vmem>>, vector<1x16x1xbf16>
    %219 = vector.shape_cast %218 : vector<1x16x1xbf16> to vector<16x1xbf16>
    %cst_187 = arith.constant dense<0.000000e+00> : vector<32x1xf32>
    %220 = tpu.matmul %181, %219, %cst_187 {dimension_numbers = #tpu.dot_dimension_numbers<[1], [0], [0], [1], [0, 0, 1, 1], [], []>} : vector<32x16xbf16>, vector<16x1xbf16>, vector<32x1xf32> -> vector<32x1xf32>
    %c13_188 = arith.constant 13 : index
    %c0_189 = arith.constant 0 : index
    %c0_190 = arith.constant 0 : index
    %221 = vector.load %arg9[%c13_188, %c0_189, %c0_190] : memref<16x16x1xbf16, #tpu.memory_space<vmem>>, vector<1x16x1xbf16>
    %222 = vector.shape_cast %221 : vector<1x16x1xbf16> to vector<16x1xbf16>
    %cst_191 = arith.constant dense<0.000000e+00> : vector<32x1xf32>
    %223 = tpu.matmul %181, %222, %cst_191 {dimension_numbers = #tpu.dot_dimension_numbers<[1], [0], [0], [1], [0, 0, 1, 1], [], []>} : vector<32x16xbf16>, vector<16x1xbf16>, vector<32x1xf32> -> vector<32x1xf32>
    %c14_192 = arith.constant 14 : index
    %c0_193 = arith.constant 0 : index
    %c0_194 = arith.constant 0 : index
    %224 = vector.load %arg9[%c14_192, %c0_193, %c0_194] : memref<16x16x1xbf16, #tpu.memory_space<vmem>>, vector<1x16x1xbf16>
    %225 = vector.shape_cast %224 : vector<1x16x1xbf16> to vector<16x1xbf16>
    %cst_195 = arith.constant dense<0.000000e+00> : vector<32x1xf32>
    %226 = tpu.matmul %181, %225, %cst_195 {dimension_numbers = #tpu.dot_dimension_numbers<[1], [0], [0], [1], [0, 0, 1, 1], [], []>} : vector<32x16xbf16>, vector<16x1xbf16>, vector<32x1xf32> -> vector<32x1xf32>
    %c15_196 = arith.constant 15 : index
    %c0_197 = arith.constant 0 : index
    %c0_198 = arith.constant 0 : index
    %227 = vector.load %arg9[%c15_196, %c0_197, %c0_198] : memref<16x16x1xbf16, #tpu.memory_space<vmem>>, vector<1x16x1xbf16>
    %228 = vector.shape_cast %227 : vector<1x16x1xbf16> to vector<16x1xbf16>
    %cst_199 = arith.constant dense<0.000000e+00> : vector<32x1xf32>
    %229 = tpu.matmul %181, %228, %cst_199 {dimension_numbers = #tpu.dot_dimension_numbers<[1], [0], [0], [1], [0, 0, 1, 1], [], []>} : vector<32x16xbf16>, vector<16x1xbf16>, vector<32x1xf32> -> vector<32x1xf32>
    %230 = tpu.concatenate %184, %187, %190, %193, %196, %199, %202, %205, %208, %211, %214, %217, %220, %223, %226, %229 in 0 : vector<32x1xf32>, vector<32x1xf32>, vector<32x1xf32>, vector<32x1xf32>, vector<32x1xf32>, vector<32x1xf32>, vector<32x1xf32>, vector<32x1xf32>, vector<32x1xf32>, vector<32x1xf32>, vector<32x1xf32>, vector<32x1xf32>, vector<32x1xf32>, vector<32x1xf32>, vector<32x1xf32>, vector<32x1xf32> -> vector<512x1xf32>
    %231 = arith.truncf %230 : vector<512x1xf32> to vector<512x1xbf16>
    %cst_200 = arith.constant dense<0.000000e+00> : vector<64x1xf32>
    %232 = tpu.matmul %179, %231, %cst_200 {dimension_numbers = #tpu.dot_dimension_numbers<[1], [0], [0], [1], [0, 0, 1, 1], [], []>} : vector<64x512xbf16>, vector<512x1xbf16>, vector<64x1xf32> -> vector<64x1xf32>
    %233 = arith.addf %232, %180 : vector<64x1xf32>
    %c0_201 = arith.constant 0 : index
    %c0_202 = arith.constant 0 : index
    %234 = vector.load %arg1[%c0_201, %c0_202] : memref<32x1xf32, #tpu.memory_space<vmem>>, vector<32x1xf32>
    %235 = vector.extract_strided_slice %233 {offsets = [0, 0], sizes = [16, 1], strides = [1, 1]} : vector<64x1xf32> to vector<16x1xf32>
    %236 = vector.extract_strided_slice %233 {offsets = [16, 0], sizes = [16, 1], strides = [1, 1]} : vector<64x1xf32> to vector<16x1xf32>
    %237 = vector.extract_strided_slice %234 {offsets = [0, 0], sizes = [16, 1], strides = [1, 1]} : vector<32x1xf32> to vector<16x1xf32>
    %cst_203 = arith.constant 5.000000e-01 : f32
    %238 = vector.broadcast %cst_203 : f32 to vector<16x1xf32>
    %239 = arith.mulf %238, %236 : vector<16x1xf32>
    %240 = math.exp %239 : vector<16x1xf32>
    %241 = arith.mulf %237, %240 : vector<16x1xf32>
    %242 = arith.addf %241, %235 : vector<16x1xf32>
    %243 = vector.extract_strided_slice %233 {offsets = [32, 0], sizes = [16, 1], strides = [1, 1]} : vector<64x1xf32> to vector<16x1xf32>
    %244 = vector.extract_strided_slice %233 {offsets = [48, 0], sizes = [16, 1], strides = [1, 1]} : vector<64x1xf32> to vector<16x1xf32>
    %245 = vector.extract_strided_slice %234 {offsets = [16, 0], sizes = [16, 1], strides = [1, 1]} : vector<32x1xf32> to vector<16x1xf32>
    %cst_204 = arith.constant 5.000000e-01 : f32
    %246 = vector.broadcast %cst_204 : f32 to vector<16x1xf32>
    %247 = arith.mulf %246, %244 : vector<16x1xf32>
    %248 = math.exp %247 : vector<16x1xf32>
    %249 = arith.mulf %245, %248 : vector<16x1xf32>
    %250 = arith.addf %249, %243 : vector<16x1xf32>
    %251 = tpu.concatenate %242, %250 in 0 : vector<16x1xf32>, vector<16x1xf32> -> vector<32x1xf32>
    %c0_205 = arith.constant 0 : index
    %c0_206 = arith.constant 0 : index
    %252 = vector.load %arg11[%c0_205, %c0_206] : memref<32x512xbf16, #tpu.memory_space<vmem>>, vector<32x512xbf16>
    %c0_207 = arith.constant 0 : index
    %c0_208 = arith.constant 0 : index
    %253 = vector.load %arg13[%c0_207, %c0_208] : memref<32x1xf32, #tpu.memory_space<vmem>>, vector<32x1xf32>
    %c0_209 = arith.constant 0 : index
    %c0_210 = arith.constant 0 : index
    %254 = vector.load %arg14[%c0_209, %c0_210] : memref<32x1xf32, #tpu.memory_space<vmem>>, vector<32x1xf32>
    %255 = arith.truncf %251 : vector<32x1xf32> to vector<32x1xbf16>
    %c0_211 = arith.constant 0 : index
    %c0_212 = arith.constant 0 : index
    %c0_213 = arith.constant 0 : index
    %256 = vector.load %arg12[%c0_211, %c0_212, %c0_213] : memref<16x1x16xbf16, #tpu.memory_space<vmem>>, vector<1x1x16xbf16>
    %257 = vector.shape_cast %256 : vector<1x1x16xbf16> to vector<1x16xbf16>
    %cst_214 = arith.constant dense<0.000000e+00> : vector<32x16xf32>
    %258 = tpu.matmul %255, %257, %cst_214 {dimension_numbers = #tpu.dot_dimension_numbers<[1], [0], [0], [1], [0, 0, 1, 1], [], []>} : vector<32x1xbf16>, vector<1x16xbf16>, vector<32x16xf32> -> vector<32x16xf32>
    %c1_215 = arith.constant 1 : index
    %c0_216 = arith.constant 0 : index
    %c0_217 = arith.constant 0 : index
    %259 = vector.load %arg12[%c1_215, %c0_216, %c0_217] : memref<16x1x16xbf16, #tpu.memory_space<vmem>>, vector<1x1x16xbf16>
    %260 = vector.shape_cast %259 : vector<1x1x16xbf16> to vector<1x16xbf16>
    %cst_218 = arith.constant dense<0.000000e+00> : vector<32x16xf32>
    %261 = tpu.matmul %255, %260, %cst_218 {dimension_numbers = #tpu.dot_dimension_numbers<[1], [0], [0], [1], [0, 0, 1, 1], [], []>} : vector<32x1xbf16>, vector<1x16xbf16>, vector<32x16xf32> -> vector<32x16xf32>
    %c2_219 = arith.constant 2 : index
    %c0_220 = arith.constant 0 : index
    %c0_221 = arith.constant 0 : index
    %262 = vector.load %arg12[%c2_219, %c0_220, %c0_221] : memref<16x1x16xbf16, #tpu.memory_space<vmem>>, vector<1x1x16xbf16>
    %263 = vector.shape_cast %262 : vector<1x1x16xbf16> to vector<1x16xbf16>
    %cst_222 = arith.constant dense<0.000000e+00> : vector<32x16xf32>
    %264 = tpu.matmul %255, %263, %cst_222 {dimension_numbers = #tpu.dot_dimension_numbers<[1], [0], [0], [1], [0, 0, 1, 1], [], []>} : vector<32x1xbf16>, vector<1x16xbf16>, vector<32x16xf32> -> vector<32x16xf32>
    %c3_223 = arith.constant 3 : index
    %c0_224 = arith.constant 0 : index
    %c0_225 = arith.constant 0 : index
    %265 = vector.load %arg12[%c3_223, %c0_224, %c0_225] : memref<16x1x16xbf16, #tpu.memory_space<vmem>>, vector<1x1x16xbf16>
    %266 = vector.shape_cast %265 : vector<1x1x16xbf16> to vector<1x16xbf16>
    %cst_226 = arith.constant dense<0.000000e+00> : vector<32x16xf32>
    %267 = tpu.matmul %255, %266, %cst_226 {dimension_numbers = #tpu.dot_dimension_numbers<[1], [0], [0], [1], [0, 0, 1, 1], [], []>} : vector<32x1xbf16>, vector<1x16xbf16>, vector<32x16xf32> -> vector<32x16xf32>
    %c4_227 = arith.constant 4 : index
    %c0_228 = arith.constant 0 : index
    %c0_229 = arith.constant 0 : index
    %268 = vector.load %arg12[%c4_227, %c0_228, %c0_229] : memref<16x1x16xbf16, #tpu.memory_space<vmem>>, vector<1x1x16xbf16>
    %269 = vector.shape_cast %268 : vector<1x1x16xbf16> to vector<1x16xbf16>
    %cst_230 = arith.constant dense<0.000000e+00> : vector<32x16xf32>
    %270 = tpu.matmul %255, %269, %cst_230 {dimension_numbers = #tpu.dot_dimension_numbers<[1], [0], [0], [1], [0, 0, 1, 1], [], []>} : vector<32x1xbf16>, vector<1x16xbf16>, vector<32x16xf32> -> vector<32x16xf32>
    %c5_231 = arith.constant 5 : index
    %c0_232 = arith.constant 0 : index
    %c0_233 = arith.constant 0 : index
    %271 = vector.load %arg12[%c5_231, %c0_232, %c0_233] : memref<16x1x16xbf16, #tpu.memory_space<vmem>>, vector<1x1x16xbf16>
    %272 = vector.shape_cast %271 : vector<1x1x16xbf16> to vector<1x16xbf16>
    %cst_234 = arith.constant dense<0.000000e+00> : vector<32x16xf32>
    %273 = tpu.matmul %255, %272, %cst_234 {dimension_numbers = #tpu.dot_dimension_numbers<[1], [0], [0], [1], [0, 0, 1, 1], [], []>} : vector<32x1xbf16>, vector<1x16xbf16>, vector<32x16xf32> -> vector<32x16xf32>
    %c6_235 = arith.constant 6 : index
    %c0_236 = arith.constant 0 : index
    %c0_237 = arith.constant 0 : index
    %274 = vector.load %arg12[%c6_235, %c0_236, %c0_237] : memref<16x1x16xbf16, #tpu.memory_space<vmem>>, vector<1x1x16xbf16>
    %275 = vector.shape_cast %274 : vector<1x1x16xbf16> to vector<1x16xbf16>
    %cst_238 = arith.constant dense<0.000000e+00> : vector<32x16xf32>
    %276 = tpu.matmul %255, %275, %cst_238 {dimension_numbers = #tpu.dot_dimension_numbers<[1], [0], [0], [1], [0, 0, 1, 1], [], []>} : vector<32x1xbf16>, vector<1x16xbf16>, vector<32x16xf32> -> vector<32x16xf32>
    %c7_239 = arith.constant 7 : index
    %c0_240 = arith.constant 0 : index
    %c0_241 = arith.constant 0 : index
    %277 = vector.load %arg12[%c7_239, %c0_240, %c0_241] : memref<16x1x16xbf16, #tpu.memory_space<vmem>>, vector<1x1x16xbf16>
    %278 = vector.shape_cast %277 : vector<1x1x16xbf16> to vector<1x16xbf16>
    %cst_242 = arith.constant dense<0.000000e+00> : vector<32x16xf32>
    %279 = tpu.matmul %255, %278, %cst_242 {dimension_numbers = #tpu.dot_dimension_numbers<[1], [0], [0], [1], [0, 0, 1, 1], [], []>} : vector<32x1xbf16>, vector<1x16xbf16>, vector<32x16xf32> -> vector<32x16xf32>
    %c8_243 = arith.constant 8 : index
    %c0_244 = arith.constant 0 : index
    %c0_245 = arith.constant 0 : index
    %280 = vector.load %arg12[%c8_243, %c0_244, %c0_245] : memref<16x1x16xbf16, #tpu.memory_space<vmem>>, vector<1x1x16xbf16>
    %281 = vector.shape_cast %280 : vector<1x1x16xbf16> to vector<1x16xbf16>
    %cst_246 = arith.constant dense<0.000000e+00> : vector<32x16xf32>
    %282 = tpu.matmul %255, %281, %cst_246 {dimension_numbers = #tpu.dot_dimension_numbers<[1], [0], [0], [1], [0, 0, 1, 1], [], []>} : vector<32x1xbf16>, vector<1x16xbf16>, vector<32x16xf32> -> vector<32x16xf32>
    %c9_247 = arith.constant 9 : index
    %c0_248 = arith.constant 0 : index
    %c0_249 = arith.constant 0 : index
    %283 = vector.load %arg12[%c9_247, %c0_248, %c0_249] : memref<16x1x16xbf16, #tpu.memory_space<vmem>>, vector<1x1x16xbf16>
    %284 = vector.shape_cast %283 : vector<1x1x16xbf16> to vector<1x16xbf16>
    %cst_250 = arith.constant dense<0.000000e+00> : vector<32x16xf32>
    %285 = tpu.matmul %255, %284, %cst_250 {dimension_numbers = #tpu.dot_dimension_numbers<[1], [0], [0], [1], [0, 0, 1, 1], [], []>} : vector<32x1xbf16>, vector<1x16xbf16>, vector<32x16xf32> -> vector<32x16xf32>
    %c10_251 = arith.constant 10 : index
    %c0_252 = arith.constant 0 : index
    %c0_253 = arith.constant 0 : index
    %286 = vector.load %arg12[%c10_251, %c0_252, %c0_253] : memref<16x1x16xbf16, #tpu.memory_space<vmem>>, vector<1x1x16xbf16>
    %287 = vector.shape_cast %286 : vector<1x1x16xbf16> to vector<1x16xbf16>
    %cst_254 = arith.constant dense<0.000000e+00> : vector<32x16xf32>
    %288 = tpu.matmul %255, %287, %cst_254 {dimension_numbers = #tpu.dot_dimension_numbers<[1], [0], [0], [1], [0, 0, 1, 1], [], []>} : vector<32x1xbf16>, vector<1x16xbf16>, vector<32x16xf32> -> vector<32x16xf32>
    %c11_255 = arith.constant 11 : index
    %c0_256 = arith.constant 0 : index
    %c0_257 = arith.constant 0 : index
    %289 = vector.load %arg12[%c11_255, %c0_256, %c0_257] : memref<16x1x16xbf16, #tpu.memory_space<vmem>>, vector<1x1x16xbf16>
    %290 = vector.shape_cast %289 : vector<1x1x16xbf16> to vector<1x16xbf16>
    %cst_258 = arith.constant dense<0.000000e+00> : vector<32x16xf32>
    %291 = tpu.matmul %255, %290, %cst_258 {dimension_numbers = #tpu.dot_dimension_numbers<[1], [0], [0], [1], [0, 0, 1, 1], [], []>} : vector<32x1xbf16>, vector<1x16xbf16>, vector<32x16xf32> -> vector<32x16xf32>
    %c12_259 = arith.constant 12 : index
    %c0_260 = arith.constant 0 : index
    %c0_261 = arith.constant 0 : index
    %292 = vector.load %arg12[%c12_259, %c0_260, %c0_261] : memref<16x1x16xbf16, #tpu.memory_space<vmem>>, vector<1x1x16xbf16>
    %293 = vector.shape_cast %292 : vector<1x1x16xbf16> to vector<1x16xbf16>
    %cst_262 = arith.constant dense<0.000000e+00> : vector<32x16xf32>
    %294 = tpu.matmul %255, %293, %cst_262 {dimension_numbers = #tpu.dot_dimension_numbers<[1], [0], [0], [1], [0, 0, 1, 1], [], []>} : vector<32x1xbf16>, vector<1x16xbf16>, vector<32x16xf32> -> vector<32x16xf32>
    %c13_263 = arith.constant 13 : index
    %c0_264 = arith.constant 0 : index
    %c0_265 = arith.constant 0 : index
    %295 = vector.load %arg12[%c13_263, %c0_264, %c0_265] : memref<16x1x16xbf16, #tpu.memory_space<vmem>>, vector<1x1x16xbf16>
    %296 = vector.shape_cast %295 : vector<1x1x16xbf16> to vector<1x16xbf16>
    %cst_266 = arith.constant dense<0.000000e+00> : vector<32x16xf32>
    %297 = tpu.matmul %255, %296, %cst_266 {dimension_numbers = #tpu.dot_dimension_numbers<[1], [0], [0], [1], [0, 0, 1, 1], [], []>} : vector<32x1xbf16>, vector<1x16xbf16>, vector<32x16xf32> -> vector<32x16xf32>
    %c14_267 = arith.constant 14 : index
    %c0_268 = arith.constant 0 : index
    %c0_269 = arith.constant 0 : index
    %298 = vector.load %arg12[%c14_267, %c0_268, %c0_269] : memref<16x1x16xbf16, #tpu.memory_space<vmem>>, vector<1x1x16xbf16>
    %299 = vector.shape_cast %298 : vector<1x1x16xbf16> to vector<1x16xbf16>
    %cst_270 = arith.constant dense<0.000000e+00> : vector<32x16xf32>
    %300 = tpu.matmul %255, %299, %cst_270 {dimension_numbers = #tpu.dot_dimension_numbers<[1], [0], [0], [1], [0, 0, 1, 1], [], []>} : vector<32x1xbf16>, vector<1x16xbf16>, vector<32x16xf32> -> vector<32x16xf32>
    %c15_271 = arith.constant 15 : index
    %c0_272 = arith.constant 0 : index
    %c0_273 = arith.constant 0 : index
    %301 = vector.load %arg12[%c15_271, %c0_272, %c0_273] : memref<16x1x16xbf16, #tpu.memory_space<vmem>>, vector<1x1x16xbf16>
    %302 = vector.shape_cast %301 : vector<1x1x16xbf16> to vector<1x16xbf16>
    %cst_274 = arith.constant dense<0.000000e+00> : vector<32x16xf32>
    %303 = tpu.matmul %255, %302, %cst_274 {dimension_numbers = #tpu.dot_dimension_numbers<[1], [0], [0], [1], [0, 0, 1, 1], [], []>} : vector<32x1xbf16>, vector<1x16xbf16>, vector<32x16xf32> -> vector<32x16xf32>
    %304 = tpu.concatenate %258, %261, %264, %267, %270, %273, %276, %279, %282, %285, %288, %291, %294, %297, %300, %303 in 0 : vector<32x16xf32>, vector<32x16xf32>, vector<32x16xf32>, vector<32x16xf32>, vector<32x16xf32>, vector<32x16xf32>, vector<32x16xf32>, vector<32x16xf32>, vector<32x16xf32>, vector<32x16xf32>, vector<32x16xf32>, vector<32x16xf32>, vector<32x16xf32>, vector<32x16xf32>, vector<32x16xf32>, vector<32x16xf32> -> vector<512x16xf32>
    %305 = arith.truncf %304 : vector<512x16xf32> to vector<512x16xbf16>
    %cst_275 = arith.constant dense<0.000000e+00> : vector<32x16xf32>
    %306 = tpu.matmul %252, %305, %cst_275 {dimension_numbers = #tpu.dot_dimension_numbers<[1], [0], [0], [1], [0, 0, 1, 1], [], []>} : vector<32x512xbf16>, vector<512x16xbf16>, vector<32x16xf32> -> vector<32x16xf32>
    %cst_276 = arith.constant dense<0.000000e+00> : vector<32xf32>
    %307 = vector.multi_reduction <add>, %306, %cst_276 [1] : vector<32x16xf32> to vector<32xf32>
    %308 = vector.shape_cast %307 : vector<32xf32> to vector<32x1xf32>
    %309 = vector.extract_strided_slice %308 {offsets = [0, 0], sizes = [16, 1], strides = [1, 1]} : vector<32x1xf32> to vector<16x1xf32>
    %310 = vector.extract_strided_slice %308 {offsets = [16, 0], sizes = [16, 1], strides = [1, 1]} : vector<32x1xf32> to vector<16x1xf32>
    %311 = arith.addf %309, %310 : vector<16x1xf32>
    %cst_277 = arith.constant 3.125000e-02 : f32
    %312 = vector.broadcast %cst_277 : f32 to vector<16x1xf32>
    %313 = arith.mulf %311, %312 : vector<16x1xf32>
    %314 = tpu.concatenate %313, %313 in 0 : vector<16x1xf32>, vector<16x1xf32> -> vector<32x1xf32>
    %315 = vector.broadcast %314 : vector<32x1xf32> to vector<32x16xf32>
    %316 = arith.subf %306, %315 : vector<32x16xf32>
    %317 = arith.mulf %316, %316 : vector<32x16xf32>
    %cst_278 = arith.constant dense<0.000000e+00> : vector<32xf32>
    %318 = vector.multi_reduction <add>, %317, %cst_278 [1] : vector<32x16xf32> to vector<32xf32>
    %319 = vector.shape_cast %318 : vector<32xf32> to vector<32x1xf32>
    %320 = vector.extract_strided_slice %319 {offsets = [0, 0], sizes = [16, 1], strides = [1, 1]} : vector<32x1xf32> to vector<16x1xf32>
    %321 = vector.extract_strided_slice %319 {offsets = [16, 0], sizes = [16, 1], strides = [1, 1]} : vector<32x1xf32> to vector<16x1xf32>
    %322 = arith.addf %320, %321 : vector<16x1xf32>
    %cst_279 = arith.constant 3.125000e-02 : f32
    %323 = vector.broadcast %cst_279 : f32 to vector<16x1xf32>
    %324 = arith.mulf %322, %323 : vector<16x1xf32>
    %325 = tpu.concatenate %324, %324 in 0 : vector<16x1xf32>, vector<16x1xf32> -> vector<32x1xf32>
    %cst_280 = arith.constant 9.99999974E-6 : f32
    %326 = vector.broadcast %cst_280 : f32 to vector<32x1xf32>
    %327 = arith.addf %325, %326 : vector<32x1xf32>
    %328 = math.rsqrt %327 : vector<32x1xf32>
    %329 = vector.broadcast %328 : vector<32x1xf32> to vector<32x16xf32>
    %330 = arith.mulf %316, %329 : vector<32x16xf32>
    %331 = vector.broadcast %253 : vector<32x1xf32> to vector<32x16xf32>
    %332 = arith.mulf %330, %331 : vector<32x16xf32>
    %333 = vector.broadcast %254 : vector<32x1xf32> to vector<32x16xf32>
    %334 = arith.addf %332, %333 : vector<32x16xf32>
    %cst_281 = arith.constant 0.000000e+00 : f32
    %335 = vector.broadcast %cst_281 : f32 to vector<32x16xf32>
    %336 = arith.cmpf oge, %334, %335 : vector<32x16xf32>
    %cst_282 = arith.constant 2.000000e-01 : f32
    %337 = vector.broadcast %cst_282 : f32 to vector<32x16xf32>
    %338 = arith.mulf %337, %334 : vector<32x16xf32>
    %339 = arith.select %336, %334, %338 : vector<32x16xi1>, vector<32x16xf32>
    %c0_283 = arith.constant 0 : index
    %c0_284 = arith.constant 0 : index
    %340 = vector.load %arg15[%c0_283, %c0_284] : memref<16x512xbf16, #tpu.memory_space<vmem>>, vector<16x512xbf16>
    %c0_285 = arith.constant 0 : index
    %c0_286 = arith.constant 0 : index
    %341 = vector.load %arg17[%c0_285, %c0_286] : memref<16x1xf32, #tpu.memory_space<vmem>>, vector<16x1xf32>
    %c0_287 = arith.constant 0 : index
    %c0_288 = arith.constant 0 : index
    %342 = vector.load %arg18[%c0_287, %c0_288] : memref<16x1xf32, #tpu.memory_space<vmem>>, vector<16x1xf32>
    %343 = arith.truncf %339 : vector<32x16xf32> to vector<32x16xbf16>
    %c0_289 = arith.constant 0 : index
    %c0_290 = arith.constant 0 : index
    %c0_291 = arith.constant 0 : index
    %344 = vector.load %arg16[%c0_289, %c0_290, %c0_291] : memref<16x16x64xbf16, #tpu.memory_space<vmem>>, vector<1x16x64xbf16>
    %345 = vector.shape_cast %344 : vector<1x16x64xbf16> to vector<16x64xbf16>
    %cst_292 = arith.constant dense<0.000000e+00> : vector<32x64xf32>
    %346 = tpu.matmul %343, %345, %cst_292 {dimension_numbers = #tpu.dot_dimension_numbers<[1], [0], [0], [1], [0, 0, 1, 1], [], []>} : vector<32x16xbf16>, vector<16x64xbf16>, vector<32x64xf32> -> vector<32x64xf32>
    %c1_293 = arith.constant 1 : index
    %c0_294 = arith.constant 0 : index
    %c0_295 = arith.constant 0 : index
    %347 = vector.load %arg16[%c1_293, %c0_294, %c0_295] : memref<16x16x64xbf16, #tpu.memory_space<vmem>>, vector<1x16x64xbf16>
    %348 = vector.shape_cast %347 : vector<1x16x64xbf16> to vector<16x64xbf16>
    %cst_296 = arith.constant dense<0.000000e+00> : vector<32x64xf32>
    %349 = tpu.matmul %343, %348, %cst_296 {dimension_numbers = #tpu.dot_dimension_numbers<[1], [0], [0], [1], [0, 0, 1, 1], [], []>} : vector<32x16xbf16>, vector<16x64xbf16>, vector<32x64xf32> -> vector<32x64xf32>
    %c2_297 = arith.constant 2 : index
    %c0_298 = arith.constant 0 : index
    %c0_299 = arith.constant 0 : index
    %350 = vector.load %arg16[%c2_297, %c0_298, %c0_299] : memref<16x16x64xbf16, #tpu.memory_space<vmem>>, vector<1x16x64xbf16>
    %351 = vector.shape_cast %350 : vector<1x16x64xbf16> to vector<16x64xbf16>
    %cst_300 = arith.constant dense<0.000000e+00> : vector<32x64xf32>
    %352 = tpu.matmul %343, %351, %cst_300 {dimension_numbers = #tpu.dot_dimension_numbers<[1], [0], [0], [1], [0, 0, 1, 1], [], []>} : vector<32x16xbf16>, vector<16x64xbf16>, vector<32x64xf32> -> vector<32x64xf32>
    %c3_301 = arith.constant 3 : index
    %c0_302 = arith.constant 0 : index
    %c0_303 = arith.constant 0 : index
    %353 = vector.load %arg16[%c3_301, %c0_302, %c0_303] : memref<16x16x64xbf16, #tpu.memory_space<vmem>>, vector<1x16x64xbf16>
    %354 = vector.shape_cast %353 : vector<1x16x64xbf16> to vector<16x64xbf16>
    %cst_304 = arith.constant dense<0.000000e+00> : vector<32x64xf32>
    %355 = tpu.matmul %343, %354, %cst_304 {dimension_numbers = #tpu.dot_dimension_numbers<[1], [0], [0], [1], [0, 0, 1, 1], [], []>} : vector<32x16xbf16>, vector<16x64xbf16>, vector<32x64xf32> -> vector<32x64xf32>
    %c4_305 = arith.constant 4 : index
    %c0_306 = arith.constant 0 : index
    %c0_307 = arith.constant 0 : index
    %356 = vector.load %arg16[%c4_305, %c0_306, %c0_307] : memref<16x16x64xbf16, #tpu.memory_space<vmem>>, vector<1x16x64xbf16>
    %357 = vector.shape_cast %356 : vector<1x16x64xbf16> to vector<16x64xbf16>
    %cst_308 = arith.constant dense<0.000000e+00> : vector<32x64xf32>
    %358 = tpu.matmul %343, %357, %cst_308 {dimension_numbers = #tpu.dot_dimension_numbers<[1], [0], [0], [1], [0, 0, 1, 1], [], []>} : vector<32x16xbf16>, vector<16x64xbf16>, vector<32x64xf32> -> vector<32x64xf32>
    %c5_309 = arith.constant 5 : index
    %c0_310 = arith.constant 0 : index
    %c0_311 = arith.constant 0 : index
    %359 = vector.load %arg16[%c5_309, %c0_310, %c0_311] : memref<16x16x64xbf16, #tpu.memory_space<vmem>>, vector<1x16x64xbf16>
    %360 = vector.shape_cast %359 : vector<1x16x64xbf16> to vector<16x64xbf16>
    %cst_312 = arith.constant dense<0.000000e+00> : vector<32x64xf32>
    %361 = tpu.matmul %343, %360, %cst_312 {dimension_numbers = #tpu.dot_dimension_numbers<[1], [0], [0], [1], [0, 0, 1, 1], [], []>} : vector<32x16xbf16>, vector<16x64xbf16>, vector<32x64xf32> -> vector<32x64xf32>
    %c6_313 = arith.constant 6 : index
    %c0_314 = arith.constant 0 : index
    %c0_315 = arith.constant 0 : index
    %362 = vector.load %arg16[%c6_313, %c0_314, %c0_315] : memref<16x16x64xbf16, #tpu.memory_space<vmem>>, vector<1x16x64xbf16>
    %363 = vector.shape_cast %362 : vector<1x16x64xbf16> to vector<16x64xbf16>
    %cst_316 = arith.constant dense<0.000000e+00> : vector<32x64xf32>
    %364 = tpu.matmul %343, %363, %cst_316 {dimension_numbers = #tpu.dot_dimension_numbers<[1], [0], [0], [1], [0, 0, 1, 1], [], []>} : vector<32x16xbf16>, vector<16x64xbf16>, vector<32x64xf32> -> vector<32x64xf32>
    %c7_317 = arith.constant 7 : index
    %c0_318 = arith.constant 0 : index
    %c0_319 = arith.constant 0 : index
    %365 = vector.load %arg16[%c7_317, %c0_318, %c0_319] : memref<16x16x64xbf16, #tpu.memory_space<vmem>>, vector<1x16x64xbf16>
    %366 = vector.shape_cast %365 : vector<1x16x64xbf16> to vector<16x64xbf16>
    %cst_320 = arith.constant dense<0.000000e+00> : vector<32x64xf32>
    %367 = tpu.matmul %343, %366, %cst_320 {dimension_numbers = #tpu.dot_dimension_numbers<[1], [0], [0], [1], [0, 0, 1, 1], [], []>} : vector<32x16xbf16>, vector<16x64xbf16>, vector<32x64xf32> -> vector<32x64xf32>
    %c8_321 = arith.constant 8 : index
    %c0_322 = arith.constant 0 : index
    %c0_323 = arith.constant 0 : index
    %368 = vector.load %arg16[%c8_321, %c0_322, %c0_323] : memref<16x16x64xbf16, #tpu.memory_space<vmem>>, vector<1x16x64xbf16>
    %369 = vector.shape_cast %368 : vector<1x16x64xbf16> to vector<16x64xbf16>
    %cst_324 = arith.constant dense<0.000000e+00> : vector<32x64xf32>
    %370 = tpu.matmul %343, %369, %cst_324 {dimension_numbers = #tpu.dot_dimension_numbers<[1], [0], [0], [1], [0, 0, 1, 1], [], []>} : vector<32x16xbf16>, vector<16x64xbf16>, vector<32x64xf32> -> vector<32x64xf32>
    %c9_325 = arith.constant 9 : index
    %c0_326 = arith.constant 0 : index
    %c0_327 = arith.constant 0 : index
    %371 = vector.load %arg16[%c9_325, %c0_326, %c0_327] : memref<16x16x64xbf16, #tpu.memory_space<vmem>>, vector<1x16x64xbf16>
    %372 = vector.shape_cast %371 : vector<1x16x64xbf16> to vector<16x64xbf16>
    %cst_328 = arith.constant dense<0.000000e+00> : vector<32x64xf32>
    %373 = tpu.matmul %343, %372, %cst_328 {dimension_numbers = #tpu.dot_dimension_numbers<[1], [0], [0], [1], [0, 0, 1, 1], [], []>} : vector<32x16xbf16>, vector<16x64xbf16>, vector<32x64xf32> -> vector<32x64xf32>
    %c10_329 = arith.constant 10 : index
    %c0_330 = arith.constant 0 : index
    %c0_331 = arith.constant 0 : index
    %374 = vector.load %arg16[%c10_329, %c0_330, %c0_331] : memref<16x16x64xbf16, #tpu.memory_space<vmem>>, vector<1x16x64xbf16>
    %375 = vector.shape_cast %374 : vector<1x16x64xbf16> to vector<16x64xbf16>
    %cst_332 = arith.constant dense<0.000000e+00> : vector<32x64xf32>
    %376 = tpu.matmul %343, %375, %cst_332 {dimension_numbers = #tpu.dot_dimension_numbers<[1], [0], [0], [1], [0, 0, 1, 1], [], []>} : vector<32x16xbf16>, vector<16x64xbf16>, vector<32x64xf32> -> vector<32x64xf32>
    %c11_333 = arith.constant 11 : index
    %c0_334 = arith.constant 0 : index
    %c0_335 = arith.constant 0 : index
    %377 = vector.load %arg16[%c11_333, %c0_334, %c0_335] : memref<16x16x64xbf16, #tpu.memory_space<vmem>>, vector<1x16x64xbf16>
    %378 = vector.shape_cast %377 : vector<1x16x64xbf16> to vector<16x64xbf16>
    %cst_336 = arith.constant dense<0.000000e+00> : vector<32x64xf32>
    %379 = tpu.matmul %343, %378, %cst_336 {dimension_numbers = #tpu.dot_dimension_numbers<[1], [0], [0], [1], [0, 0, 1, 1], [], []>} : vector<32x16xbf16>, vector<16x64xbf16>, vector<32x64xf32> -> vector<32x64xf32>
    %c12_337 = arith.constant 12 : index
    %c0_338 = arith.constant 0 : index
    %c0_339 = arith.constant 0 : index
    %380 = vector.load %arg16[%c12_337, %c0_338, %c0_339] : memref<16x16x64xbf16, #tpu.memory_space<vmem>>, vector<1x16x64xbf16>
    %381 = vector.shape_cast %380 : vector<1x16x64xbf16> to vector<16x64xbf16>
    %cst_340 = arith.constant dense<0.000000e+00> : vector<32x64xf32>
    %382 = tpu.matmul %343, %381, %cst_340 {dimension_numbers = #tpu.dot_dimension_numbers<[1], [0], [0], [1], [0, 0, 1, 1], [], []>} : vector<32x16xbf16>, vector<16x64xbf16>, vector<32x64xf32> -> vector<32x64xf32>
    %c13_341 = arith.constant 13 : index
    %c0_342 = arith.constant 0 : index
    %c0_343 = arith.constant 0 : index
    %383 = vector.load %arg16[%c13_341, %c0_342, %c0_343] : memref<16x16x64xbf16, #tpu.memory_space<vmem>>, vector<1x16x64xbf16>
    %384 = vector.shape_cast %383 : vector<1x16x64xbf16> to vector<16x64xbf16>
    %cst_344 = arith.constant dense<0.000000e+00> : vector<32x64xf32>
    %385 = tpu.matmul %343, %384, %cst_344 {dimension_numbers = #tpu.dot_dimension_numbers<[1], [0], [0], [1], [0, 0, 1, 1], [], []>} : vector<32x16xbf16>, vector<16x64xbf16>, vector<32x64xf32> -> vector<32x64xf32>
    %c14_345 = arith.constant 14 : index
    %c0_346 = arith.constant 0 : index
    %c0_347 = arith.constant 0 : index
    %386 = vector.load %arg16[%c14_345, %c0_346, %c0_347] : memref<16x16x64xbf16, #tpu.memory_space<vmem>>, vector<1x16x64xbf16>
    %387 = vector.shape_cast %386 : vector<1x16x64xbf16> to vector<16x64xbf16>
    %cst_348 = arith.constant dense<0.000000e+00> : vector<32x64xf32>
    %388 = tpu.matmul %343, %387, %cst_348 {dimension_numbers = #tpu.dot_dimension_numbers<[1], [0], [0], [1], [0, 0, 1, 1], [], []>} : vector<32x16xbf16>, vector<16x64xbf16>, vector<32x64xf32> -> vector<32x64xf32>
    %c15_349 = arith.constant 15 : index
    %c0_350 = arith.constant 0 : index
    %c0_351 = arith.constant 0 : index
    %389 = vector.load %arg16[%c15_349, %c0_350, %c0_351] : memref<16x16x64xbf16, #tpu.memory_space<vmem>>, vector<1x16x64xbf16>
    %390 = vector.shape_cast %389 : vector<1x16x64xbf16> to vector<16x64xbf16>
    %cst_352 = arith.constant dense<0.000000e+00> : vector<32x64xf32>
    %391 = tpu.matmul %343, %390, %cst_352 {dimension_numbers = #tpu.dot_dimension_numbers<[1], [0], [0], [1], [0, 0, 1, 1], [], []>} : vector<32x16xbf16>, vector<16x64xbf16>, vector<32x64xf32> -> vector<32x64xf32>
    %392 = tpu.concatenate %346, %349, %352, %355, %358, %361, %364, %367, %370, %373, %376, %379, %382, %385, %388, %391 in 0 : vector<32x64xf32>, vector<32x64xf32>, vector<32x64xf32>, vector<32x64xf32>, vector<32x64xf32>, vector<32x64xf32>, vector<32x64xf32>, vector<32x64xf32>, vector<32x64xf32>, vector<32x64xf32>, vector<32x64xf32>, vector<32x64xf32>, vector<32x64xf32>, vector<32x64xf32>, vector<32x64xf32>, vector<32x64xf32> -> vector<512x64xf32>
    %393 = arith.truncf %392 : vector<512x64xf32> to vector<512x64xbf16>
    %cst_353 = arith.constant dense<0.000000e+00> : vector<16x64xf32>
    %394 = tpu.matmul %340, %393, %cst_353 {dimension_numbers = #tpu.dot_dimension_numbers<[1], [0], [0], [1], [0, 0, 1, 1], [], []>} : vector<16x512xbf16>, vector<512x64xbf16>, vector<16x64xf32> -> vector<16x64xf32>
    %cst_354 = arith.constant dense<0.000000e+00> : vector<16xf32>
    %395 = vector.multi_reduction <add>, %394, %cst_354 [1] : vector<16x64xf32> to vector<16xf32>
    %396 = vector.shape_cast %395 : vector<16xf32> to vector<16x1xf32>
    %397 = vector.extract_strided_slice %396 {offsets = [0, 0], sizes = [8, 1], strides = [1, 1]} : vector<16x1xf32> to vector<8x1xf32>
    %398 = vector.extract_strided_slice %396 {offsets = [8, 0], sizes = [8, 1], strides = [1, 1]} : vector<16x1xf32> to vector<8x1xf32>
    %399 = arith.addf %397, %398 : vector<8x1xf32>
    %cst_355 = arith.constant 7.812500e-03 : f32
    %400 = vector.broadcast %cst_355 : f32 to vector<8x1xf32>
    %401 = arith.mulf %399, %400 : vector<8x1xf32>
    %402 = tpu.concatenate %401, %401 in 0 : vector<8x1xf32>, vector<8x1xf32> -> vector<16x1xf32>
    %403 = vector.broadcast %402 : vector<16x1xf32> to vector<16x64xf32>
    %404 = arith.subf %394, %403 : vector<16x64xf32>
    %405 = arith.mulf %404, %404 : vector<16x64xf32>
    %cst_356 = arith.constant dense<0.000000e+00> : vector<16xf32>
    %406 = vector.multi_reduction <add>, %405, %cst_356 [1] : vector<16x64xf32> to vector<16xf32>
    %407 = vector.shape_cast %406 : vector<16xf32> to vector<16x1xf32>
    %408 = vector.extract_strided_slice %407 {offsets = [0, 0], sizes = [8, 1], strides = [1, 1]} : vector<16x1xf32> to vector<8x1xf32>
    %409 = vector.extract_strided_slice %407 {offsets = [8, 0], sizes = [8, 1], strides = [1, 1]} : vector<16x1xf32> to vector<8x1xf32>
    %410 = arith.addf %408, %409 : vector<8x1xf32>
    %cst_357 = arith.constant 7.812500e-03 : f32
    %411 = vector.broadcast %cst_357 : f32 to vector<8x1xf32>
    %412 = arith.mulf %410, %411 : vector<8x1xf32>
    %413 = tpu.concatenate %412, %412 in 0 : vector<8x1xf32>, vector<8x1xf32> -> vector<16x1xf32>
    %cst_358 = arith.constant 9.99999974E-6 : f32
    %414 = vector.broadcast %cst_358 : f32 to vector<16x1xf32>
    %415 = arith.addf %413, %414 : vector<16x1xf32>
    %416 = math.rsqrt %415 : vector<16x1xf32>
    %417 = vector.broadcast %416 : vector<16x1xf32> to vector<16x64xf32>
    %418 = arith.mulf %404, %417 : vector<16x64xf32>
    %419 = vector.broadcast %341 : vector<16x1xf32> to vector<16x64xf32>
    %420 = arith.mulf %418, %419 : vector<16x64xf32>
    %421 = vector.broadcast %342 : vector<16x1xf32> to vector<16x64xf32>
    %422 = arith.addf %420, %421 : vector<16x64xf32>
    %cst_359 = arith.constant 0.000000e+00 : f32
    %423 = vector.broadcast %cst_359 : f32 to vector<16x64xf32>
    %424 = arith.cmpf oge, %422, %423 : vector<16x64xf32>
    %cst_360 = arith.constant 2.000000e-01 : f32
    %425 = vector.broadcast %cst_360 : f32 to vector<16x64xf32>
    %426 = arith.mulf %425, %422 : vector<16x64xf32>
    %427 = arith.select %424, %422, %426 : vector<16x64xi1>, vector<16x64xf32>
    %c0_361 = arith.constant 0 : index
    %c0_362 = arith.constant 0 : index
    %428 = vector.load %arg19[%c0_361, %c0_362] : memref<6x256xbf16, #tpu.memory_space<vmem>>, vector<6x256xbf16>
    tpu.wait_dma2 semaphore(%arg23 : memref<!tpu.dma_semaphore, #tpu.memory_space<semaphore_mem>>) src(%arg20 : memref<16x64x256xi8, #tpu.memory_space<any>>) dst(%arg22 : memref<16x64x256xi8, #tpu.memory_space<vmem>>)
    %429 = arith.truncf %427 : vector<16x64xf32> to vector<16x64xbf16>
    %c0_363 = arith.constant 0 : index
    %c0_364 = arith.constant 0 : index
    %c0_365 = arith.constant 0 : index
    %430 = vector.load %arg22[%c0_363, %c0_364, %c0_365] : memref<16x64x256xi8, #tpu.memory_space<vmem>>, vector<1x64x256xi8>
    %431 = vector.shape_cast %430 : vector<1x64x256xi8> to vector<64x256xi8>
    %432 = arith.sitofp %431 : vector<64x256xi8> to vector<64x256xf32>
    %433 = arith.truncf %432 : vector<64x256xf32> to vector<64x256xbf16>
    %cst_366 = arith.constant dense<0.000000e+00> : vector<16x256xf32>
    %434 = tpu.matmul %429, %433, %cst_366 {dimension_numbers = #tpu.dot_dimension_numbers<[1], [0], [0], [1], [0, 0, 1, 1], [], []>} : vector<16x64xbf16>, vector<64x256xbf16>, vector<16x256xf32> -> vector<16x256xf32>
    %c1_367 = arith.constant 1 : index
    %c0_368 = arith.constant 0 : index
    %c0_369 = arith.constant 0 : index
    %435 = vector.load %arg22[%c1_367, %c0_368, %c0_369] : memref<16x64x256xi8, #tpu.memory_space<vmem>>, vector<1x64x256xi8>
    %436 = vector.shape_cast %435 : vector<1x64x256xi8> to vector<64x256xi8>
    %437 = arith.sitofp %436 : vector<64x256xi8> to vector<64x256xf32>
    %438 = arith.truncf %437 : vector<64x256xf32> to vector<64x256xbf16>
    %cst_370 = arith.constant dense<0.000000e+00> : vector<16x256xf32>
    %439 = tpu.matmul %429, %438, %cst_370 {dimension_numbers = #tpu.dot_dimension_numbers<[1], [0], [0], [1], [0, 0, 1, 1], [], []>} : vector<16x64xbf16>, vector<64x256xbf16>, vector<16x256xf32> -> vector<16x256xf32>
    %c2_371 = arith.constant 2 : index
    %c0_372 = arith.constant 0 : index
    %c0_373 = arith.constant 0 : index
    %440 = vector.load %arg22[%c2_371, %c0_372, %c0_373] : memref<16x64x256xi8, #tpu.memory_space<vmem>>, vector<1x64x256xi8>
    %441 = vector.shape_cast %440 : vector<1x64x256xi8> to vector<64x256xi8>
    %442 = arith.sitofp %441 : vector<64x256xi8> to vector<64x256xf32>
    %443 = arith.truncf %442 : vector<64x256xf32> to vector<64x256xbf16>
    %cst_374 = arith.constant dense<0.000000e+00> : vector<16x256xf32>
    %444 = tpu.matmul %429, %443, %cst_374 {dimension_numbers = #tpu.dot_dimension_numbers<[1], [0], [0], [1], [0, 0, 1, 1], [], []>} : vector<16x64xbf16>, vector<64x256xbf16>, vector<16x256xf32> -> vector<16x256xf32>
    %c3_375 = arith.constant 3 : index
    %c0_376 = arith.constant 0 : index
    %c0_377 = arith.constant 0 : index
    %445 = vector.load %arg22[%c3_375, %c0_376, %c0_377] : memref<16x64x256xi8, #tpu.memory_space<vmem>>, vector<1x64x256xi8>
    %446 = vector.shape_cast %445 : vector<1x64x256xi8> to vector<64x256xi8>
    %447 = arith.sitofp %446 : vector<64x256xi8> to vector<64x256xf32>
    %448 = arith.truncf %447 : vector<64x256xf32> to vector<64x256xbf16>
    %cst_378 = arith.constant dense<0.000000e+00> : vector<16x256xf32>
    %449 = tpu.matmul %429, %448, %cst_378 {dimension_numbers = #tpu.dot_dimension_numbers<[1], [0], [0], [1], [0, 0, 1, 1], [], []>} : vector<16x64xbf16>, vector<64x256xbf16>, vector<16x256xf32> -> vector<16x256xf32>
    %c4_379 = arith.constant 4 : index
    %c0_380 = arith.constant 0 : index
    %c0_381 = arith.constant 0 : index
    %450 = vector.load %arg22[%c4_379, %c0_380, %c0_381] : memref<16x64x256xi8, #tpu.memory_space<vmem>>, vector<1x64x256xi8>
    %451 = vector.shape_cast %450 : vector<1x64x256xi8> to vector<64x256xi8>
    %452 = arith.sitofp %451 : vector<64x256xi8> to vector<64x256xf32>
    %453 = arith.truncf %452 : vector<64x256xf32> to vector<64x256xbf16>
    %cst_382 = arith.constant dense<0.000000e+00> : vector<16x256xf32>
    %454 = tpu.matmul %429, %453, %cst_382 {dimension_numbers = #tpu.dot_dimension_numbers<[1], [0], [0], [1], [0, 0, 1, 1], [], []>} : vector<16x64xbf16>, vector<64x256xbf16>, vector<16x256xf32> -> vector<16x256xf32>
    %c5_383 = arith.constant 5 : index
    %c0_384 = arith.constant 0 : index
    %c0_385 = arith.constant 0 : index
    %455 = vector.load %arg22[%c5_383, %c0_384, %c0_385] : memref<16x64x256xi8, #tpu.memory_space<vmem>>, vector<1x64x256xi8>
    %456 = vector.shape_cast %455 : vector<1x64x256xi8> to vector<64x256xi8>
    %457 = arith.sitofp %456 : vector<64x256xi8> to vector<64x256xf32>
    %458 = arith.truncf %457 : vector<64x256xf32> to vector<64x256xbf16>
    %cst_386 = arith.constant dense<0.000000e+00> : vector<16x256xf32>
    %459 = tpu.matmul %429, %458, %cst_386 {dimension_numbers = #tpu.dot_dimension_numbers<[1], [0], [0], [1], [0, 0, 1, 1], [], []>} : vector<16x64xbf16>, vector<64x256xbf16>, vector<16x256xf32> -> vector<16x256xf32>
    %c6_387 = arith.constant 6 : index
    %c0_388 = arith.constant 0 : index
    %c0_389 = arith.constant 0 : index
    %460 = vector.load %arg22[%c6_387, %c0_388, %c0_389] : memref<16x64x256xi8, #tpu.memory_space<vmem>>, vector<1x64x256xi8>
    %461 = vector.shape_cast %460 : vector<1x64x256xi8> to vector<64x256xi8>
    %462 = arith.sitofp %461 : vector<64x256xi8> to vector<64x256xf32>
    %463 = arith.truncf %462 : vector<64x256xf32> to vector<64x256xbf16>
    %cst_390 = arith.constant dense<0.000000e+00> : vector<16x256xf32>
    %464 = tpu.matmul %429, %463, %cst_390 {dimension_numbers = #tpu.dot_dimension_numbers<[1], [0], [0], [1], [0, 0, 1, 1], [], []>} : vector<16x64xbf16>, vector<64x256xbf16>, vector<16x256xf32> -> vector<16x256xf32>
    %c7_391 = arith.constant 7 : index
    %c0_392 = arith.constant 0 : index
    %c0_393 = arith.constant 0 : index
    %465 = vector.load %arg22[%c7_391, %c0_392, %c0_393] : memref<16x64x256xi8, #tpu.memory_space<vmem>>, vector<1x64x256xi8>
    %466 = vector.shape_cast %465 : vector<1x64x256xi8> to vector<64x256xi8>
    %467 = arith.sitofp %466 : vector<64x256xi8> to vector<64x256xf32>
    %468 = arith.truncf %467 : vector<64x256xf32> to vector<64x256xbf16>
    %cst_394 = arith.constant dense<0.000000e+00> : vector<16x256xf32>
    %469 = tpu.matmul %429, %468, %cst_394 {dimension_numbers = #tpu.dot_dimension_numbers<[1], [0], [0], [1], [0, 0, 1, 1], [], []>} : vector<16x64xbf16>, vector<64x256xbf16>, vector<16x256xf32> -> vector<16x256xf32>
    %c8_395 = arith.constant 8 : index
    %c0_396 = arith.constant 0 : index
    %c0_397 = arith.constant 0 : index
    %470 = vector.load %arg22[%c8_395, %c0_396, %c0_397] : memref<16x64x256xi8, #tpu.memory_space<vmem>>, vector<1x64x256xi8>
    %471 = vector.shape_cast %470 : vector<1x64x256xi8> to vector<64x256xi8>
    %472 = arith.sitofp %471 : vector<64x256xi8> to vector<64x256xf32>
    %473 = arith.truncf %472 : vector<64x256xf32> to vector<64x256xbf16>
    %cst_398 = arith.constant dense<0.000000e+00> : vector<16x256xf32>
    %474 = tpu.matmul %429, %473, %cst_398 {dimension_numbers = #tpu.dot_dimension_numbers<[1], [0], [0], [1], [0, 0, 1, 1], [], []>} : vector<16x64xbf16>, vector<64x256xbf16>, vector<16x256xf32> -> vector<16x256xf32>
    %c9_399 = arith.constant 9 : index
    %c0_400 = arith.constant 0 : index
    %c0_401 = arith.constant 0 : index
    %475 = vector.load %arg22[%c9_399, %c0_400, %c0_401] : memref<16x64x256xi8, #tpu.memory_space<vmem>>, vector<1x64x256xi8>
    %476 = vector.shape_cast %475 : vector<1x64x256xi8> to vector<64x256xi8>
    %477 = arith.sitofp %476 : vector<64x256xi8> to vector<64x256xf32>
    %478 = arith.truncf %477 : vector<64x256xf32> to vector<64x256xbf16>
    %cst_402 = arith.constant dense<0.000000e+00> : vector<16x256xf32>
    %479 = tpu.matmul %429, %478, %cst_402 {dimension_numbers = #tpu.dot_dimension_numbers<[1], [0], [0], [1], [0, 0, 1, 1], [], []>} : vector<16x64xbf16>, vector<64x256xbf16>, vector<16x256xf32> -> vector<16x256xf32>
    %c10_403 = arith.constant 10 : index
    %c0_404 = arith.constant 0 : index
    %c0_405 = arith.constant 0 : index
    %480 = vector.load %arg22[%c10_403, %c0_404, %c0_405] : memref<16x64x256xi8, #tpu.memory_space<vmem>>, vector<1x64x256xi8>
    %481 = vector.shape_cast %480 : vector<1x64x256xi8> to vector<64x256xi8>
    %482 = arith.sitofp %481 : vector<64x256xi8> to vector<64x256xf32>
    %483 = arith.truncf %482 : vector<64x256xf32> to vector<64x256xbf16>
    %cst_406 = arith.constant dense<0.000000e+00> : vector<16x256xf32>
    %484 = tpu.matmul %429, %483, %cst_406 {dimension_numbers = #tpu.dot_dimension_numbers<[1], [0], [0], [1], [0, 0, 1, 1], [], []>} : vector<16x64xbf16>, vector<64x256xbf16>, vector<16x256xf32> -> vector<16x256xf32>
    %c11_407 = arith.constant 11 : index
    %c0_408 = arith.constant 0 : index
    %c0_409 = arith.constant 0 : index
    %485 = vector.load %arg22[%c11_407, %c0_408, %c0_409] : memref<16x64x256xi8, #tpu.memory_space<vmem>>, vector<1x64x256xi8>
    %486 = vector.shape_cast %485 : vector<1x64x256xi8> to vector<64x256xi8>
    %487 = arith.sitofp %486 : vector<64x256xi8> to vector<64x256xf32>
    %488 = arith.truncf %487 : vector<64x256xf32> to vector<64x256xbf16>
    %cst_410 = arith.constant dense<0.000000e+00> : vector<16x256xf32>
    %489 = tpu.matmul %429, %488, %cst_410 {dimension_numbers = #tpu.dot_dimension_numbers<[1], [0], [0], [1], [0, 0, 1, 1], [], []>} : vector<16x64xbf16>, vector<64x256xbf16>, vector<16x256xf32> -> vector<16x256xf32>
    %c12_411 = arith.constant 12 : index
    %c0_412 = arith.constant 0 : index
    %c0_413 = arith.constant 0 : index
    %490 = vector.load %arg22[%c12_411, %c0_412, %c0_413] : memref<16x64x256xi8, #tpu.memory_space<vmem>>, vector<1x64x256xi8>
    %491 = vector.shape_cast %490 : vector<1x64x256xi8> to vector<64x256xi8>
    %492 = arith.sitofp %491 : vector<64x256xi8> to vector<64x256xf32>
    %493 = arith.truncf %492 : vector<64x256xf32> to vector<64x256xbf16>
    %cst_414 = arith.constant dense<0.000000e+00> : vector<16x256xf32>
    %494 = tpu.matmul %429, %493, %cst_414 {dimension_numbers = #tpu.dot_dimension_numbers<[1], [0], [0], [1], [0, 0, 1, 1], [], []>} : vector<16x64xbf16>, vector<64x256xbf16>, vector<16x256xf32> -> vector<16x256xf32>
    %c13_415 = arith.constant 13 : index
    %c0_416 = arith.constant 0 : index
    %c0_417 = arith.constant 0 : index
    %495 = vector.load %arg22[%c13_415, %c0_416, %c0_417] : memref<16x64x256xi8, #tpu.memory_space<vmem>>, vector<1x64x256xi8>
    %496 = vector.shape_cast %495 : vector<1x64x256xi8> to vector<64x256xi8>
    %497 = arith.sitofp %496 : vector<64x256xi8> to vector<64x256xf32>
    %498 = arith.truncf %497 : vector<64x256xf32> to vector<64x256xbf16>
    %cst_418 = arith.constant dense<0.000000e+00> : vector<16x256xf32>
    %499 = tpu.matmul %429, %498, %cst_418 {dimension_numbers = #tpu.dot_dimension_numbers<[1], [0], [0], [1], [0, 0, 1, 1], [], []>} : vector<16x64xbf16>, vector<64x256xbf16>, vector<16x256xf32> -> vector<16x256xf32>
    %c14_419 = arith.constant 14 : index
    %c0_420 = arith.constant 0 : index
    %c0_421 = arith.constant 0 : index
    %500 = vector.load %arg22[%c14_419, %c0_420, %c0_421] : memref<16x64x256xi8, #tpu.memory_space<vmem>>, vector<1x64x256xi8>
    %501 = vector.shape_cast %500 : vector<1x64x256xi8> to vector<64x256xi8>
    %502 = arith.sitofp %501 : vector<64x256xi8> to vector<64x256xf32>
    %503 = arith.truncf %502 : vector<64x256xf32> to vector<64x256xbf16>
    %cst_422 = arith.constant dense<0.000000e+00> : vector<16x256xf32>
    %504 = tpu.matmul %429, %503, %cst_422 {dimension_numbers = #tpu.dot_dimension_numbers<[1], [0], [0], [1], [0, 0, 1, 1], [], []>} : vector<16x64xbf16>, vector<64x256xbf16>, vector<16x256xf32> -> vector<16x256xf32>
    %c15_423 = arith.constant 15 : index
    %c0_424 = arith.constant 0 : index
    %c0_425 = arith.constant 0 : index
    %505 = vector.load %arg22[%c15_423, %c0_424, %c0_425] : memref<16x64x256xi8, #tpu.memory_space<vmem>>, vector<1x64x256xi8>
    %506 = vector.shape_cast %505 : vector<1x64x256xi8> to vector<64x256xi8>
    %507 = arith.sitofp %506 : vector<64x256xi8> to vector<64x256xf32>
    %508 = arith.truncf %507 : vector<64x256xf32> to vector<64x256xbf16>
    %cst_426 = arith.constant dense<0.000000e+00> : vector<16x256xf32>
    %509 = tpu.matmul %429, %508, %cst_426 {dimension_numbers = #tpu.dot_dimension_numbers<[1], [0], [0], [1], [0, 0, 1, 1], [], []>} : vector<16x64xbf16>, vector<64x256xbf16>, vector<16x256xf32> -> vector<16x256xf32>
    %510 = tpu.concatenate %434, %439, %444, %449, %454, %459, %464, %469, %474, %479, %484, %489, %494, %499, %504, %509 in 0 : vector<16x256xf32>, vector<16x256xf32>, vector<16x256xf32>, vector<16x256xf32>, vector<16x256xf32>, vector<16x256xf32>, vector<16x256xf32>, vector<16x256xf32>, vector<16x256xf32>, vector<16x256xf32>, vector<16x256xf32>, vector<16x256xf32>, vector<16x256xf32>, vector<16x256xf32>, vector<16x256xf32>, vector<16x256xf32> -> vector<256x256xf32>
    %511 = arith.truncf %510 : vector<256x256xf32> to vector<256x256xbf16>
    %cst_427 = arith.constant dense<0.000000e+00> : vector<6x256xf32>
    %512 = tpu.matmul %428, %511, %cst_427 {dimension_numbers = #tpu.dot_dimension_numbers<[1], [0], [0], [1], [0, 0, 1, 1], [], []>} : vector<6x256xbf16>, vector<256x256xbf16>, vector<6x256xf32> -> vector<6x256xf32>
    %513 = math.tanh %512 : vector<6x256xf32>
    %c0_428 = arith.constant 0 : index
    %c0_429 = arith.constant 0 : index
    %514 = vector.load %arg21[%c0_428, %c0_429] : memref<6x256xf32, #tpu.memory_space<vmem>>, vector<6x256xf32>
    tpu.vector_store %arg21[%c0_428, %c0_429], %513 {strides = array<i32>} : memref<6x256xf32, #tpu.memory_space<vmem>>, vector<6x256xf32>,
    return
  }
}

</mosaic_0001>

<llo_original>
// kernel: netG_forward.1
$region0: #{netG_forward.1}
  #allocation0 [shape = 'u32[]', space=smem, size = 0x4, offset = 0x4, fixed_abs, tag = 'smem constant byte address 0x4 - core index']
  #allocation1 [shape = 'u32[144,128]{1,0:T(1,128)}', space=vmem, size = 0x12000, scoped, tag = 'internal scratch']
  #allocation2 [shape = 's8[16,64,256]{2,1,0:T(32,128)(4,1)}', space=vmem, size = 0x40000, scoped, tag = 'scratch operand']
  #allocation3 [shape = 's32[1]{0}', space=sflag, size = 0x4, scoped, tag = 'scratch operand']
  #allocation4 [shape = 's32[]', space=sflag, size = 0x4, offset = 0, fixed_abs, tag = 'sflag constant byte address 0x0 - dummy sync flag']
  %s0 = inlined_call_operand.vmem [shape: f32[8,256], index: 0, kind: input, shape index: {}]
  %s1 = inlined_call_operand.vmem [shape: f32[32,1], index: 1, kind: input, shape index: {}]
  %s2 = inlined_call_operand.vmem [shape: bf16[16,128], index: 2, kind: input, shape index: {}]
  %s3 = inlined_call_operand.vmem [shape: s8[16,256,64], index: 3, kind: input, shape index: {}]
  %s4 = inlined_call_operand.vmem [shape: bf16[32,256], index: 4, kind: input, shape index: {}]
  %s5 = inlined_call_operand.vmem [shape: bf16[16,64,16], index: 5, kind: input, shape index: {}]
  %s6 = inlined_call_operand.vmem [shape: f32[32,1], index: 6, kind: input, shape index: {}]
  %s7 = inlined_call_operand.vmem [shape: f32[32,1], index: 7, kind: input, shape index: {}]
  %s8 = inlined_call_operand.vmem [shape: bf16[64,512], index: 8, kind: input, shape index: {}]
  %s9 = inlined_call_operand.vmem [shape: bf16[16,16,1], index: 9, kind: input, shape index: {}]
  %s10 = inlined_call_operand.vmem [shape: f32[64,1], index: 10, kind: input, shape index: {}]
  %s11 = inlined_call_operand.vmem [shape: bf16[32,512], index: 11, kind: input, shape index: {}]
  %s12 = inlined_call_operand.vmem [shape: bf16[16,1,16], index: 12, kind: input, shape index: {}]
  %s13 = inlined_call_operand.vmem [shape: f32[32,1], index: 13, kind: input, shape index: {}]
  %s14 = inlined_call_operand.vmem [shape: f32[32,1], index: 14, kind: input, shape index: {}]
  %s15 = inlined_call_operand.vmem [shape: bf16[16,512], index: 15, kind: input, shape index: {}]
  %s16 = inlined_call_operand.vmem [shape: bf16[16,16,64], index: 16, kind: input, shape index: {}]
  %s17 = inlined_call_operand.vmem [shape: f32[16,1], index: 17, kind: input, shape index: {}]
  %s18 = inlined_call_operand.vmem [shape: f32[16,1], index: 18, kind: input, shape index: {}]
  %s19 = inlined_call_operand.vmem [shape: bf16[6,256], index: 19, kind: input, shape index: {}]
  %s20 = inlined_call_operand.vmem [shape: s8[16,64,256], index: 20, kind: input, shape index: {}]
  %s21 = inlined_call_operand.vmem [shape: f32[6,256], index: 21, kind: output, shape index: {}]
  %s22 = sld [smem:[#allocation0]]
  $region124: #{netG_forward.1} parent=0
    _
  %s24 = ssub.s32 1, %s22
  %s25 = scalar_select 0, %s24, %s22
  // Predicated region
  $region2: #{netG_forward.1} parent=0 // pred_check
    _
  $region3: #{netG_forward.1} parent=0 // pred_check_branch
    %27 = sbr.rel (0) target = $region5
  $region4: #{netG_forward.1} parent=0 // pred_region
    _
  $region5: #{netG_forward.1} parent=0 // pred_fallthru
    _
  // Predicated region
  $region6: #{netG_forward.1} parent=0 // pred_check
    _
  $region7: #{netG_forward.1} parent=0 // pred_check_branch
    %29 = sbr.rel (0) target = $region9
  $region8: #{netG_forward.1} parent=0 // pred_region
    _
  $region9: #{netG_forward.1} parent=0 // pred_fallthru
    _
  // Predicated region
  $region10: #{netG_forward.1} parent=0 // pred_check
    _
  $region11: #{netG_forward.1} parent=0 // pred_check_branch
    %31 = sbr.rel (0) target = $region13
  $region12: #{netG_forward.1} parent=0 // pred_region
    _
  $region13: #{netG_forward.1} parent=0 // pred_fallthru
    _
  // Predicated region
  $region14: #{netG_forward.1} parent=0 // pred_check
    _
  $region15: #{netG_forward.1} parent=0 // pred_check_branch
    %33 = sbr.rel (0) target = $region17
  $region16: #{netG_forward.1} parent=0 // pred_region
    _
  $region17: #{netG_forward.1} parent=0 // pred_fallthru
    _
  // Predicated region
  $region18: #{netG_forward.1} parent=0 // pred_check
    _
  $region19: #{netG_forward.1} parent=0 // pred_check_branch
    %35 = sbr.rel (0) target = $region21
  $region20: #{netG_forward.1} parent=0 // pred_region
    _
  $region21: #{netG_forward.1} parent=0 // pred_fallthru
    _
  // Predicated region
  $region22: #{netG_forward.1} parent=0 // pred_check
    _
  $region23: #{netG_forward.1} parent=0 // pred_check_branch
    %37 = sbr.rel (0) target = $region25
  $region24: #{netG_forward.1} parent=0 // pred_region
    _
  $region25: #{netG_forward.1} parent=0 // pred_fallthru
    _
  // Predicated region
  $region26: #{netG_forward.1} parent=0 // pred_check
    _
  $region27: #{netG_forward.1} parent=0 // pred_check_branch
    %39 = sbr.rel (0) target = $region29
  $region28: #{netG_forward.1} parent=0 // pred_region
    _
  $region29: #{netG_forward.1} parent=0 // pred_fallthru
    _
  // Predicated region
  $region30: #{netG_forward.1} parent=0 // pred_check
    _
  $region31: #{netG_forward.1} parent=0 // pred_check_branch
    %41 = sbr.rel (0) target = $region33
  $region32: #{netG_forward.1} parent=0 // pred_region
    _
  $region33: #{netG_forward.1} parent=0 // pred_fallthru
    _
  // Predicated region
  $region34: #{netG_forward.1} parent=0 // pred_check
    _
  $region35: #{netG_forward.1} parent=0 // pred_check_branch
    %43 = sbr.rel (0) target = $region37
  $region36: #{netG_forward.1} parent=0 // pred_region
    _
  $region37: #{netG_forward.1} parent=0 // pred_fallthru
    _
  // Predicated region
  $region38: #{netG_forward.1} parent=0 // pred_check
    _
  $region39: #{netG_forward.1} parent=0 // pred_check_branch
    %45 = sbr.rel (0) target = $region41
  $region40: #{netG_forward.1} parent=0 // pred_region
    _
  $region41: #{netG_forward.1} parent=0 // pred_fallthru
    _
  // Predicated region
  $region42: #{netG_forward.1} parent=0 // pred_check
    _
  $region43: #{netG_forward.1} parent=0 // pred_check_branch
    %47 = sbr.rel (0) target = $region45
  $region44: #{netG_forward.1} parent=0 // pred_region
    _
  $region45: #{netG_forward.1} parent=0 // pred_fallthru
    _
  // Predicated region
  $region46: #{netG_forward.1} parent=0 // pred_check
    _
  $region47: #{netG_forward.1} parent=0 // pred_check_branch
    %49 = sbr.rel (0) target = $region49
  $region48: #{netG_forward.1} parent=0 // pred_region
    _
  $region49: #{netG_forward.1} parent=0 // pred_fallthru
    _
  // Predicated region
  $region50: #{netG_forward.1} parent=0 // pred_check
    _
  $region51: #{netG_forward.1} parent=0 // pred_check_branch
    %51 = sbr.rel (0) target = $region53
  $region52: #{netG_forward.1} parent=0 // pred_region
    _
  $region53: #{netG_forward.1} parent=0 // pred_fallthru
    _
  // Predicated region
  $region54: #{netG_forward.1} parent=0 // pred_check
    _
  $region55: #{netG_forward.1} parent=0 // pred_check_branch
    %53 = sbr.rel (0) target = $region57
  $region56: #{netG_forward.1} parent=0 // pred_region
    _
  $region57: #{netG_forward.1} parent=0 // pred_fallthru
    _
  // Predicated region
  $region58: #{netG_forward.1} parent=0 // pred_check
    _
  $region59: #{netG_forward.1} parent=0 // pred_check_branch
    %55 = sbr.rel (0) target = $region61
  $region60: #{netG_forward.1} parent=0 // pred_region
    _
  $region61: #{netG_forward.1} parent=0 // pred_fallthru
    _
  // Predicated region
  $region62: #{netG_forward.1} parent=0 // pred_check
    _
  $region63: #{netG_forward.1} parent=0 // pred_check_branch
    %57 = sbr.rel (0) target = $region65
  $region64: #{netG_forward.1} parent=0 // pred_region
    _
  $region65: #{netG_forward.1} parent=0 // pred_fallthru
    _
  // Predicated region
  $region66: #{netG_forward.1} parent=0 // pred_check
    _
  $region67: #{netG_forward.1} parent=0 // pred_check_branch
    %59 = sbr.rel (0) target = $region69
  $region68: #{netG_forward.1} parent=0 // pred_region
    _
  $region69: #{netG_forward.1} parent=0 // pred_fallthru
    _
  // Predicated region
  $region70: #{netG_forward.1} parent=0 // pred_check
    _
  $region71: #{netG_forward.1} parent=0 // pred_check_branch
    %61 = sbr.rel (0) target = $region73
  $region72: #{netG_forward.1} parent=0 // pred_region
    _
  $region73: #{netG_forward.1} parent=0 // pred_fallthru
    _
  // Predicated region
  $region74: #{netG_forward.1} parent=0 // pred_check
    _
  $region75: #{netG_forward.1} parent=0 // pred_check_branch
    %63 = sbr.rel (0) target = $region77
  $region76: #{netG_forward.1} parent=0 // pred_region
    _
  $region77: #{netG_forward.1} parent=0 // pred_fallthru
    _
  // Predicated region
  $region78: #{netG_forward.1} parent=0 // pred_check
    _
  $region79: #{netG_forward.1} parent=0 // pred_check_branch
    %65 = sbr.rel (0) target = $region81
  $region80: #{netG_forward.1} parent=0 // pred_region
    _
  $region81: #{netG_forward.1} parent=0 // pred_fallthru
    _
  %p68 = scmp.lt.u32.totalorder 512, 8
  %p69 = pneg %p68
  // Predicated region
  $region82: #{netG_forward.1} parent=0 // pred_check
    _
  $region83: #{netG_forward.1} parent=0 // pred_check_branch
    %71 = sbr.rel (%p68) target = $region85
  $region84: #{netG_forward.1} parent=0 // pred_region
    %s86 = sand.u32 512, 7
    %p87 = scmp.eq.s32.totalorder %s86, 0
    // Predicated region
    $region97: #{netG_forward.1} parent=84 // pred_check
      %p88 = pneg %p87
    $region98: #{netG_forward.1} parent=84 // pred_check_branch
      %90 = sbr.rel (%p88) target = $region100
    $region99: #{netG_forward.1} parent=84 // pred_region
      loop: start=0, step=1, limit=1
      $region101: #{netG_forward.1} parent=99 // loop_pre_header
        _
      $region102: #{netG_forward.1} parent=99 // loop_header
        %s92 = sphi 0, %s96
        %p93 = scmp.ge.s32.totalorder %s92, 1
        %s97 = sphi %s20, %s20
        %s98 = sphi [#allocation2], [#allocation2]
      $region103: #{netG_forward.1} parent=99 // loop_header_branch
        %95 = sbr.rel (%p93) target = $region107
      $region104: #{netG_forward.1} parent=99 // loop_body
        %v99 = vld [vmem:[%s97] sm:$0xff]
        %100 = vst [vmem:[%s98] sm:$0xff] %v99
        %v101 = vld [vmem:[%s97 + $0x8] sm:$0xff]
        %102 = vst [vmem:[%s98 + $0x8] sm:$0xff] %v101
        %v103 = vld [vmem:[%s97 + $0x10] sm:$0xff]
        %104 = vst [vmem:[%s98 + $0x10] sm:$0xff] %v103
        %v105 = vld [vmem:[%s97 + $0x18] sm:$0xff]
        %106 = vst [vmem:[%s98 + $0x18] sm:$0xff] %v105
        %v107 = vld [vmem:[%s97 + $0x20] sm:$0xff]
        %108 = vst [vmem:[%s98 + $0x20] sm:$0xff] %v107
        %v109 = vld [vmem:[%s97 + $0x28] sm:$0xff]
        %110 = vst [vmem:[%s98 + $0x28] sm:$0xff] %v109
        %v111 = vld [vmem:[%s97 + $0x30] sm:$0xff]
        %112 = vst [vmem:[%s98 + $0x30] sm:$0xff] %v111
        %v113 = vld [vmem:[%s97 + $0x38] sm:$0xff]
        %114 = vst [vmem:[%s98 + $0x38] sm:$0xff] %v113
        %v115 = vld [vmem:[%s97 + $0x40] sm:$0xff]
        %116 = vst [vmem:[%s98 + $0x40] sm:$0xff] %v115
        %v117 = vld [vmem:[%s97 + $0x48] sm:$0xff]
        %118 = vst [vmem:[%s98 + $0x48] sm:$0xff] %v117
        %v119 = vld [vmem:[%s97 + $0x50] sm:$0xff]
        %120 = vst [vmem:[%s98 + $0x50] sm:$0xff] %v119
        %v121 = vld [vmem:[%s97 + $0x58] sm:$0xff]
        %122 = vst [vmem:[%s98 + $0x58] sm:$0xff] %v121
        %v123 = vld [vmem:[%s97 + $0x60] sm:$0xff]
        %124 = vst [vmem:[%s98 + $0x60] sm:$0xff] %v123
        %v125 = vld [vmem:[%s97 + $0x68] sm:$0xff]
        %126 = vst [vmem:[%s98 + $0x68] sm:$0xff] %v125
        %v127 = vld [vmem:[%s97 + $0x70] sm:$0xff]
        %128 = vst [vmem:[%s98 + $0x70] sm:$0xff] %v127
        %v129 = vld [vmem:[%s97 + $0x78] sm:$0xff]
        %130 = vst [vmem:[%s98 + $0x78] sm:$0xff] %v129
        %v131 = vld [vmem:[%s97 + $0x80] sm:$0xff]
        %132 = vst [vmem:[%s98 + $0x80] sm:$0xff] %v131
        %v133 = vld [vmem:[%s97 + $0x88] sm:$0xff]
        %134 = vst [vmem:[%s98 + $0x88] sm:$0xff] %v133
        %v135 = vld [vmem:[%s97 + $0x90] sm:$0xff]
        %136 = vst [vmem:[%s98 + $0x90] sm:$0xff] %v135
        %v137 = vld [vmem:[%s97 + $0x98] sm:$0xff]
        %138 = vst [vmem:[%s98 + $0x98] sm:$0xff] %v137
        %v139 = vld [vmem:[%s97 + $0xa0] sm:$0xff]
        %140 = vst [vmem:[%s98 + $0xa0] sm:$0xff] %v139
        %v141 = vld [vmem:[%s97 + $0xa8] sm:$0xff]
        %142 = vst [vmem:[%s98 + $0xa8] sm:$0xff] %v141
        %v143 = vld [vmem:[%s97 + $0xb0] sm:$0xff]
        %144 = vst [vmem:[%s98 + $0xb0] sm:$0xff] %v143
        %v145 = vld [vmem:[%s97 + $0xb8] sm:$0xff]
        %146 = vst [vmem:[%s98 + $0xb8] sm:$0xff] %v145
        %v147 = vld [vmem:[%s97 + $0xc0] sm:$0xff]
        %148 = vst [vmem:[%s98 + $0xc0] sm:$0xff] %v147
        %v149 = vld [vmem:[%s97 + $0xc8] sm:$0xff]
        %150 = vst [vmem:[%s98 + $0xc8] sm:$0xff] %v149
        %v151 = vld [vmem:[%s97 + $0xd0] sm:$0xff]
        %152 = vst [vmem:[%s98 + $0xd0] sm:$0xff] %v151
        %v153 = vld [vmem:[%s97 + $0xd8] sm:$0xff]
        %154 = vst [vmem:[%s98 + $0xd8] sm:$0xff] %v153
        %v155 = vld [vmem:[%s97 + $0xe0] sm:$0xff]
        %156 = vst [vmem:[%s98 + $0xe0] sm:$0xff] %v155
        %v157 = vld [vmem:[%s97 + $0xe8] sm:$0xff]
        %158 = vst [vmem:[%s98 + $0xe8] sm:$0xff] %v157
        %v159 = vld [vmem:[%s97 + $0xf0] sm:$0xff]
        %160 = vst [vmem:[%s98 + $0xf0] sm:$0xff] %v159
        %v161 = vld [vmem:[%s97 + $0xf8] sm:$0xff]
        %162 = vst [vmem:[%s98 + $0xf8] sm:$0xff] %v161
        %v163 = vld [vmem:[%s97 + $0x100] sm:$0xff]
        %164 = vst [vmem:[%s98 + $0x100] sm:$0xff] %v163
        %v165 = vld [vmem:[%s97 + $0x108] sm:$0xff]
        %166 = vst [vmem:[%s98 + $0x108] sm:$0xff] %v165
        %v167 = vld [vmem:[%s97 + $0x110] sm:$0xff]
        %168 = vst [vmem:[%s98 + $0x110] sm:$0xff] %v167
        %v169 = vld [vmem:[%s97 + $0x118] sm:$0xff]
        %170 = vst [vmem:[%s98 + $0x118] sm:$0xff] %v169
        %v171 = vld [vmem:[%s97 + $0x120] sm:$0xff]
        %172 = vst [vmem:[%s98 + $0x120] sm:$0xff] %v171
        %v173 = vld [vmem:[%s97 + $0x128] sm:$0xff]
        %174 = vst [vmem:[%s98 + $0x128] sm:$0xff] %v173
        %v175 = vld [vmem:[%s97 + $0x130] sm:$0xff]
        %176 = vst [vmem:[%s98 + $0x130] sm:$0xff] %v175
        %v177 = vld [vmem:[%s97 + $0x138] sm:$0xff]
        %178 = vst [vmem:[%s98 + $0x138] sm:$0xff] %v177
        %v179 = vld [vmem:[%s97 + $0x140] sm:$0xff]
        %180 = vst [vmem:[%s98 + $0x140] sm:$0xff] %v179
        %v181 = vld [vmem:[%s97 + $0x148] sm:$0xff]
        %182 = vst [vmem:[%s98 + $0x148] sm:$0xff] %v181
        %v183 = vld [vmem:[%s97 + $0x150] sm:$0xff]
        %184 = vst [vmem:[%s98 + $0x150] sm:$0xff] %v183
        %v185 = vld [vmem:[%s97 + $0x158] sm:$0xff]
        %186 = vst [vmem:[%s98 + $0x158] sm:$0xff] %v185
        %v187 = vld [vmem:[%s97 + $0x160] sm:$0xff]
        %188 = vst [vmem:[%s98 + $0x160] sm:$0xff] %v187
        %v189 = vld [vmem:[%s97 + $0x168] sm:$0xff]
        %190 = vst [vmem:[%s98 + $0x168] sm:$0xff] %v189
        %v191 = vld [vmem:[%s97 + $0x170] sm:$0xff]
        %192 = vst [vmem:[%s98 + $0x170] sm:$0xff] %v191
        %v193 = vld [vmem:[%s97 + $0x178] sm:$0xff]
        %194 = vst [vmem:[%s98 + $0x178] sm:$0xff] %v193
        %v195 = vld [vmem:[%s97 + $0x180] sm:$0xff]
        %196 = vst [vmem:[%s98 + $0x180] sm:$0xff] %v195
        %v197 = vld [vmem:[%s97 + $0x188] sm:$0xff]
        %198 = vst [vmem:[%s98 + $0x188] sm:$0xff] %v197
        %v199 = vld [vmem:[%s97 + $0x190] sm:$0xff]
        %200 = vst [vmem:[%s98 + $0x190] sm:$0xff] %v199
        %v201 = vld [vmem:[%s97 + $0x198] sm:$0xff]
        %202 = vst [vmem:[%s98 + $0x198] sm:$0xff] %v201
        %v203 = vld [vmem:[%s97 + $0x1a0] sm:$0xff]
        %204 = vst [vmem:[%s98 + $0x1a0] sm:$0xff] %v203
        %v205 = vld [vmem:[%s97 + $0x1a8] sm:$0xff]
        %206 = vst [vmem:[%s98 + $0x1a8] sm:$0xff] %v205
        %v207 = vld [vmem:[%s97 + $0x1b0] sm:$0xff]
        %208 = vst [vmem:[%s98 + $0x1b0] sm:$0xff] %v207
        %v209 = vld [vmem:[%s97 + $0x1b8] sm:$0xff]
        %210 = vst [vmem:[%s98 + $0x1b8] sm:$0xff] %v209
        %v211 = vld [vmem:[%s97 + $0x1c0] sm:$0xff]
        %212 = vst [vmem:[%s98 + $0x1c0] sm:$0xff] %v211
        %v213 = vld [vmem:[%s97 + $0x1c8] sm:$0xff]
        %214 = vst [vmem:[%s98 + $0x1c8] sm:$0xff] %v213
        %v215 = vld [vmem:[%s97 + $0x1d0] sm:$0xff]
        %216 = vst [vmem:[%s98 + $0x1d0] sm:$0xff] %v215
        %v217 = vld [vmem:[%s97 + $0x1d8] sm:$0xff]
        %218 = vst [vmem:[%s98 + $0x1d8] sm:$0xff] %v217
        %v219 = vld [vmem:[%s97 + $0x1e0] sm:$0xff]
        %220 = vst [vmem:[%s98 + $0x1e0] sm:$0xff] %v219
        %v221 = vld [vmem:[%s97 + $0x1e8] sm:$0xff]
        %222 = vst [vmem:[%s98 + $0x1e8] sm:$0xff] %v221
        %v223 = vld [vmem:[%s97 + $0x1f0] sm:$0xff]
        %224 = vst [vmem:[%s98 + $0x1f0] sm:$0xff] %v223
        %v225 = vld [vmem:[%s97 + $0x1f8] sm:$0xff]
        %226 = vst [vmem:[%s98 + $0x1f8] sm:$0xff] %v225
      $region105: #{netG_forward.1} parent=99 // loop_footer
        %s96 = sadd.s32 1, %s92
      $region106: #{netG_forward.1} parent=99 // loop_footer_branch
        %91 = sbr.rel target = $region102
      $region107: #{netG_forward.1} parent=99 // loop_exit
        _
    $region100: #{netG_forward.1} parent=84 // pred_fallthru
      _
    %p227 = pneg %p87
    // Predicated region
    $region108: #{netG_forward.1} parent=84 // pred_check
      _
    $region109: #{netG_forward.1} parent=84 // pred_check_branch
      %229 = sbr.rel (%p87) target = $region111
    $region110: #{netG_forward.1} parent=84 // pred_region
      %s230 = sand.u32 512, 7
    $region111: #{netG_forward.1} parent=84 // pred_fallthru
      _
  $region85: #{netG_forward.1} parent=0 // pred_fallthru
    _
  // Predicated region
  $region86: #{netG_forward.1} parent=0 // pred_check
    %p72 = pneg %p68
  $region87: #{netG_forward.1} parent=0 // pred_check_branch
    %74 = sbr.rel (%p72) target = $region89
  $region88: #{netG_forward.1} parent=0 // pred_region
    %s75 = sshllo.u32 0, 512
    loop: start=0, step=1, limit=1
    $region90: #{netG_forward.1} parent=88 // loop_pre_header
      _
    $region91: #{netG_forward.1} parent=88 // loop_header
      %s77 = sphi 0, %s81
      %p78 = scmp.ge.s32.totalorder %s77, 1
      %s82 = sphi %s20, %s20
      %s83 = sphi [#allocation2], [#allocation2]
    $region92: #{netG_forward.1} parent=88 // loop_header_branch
      %80 = sbr.rel (%p78) target = $region96
    $region93: #{netG_forward.1} parent=88 // loop_body
      %v84 = vld [vmem:[%s82] sm:%s75]
      %85 = vst [vmem:[%s83] sm:%s75] %v84
    $region94: #{netG_forward.1} parent=88 // loop_footer
      %s81 = sadd.s32 1, %s77
    $region95: #{netG_forward.1} parent=88 // loop_footer_branch
      %76 = sbr.rel target = $region91
    $region96: #{netG_forward.1} parent=88 // loop_exit
      _
  $region89: #{netG_forward.1} parent=0 // pred_fallthru
    _
  // Predicated region
  $region112: #{netG_forward.1} parent=0 // pred_check
    _
  $region113: #{netG_forward.1} parent=0 // pred_check_branch
    %233 = sbr.rel (0) target = $region115
  $region114: #{netG_forward.1} parent=0 // pred_region
    %234 = vsyncadd [#allocation3], 8192
  $region115: #{netG_forward.1} parent=0 // pred_fallthru
    _
  %v235 = vld [vmem:[%s2] sm:$0xf]
  %v236 = vld [vmem:[%s2 + $0x4] sm:$0xf]
  %v237 = vld [vmem:[%s0] sm:$0xff]
  %v238 = vld [vmem:[%s0 + $0x8] sm:$0xff]
  %v239 = vpack.c.bf16 %v237, %v237
  %v240 = vpack.c.bf16 %v238, %v238
  %v241 = vld [vmem:[%s3] sm:$0xff]
  %v242 = vld [vmem:[%s3 + $0x8] sm:$0xff]
  %v243 = vld [vmem:[%s3 + $0x10] sm:$0xff]
  %v244 = vld [vmem:[%s3 + $0x18] sm:$0xff]
  %v245 = vld [vmem:[%s3 + $0x20] sm:$0xff]
  %v246 = vld [vmem:[%s3 + $0x28] sm:$0xff]
  %v247 = vld [vmem:[%s3 + $0x30] sm:$0xff]
  %v248 = vld [vmem:[%s3 + $0x38] sm:$0xff]
  %v249 = vunpack.c.l.s8.bf16 %v241
  %v250 = vunpack.c.h.s8.bf16 %v241
  %v251 = vunpack.c.l.s8.bf16 %v242
  %v252 = vunpack.c.h.s8.bf16 %v242
  %v253 = vunpack.c.l.s8.bf16 %v243
  %v254 = vunpack.c.h.s8.bf16 %v243
  %v255 = vunpack.c.l.s8.bf16 %v244
  %v256 = vunpack.c.h.s8.bf16 %v244
  %v257 = vunpack.c.l.s8.bf16 %v245
  %v258 = vunpack.c.h.s8.bf16 %v245
  %v259 = vunpack.c.l.s8.bf16 %v246
  %v260 = vunpack.c.h.s8.bf16 %v246
  %v261 = vunpack.c.l.s8.bf16 %v247
  %v262 = vunpack.c.h.s8.bf16 %v247
  %v263 = vunpack.c.l.s8.bf16 %v248
  %v264 = vunpack.c.h.s8.bf16 %v248
  %265 = vmatprep.subr.bf16.mxu0 0
  %266 = vmatpush1.bf16.msra.mxu0 %v249
  %267 = vmatprep.subr.bf16.mxu0 0
  %268 = vmatpush1.bf16.msra.mxu0 %v250
  %269 = vmatprep.subr.bf16.mxu0 0
  %270 = vmatpush1.bf16.msra.mxu0 %v251
  %271 = vmatprep.subr.bf16.mxu0 0
  %272 = vmatpush1.bf16.msra.mxu0 %v252
  %273 = vmatprep.subr.bf16.mxu0 0
  %274 = vmatpush1.bf16.msra.mxu0 %v253
  %275 = vmatprep.subr.bf16.mxu0 0
  %276 = vmatpush1.bf16.msra.mxu0 %v254
  %277 = vmatprep.subr.bf16.mxu0 0
  %278 = vmatpush1.bf16.msra.mxu0 %v255
  %279 = vmatprep.subr.bf16.mxu0 0
  %280 = vmatpush1.bf16.msra.mxu0 %v256
  %281 = vmatprep.subr.bf16.mxu0 0
  %282 = vmatpush1.bf16.msra.mxu0 %v257
  %283 = vmatprep.subr.bf16.mxu0 0
  %284 = vmatpush1.bf16.msra.mxu0 %v258
  %285 = vmatprep.subr.bf16.mxu0 0
  %286 = vmatpush1.bf16.msra.mxu0 %v259
  %287 = vmatprep.subr.bf16.mxu0 0
  %288 = vmatpush1.bf16.msra.mxu0 %v260
  %289 = vmatprep.subr.bf16.mxu0 0
  %290 = vmatpush1.bf16.msra.mxu0 %v261
  %291 = vmatprep.subr.bf16.mxu0 0
  %292 = vmatpush1.bf16.msra.mxu0 %v262
  %293 = vmatprep.subr.bf16.mxu0 0
  %294 = vmatpush1.bf16.msra.mxu0 %v263
  %295 = vmatprep.subr.bf16.mxu0 0
  %296 = vmatpush1.bf16.msra.mxu0 %v264
  %297 = vmatprep.mubr.bf16.mxu0 %v240
  %298 = vmatmul.mubr.bf16.gmra.mrb[0].mxu0 %v239
  %v299 = vpop.f32.mrb[0].mxu0
  %v300 = vadd.f32 0.0, %v299
  %v301 = vpop.f32.mrb[0].mxu0
  %v302 = vpop.f32.mrb[0].mxu0
  %v303 = vpop.f32.mrb[0].mxu0
  %304 = vdwg.mxu0
  %s305 = scalar_lea.vmem %s3, 64
  %v306 = vld [vmem:[%s305] sm:$0xff]
  %v307 = vld [vmem:[%s305 + $0x8] sm:$0xff]
  %v308 = vld [vmem:[%s305 + $0x10] sm:$0xff]
  %v309 = vld [vmem:[%s305 + $0x18] sm:$0xff]
  %v310 = vld [vmem:[%s305 + $0x20] sm:$0xff]
  %v311 = vld [vmem:[%s305 + $0x28] sm:$0xff]
  %v312 = vld [vmem:[%s305 + $0x30] sm:$0xff]
  %v313 = vld [vmem:[%s305 + $0x38] sm:$0xff]
  %v314 = vunpack.c.l.s8.bf16 %v306
  %v315 = vunpack.c.h.s8.bf16 %v306
  %v316 = vunpack.c.l.s8.bf16 %v307
  %v317 = vunpack.c.h.s8.bf16 %v307
  %v318 = vunpack.c.l.s8.bf16 %v308
  %v319 = vunpack.c.h.s8.bf16 %v308
  %v320 = vunpack.c.l.s8.bf16 %v309
  %v321 = vunpack.c.h.s8.bf16 %v309
  %v322 = vunpack.c.l.s8.bf16 %v310
  %v323 = vunpack.c.h.s8.bf16 %v310
  %v324 = vunpack.c.l.s8.bf16 %v311
  %v325 = vunpack.c.h.s8.bf16 %v311
  %v326 = vunpack.c.l.s8.bf16 %v312
  %v327 = vunpack.c.h.s8.bf16 %v312
  %v328 = vunpack.c.l.s8.bf16 %v313
  %v329 = vunpack.c.h.s8.bf16 %v313
  %330 = vmatprep.subr.bf16.mxu0 0
  %331 = vmatpush1.bf16.msra.mxu0 %v314
  %332 = vmatprep.subr.bf16.mxu0 0
  %333 = vmatpush1.bf16.msra.mxu0 %v315
  %334 = vmatprep.subr.bf16.mxu0 0
  %335 = vmatpush1.bf16.msra.mxu0 %v316
  %336 = vmatprep.subr.bf16.mxu0 0
  %337 = vmatpush1.bf16.msra.mxu0 %v317
  %338 = vmatprep.subr.bf16.mxu0 0
  %339 = vmatpush1.bf16.msra.mxu0 %v318
  %340 = vmatprep.subr.bf16.mxu0 0
  %341 = vmatpush1.bf16.msra.mxu0 %v319
  %342 = vmatprep.subr.bf16.mxu0 0
  %343 = vmatpush1.bf16.msra.mxu0 %v320
  %344 = vmatprep.subr.bf16.mxu0 0
  %345 = vmatpush1.bf16.msra.mxu0 %v321
  %346 = vmatprep.subr.bf16.mxu0 0
  %347 = vmatpush1.bf16.msra.mxu0 %v322
  %348 = vmatprep.subr.bf16.mxu0 0
  %349 = vmatpush1.bf16.msra.mxu0 %v323
  %350 = vmatprep.subr.bf16.mxu0 0
  %351 = vmatpush1.bf16.msra.mxu0 %v324
  %352 = vmatprep.subr.bf16.mxu0 0
  %353 = vmatpush1.bf16.msra.mxu0 %v325
  %354 = vmatprep.subr.bf16.mxu0 0
  %355 = vmatpush1.bf16.msra.mxu0 %v326
  %356 = vmatprep.subr.bf16.mxu0 0
  %357 = vmatpush1.bf16.msra.mxu0 %v327
  %358 = vmatprep.subr.bf16.mxu0 0
  %359 = vmatpush1.bf16.msra.mxu0 %v328
  %360 = vmatprep.subr.bf16.mxu0 0
  %361 = vmatpush1.bf16.msra.mxu0 %v329
  %362 = vmatprep.mubr.bf16.mxu0 %v240
  %363 = vmatmul.mubr.bf16.gmra.mrb[0].mxu0 %v239
  %v364 = vpop.f32.mrb[0].mxu0
  %v365 = vadd.f32 0.0, %v364
  %v366 = vpop.f32.mrb[0].mxu0
  %v367 = vpop.f32.mrb[0].mxu0
  %v368 = vpop.f32.mrb[0].mxu0
  %369 = vdwg.mxu0
  %s370 = scalar_lea.vmem %s3, 128
  %v371 = vld [vmem:[%s370] sm:$0xff]
  %v372 = vld [vmem:[%s370 + $0x8] sm:$0xff]
  %v373 = vld [vmem:[%s370 + $0x10] sm:$0xff]
  %v374 = vld [vmem:[%s370 + $0x18] sm:$0xff]
  %v375 = vld [vmem:[%s370 + $0x20] sm:$0xff]
  %v376 = vld [vmem:[%s370 + $0x28] sm:$0xff]
  %v377 = vld [vmem:[%s370 + $0x30] sm:$0xff]
  %v378 = vld [vmem:[%s370 + $0x38] sm:$0xff]
  %v379 = vunpack.c.l.s8.bf16 %v371
  %v380 = vunpack.c.h.s8.bf16 %v371
  %v381 = vunpack.c.l.s8.bf16 %v372
  %v382 = vunpack.c.h.s8.bf16 %v372
  %v383 = vunpack.c.l.s8.bf16 %v373
  %v384 = vunpack.c.h.s8.bf16 %v373
  %v385 = vunpack.c.l.s8.bf16 %v374
  %v386 = vunpack.c.h.s8.bf16 %v374
  %v387 = vunpack.c.l.s8.bf16 %v375
  %v388 = vunpack.c.h.s8.bf16 %v375
  %v389 = vunpack.c.l.s8.bf16 %v376
  %v390 = vunpack.c.h.s8.bf16 %v376
  %v391 = vunpack.c.l.s8.bf16 %v377
  %v392 = vunpack.c.h.s8.bf16 %v377
  %v393 = vunpack.c.l.s8.bf16 %v378
  %v394 = vunpack.c.h.s8.bf16 %v378
  %395 = vmatprep.subr.bf16.mxu0 0
  %396 = vmatpush1.bf16.msra.mxu0 %v379
  %397 = vmatprep.subr.bf16.mxu0 0
  %398 = vmatpush1.bf16.msra.mxu0 %v380
  %399 = vmatprep.subr.bf16.mxu0 0
  %400 = vmatpush1.bf16.msra.mxu0 %v381
  %401 = vmatprep.subr.bf16.mxu0 0
  %402 = vmatpush1.bf16.msra.mxu0 %v382
  %403 = vmatprep.subr.bf16.mxu0 0
  %404 = vmatpush1.bf16.msra.mxu0 %v383
  %405 = vmatprep.subr.bf16.mxu0 0
  %406 = vmatpush1.bf16.msra.mxu0 %v384
  %407 = vmatprep.subr.bf16.mxu0 0
  %408 = vmatpush1.bf16.msra.mxu0 %v385
  %409 = vmatprep.subr.bf16.mxu0 0
  %410 = vmatpush1.bf16.msra.mxu0 %v386
  %411 = vmatprep.subr.bf16.mxu0 0
  %412 = vmatpush1.bf16.msra.mxu0 %v387
  %413 = vmatprep.subr.bf16.mxu0 0
  %414 = vmatpush1.bf16.msra.mxu0 %v388
  %415 = vmatprep.subr.bf16.mxu0 0
  %416 = vmatpush1.bf16.msra.mxu0 %v389
  %417 = vmatprep.subr.bf16.mxu0 0
  %418 = vmatpush1.bf16.msra.mxu0 %v390
  %419 = vmatprep.subr.bf16.mxu0 0
  %420 = vmatpush1.bf16.msra.mxu0 %v391
  %421 = vmatprep.subr.bf16.mxu0 0
  %422 = vmatpush1.bf16.msra.mxu0 %v392
  %423 = vmatprep.subr.bf16.mxu0 0
  %424 = vmatpush1.bf16.msra.mxu0 %v393
  %425 = vmatprep.subr.bf16.mxu0 0
  %426 = vmatpush1.bf16.msra.mxu0 %v394
  %427 = vmatprep.mubr.bf16.mxu0 %v240
  %428 = vmatmul.mubr.bf16.gmra.mrb[0].mxu0 %v239
  %v429 = vpop.f32.mrb[0].mxu0
  %v430 = vadd.f32 0.0, %v429
  %v431 = vpop.f32.mrb[0].mxu0
  %v432 = vpop.f32.mrb[0].mxu0
  %v433 = vpop.f32.mrb[0].mxu0
  %434 = vdwg.mxu0
  %s435 = scalar_lea.vmem %s3, 192
  %v436 = vld [vmem:[%s435] sm:$0xff]
  %v437 = vld [vmem:[%s435 + $0x8] sm:$0xff]
  %v438 = vld [vmem:[%s435 + $0x10] sm:$0xff]
  %v439 = vld [vmem:[%s435 + $0x18] sm:$0xff]
  %v440 = vld [vmem:[%s435 + $0x20] sm:$0xff]
  %v441 = vld [vmem:[%s435 + $0x28] sm:$0xff]
  %v442 = vld [vmem:[%s435 + $0x30] sm:$0xff]
  %v443 = vld [vmem:[%s435 + $0x38] sm:$0xff]
  %v444 = vunpack.c.l.s8.bf16 %v436
  %v445 = vunpack.c.h.s8.bf16 %v436
  %v446 = vunpack.c.l.s8.bf16 %v437
  %v447 = vunpack.c.h.s8.bf16 %v437
  %v448 = vunpack.c.l.s8.bf16 %v438
  %v449 = vunpack.c.h.s8.bf16 %v438
  %v450 = vunpack.c.l.s8.bf16 %v439
  %v451 = vunpack.c.h.s8.bf16 %v439
  %v452 = vunpack.c.l.s8.bf16 %v440
  %v453 = vunpack.c.h.s8.bf16 %v440
  %v454 = vunpack.c.l.s8.bf16 %v441
  %v455 = vunpack.c.h.s8.bf16 %v441
  %v456 = vunpack.c.l.s8.bf16 %v442
  %v457 = vunpack.c.h.s8.bf16 %v442
  %v458 = vunpack.c.l.s8.bf16 %v443
  %v459 = vunpack.c.h.s8.bf16 %v443
  %460 = vmatprep.subr.bf16.mxu0 0
  %461 = vmatpush1.bf16.msra.mxu0 %v444
  %462 = vmatprep.subr.bf16.mxu0 0
  %463 = vmatpush1.bf16.msra.mxu0 %v445
  %464 = vmatprep.subr.bf16.mxu0 0
  %465 = vmatpush1.bf16.msra.mxu0 %v446
  %466 = vmatprep.subr.bf16.mxu0 0
  %467 = vmatpush1.bf16.msra.mxu0 %v447
  %468 = vmatprep.subr.bf16.mxu0 0
  %469 = vmatpush1.bf16.msra.mxu0 %v448
  %470 = vmatprep.subr.bf16.mxu0 0
  %471 = vmatpush1.bf16.msra.mxu0 %v449
  %472 = vmatprep.subr.bf16.mxu0 0
  %473 = vmatpush1.bf16.msra.mxu0 %v450
  %474 = vmatprep.subr.bf16.mxu0 0
  %475 = vmatpush1.bf16.msra.mxu0 %v451
  %476 = vmatprep.subr.bf16.mxu0 0
  %477 = vmatpush1.bf16.msra.mxu0 %v452
  %478 = vmatprep.subr.bf16.mxu0 0
  %479 = vmatpush1.bf16.msra.mxu0 %v453
  %480 = vmatprep.subr.bf16.mxu0 0
  %481 = vmatpush1.bf16.msra.mxu0 %v454
  %482 = vmatprep.subr.bf16.mxu0 0
  %483 = vmatpush1.bf16.msra.mxu0 %v455
  %484 = vmatprep.subr.bf16.mxu0 0
  %485 = vmatpush1.bf16.msra.mxu0 %v456
  %486 = vmatprep.subr.bf16.mxu0 0
  %487 = vmatpush1.bf16.msra.mxu0 %v457
  %488 = vmatprep.subr.bf16.mxu0 0
  %489 = vmatpush1.bf16.msra.mxu0 %v458
  %490 = vmatprep.subr.bf16.mxu0 0
  %491 = vmatpush1.bf16.msra.mxu0 %v459
  %492 = vmatprep.mubr.bf16.mxu0 %v240
  %493 = vmatmul.mubr.bf16.gmra.mrb[0].mxu0 %v239
  %v494 = vpop.f32.mrb[0].mxu0
  %v495 = vadd.f32 0.0, %v494
  %v496 = vpop.f32.mrb[0].mxu0
  %v497 = vpop.f32.mrb[0].mxu0
  %v498 = vpop.f32.mrb[0].mxu0
  %499 = vdwg.mxu0
  %s500 = scalar_lea.vmem %s3, 256
  %v501 = vld [vmem:[%s500] sm:$0xff]
  %v502 = vld [vmem:[%s500 + $0x8] sm:$0xff]
  %v503 = vld [vmem:[%s500 + $0x10] sm:$0xff]
  %v504 = vld [vmem:[%s500 + $0x18] sm:$0xff]
  %v505 = vld [vmem:[%s500 + $0x20] sm:$0xff]
  %v506 = vld [vmem:[%s500 + $0x28] sm:$0xff]
  %v507 = vld [vmem:[%s500 + $0x30] sm:$0xff]
  %v508 = vld [vmem:[%s500 + $0x38] sm:$0xff]
  %v509 = vunpack.c.l.s8.bf16 %v501
  %v510 = vunpack.c.h.s8.bf16 %v501
  %v511 = vunpack.c.l.s8.bf16 %v502
  %v512 = vunpack.c.h.s8.bf16 %v502
  %v513 = vunpack.c.l.s8.bf16 %v503
  %v514 = vunpack.c.h.s8.bf16 %v503
  %v515 = vunpack.c.l.s8.bf16 %v504
  %v516 = vunpack.c.h.s8.bf16 %v504
  %v517 = vunpack.c.l.s8.bf16 %v505
  %v518 = vunpack.c.h.s8.bf16 %v505
  %v519 = vunpack.c.l.s8.bf16 %v506
  %v520 = vunpack.c.h.s8.bf16 %v506
  %v521 = vunpack.c.l.s8.bf16 %v507
  %v522 = vunpack.c.h.s8.bf16 %v507
  %v523 = vunpack.c.l.s8.bf16 %v508
  %v524 = vunpack.c.h.s8.bf16 %v508
  %525 = vmatprep.subr.bf16.mxu0 0
  %526 = vmatpush1.bf16.msra.mxu0 %v509
  %527 = vmatprep.subr.bf16.mxu0 0
  %528 = vmatpush1.bf16.msra.mxu0 %v510
  %529 = vmatprep.subr.bf16.mxu0 0
  %530 = vmatpush1.bf16.msra.mxu0 %v511
  %531 = vmatprep.subr.bf16.mxu0 0
  %532 = vmatpush1.bf16.msra.mxu0 %v512
  %533 = vmatprep.subr.bf16.mxu0 0
  %534 = vmatpush1.bf16.msra.mxu0 %v513
  %535 = vmatprep.subr.bf16.mxu0 0
  %536 = vmatpush1.bf16.msra.mxu0 %v514
  %537 = vmatprep.subr.bf16.mxu0 0
  %538 = vmatpush1.bf16.msra.mxu0 %v515
  %539 = vmatprep.subr.bf16.mxu0 0
  %540 = vmatpush1.bf16.msra.mxu0 %v516
  %541 = vmatprep.subr.bf16.mxu0 0
  %542 = vmatpush1.bf16.msra.mxu0 %v517
  %543 = vmatprep.subr.bf16.mxu0 0
  %544 = vmatpush1.bf16.msra.mxu0 %v518
  %545 = vmatprep.subr.bf16.mxu0 0
  %546 = vmatpush1.bf16.msra.mxu0 %v519
  %547 = vmatprep.subr.bf16.mxu0 0
  %548 = vmatpush1.bf16.msra.mxu0 %v520
  %549 = vmatprep.subr.bf16.mxu0 0
  %550 = vmatpush1.bf16.msra.mxu0 %v521
  %551 = vmatprep.subr.bf16.mxu0 0
  %552 = vmatpush1.bf16.msra.mxu0 %v522
  %553 = vmatprep.subr.bf16.mxu0 0
  %554 = vmatpush1.bf16.msra.mxu0 %v523
  %555 = vmatprep.subr.bf16.mxu0 0
  %556 = vmatpush1.bf16.msra.mxu0 %v524
  %557 = vmatprep.mubr.bf16.mxu0 %v240
  %558 = vmatmul.mubr.bf16.gmra.mrb[0].mxu0 %v239
  %v559 = vpop.f32.mrb[0].mxu0
  %v560 = vadd.f32 0.0, %v559
  %v561 = vpop.f32.mrb[0].mxu0
  %v562 = vpop.f32.mrb[0].mxu0
  %v563 = vpop.f32.mrb[0].mxu0
  %564 = vdwg.mxu0
  %s565 = scalar_lea.vmem %s3, 320
  %v566 = vld [vmem:[%s565] sm:$0xff]
  %v567 = vld [vmem:[%s565 + $0x8] sm:$0xff]
  %v568 = vld [vmem:[%s565 + $0x10] sm:$0xff]
  %v569 = vld [vmem:[%s565 + $0x18] sm:$0xff]
  %v570 = vld [vmem:[%s565 + $0x20] sm:$0xff]
  %v571 = vld [vmem:[%s565 + $0x28] sm:$0xff]
  %v572 = vld [vmem:[%s565 + $0x30] sm:$0xff]
  %v573 = vld [vmem:[%s565 + $0x38] sm:$0xff]
  %v574 = vunpack.c.l.s8.bf16 %v566
  %v575 = vunpack.c.h.s8.bf16 %v566
  %v576 = vunpack.c.l.s8.bf16 %v567
  %v577 = vunpack.c.h.s8.bf16 %v567
  %v578 = vunpack.c.l.s8.bf16 %v568
  %v579 = vunpack.c.h.s8.bf16 %v568
  %v580 = vunpack.c.l.s8.bf16 %v569
  %v581 = vunpack.c.h.s8.bf16 %v569
  %v582 = vunpack.c.l.s8.bf16 %v570
  %v583 = vunpack.c.h.s8.bf16 %v570
  %v584 = vunpack.c.l.s8.bf16 %v571
  %v585 = vunpack.c.h.s8.bf16 %v571
  %v586 = vunpack.c.l.s8.bf16 %v572
  %v587 = vunpack.c.h.s8.bf16 %v572
  %v588 = vunpack.c.l.s8.bf16 %v573
  %v589 = vunpack.c.h.s8.bf16 %v573
  %590 = vmatprep.subr.bf16.mxu0 0
  %591 = vmatpush1.bf16.msra.mxu0 %v574
  %592 = vmatprep.subr.bf16.mxu0 0
  %593 = vmatpush1.bf16.msra.mxu0 %v575
  %594 = vmatprep.subr.bf16.mxu0 0
  %595 = vmatpush1.bf16.msra.mxu0 %v576
  %596 = vmatprep.subr.bf16.mxu0 0
  %597 = vmatpush1.bf16.msra.mxu0 %v577
  %598 = vmatprep.subr.bf16.mxu0 0
  %599 = vmatpush1.bf16.msra.mxu0 %v578
  %600 = vmatprep.subr.bf16.mxu0 0
  %601 = vmatpush1.bf16.msra.mxu0 %v579
  %602 = vmatprep.subr.bf16.mxu0 0
  %603 = vmatpush1.bf16.msra.mxu0 %v580
  %604 = vmatprep.subr.bf16.mxu0 0
  %605 = vmatpush1.bf16.msra.mxu0 %v581
  %606 = vmatprep.subr.bf16.mxu0 0
  %607 = vmatpush1.bf16.msra.mxu0 %v582
  %608 = vmatprep.subr.bf16.mxu0 0
  %609 = vmatpush1.bf16.msra.mxu0 %v583
  %610 = vmatprep.subr.bf16.mxu0 0
  %611 = vmatpush1.bf16.msra.mxu0 %v584
  %612 = vmatprep.subr.bf16.mxu0 0
  %613 = vmatpush1.bf16.msra.mxu0 %v585
  %614 = vmatprep.subr.bf16.mxu0 0
  %615 = vmatpush1.bf16.msra.mxu0 %v586
  %616 = vmatprep.subr.bf16.mxu0 0
  %617 = vmatpush1.bf16.msra.mxu0 %v587
  %618 = vmatprep.subr.bf16.mxu0 0
  %619 = vmatpush1.bf16.msra.mxu0 %v588
  %620 = vmatprep.subr.bf16.mxu0 0
  %621 = vmatpush1.bf16.msra.mxu0 %v589
  %622 = vmatprep.mubr.bf16.mxu0 %v240
  %623 = vmatmul.mubr.bf16.gmra.mrb[0].mxu0 %v239
  %v624 = vpop.f32.mrb[0].mxu0
  %v625 = vadd.f32 0.0, %v624
  %v626 = vpop.f32.mrb[0].mxu0
  %v627 = vpop.f32.mrb[0].mxu0
  %v628 = vpop.f32.mrb[0].mxu0
  %629 = vdwg.mxu0
  %s630 = scalar_lea.vmem %s3, 384
  %v631 = vld [vmem:[%s630] sm:$0xff]
  %v632 = vld [vmem:[%s630 + $0x8] sm:$0xff]
  %v633 = vld [vmem:[%s630 + $0x10] sm:$0xff]
  %v634 = vld [vmem:[%s630 + $0x18] sm:$0xff]
  %v635 = vld [vmem:[%s630 + $0x20] sm:$0xff]
  %v636 = vld [vmem:[%s630 + $0x28] sm:$0xff]
  %v637 = vld [vmem:[%s630 + $0x30] sm:$0xff]
  %v638 = vld [vmem:[%s630 + $0x38] sm:$0xff]
  %v639 = vunpack.c.l.s8.bf16 %v631
  %v640 = vunpack.c.h.s8.bf16 %v631
  %v641 = vunpack.c.l.s8.bf16 %v632
  %v642 = vunpack.c.h.s8.bf16 %v632
  %v643 = vunpack.c.l.s8.bf16 %v633
  %v644 = vunpack.c.h.s8.bf16 %v633
  %v645 = vunpack.c.l.s8.bf16 %v634
  %v646 = vunpack.c.h.s8.bf16 %v634
  %v647 = vunpack.c.l.s8.bf16 %v635
  %v648 = vunpack.c.h.s8.bf16 %v635
  %v649 = vunpack.c.l.s8.bf16 %v636
  %v650 = vunpack.c.h.s8.bf16 %v636
  %v651 = vunpack.c.l.s8.bf16 %v637
  %v652 = vunpack.c.h.s8.bf16 %v637
  %v653 = vunpack.c.l.s8.bf16 %v638
  %v654 = vunpack.c.h.s8.bf16 %v638
  %655 = vmatprep.subr.bf16.mxu0 0
  %656 = vmatpush1.bf16.msra.mxu0 %v639
  %657 = vmatprep.subr.bf16.mxu0 0
  %658 = vmatpush1.bf16.msra.mxu0 %v640
  %659 = vmatprep.subr.bf16.mxu0 0
  %660 = vmatpush1.bf16.msra.mxu0 %v641
  %661 = vmatprep.subr.bf16.mxu0 0
  %662 = vmatpush1.bf16.msra.mxu0 %v642
  %663 = vmatprep.subr.bf16.mxu0 0
  %664 = vmatpush1.bf16.msra.mxu0 %v643
  %665 = vmatprep.subr.bf16.mxu0 0
  %666 = vmatpush1.bf16.msra.mxu0 %v644
  %667 = vmatprep.subr.bf16.mxu0 0
  %668 = vmatpush1.bf16.msra.mxu0 %v645
  %669 = vmatprep.subr.bf16.mxu0 0
  %670 = vmatpush1.bf16.msra.mxu0 %v646
  %671 = vmatprep.subr.bf16.mxu0 0
  %672 = vmatpush1.bf16.msra.mxu0 %v647
  %673 = vmatprep.subr.bf16.mxu0 0
  %674 = vmatpush1.bf16.msra.mxu0 %v648
  %675 = vmatprep.subr.bf16.mxu0 0
  %676 = vmatpush1.bf16.msra.mxu0 %v649
  %677 = vmatprep.subr.bf16.mxu0 0
  %678 = vmatpush1.bf16.msra.mxu0 %v650
  %679 = vmatprep.subr.bf16.mxu0 0
  %680 = vmatpush1.bf16.msra.mxu0 %v651
  %681 = vmatprep.subr.bf16.mxu0 0
  %682 = vmatpush1.bf16.msra.mxu0 %v652
  %683 = vmatprep.subr.bf16.mxu0 0
  %684 = vmatpush1.bf16.msra.mxu0 %v653
  %685 = vmatprep.subr.bf16.mxu0 0
  %686 = vmatpush1.bf16.msra.mxu0 %v654
  %687 = vmatprep.mubr.bf16.mxu0 %v240
  %688 = vmatmul.mubr.bf16.gmra.mrb[0].mxu0 %v239
  %v689 = vpop.f32.mrb[0].mxu0
  %v690 = vadd.f32 0.0, %v689
  %v691 = vpop.f32.mrb[0].mxu0
  %v692 = vpop.f32.mrb[0].mxu0
  %v693 = vpop.f32.mrb[0].mxu0
  %694 = vdwg.mxu0
  %s695 = scalar_lea.vmem %s3, 448
  %v696 = vld [vmem:[%s695] sm:$0xff]
  %v697 = vld [vmem:[%s695 + $0x8] sm:$0xff]
  %v698 = vld [vmem:[%s695 + $0x10] sm:$0xff]
  %v699 = vld [vmem:[%s695 + $0x18] sm:$0xff]
  %v700 = vld [vmem:[%s695 + $0x20] sm:$0xff]
  %v701 = vld [vmem:[%s695 + $0x28] sm:$0xff]
  %v702 = vld [vmem:[%s695 + $0x30] sm:$0xff]
  %v703 = vld [vmem:[%s695 + $0x38] sm:$0xff]
  %v704 = vunpack.c.l.s8.bf16 %v696
  %v705 = vunpack.c.h.s8.bf16 %v696
  %v706 = vunpack.c.l.s8.bf16 %v697
  %v707 = vunpack.c.h.s8.bf16 %v697
  %v708 = vunpack.c.l.s8.bf16 %v698
  %v709 = vunpack.c.h.s8.bf16 %v698
  %v710 = vunpack.c.l.s8.bf16 %v699
  %v711 = vunpack.c.h.s8.bf16 %v699
  %v712 = vunpack.c.l.s8.bf16 %v700
  %v713 = vunpack.c.h.s8.bf16 %v700
  %v714 = vunpack.c.l.s8.bf16 %v701
  %v715 = vunpack.c.h.s8.bf16 %v701
  %v716 = vunpack.c.l.s8.bf16 %v702
  %v717 = vunpack.c.h.s8.bf16 %v702
  %v718 = vunpack.c.l.s8.bf16 %v703
  %v719 = vunpack.c.h.s8.bf16 %v703
  %720 = vmatprep.subr.bf16.mxu0 0
  %721 = vmatpush1.bf16.msra.mxu0 %v704
  %722 = vmatprep.subr.bf16.mxu0 0
  %723 = vmatpush1.bf16.msra.mxu0 %v705
  %724 = vmatprep.subr.bf16.mxu0 0
  %725 = vmatpush1.bf16.msra.mxu0 %v706
  %726 = vmatprep.subr.bf16.mxu0 0
  %727 = vmatpush1.bf16.msra.mxu0 %v707
  %728 = vmatprep.subr.bf16.mxu0 0
  %729 = vmatpush1.bf16.msra.mxu0 %v708
  %730 = vmatprep.subr.bf16.mxu0 0
  %731 = vmatpush1.bf16.msra.mxu0 %v709
  %732 = vmatprep.subr.bf16.mxu0 0
  %733 = vmatpush1.bf16.msra.mxu0 %v710
  %734 = vmatprep.subr.bf16.mxu0 0
  %735 = vmatpush1.bf16.msra.mxu0 %v711
  %736 = vmatprep.subr.bf16.mxu0 0
  %737 = vmatpush1.bf16.msra.mxu0 %v712
  %738 = vmatprep.subr.bf16.mxu0 0
  %739 = vmatpush1.bf16.msra.mxu0 %v713
  %740 = vmatprep.subr.bf16.mxu0 0
  %741 = vmatpush1.bf16.msra.mxu0 %v714
  %742 = vmatprep.subr.bf16.mxu0 0
  %743 = vmatpush1.bf16.msra.mxu0 %v715
  %744 = vmatprep.subr.bf16.mxu0 0
  %745 = vmatpush1.bf16.msra.mxu0 %v716
  %746 = vmatprep.subr.bf16.mxu0 0
  %747 = vmatpush1.bf16.msra.mxu0 %v717
  %748 = vmatprep.subr.bf16.mxu0 0
  %749 = vmatpush1.bf16.msra.mxu0 %v718
  %750 = vmatprep.subr.bf16.mxu0 0
  %751 = vmatpush1.bf16.msra.mxu0 %v719
  %752 = vmatprep.mubr.bf16.mxu0 %v240
  %753 = vmatmul.mubr.bf16.gmra.mrb[0].mxu0 %v239
  %v754 = vpop.f32.mrb[0].mxu0
  %v755 = vadd.f32 0.0, %v754
  %v756 = vpop.f32.mrb[0].mxu0
  %v757 = vpop.f32.mrb[0].mxu0
  %v758 = vpop.f32.mrb[0].mxu0
  %759 = vdwg.mxu0
  %s760 = scalar_lea.vmem %s3, 512
  %v761 = vld [vmem:[%s760] sm:$0xff]
  %v762 = vld [vmem:[%s760 + $0x8] sm:$0xff]
  %v763 = vld [vmem:[%s760 + $0x10] sm:$0xff]
  %v764 = vld [vmem:[%s760 + $0x18] sm:$0xff]
  %v765 = vld [vmem:[%s760 + $0x20] sm:$0xff]
  %v766 = vld [vmem:[%s760 + $0x28] sm:$0xff]
  %v767 = vld [vmem:[%s760 + $0x30] sm:$0xff]
  %v768 = vld [vmem:[%s760 + $0x38] sm:$0xff]
  %v769 = vunpack.c.l.s8.bf16 %v761
  %v770 = vunpack.c.h.s8.bf16 %v761
  %v771 = vunpack.c.l.s8.bf16 %v762
  %v772 = vunpack.c.h.s8.bf16 %v762
  %v773 = vunpack.c.l.s8.bf16 %v763
  %v774 = vunpack.c.h.s8.bf16 %v763
  %v775 = vunpack.c.l.s8.bf16 %v764
  %v776 = vunpack.c.h.s8.bf16 %v764
  %v777 = vunpack.c.l.s8.bf16 %v765
  %v778 = vunpack.c.h.s8.bf16 %v765
  %v779 = vunpack.c.l.s8.bf16 %v766
  %v780 = vunpack.c.h.s8.bf16 %v766
  %v781 = vunpack.c.l.s8.bf16 %v767
  %v782 = vunpack.c.h.s8.bf16 %v767
  %v783 = vunpack.c.l.s8.bf16 %v768
  %v784 = vunpack.c.h.s8.bf16 %v768
  %785 = vmatprep.subr.bf16.mxu0 0
  %786 = vmatpush1.bf16.msra.mxu0 %v769
  %787 = vmatprep.subr.bf16.mxu0 0
  %788 = vmatpush1.bf16.msra.mxu0 %v770
  %789 = vmatprep.subr.bf16.mxu0 0
  %790 = vmatpush1.bf16.msra.mxu0 %v771
  %791 = vmatprep.subr.bf16.mxu0 0
  %792 = vmatpush1.bf16.msra.mxu0 %v772
  %793 = vmatprep.subr.bf16.mxu0 0
  %794 = vmatpush1.bf16.msra.mxu0 %v773
  %795 = vmatprep.subr.bf16.mxu0 0
  %796 = vmatpush1.bf16.msra.mxu0 %v774
  %797 = vmatprep.subr.bf16.mxu0 0
  %798 = vmatpush1.bf16.msra.mxu0 %v775
  %799 = vmatprep.subr.bf16.mxu0 0
  %800 = vmatpush1.bf16.msra.mxu0 %v776
  %801 = vmatprep.subr.bf16.mxu0 0
  %802 = vmatpush1.bf16.msra.mxu0 %v777
  %803 = vmatprep.subr.bf16.mxu0 0
  %804 = vmatpush1.bf16.msra.mxu0 %v778
  %805 = vmatprep.subr.bf16.mxu0 0
  %806 = vmatpush1.bf16.msra.mxu0 %v779
  %807 = vmatprep.subr.bf16.mxu0 0
  %808 = vmatpush1.bf16.msra.mxu0 %v780
  %809 = vmatprep.subr.bf16.mxu0 0
  %810 = vmatpush1.bf16.msra.mxu0 %v781
  %811 = vmatprep.subr.bf16.mxu0 0
  %812 = vmatpush1.bf16.msra.mxu0 %v782
  %813 = vmatprep.subr.bf16.mxu0 0
  %814 = vmatpush1.bf16.msra.mxu0 %v783
  %815 = vmatprep.subr.bf16.mxu0 0
  %816 = vmatpush1.bf16.msra.mxu0 %v784
  %817 = vmatprep.mubr.bf16.mxu0 %v240
  %818 = vmatmul.mubr.bf16.gmra.mrb[0].mxu0 %v239
  %v819 = vpop.f32.mrb[0].mxu0
  %v820 = vadd.f32 0.0, %v819
  %v821 = vpop.f32.mrb[0].mxu0
  %v822 = vpop.f32.mrb[0].mxu0
  %v823 = vpop.f32.mrb[0].mxu0
  %824 = vdwg.mxu0
  %s825 = scalar_lea.vmem %s3, 576
  %v826 = vld [vmem:[%s825] sm:$0xff]
  %v827 = vld [vmem:[%s825 + $0x8] sm:$0xff]
  %v828 = vld [vmem:[%s825 + $0x10] sm:$0xff]
  %v829 = vld [vmem:[%s825 + $0x18] sm:$0xff]
  %v830 = vld [vmem:[%s825 + $0x20] sm:$0xff]
  %v831 = vld [vmem:[%s825 + $0x28] sm:$0xff]
  %v832 = vld [vmem:[%s825 + $0x30] sm:$0xff]
  %v833 = vld [vmem:[%s825 + $0x38] sm:$0xff]
  %v834 = vunpack.c.l.s8.bf16 %v826
  %v835 = vunpack.c.h.s8.bf16 %v826
  %v836 = vunpack.c.l.s8.bf16 %v827
  %v837 = vunpack.c.h.s8.bf16 %v827
  %v838 = vunpack.c.l.s8.bf16 %v828
  %v839 = vunpack.c.h.s8.bf16 %v828
  %v840 = vunpack.c.l.s8.bf16 %v829
  %v841 = vunpack.c.h.s8.bf16 %v829
  %v842 = vunpack.c.l.s8.bf16 %v830
  %v843 = vunpack.c.h.s8.bf16 %v830
  %v844 = vunpack.c.l.s8.bf16 %v831
  %v845 = vunpack.c.h.s8.bf16 %v831
  %v846 = vunpack.c.l.s8.bf16 %v832
  %v847 = vunpack.c.h.s8.bf16 %v832
  %v848 = vunpack.c.l.s8.bf16 %v833
  %v849 = vunpack.c.h.s8.bf16 %v833
  %850 = vmatprep.subr.bf16.mxu0 0
  %851 = vmatpush1.bf16.msra.mxu0 %v834
  %852 = vmatprep.subr.bf16.mxu0 0
  %853 = vmatpush1.bf16.msra.mxu0 %v835
  %854 = vmatprep.subr.bf16.mxu0 0
  %855 = vmatpush1.bf16.msra.mxu0 %v836
  %856 = vmatprep.subr.bf16.mxu0 0
  %857 = vmatpush1.bf16.msra.mxu0 %v837
  %858 = vmatprep.subr.bf16.mxu0 0
  %859 = vmatpush1.bf16.msra.mxu0 %v838
  %860 = vmatprep.subr.bf16.mxu0 0
  %861 = vmatpush1.bf16.msra.mxu0 %v839
  %862 = vmatprep.subr.bf16.mxu0 0
  %863 = vmatpush1.bf16.msra.mxu0 %v840
  %864 = vmatprep.subr.bf16.mxu0 0
  %865 = vmatpush1.bf16.msra.mxu0 %v841
  %866 = vmatprep.subr.bf16.mxu0 0
  %867 = vmatpush1.bf16.msra.mxu0 %v842
  %868 = vmatprep.subr.bf16.mxu0 0
  %869 = vmatpush1.bf16.msra.mxu0 %v843
  %870 = vmatprep.subr.bf16.mxu0 0
  %871 = vmatpush1.bf16.msra.mxu0 %v844
  %872 = vmatprep.subr.bf16.mxu0 0
  %873 = vmatpush1.bf16.msra.mxu0 %v845
  %874 = vmatprep.subr.bf16.mxu0 0
  %875 = vmatpush1.bf16.msra.mxu0 %v846
  %876 = vmatprep.subr.bf16.mxu0 0
  %877 = vmatpush1.bf16.msra.mxu0 %v847
  %878 = vmatprep.subr.bf16.mxu0 0
  %879 = vmatpush1.bf16.msra.mxu0 %v848
  %880 = vmatprep.subr.bf16.mxu0 0
  %881 = vmatpush1.bf16.msra.mxu0 %v849
  %882 = vmatprep.mubr.bf16.mxu0 %v240
  %883 = vmatmul.mubr.bf16.gmra.mrb[0].mxu0 %v239
  %v884 = vpop.f32.mrb[0].mxu0
  %v885 = vadd.f32 0.0, %v884
  %v886 = vpop.f32.mrb[0].mxu0
  %v887 = vpop.f32.mrb[0].mxu0
  %v888 = vpop.f32.mrb[0].mxu0
  %889 = vdwg.mxu0
  %s890 = scalar_lea.vmem %s3, 640
  %v891 = vld [vmem:[%s890] sm:$0xff]
  %v892 = vld [vmem:[%s890 + $0x8] sm:$0xff]
  %v893 = vld [vmem:[%s890 + $0x10] sm:$0xff]
  %v894 = vld [vmem:[%s890 + $0x18] sm:$0xff]
  %v895 = vld [vmem:[%s890 + $0x20] sm:$0xff]
  %v896 = vld [vmem:[%s890 + $0x28] sm:$0xff]
  %v897 = vld [vmem:[%s890 + $0x30] sm:$0xff]
  %v898 = vld [vmem:[%s890 + $0x38] sm:$0xff]
  %v899 = vunpack.c.l.s8.bf16 %v891
  %v900 = vunpack.c.h.s8.bf16 %v891
  %v901 = vunpack.c.l.s8.bf16 %v892
  %v902 = vunpack.c.h.s8.bf16 %v892
  %v903 = vunpack.c.l.s8.bf16 %v893
  %v904 = vunpack.c.h.s8.bf16 %v893
  %v905 = vunpack.c.l.s8.bf16 %v894
  %v906 = vunpack.c.h.s8.bf16 %v894
  %v907 = vunpack.c.l.s8.bf16 %v895
  %v908 = vunpack.c.h.s8.bf16 %v895
  %v909 = vunpack.c.l.s8.bf16 %v896
  %v910 = vunpack.c.h.s8.bf16 %v896
  %v911 = vunpack.c.l.s8.bf16 %v897
  %v912 = vunpack.c.h.s8.bf16 %v897
  %v913 = vunpack.c.l.s8.bf16 %v898
  %v914 = vunpack.c.h.s8.bf16 %v898
  %915 = vmatprep.subr.bf16.mxu0 0
  %916 = vmatpush1.bf16.msra.mxu0 %v899
  %917 = vmatprep.subr.bf16.mxu0 0
  %918 = vmatpush1.bf16.msra.mxu0 %v900
  %919 = vmatprep.subr.bf16.mxu0 0
  %920 = vmatpush1.bf16.msra.mxu0 %v901
  %921 = vmatprep.subr.bf16.mxu0 0
  %922 = vmatpush1.bf16.msra.mxu0 %v902
  %923 = vmatprep.subr.bf16.mxu0 0
  %924 = vmatpush1.bf16.msra.mxu0 %v903
  %925 = vmatprep.subr.bf16.mxu0 0
  %926 = vmatpush1.bf16.msra.mxu0 %v904
  %927 = vmatprep.subr.bf16.mxu0 0
  %928 = vmatpush1.bf16.msra.mxu0 %v905
  %929 = vmatprep.subr.bf16.mxu0 0
  %930 = vmatpush1.bf16.msra.mxu0 %v906
  %931 = vmatprep.subr.bf16.mxu0 0
  %932 = vmatpush1.bf16.msra.mxu0 %v907
  %933 = vmatprep.subr.bf16.mxu0 0
  %934 = vmatpush1.bf16.msra.mxu0 %v908
  %935 = vmatprep.subr.bf16.mxu0 0
  %936 = vmatpush1.bf16.msra.mxu0 %v909
  %937 = vmatprep.subr.bf16.mxu0 0
  %938 = vmatpush1.bf16.msra.mxu0 %v910
  %939 = vmatprep.subr.bf16.mxu0 0
  %940 = vmatpush1.bf16.msra.mxu0 %v911
  %941 = vmatprep.subr.bf16.mxu0 0
  %942 = vmatpush1.bf16.msra.mxu0 %v912
  %943 = vmatprep.subr.bf16.mxu0 0
  %944 = vmatpush1.bf16.msra.mxu0 %v913
  %945 = vmatprep.subr.bf16.mxu0 0
  %946 = vmatpush1.bf16.msra.mxu0 %v914
  %947 = vmatprep.mubr.bf16.mxu0 %v240
  %948 = vmatmul.mubr.bf16.gmra.mrb[0].mxu0 %v239
  %v949 = vpop.f32.mrb[0].mxu0
  %v950 = vadd.f32 0.0, %v949
  %v951 = vpop.f32.mrb[0].mxu0
  %v952 = vpop.f32.mrb[0].mxu0
  %v953 = vpop.f32.mrb[0].mxu0
  %954 = vdwg.mxu0
  %s955 = scalar_lea.vmem %s3, 704
  %v956 = vld [vmem:[%s955] sm:$0xff]
  %v957 = vld [vmem:[%s955 + $0x8] sm:$0xff]
  %v958 = vld [vmem:[%s955 + $0x10] sm:$0xff]
  %v959 = vld [vmem:[%s955 + $0x18] sm:$0xff]
  %v960 = vld [vmem:[%s955 + $0x20] sm:$0xff]
  %v961 = vld [vmem:[%s955 + $0x28] sm:$0xff]
  %v962 = vld [vmem:[%s955 + $0x30] sm:$0xff]
  %v963 = vld [vmem:[%s955 + $0x38] sm:$0xff]
  %v964 = vunpack.c.l.s8.bf16 %v956
  %v965 = vunpack.c.h.s8.bf16 %v956
  %v966 = vunpack.c.l.s8.bf16 %v957
  %v967 = vunpack.c.h.s8.bf16 %v957
  %v968 = vunpack.c.l.s8.bf16 %v958
  %v969 = vunpack.c.h.s8.bf16 %v958
  %v970 = vunpack.c.l.s8.bf16 %v959
  %v971 = vunpack.c.h.s8.bf16 %v959
  %v972 = vunpack.c.l.s8.bf16 %v960
  %v973 = vunpack.c.h.s8.bf16 %v960
  %v974 = vunpack.c.l.s8.bf16 %v961
  %v975 = vunpack.c.h.s8.bf16 %v961
  %v976 = vunpack.c.l.s8.bf16 %v962
  %v977 = vunpack.c.h.s8.bf16 %v962
  %v978 = vunpack.c.l.s8.bf16 %v963
  %v979 = vunpack.c.h.s8.bf16 %v963
  %980 = vmatprep.subr.bf16.mxu0 0
  %981 = vmatpush1.bf16.msra.mxu0 %v964
  %982 = vmatprep.subr.bf16.mxu0 0
  %983 = vmatpush1.bf16.msra.mxu0 %v965
  %984 = vmatprep.subr.bf16.mxu0 0
  %985 = vmatpush1.bf16.msra.mxu0 %v966
  %986 = vmatprep.subr.bf16.mxu0 0
  %987 = vmatpush1.bf16.msra.mxu0 %v967
  %988 = vmatprep.subr.bf16.mxu0 0
  %989 = vmatpush1.bf16.msra.mxu0 %v968
  %990 = vmatprep.subr.bf16.mxu0 0
  %991 = vmatpush1.bf16.msra.mxu0 %v969
  %992 = vmatprep.subr.bf16.mxu0 0
  %993 = vmatpush1.bf16.msra.mxu0 %v970
  %994 = vmatprep.subr.bf16.mxu0 0
  %995 = vmatpush1.bf16.msra.mxu0 %v971
  %996 = vmatprep.subr.bf16.mxu0 0
  %997 = vmatpush1.bf16.msra.mxu0 %v972
  %998 = vmatprep.subr.bf16.mxu0 0
  %999 = vmatpush1.bf16.msra.mxu0 %v973
  %1000 = vmatprep.subr.bf16.mxu0 0
  %1001 = vmatpush1.bf16.msra.mxu0 %v974
  %1002 = vmatprep.subr.bf16.mxu0 0
  %1003 = vmatpush1.bf16.msra.mxu0 %v975
  %1004 = vmatprep.subr.bf16.mxu0 0
  %1005 = vmatpush1.bf16.msra.mxu0 %v976
  %1006 = vmatprep.subr.bf16.mxu0 0
  %1007 = vmatpush1.bf16.msra.mxu0 %v977
  %1008 = vmatprep.subr.bf16.mxu0 0
  %1009 = vmatpush1.bf16.msra.mxu0 %v978
  %1010 = vmatprep.subr.bf16.mxu0 0
  %1011 = vmatpush1.bf16.msra.mxu0 %v979
  %1012 = vmatprep.mubr.bf16.mxu0 %v240
  %1013 = vmatmul.mubr.bf16.gmra.mrb[0].mxu0 %v239
  %v1014 = vpop.f32.mrb[0].mxu0
  %v1015 = vadd.f32 0.0, %v1014
  %v1016 = vpop.f32.mrb[0].mxu0
  %v1017 = vpop.f32.mrb[0].mxu0
  %v1018 = vpop.f32.mrb[0].mxu0
  %1019 = vdwg.mxu0
  %s1020 = scalar_lea.vmem %s3, 768
  %v1021 = vld [vmem:[%s1020] sm:$0xff]
  %v1022 = vld [vmem:[%s1020 + $0x8] sm:$0xff]
  %v1023 = vld [vmem:[%s1020 + $0x10] sm:$0xff]
  %v1024 = vld [vmem:[%s1020 + $0x18] sm:$0xff]
  %v1025 = vld [vmem:[%s1020 + $0x20] sm:$0xff]
  %v1026 = vld [vmem:[%s1020 + $0x28] sm:$0xff]
  %v1027 = vld [vmem:[%s1020 + $0x30] sm:$0xff]
  %v1028 = vld [vmem:[%s1020 + $0x38] sm:$0xff]
  %v1029 = vunpack.c.l.s8.bf16 %v1021
  %v1030 = vunpack.c.h.s8.bf16 %v1021
  %v1031 = vunpack.c.l.s8.bf16 %v1022
  %v1032 = vunpack.c.h.s8.bf16 %v1022
  %v1033 = vunpack.c.l.s8.bf16 %v1023
  %v1034 = vunpack.c.h.s8.bf16 %v1023
  %v1035 = vunpack.c.l.s8.bf16 %v1024
  %v1036 = vunpack.c.h.s8.bf16 %v1024
  %v1037 = vunpack.c.l.s8.bf16 %v1025
  %v1038 = vunpack.c.h.s8.bf16 %v1025
  %v1039 = vunpack.c.l.s8.bf16 %v1026
  %v1040 = vunpack.c.h.s8.bf16 %v1026
  %v1041 = vunpack.c.l.s8.bf16 %v1027
  %v1042 = vunpack.c.h.s8.bf16 %v1027
  %v1043 = vunpack.c.l.s8.bf16 %v1028
  %v1044 = vunpack.c.h.s8.bf16 %v1028
  %1045 = vmatprep.subr.bf16.mxu0 0
  %1046 = vmatpush1.bf16.msra.mxu0 %v1029
  %1047 = vmatprep.subr.bf16.mxu0 0
  %1048 = vmatpush1.bf16.msra.mxu0 %v1030
  %1049 = vmatprep.subr.bf16.mxu0 0
  %1050 = vmatpush1.bf16.msra.mxu0 %v1031
  %1051 = vmatprep.subr.bf16.mxu0 0
  %1052 = vmatpush1.bf16.msra.mxu0 %v1032
  %1053 = vmatprep.subr.bf16.mxu0 0
  %1054 = vmatpush1.bf16.msra.mxu0 %v1033
  %1055 = vmatprep.subr.bf16.mxu0 0
  %1056 = vmatpush1.bf16.msra.mxu0 %v1034
  %1057 = vmatprep.subr.bf16.mxu0 0
  %1058 = vmatpush1.bf16.msra.mxu0 %v1035
  %1059 = vmatprep.subr.bf16.mxu0 0
  %1060 = vmatpush1.bf16.msra.mxu0 %v1036
  %1061 = vmatprep.subr.bf16.mxu0 0
  %1062 = vmatpush1.bf16.msra.mxu0 %v1037
  %1063 = vmatprep.subr.bf16.mxu0 0
  %1064 = vmatpush1.bf16.msra.mxu0 %v1038
  %1065 = vmatprep.subr.bf16.mxu0 0
  %1066 = vmatpush1.bf16.msra.mxu0 %v1039
  %1067 = vmatprep.subr.bf16.mxu0 0
  %1068 = vmatpush1.bf16.msra.mxu0 %v1040
  %1069 = vmatprep.subr.bf16.mxu0 0
  %1070 = vmatpush1.bf16.msra.mxu0 %v1041
  %1071 = vmatprep.subr.bf16.mxu0 0
  %1072 = vmatpush1.bf16.msra.mxu0 %v1042
  %1073 = vmatprep.subr.bf16.mxu0 0
  %1074 = vmatpush1.bf16.msra.mxu0 %v1043
  %1075 = vmatprep.subr.bf16.mxu0 0
  %1076 = vmatpush1.bf16.msra.mxu0 %v1044
  %1077 = vmatprep.mubr.bf16.mxu0 %v240
  %1078 = vmatmul.mubr.bf16.gmra.mrb[0].mxu0 %v239
  %v1079 = vpop.f32.mrb[0].mxu0
  %v1080 = vadd.f32 0.0, %v1079
  %v1081 = vpop.f32.mrb[0].mxu0
  %v1082 = vpop.f32.mrb[0].mxu0
  %v1083 = vpop.f32.mrb[0].mxu0
  %1084 = vdwg.mxu0
  %s1085 = scalar_lea.vmem %s3, 832
  %v1086 = vld [vmem:[%s1085] sm:$0xff]
  %v1087 = vld [vmem:[%s1085 + $0x8] sm:$0xff]
  %v1088 = vld [vmem:[%s1085 + $0x10] sm:$0xff]
  %v1089 = vld [vmem:[%s1085 + $0x18] sm:$0xff]
  %v1090 = vld [vmem:[%s1085 + $0x20] sm:$0xff]
  %v1091 = vld [vmem:[%s1085 + $0x28] sm:$0xff]
  %v1092 = vld [vmem:[%s1085 + $0x30] sm:$0xff]
  %v1093 = vld [vmem:[%s1085 + $0x38] sm:$0xff]
  %v1094 = vunpack.c.l.s8.bf16 %v1086
  %v1095 = vunpack.c.h.s8.bf16 %v1086
  %v1096 = vunpack.c.l.s8.bf16 %v1087
  %v1097 = vunpack.c.h.s8.bf16 %v1087
  %v1098 = vunpack.c.l.s8.bf16 %v1088
  %v1099 = vunpack.c.h.s8.bf16 %v1088
  %v1100 = vunpack.c.l.s8.bf16 %v1089
  %v1101 = vunpack.c.h.s8.bf16 %v1089
  %v1102 = vunpack.c.l.s8.bf16 %v1090
  %v1103 = vunpack.c.h.s8.bf16 %v1090
  %v1104 = vunpack.c.l.s8.bf16 %v1091
  %v1105 = vunpack.c.h.s8.bf16 %v1091
  %v1106 = vunpack.c.l.s8.bf16 %v1092
  %v1107 = vunpack.c.h.s8.bf16 %v1092
  %v1108 = vunpack.c.l.s8.bf16 %v1093
  %v1109 = vunpack.c.h.s8.bf16 %v1093
  %1110 = vmatprep.subr.bf16.mxu0 0
  %1111 = vmatpush1.bf16.msra.mxu0 %v1094
  %1112 = vmatprep.subr.bf16.mxu0 0
  %1113 = vmatpush1.bf16.msra.mxu0 %v1095
  %1114 = vmatprep.subr.bf16.mxu0 0
  %1115 = vmatpush1.bf16.msra.mxu0 %v1096
  %1116 = vmatprep.subr.bf16.mxu0 0
  %1117 = vmatpush1.bf16.msra.mxu0 %v1097
  %1118 = vmatprep.subr.bf16.mxu0 0
  %1119 = vmatpush1.bf16.msra.mxu0 %v1098
  %1120 = vmatprep.subr.bf16.mxu0 0
  %1121 = vmatpush1.bf16.msra.mxu0 %v1099
  %1122 = vmatprep.subr.bf16.mxu0 0
  %1123 = vmatpush1.bf16.msra.mxu0 %v1100
  %1124 = vmatprep.subr.bf16.mxu0 0
  %1125 = vmatpush1.bf16.msra.mxu0 %v1101
  %1126 = vmatprep.subr.bf16.mxu0 0
  %1127 = vmatpush1.bf16.msra.mxu0 %v1102
  %1128 = vmatprep.subr.bf16.mxu0 0
  %1129 = vmatpush1.bf16.msra.mxu0 %v1103
  %1130 = vmatprep.subr.bf16.mxu0 0
  %1131 = vmatpush1.bf16.msra.mxu0 %v1104
  %1132 = vmatprep.subr.bf16.mxu0 0
  %1133 = vmatpush1.bf16.msra.mxu0 %v1105
  %1134 = vmatprep.subr.bf16.mxu0 0
  %1135 = vmatpush1.bf16.msra.mxu0 %v1106
  %1136 = vmatprep.subr.bf16.mxu0 0
  %1137 = vmatpush1.bf16.msra.mxu0 %v1107
  %1138 = vmatprep.subr.bf16.mxu0 0
  %1139 = vmatpush1.bf16.msra.mxu0 %v1108
  %1140 = vmatprep.subr.bf16.mxu0 0
  %1141 = vmatpush1.bf16.msra.mxu0 %v1109
  %1142 = vmatprep.mubr.bf16.mxu0 %v240
  %1143 = vmatmul.mubr.bf16.gmra.mrb[0].mxu0 %v239
  %v1144 = vpop.f32.mrb[0].mxu0
  %v1145 = vadd.f32 0.0, %v1144
  %v1146 = vpop.f32.mrb[0].mxu0
  %v1147 = vpop.f32.mrb[0].mxu0
  %v1148 = vpop.f32.mrb[0].mxu0
  %1149 = vdwg.mxu0
  %s1150 = scalar_lea.vmem %s3, 896
  %v1151 = vld [vmem:[%s1150] sm:$0xff]
  %v1152 = vld [vmem:[%s1150 + $0x8] sm:$0xff]
  %v1153 = vld [vmem:[%s1150 + $0x10] sm:$0xff]
  %v1154 = vld [vmem:[%s1150 + $0x18] sm:$0xff]
  %v1155 = vld [vmem:[%s1150 + $0x20] sm:$0xff]
  %v1156 = vld [vmem:[%s1150 + $0x28] sm:$0xff]
  %v1157 = vld [vmem:[%s1150 + $0x30] sm:$0xff]
  %v1158 = vld [vmem:[%s1150 + $0x38] sm:$0xff]
  %v1159 = vunpack.c.l.s8.bf16 %v1151
  %v1160 = vunpack.c.h.s8.bf16 %v1151
  %v1161 = vunpack.c.l.s8.bf16 %v1152
  %v1162 = vunpack.c.h.s8.bf16 %v1152
  %v1163 = vunpack.c.l.s8.bf16 %v1153
  %v1164 = vunpack.c.h.s8.bf16 %v1153
  %v1165 = vunpack.c.l.s8.bf16 %v1154
  %v1166 = vunpack.c.h.s8.bf16 %v1154
  %v1167 = vunpack.c.l.s8.bf16 %v1155
  %v1168 = vunpack.c.h.s8.bf16 %v1155
  %v1169 = vunpack.c.l.s8.bf16 %v1156
  %v1170 = vunpack.c.h.s8.bf16 %v1156
  %v1171 = vunpack.c.l.s8.bf16 %v1157
  %v1172 = vunpack.c.h.s8.bf16 %v1157
  %v1173 = vunpack.c.l.s8.bf16 %v1158
  %v1174 = vunpack.c.h.s8.bf16 %v1158
  %1175 = vmatprep.subr.bf16.mxu0 0
  %1176 = vmatpush1.bf16.msra.mxu0 %v1159
  %1177 = vmatprep.subr.bf16.mxu0 0
  %1178 = vmatpush1.bf16.msra.mxu0 %v1160
  %1179 = vmatprep.subr.bf16.mxu0 0
  %1180 = vmatpush1.bf16.msra.mxu0 %v1161
  %1181 = vmatprep.subr.bf16.mxu0 0
  %1182 = vmatpush1.bf16.msra.mxu0 %v1162
  %1183 = vmatprep.subr.bf16.mxu0 0
  %1184 = vmatpush1.bf16.msra.mxu0 %v1163
  %1185 = vmatprep.subr.bf16.mxu0 0
  %1186 = vmatpush1.bf16.msra.mxu0 %v1164
  %1187 = vmatprep.subr.bf16.mxu0 0
  %1188 = vmatpush1.bf16.msra.mxu0 %v1165
  %1189 = vmatprep.subr.bf16.mxu0 0
  %1190 = vmatpush1.bf16.msra.mxu0 %v1166
  %1191 = vmatprep.subr.bf16.mxu0 0
  %1192 = vmatpush1.bf16.msra.mxu0 %v1167
  %1193 = vmatprep.subr.bf16.mxu0 0
  %1194 = vmatpush1.bf16.msra.mxu0 %v1168
  %1195 = vmatprep.subr.bf16.mxu0 0
  %1196 = vmatpush1.bf16.msra.mxu0 %v1169
  %1197 = vmatprep.subr.bf16.mxu0 0
  %1198 = vmatpush1.bf16.msra.mxu0 %v1170
  %1199 = vmatprep.subr.bf16.mxu0 0
  %1200 = vmatpush1.bf16.msra.mxu0 %v1171
  %1201 = vmatprep.subr.bf16.mxu0 0
  %1202 = vmatpush1.bf16.msra.mxu0 %v1172
  %1203 = vmatprep.subr.bf16.mxu0 0
  %1204 = vmatpush1.bf16.msra.mxu0 %v1173
  %1205 = vmatprep.subr.bf16.mxu0 0
  %1206 = vmatpush1.bf16.msra.mxu0 %v1174
  %1207 = vmatprep.mubr.bf16.mxu0 %v240
  %1208 = vmatmul.mubr.bf16.gmra.mrb[0].mxu0 %v239
  %v1209 = vpop.f32.mrb[0].mxu0
  %v1210 = vadd.f32 0.0, %v1209
  %v1211 = vpop.f32.mrb[0].mxu0
  %v1212 = vpop.f32.mrb[0].mxu0
  %v1213 = vpop.f32.mrb[0].mxu0
  %1214 = vdwg.mxu0
  %s1215 = scalar_lea.vmem %s3, 960
  %v1216 = vld [vmem:[%s1215] sm:$0xff]
  %v1217 = vld [vmem:[%s1215 + $0x8] sm:$0xff]
  %v1218 = vld [vmem:[%s1215 + $0x10] sm:$0xff]
  %v1219 = vld [vmem:[%s1215 + $0x18] sm:$0xff]
  %v1220 = vld [vmem:[%s1215 + $0x20] sm:$0xff]
  %v1221 = vld [vmem:[%s1215 + $0x28] sm:$0xff]
  %v1222 = vld [vmem:[%s1215 + $0x30] sm:$0xff]
  %v1223 = vld [vmem:[%s1215 + $0x38] sm:$0xff]
  %v1224 = vunpack.c.l.s8.bf16 %v1216
  %v1225 = vunpack.c.h.s8.bf16 %v1216
  %v1226 = vunpack.c.l.s8.bf16 %v1217
  %v1227 = vunpack.c.h.s8.bf16 %v1217
  %v1228 = vunpack.c.l.s8.bf16 %v1218
  %v1229 = vunpack.c.h.s8.bf16 %v1218
  %v1230 = vunpack.c.l.s8.bf16 %v1219
  %v1231 = vunpack.c.h.s8.bf16 %v1219
  %v1232 = vunpack.c.l.s8.bf16 %v1220
  %v1233 = vunpack.c.h.s8.bf16 %v1220
  %v1234 = vunpack.c.l.s8.bf16 %v1221
  %v1235 = vunpack.c.h.s8.bf16 %v1221
  %v1236 = vunpack.c.l.s8.bf16 %v1222
  %v1237 = vunpack.c.h.s8.bf16 %v1222
  %v1238 = vunpack.c.l.s8.bf16 %v1223
  %v1239 = vunpack.c.h.s8.bf16 %v1223
  %1240 = vmatprep.subr.bf16.mxu0 0
  %1241 = vmatpush1.bf16.msra.mxu0 %v1224
  %1242 = vmatprep.subr.bf16.mxu0 0
  %1243 = vmatpush1.bf16.msra.mxu0 %v1225
  %1244 = vmatprep.subr.bf16.mxu0 0
  %1245 = vmatpush1.bf16.msra.mxu0 %v1226
  %1246 = vmatprep.subr.bf16.mxu0 0
  %1247 = vmatpush1.bf16.msra.mxu0 %v1227
  %1248 = vmatprep.subr.bf16.mxu0 0
  %1249 = vmatpush1.bf16.msra.mxu0 %v1228
  %1250 = vmatprep.subr.bf16.mxu0 0
  %1251 = vmatpush1.bf16.msra.mxu0 %v1229
  %1252 = vmatprep.subr.bf16.mxu0 0
  %1253 = vmatpush1.bf16.msra.mxu0 %v1230
  %1254 = vmatprep.subr.bf16.mxu0 0
  %1255 = vmatpush1.bf16.msra.mxu0 %v1231
  %1256 = vmatprep.subr.bf16.mxu0 0
  %1257 = vmatpush1.bf16.msra.mxu0 %v1232
  %1258 = vmatprep.subr.bf16.mxu0 0
  %1259 = vmatpush1.bf16.msra.mxu0 %v1233
  %1260 = vmatprep.subr.bf16.mxu0 0
  %1261 = vmatpush1.bf16.msra.mxu0 %v1234
  %1262 = vmatprep.subr.bf16.mxu0 0
  %1263 = vmatpush1.bf16.msra.mxu0 %v1235
  %1264 = vmatprep.subr.bf16.mxu0 0
  %1265 = vmatpush1.bf16.msra.mxu0 %v1236
  %1266 = vmatprep.subr.bf16.mxu0 0
  %1267 = vmatpush1.bf16.msra.mxu0 %v1237
  %1268 = vmatprep.subr.bf16.mxu0 0
  %1269 = vmatpush1.bf16.msra.mxu0 %v1238
  %1270 = vmatprep.subr.bf16.mxu0 0
  %1271 = vmatpush1.bf16.msra.mxu0 %v1239
  %1272 = vmatprep.mubr.bf16.mxu0 %v240
  %1273 = vmatmul.mubr.bf16.gmra.mrb[0].mxu0 %v239
  %v1274 = vpop.f32.mrb[0].mxu0
  %v1275 = vadd.f32 0.0, %v1274
  %v1276 = vpop.f32.mrb[0].mxu0
  %v1277 = vpop.f32.mrb[0].mxu0
  %v1278 = vpop.f32.mrb[0].mxu0
  %1279 = vdwg.mxu0
  %v1280 = vpack.c.bf16 %v365, %v300
  %v1281 = vpack.c.bf16 %v495, %v430
  %v1282 = vpack.c.bf16 %v625, %v560
  %v1283 = vpack.c.bf16 %v755, %v690
  %v1284 = vpack.c.bf16 %v885, %v820
  %v1285 = vpack.c.bf16 %v1015, %v950
  %v1286 = vpack.c.bf16 %v1145, %v1080
  %v1287 = vpack.c.bf16 %v1275, %v1210
  %v1290 = vunpack.c.l.b16 %v235
  %v1291 = vunpack.c.l.b16 %v236
  %v1292 = vpack.c.b16 %v1291, %v1290
  %1294 = vmatprep.subr.bf16.mxu0 0
  %1295 = vmatpush1.bf16.msra.mxu0 %v1280
  %1296 = vmatprep.subr.bf16.mxu0 0
  %1297 = vmatpush1.bf16.msra.mxu0 %v1281
  %1298 = vmatprep.subr.bf16.mxu0 0
  %1299 = vmatpush1.bf16.msra.mxu0 %v1282
  %1300 = vmatprep.subr.bf16.mxu0 0
  %1301 = vmatpush1.bf16.msra.mxu0 %v1283
  %1302 = vmatprep.subr.bf16.mxu0 0
  %1303 = vmatpush1.bf16.msra.mxu0 %v1284
  %1304 = vmatprep.subr.bf16.mxu0 0
  %1305 = vmatpush1.bf16.msra.mxu0 %v1285
  %1306 = vmatprep.subr.bf16.mxu0 0
  %1307 = vmatpush1.bf16.msra.mxu0 %v1286
  %1308 = vmatprep.subr.bf16.mxu0 0
  %1309 = vmatpush1.bf16.msra.mxu0 %v1287
  %1310 = vmatprep.subr.bf16.mxu0 0
  %1311 = vmatpush1.bf16.msra.mxu0 0
  %1312 = vmatprep.subr.bf16.mxu0 0
  %1313 = vmatpush1.bf16.msra.mxu0 0
  %1314 = vmatprep.subr.bf16.mxu0 0
  %1315 = vmatpush1.bf16.msra.mxu0 0
  %1316 = vmatprep.subr.bf16.mxu0 0
  %1317 = vmatpush1.bf16.msra.mxu0 0
  %1318 = vmatprep.subr.bf16.mxu0 0
  %1319 = vmatpush1.bf16.msra.mxu0 0
  %1320 = vmatprep.subr.bf16.mxu0 0
  %1321 = vmatpush1.bf16.msra.mxu0 0
  %1322 = vmatprep.subr.bf16.mxu0 0
  %1323 = vmatpush1.bf16.msra.mxu0 0
  %1324 = vmatprep.subr.bf16.mxu0 0
  %1325 = vmatpush1.bf16.msra.mxu0 0
  %1326 = vmatprep.mubr.bf16.mxu0 0
  %1327 = vmatmul.mubr.bf16.gmra.mrb[0].mxu0 %v1292
  %v1328 = vpop.f32.mrb[0].mxu0
  %v1329 = vadd.f32 0.0, %v1328
  %v1330 = vpop.f32.mrb[0].mxu0
  %v1331 = vpop.f32.mrb[0].mxu0
  %v1332 = vadd.f32 0.0, %v1331
  %v1333 = vpop.f32.mrb[0].mxu0
  %1334 = vdwg.mxu0
  %vm1335 = vcmp.ge.f32.partialorder %v1329, 0.0
  %vm1336 = vcmp.ge.f32.partialorder %v1332, 0.0
  %v1337 = vmul.f32 %v1329, 0.2
  %v1338 = vmul.f32 %v1332, 0.2
  %v1339 = vsel %vm1335, %v1329, %v1337
  %v1340 = vsel %vm1336, %v1332, %v1338
  %v1341 = vld [vmem:[%s4] sm:$0xff]
  %v1342 = vld [vmem:[%s4 + $0x8] sm:$0xff]
  %v1343 = vld [vmem:[%s4 + $0x10] sm:$0xff]
  %v1344 = vld [vmem:[%s4 + $0x18] sm:$0xff]
  %v1345 = vld [vmem:[%s6] sm:$0xff]
  %v1346 = vld [vmem:[%s6 + $0x8] sm:$0xff]
  %v1347 = vld [vmem:[%s6 + $0x10] sm:$0xff]
  %v1348 = vld [vmem:[%s6 + $0x18] sm:$0xff]
  %v1349 = vld [vmem:[%s7] sm:$0xff]
  %v1350 = vld [vmem:[%s7 + $0x8] sm:$0xff]
  %v1351 = vld [vmem:[%s7 + $0x10] sm:$0xff]
  %v1352 = vld [vmem:[%s7 + $0x18] sm:$0xff]
  %v1353 = vpack.c.bf16 %v1340, %v1339
  %v1354 = vld [vmem:[%s5] sm:$0xf]
  %v1355 = vld [vmem:[%s5 + $0x4] sm:$0xf]
  %v1356 = vld [vmem:[%s5 + $0x8] sm:$0xf]
  %v1357 = vld [vmem:[%s5 + $0xc] sm:$0xf]
  %v1358 = vld [vmem:[%s5 + $0x10] sm:$0xf]
  %v1359 = vld [vmem:[%s5 + $0x14] sm:$0xf]
  %v1360 = vld [vmem:[%s5 + $0x18] sm:$0xf]
  %v1361 = vld [vmem:[%s5 + $0x1c] sm:$0xf]
  %v1370 = vunpack.c.l.b16 %v1354
  %v1371 = vunpack.c.l.b16 %v1355
  %v1372 = vunpack.c.l.b16 %v1356
  %v1373 = vunpack.c.l.b16 %v1357
  %v1374 = vunpack.c.l.b16 %v1358
  %v1375 = vunpack.c.l.b16 %v1359
  %v1376 = vunpack.c.l.b16 %v1360
  %v1377 = vunpack.c.l.b16 %v1361
  %v1378 = vpack.c.b16 %v1371, %v1370
  %v1379 = vpack.c.b16 %v1373, %v1372
  %v1380 = vpack.c.b16 %v1375, %v1374
  %v1381 = vpack.c.b16 %v1377, %v1376
  %vm1386 = vcmask 523264
  %v1388 = vsel %vm1386, %v1353, 0
  %1390 = vmatprep.subr.bf16.mxu0 0
  %1391 = vmatpush1.bf16.msra.mxu0 %v1378
  %1392 = vmatprep.subr.bf16.mxu0 0
  %1393 = vmatpush1.bf16.msra.mxu0 %v1379
  %1394 = vmatprep.subr.bf16.mxu0 0
  %1395 = vmatpush1.bf16.msra.mxu0 %v1380
  %1396 = vmatprep.subr.bf16.mxu0 0
  %1397 = vmatpush1.bf16.msra.mxu0 %v1381
  %1398 = vmatprep.subr.bf16.mxu0 0
  %1399 = vmatpush1.bf16.msra.mxu0 0
  %1400 = vmatprep.subr.bf16.mxu0 0
  %1401 = vmatpush1.bf16.msra.mxu0 0
  %1402 = vmatprep.subr.bf16.mxu0 0
  %1403 = vmatpush1.bf16.msra.mxu0 0
  %1404 = vmatprep.subr.bf16.mxu0 0
  %1405 = vmatpush1.bf16.msra.mxu0 0
  %1406 = vmatprep.subr.bf16.mxu0 0
  %1407 = vmatpush1.bf16.msra.mxu0 0
  %1408 = vmatprep.subr.bf16.mxu0 0
  %1409 = vmatpush1.bf16.msra.mxu0 0
  %1410 = vmatprep.subr.bf16.mxu0 0
  %1411 = vmatpush1.bf16.msra.mxu0 0
  %1412 = vmatprep.subr.bf16.mxu0 0
  %1413 = vmatpush1.bf16.msra.mxu0 0
  %1414 = vmatprep.subr.bf16.mxu0 0
  %1415 = vmatpush1.bf16.msra.mxu0 0
  %1416 = vmatprep.subr.bf16.mxu0 0
  %1417 = vmatpush1.bf16.msra.mxu0 0
  %1418 = vmatprep.subr.bf16.mxu0 0
  %1419 = vmatpush1.bf16.msra.mxu0 0
  %1420 = vmatprep.subr.bf16.mxu0 0
  %1421 = vmatpush1.bf16.msra.mxu0 0
  %1422 = vmatprep.mubr.bf16.mxu0 0
  %1423 = vmatmul.mubr.bf16.gmra.mrb[0].mxu0 %v1388
  %v1424 = vpop.f32.mrb[0].mxu0
  %v1425 = vadd.f32 0.0, %v1424
  %v1426 = vpop.f32.mrb[0].mxu0
  %v1427 = vpop.f32.mrb[0].mxu0
  %v1428 = vadd.f32 0.0, %v1427
  %v1429 = vpop.f32.mrb[0].mxu0
  %1430 = vdwg.mxu0
  %s1431 = scalar_lea.vmem %s5, 32
  %v1432 = vld [vmem:[%s1431] sm:$0xf]
  %v1433 = vld [vmem:[%s1431 + $0x4] sm:$0xf]
  %v1434 = vld [vmem:[%s1431 + $0x8] sm:$0xf]
  %v1435 = vld [vmem:[%s1431 + $0xc] sm:$0xf]
  %v1436 = vld [vmem:[%s1431 + $0x10] sm:$0xf]
  %v1437 = vld [vmem:[%s1431 + $0x14] sm:$0xf]
  %v1438 = vld [vmem:[%s1431 + $0x18] sm:$0xf]
  %v1439 = vld [vmem:[%s1431 + $0x1c] sm:$0xf]
  %v1448 = vunpack.c.l.b16 %v1432
  %v1449 = vunpack.c.l.b16 %v1433
  %v1450 = vunpack.c.l.b16 %v1434
  %v1451 = vunpack.c.l.b16 %v1435
  %v1452 = vunpack.c.l.b16 %v1436
  %v1453 = vunpack.c.l.b16 %v1437
  %v1454 = vunpack.c.l.b16 %v1438
  %v1455 = vunpack.c.l.b16 %v1439
  %v1456 = vpack.c.b16 %v1449, %v1448
  %v1457 = vpack.c.b16 %v1451, %v1450
  %v1458 = vpack.c.b16 %v1453, %v1452
  %v1459 = vpack.c.b16 %v1455, %v1454
  %1464 = vmatprep.subr.bf16.mxu0 0
  %1465 = vmatpush1.bf16.msra.mxu0 %v1456
  %1466 = vmatprep.subr.bf16.mxu0 0
  %1467 = vmatpush1.bf16.msra.mxu0 %v1457
  %1468 = vmatprep.subr.bf16.mxu0 0
  %1469 = vmatpush1.bf16.msra.mxu0 %v1458
  %1470 = vmatprep.subr.bf16.mxu0 0
  %1471 = vmatpush1.bf16.msra.mxu0 %v1459
  %1472 = vmatprep.subr.bf16.mxu0 0
  %1473 = vmatpush1.bf16.msra.mxu0 0
  %1474 = vmatprep.subr.bf16.mxu0 0
  %1475 = vmatpush1.bf16.msra.mxu0 0
  %1476 = vmatprep.subr.bf16.mxu0 0
  %1477 = vmatpush1.bf16.msra.mxu0 0
  %1478 = vmatprep.subr.bf16.mxu0 0
  %1479 = vmatpush1.bf16.msra.mxu0 0
  %1480 = vmatprep.subr.bf16.mxu0 0
  %1481 = vmatpush1.bf16.msra.mxu0 0
  %1482 = vmatprep.subr.bf16.mxu0 0
  %1483 = vmatpush1.bf16.msra.mxu0 0
  %1484 = vmatprep.subr.bf16.mxu0 0
  %1485 = vmatpush1.bf16.msra.mxu0 0
  %1486 = vmatprep.subr.bf16.mxu0 0
  %1487 = vmatpush1.bf16.msra.mxu0 0
  %1488 = vmatprep.subr.bf16.mxu0 0
  %1489 = vmatpush1.bf16.msra.mxu0 0
  %1490 = vmatprep.subr.bf16.mxu0 0
  %1491 = vmatpush1.bf16.msra.mxu0 0
  %1492 = vmatprep.subr.bf16.mxu0 0
  %1493 = vmatpush1.bf16.msra.mxu0 0
  %1494 = vmatprep.subr.bf16.mxu0 0
  %1495 = vmatpush1.bf16.msra.mxu0 0
  %1496 = vmatprep.mubr.bf16.mxu0 0
  %1497 = vmatmul.mubr.bf16.gmra.mrb[0].mxu0 %v1388
  %v1498 = vpop.f32.mrb[0].mxu0
  %v1499 = vadd.f32 0.0, %v1498
  %v1500 = vpop.f32.mrb[0].mxu0
  %v1501 = vpop.f32.mrb[0].mxu0
  %v1502 = vadd.f32 0.0, %v1501
  %v1503 = vpop.f32.mrb[0].mxu0
  %1504 = vdwg.mxu0
  %s1505 = scalar_lea.vmem %s5, 64
  %v1506 = vld [vmem:[%s1505] sm:$0xf]
  %v1507 = vld [vmem:[%s1505 + $0x4] sm:$0xf]
  %v1508 = vld [vmem:[%s1505 + $0x8] sm:$0xf]
  %v1509 = vld [vmem:[%s1505 + $0xc] sm:$0xf]
  %v1510 = vld [vmem:[%s1505 + $0x10] sm:$0xf]
  %v1511 = vld [vmem:[%s1505 + $0x14] sm:$0xf]
  %v1512 = vld [vmem:[%s1505 + $0x18] sm:$0xf]
  %v1513 = vld [vmem:[%s1505 + $0x1c] sm:$0xf]
  %v1522 = vunpack.c.l.b16 %v1506
  %v1523 = vunpack.c.l.b16 %v1507
  %v1524 = vunpack.c.l.b16 %v1508
  %v1525 = vunpack.c.l.b16 %v1509
  %v1526 = vunpack.c.l.b16 %v1510
  %v1527 = vunpack.c.l.b16 %v1511
  %v1528 = vunpack.c.l.b16 %v1512
  %v1529 = vunpack.c.l.b16 %v1513
  %v1530 = vpack.c.b16 %v1523, %v1522
  %v1531 = vpack.c.b16 %v1525, %v1524
  %v1532 = vpack.c.b16 %v1527, %v1526
  %v1533 = vpack.c.b16 %v1529, %v1528
  %1538 = vmatprep.subr.bf16.mxu0 0
  %1539 = vmatpush1.bf16.msra.mxu0 %v1530
  %1540 = vmatprep.subr.bf16.mxu0 0
  %1541 = vmatpush1.bf16.msra.mxu0 %v1531
  %1542 = vmatprep.subr.bf16.mxu0 0
  %1543 = vmatpush1.bf16.msra.mxu0 %v1532
  %1544 = vmatprep.subr.bf16.mxu0 0
  %1545 = vmatpush1.bf16.msra.mxu0 %v1533
  %1546 = vmatprep.subr.bf16.mxu0 0
  %1547 = vmatpush1.bf16.msra.mxu0 0
  %1548 = vmatprep.subr.bf16.mxu0 0
  %1549 = vmatpush1.bf16.msra.mxu0 0
  %1550 = vmatprep.subr.bf16.mxu0 0
  %1551 = vmatpush1.bf16.msra.mxu0 0
  %1552 = vmatprep.subr.bf16.mxu0 0
  %1553 = vmatpush1.bf16.msra.mxu0 0
  %1554 = vmatprep.subr.bf16.mxu0 0
  %1555 = vmatpush1.bf16.msra.mxu0 0
  %1556 = vmatprep.subr.bf16.mxu0 0
  %1557 = vmatpush1.bf16.msra.mxu0 0
  %1558 = vmatprep.subr.bf16.mxu0 0
  %1559 = vmatpush1.bf16.msra.mxu0 0
  %1560 = vmatprep.subr.bf16.mxu0 0
  %1561 = vmatpush1.bf16.msra.mxu0 0
  %1562 = vmatprep.subr.bf16.mxu0 0
  %1563 = vmatpush1.bf16.msra.mxu0 0
  %1564 = vmatprep.subr.bf16.mxu0 0
  %1565 = vmatpush1.bf16.msra.mxu0 0
  %1566 = vmatprep.subr.bf16.mxu0 0
  %1567 = vmatpush1.bf16.msra.mxu0 0
  %1568 = vmatprep.subr.bf16.mxu0 0
  %1569 = vmatpush1.bf16.msra.mxu0 0
  %1570 = vmatprep.mubr.bf16.mxu0 0
  %1571 = vmatmul.mubr.bf16.gmra.mrb[0].mxu0 %v1388
  %v1572 = vpop.f32.mrb[0].mxu0
  %v1573 = vadd.f32 0.0, %v1572
  %v1574 = vpop.f32.mrb[0].mxu0
  %v1575 = vpop.f32.mrb[0].mxu0
  %v1576 = vadd.f32 0.0, %v1575
  %v1577 = vpop.f32.mrb[0].mxu0
  %1578 = vdwg.mxu0
  %s1579 = scalar_lea.vmem %s5, 96
  %v1580 = vld [vmem:[%s1579] sm:$0xf]
  %v1581 = vld [vmem:[%s1579 + $0x4] sm:$0xf]
  %v1582 = vld [vmem:[%s1579 + $0x8] sm:$0xf]
  %v1583 = vld [vmem:[%s1579 + $0xc] sm:$0xf]
  %v1584 = vld [vmem:[%s1579 + $0x10] sm:$0xf]
  %v1585 = vld [vmem:[%s1579 + $0x14] sm:$0xf]
  %v1586 = vld [vmem:[%s1579 + $0x18] sm:$0xf]
  %v1587 = vld [vmem:[%s1579 + $0x1c] sm:$0xf]
  %v1596 = vunpack.c.l.b16 %v1580
  %v1597 = vunpack.c.l.b16 %v1581
  %v1598 = vunpack.c.l.b16 %v1582
  %v1599 = vunpack.c.l.b16 %v1583
  %v1600 = vunpack.c.l.b16 %v1584
  %v1601 = vunpack.c.l.b16 %v1585
  %v1602 = vunpack.c.l.b16 %v1586
  %v1603 = vunpack.c.l.b16 %v1587
  %v1604 = vpack.c.b16 %v1597, %v1596
  %v1605 = vpack.c.b16 %v1599, %v1598
  %v1606 = vpack.c.b16 %v1601, %v1600
  %v1607 = vpack.c.b16 %v1603, %v1602
  %1612 = vmatprep.subr.bf16.mxu0 0
  %1613 = vmatpush1.bf16.msra.mxu0 %v1604
  %1614 = vmatprep.subr.bf16.mxu0 0
  %1615 = vmatpush1.bf16.msra.mxu0 %v1605
  %1616 = vmatprep.subr.bf16.mxu0 0
  %1617 = vmatpush1.bf16.msra.mxu0 %v1606
  %1618 = vmatprep.subr.bf16.mxu0 0
  %1619 = vmatpush1.bf16.msra.mxu0 %v1607
  %1620 = vmatprep.subr.bf16.mxu0 0
  %1621 = vmatpush1.bf16.msra.mxu0 0
  %1622 = vmatprep.subr.bf16.mxu0 0
  %1623 = vmatpush1.bf16.msra.mxu0 0
  %1624 = vmatprep.subr.bf16.mxu0 0
  %1625 = vmatpush1.bf16.msra.mxu0 0
  %1626 = vmatprep.subr.bf16.mxu0 0
  %1627 = vmatpush1.bf16.msra.mxu0 0
  %1628 = vmatprep.subr.bf16.mxu0 0
  %1629 = vmatpush1.bf16.msra.mxu0 0
  %1630 = vmatprep.subr.bf16.mxu0 0
  %1631 = vmatpush1.bf16.msra.mxu0 0
  %1632 = vmatprep.subr.bf16.mxu0 0
  %1633 = vmatpush1.bf16.msra.mxu0 0
  %1634 = vmatprep.subr.bf16.mxu0 0
  %1635 = vmatpush1.bf16.msra.mxu0 0
  %1636 = vmatprep.subr.bf16.mxu0 0
  %1637 = vmatpush1.bf16.msra.mxu0 0
  %1638 = vmatprep.subr.bf16.mxu0 0
  %1639 = vmatpush1.bf16.msra.mxu0 0
  %1640 = vmatprep.subr.bf16.mxu0 0
  %1641 = vmatpush1.bf16.msra.mxu0 0
  %1642 = vmatprep.subr.bf16.mxu0 0
  %1643 = vmatpush1.bf16.msra.mxu0 0
  %1644 = vmatprep.mubr.bf16.mxu0 0
  %1645 = vmatmul.mubr.bf16.gmra.mrb[0].mxu0 %v1388
  %v1646 = vpop.f32.mrb[0].mxu0
  %v1647 = vadd.f32 0.0, %v1646
  %v1648 = vpop.f32.mrb[0].mxu0
  %v1649 = vpop.f32.mrb[0].mxu0
  %v1650 = vadd.f32 0.0, %v1649
  %v1651 = vpop.f32.mrb[0].mxu0
  %1652 = vdwg.mxu0
  %s1653 = scalar_lea.vmem %s5, 128
  %v1654 = vld [vmem:[%s1653] sm:$0xf]
  %v1655 = vld [vmem:[%s1653 + $0x4] sm:$0xf]
  %v1656 = vld [vmem:[%s1653 + $0x8] sm:$0xf]
  %v1657 = vld [vmem:[%s1653 + $0xc] sm:$0xf]
  %v1658 = vld [vmem:[%s1653 + $0x10] sm:$0xf]
  %v1659 = vld [vmem:[%s1653 + $0x14] sm:$0xf]
  %v1660 = vld [vmem:[%s1653 + $0x18] sm:$0xf]
  %v1661 = vld [vmem:[%s1653 + $0x1c] sm:$0xf]
  %v1670 = vunpack.c.l.b16 %v1654
  %v1671 = vunpack.c.l.b16 %v1655
  %v1672 = vunpack.c.l.b16 %v1656
  %v1673 = vunpack.c.l.b16 %v1657
  %v1674 = vunpack.c.l.b16 %v1658
  %v1675 = vunpack.c.l.b16 %v1659
  %v1676 = vunpack.c.l.b16 %v1660
  %v1677 = vunpack.c.l.b16 %v1661
  %v1678 = vpack.c.b16 %v1671, %v1670
  %v1679 = vpack.c.b16 %v1673, %v1672
  %v1680 = vpack.c.b16 %v1675, %v1674
  %v1681 = vpack.c.b16 %v1677, %v1676
  %1686 = vmatprep.subr.bf16.mxu0 0
  %1687 = vmatpush1.bf16.msra.mxu0 %v1678
  %1688 = vmatprep.subr.bf16.mxu0 0
  %1689 = vmatpush1.bf16.msra.mxu0 %v1679
  %1690 = vmatprep.subr.bf16.mxu0 0
  %1691 = vmatpush1.bf16.msra.mxu0 %v1680
  %1692 = vmatprep.subr.bf16.mxu0 0
  %1693 = vmatpush1.bf16.msra.mxu0 %v1681
  %1694 = vmatprep.subr.bf16.mxu0 0
  %1695 = vmatpush1.bf16.msra.mxu0 0
  %1696 = vmatprep.subr.bf16.mxu0 0
  %1697 = vmatpush1.bf16.msra.mxu0 0
  %1698 = vmatprep.subr.bf16.mxu0 0
  %1699 = vmatpush1.bf16.msra.mxu0 0
  %1700 = vmatprep.subr.bf16.mxu0 0
  %1701 = vmatpush1.bf16.msra.mxu0 0
  %1702 = vmatprep.subr.bf16.mxu0 0
  %1703 = vmatpush1.bf16.msra.mxu0 0
  %1704 = vmatprep.subr.bf16.mxu0 0
  %1705 = vmatpush1.bf16.msra.mxu0 0
  %1706 = vmatprep.subr.bf16.mxu0 0
  %1707 = vmatpush1.bf16.msra.mxu0 0
  %1708 = vmatprep.subr.bf16.mxu0 0
  %1709 = vmatpush1.bf16.msra.mxu0 0
  %1710 = vmatprep.subr.bf16.mxu0 0
  %1711 = vmatpush1.bf16.msra.mxu0 0
  %1712 = vmatprep.subr.bf16.mxu0 0
  %1713 = vmatpush1.bf16.msra.mxu0 0
  %1714 = vmatprep.subr.bf16.mxu0 0
  %1715 = vmatpush1.bf16.msra.mxu0 0
  %1716 = vmatprep.subr.bf16.mxu0 0
  %1717 = vmatpush1.bf16.msra.mxu0 0
  %1718 = vmatprep.mubr.bf16.mxu0 0
  %1719 = vmatmul.mubr.bf16.gmra.mrb[0].mxu0 %v1388
  %v1720 = vpop.f32.mrb[0].mxu0
  %v1721 = vadd.f32 0.0, %v1720
  %v1722 = vpop.f32.mrb[0].mxu0
  %v1723 = vpop.f32.mrb[0].mxu0
  %v1724 = vadd.f32 0.0, %v1723
  %v1725 = vpop.f32.mrb[0].mxu0
  %1726 = vdwg.mxu0
  %s1727 = scalar_lea.vmem %s5, 160
  %v1728 = vld [vmem:[%s1727] sm:$0xf]
  %v1729 = vld [vmem:[%s1727 + $0x4] sm:$0xf]
  %v1730 = vld [vmem:[%s1727 + $0x8] sm:$0xf]
  %v1731 = vld [vmem:[%s1727 + $0xc] sm:$0xf]
  %v1732 = vld [vmem:[%s1727 + $0x10] sm:$0xf]
  %v1733 = vld [vmem:[%s1727 + $0x14] sm:$0xf]
  %v1734 = vld [vmem:[%s1727 + $0x18] sm:$0xf]
  %v1735 = vld [vmem:[%s1727 + $0x1c] sm:$0xf]
  %v1744 = vunpack.c.l.b16 %v1728
  %v1745 = vunpack.c.l.b16 %v1729
  %v1746 = vunpack.c.l.b16 %v1730
  %v1747 = vunpack.c.l.b16 %v1731
  %v1748 = vunpack.c.l.b16 %v1732
  %v1749 = vunpack.c.l.b16 %v1733
  %v1750 = vunpack.c.l.b16 %v1734
  %v1751 = vunpack.c.l.b16 %v1735
  %v1752 = vpack.c.b16 %v1745, %v1744
  %v1753 = vpack.c.b16 %v1747, %v1746
  %v1754 = vpack.c.b16 %v1749, %v1748
  %v1755 = vpack.c.b16 %v1751, %v1750
  %1760 = vmatprep.subr.bf16.mxu0 0
  %1761 = vmatpush1.bf16.msra.mxu0 %v1752
  %1762 = vmatprep.subr.bf16.mxu0 0
  %1763 = vmatpush1.bf16.msra.mxu0 %v1753
  %1764 = vmatprep.subr.bf16.mxu0 0
  %1765 = vmatpush1.bf16.msra.mxu0 %v1754
  %1766 = vmatprep.subr.bf16.mxu0 0
  %1767 = vmatpush1.bf16.msra.mxu0 %v1755
  %1768 = vmatprep.subr.bf16.mxu0 0
  %1769 = vmatpush1.bf16.msra.mxu0 0
  %1770 = vmatprep.subr.bf16.mxu0 0
  %1771 = vmatpush1.bf16.msra.mxu0 0
  %1772 = vmatprep.subr.bf16.mxu0 0
  %1773 = vmatpush1.bf16.msra.mxu0 0
  %1774 = vmatprep.subr.bf16.mxu0 0
  %1775 = vmatpush1.bf16.msra.mxu0 0
  %1776 = vmatprep.subr.bf16.mxu0 0
  %1777 = vmatpush1.bf16.msra.mxu0 0
  %1778 = vmatprep.subr.bf16.mxu0 0
  %1779 = vmatpush1.bf16.msra.mxu0 0
  %1780 = vmatprep.subr.bf16.mxu0 0
  %1781 = vmatpush1.bf16.msra.mxu0 0
  %1782 = vmatprep.subr.bf16.mxu0 0
  %1783 = vmatpush1.bf16.msra.mxu0 0
  %1784 = vmatprep.subr.bf16.mxu0 0
  %1785 = vmatpush1.bf16.msra.mxu0 0
  %1786 = vmatprep.subr.bf16.mxu0 0
  %1787 = vmatpush1.bf16.msra.mxu0 0
  %1788 = vmatprep.subr.bf16.mxu0 0
  %1789 = vmatpush1.bf16.msra.mxu0 0
  %1790 = vmatprep.subr.bf16.mxu0 0
  %1791 = vmatpush1.bf16.msra.mxu0 0
  %1792 = vmatprep.mubr.bf16.mxu0 0
  %1793 = vmatmul.mubr.bf16.gmra.mrb[0].mxu0 %v1388
  %v1794 = vpop.f32.mrb[0].mxu0
  %v1795 = vadd.f32 0.0, %v1794
  %v1796 = vpop.f32.mrb[0].mxu0
  %v1797 = vpop.f32.mrb[0].mxu0
  %v1798 = vadd.f32 0.0, %v1797
  %v1799 = vpop.f32.mrb[0].mxu0
  %1800 = vdwg.mxu0
  %s1801 = scalar_lea.vmem %s5, 192
  %v1802 = vld [vmem:[%s1801] sm:$0xf]
  %v1803 = vld [vmem:[%s1801 + $0x4] sm:$0xf]
  %v1804 = vld [vmem:[%s1801 + $0x8] sm:$0xf]
  %v1805 = vld [vmem:[%s1801 + $0xc] sm:$0xf]
  %v1806 = vld [vmem:[%s1801 + $0x10] sm:$0xf]
  %v1807 = vld [vmem:[%s1801 + $0x14] sm:$0xf]
  %v1808 = vld [vmem:[%s1801 + $0x18] sm:$0xf]
  %v1809 = vld [vmem:[%s1801 + $0x1c] sm:$0xf]
  %v1818 = vunpack.c.l.b16 %v1802
  %v1819 = vunpack.c.l.b16 %v1803
  %v1820 = vunpack.c.l.b16 %v1804
  %v1821 = vunpack.c.l.b16 %v1805
  %v1822 = vunpack.c.l.b16 %v1806
  %v1823 = vunpack.c.l.b16 %v1807
  %v1824 = vunpack.c.l.b16 %v1808
  %v1825 = vunpack.c.l.b16 %v1809
  %v1826 = vpack.c.b16 %v1819, %v1818
  %v1827 = vpack.c.b16 %v1821, %v1820
  %v1828 = vpack.c.b16 %v1823, %v1822
  %v1829 = vpack.c.b16 %v1825, %v1824
  %1834 = vmatprep.subr.bf16.mxu0 0
  %1835 = vmatpush1.bf16.msra.mxu0 %v1826
  %1836 = vmatprep.subr.bf16.mxu0 0
  %1837 = vmatpush1.bf16.msra.mxu0 %v1827
  %1838 = vmatprep.subr.bf16.mxu0 0
  %1839 = vmatpush1.bf16.msra.mxu0 %v1828
  %1840 = vmatprep.subr.bf16.mxu0 0
  %1841 = vmatpush1.bf16.msra.mxu0 %v1829
  %1842 = vmatprep.subr.bf16.mxu0 0
  %1843 = vmatpush1.bf16.msra.mxu0 0
  %1844 = vmatprep.subr.bf16.mxu0 0
  %1845 = vmatpush1.bf16.msra.mxu0 0
  %1846 = vmatprep.subr.bf16.mxu0 0
  %1847 = vmatpush1.bf16.msra.mxu0 0
  %1848 = vmatprep.subr.bf16.mxu0 0
  %1849 = vmatpush1.bf16.msra.mxu0 0
  %1850 = vmatprep.subr.bf16.mxu0 0
  %1851 = vmatpush1.bf16.msra.mxu0 0
  %1852 = vmatprep.subr.bf16.mxu0 0
  %1853 = vmatpush1.bf16.msra.mxu0 0
  %1854 = vmatprep.subr.bf16.mxu0 0
  %1855 = vmatpush1.bf16.msra.mxu0 0
  %1856 = vmatprep.subr.bf16.mxu0 0
  %1857 = vmatpush1.bf16.msra.mxu0 0
  %1858 = vmatprep.subr.bf16.mxu0 0
  %1859 = vmatpush1.bf16.msra.mxu0 0
  %1860 = vmatprep.subr.bf16.mxu0 0
  %1861 = vmatpush1.bf16.msra.mxu0 0
  %1862 = vmatprep.subr.bf16.mxu0 0
  %1863 = vmatpush1.bf16.msra.mxu0 0
  %1864 = vmatprep.subr.bf16.mxu0 0
  %1865 = vmatpush1.bf16.msra.mxu0 0
  %1866 = vmatprep.mubr.bf16.mxu0 0
  %1867 = vmatmul.mubr.bf16.gmra.mrb[0].mxu0 %v1388
  %v1868 = vpop.f32.mrb[0].mxu0
  %v1869 = vadd.f32 0.0, %v1868
  %v1870 = vpop.f32.mrb[0].mxu0
  %v1871 = vpop.f32.mrb[0].mxu0
  %v1872 = vadd.f32 0.0, %v1871
  %v1873 = vpop.f32.mrb[0].mxu0
  %1874 = vdwg.mxu0
  %s1875 = scalar_lea.vmem %s5, 224
  %v1876 = vld [vmem:[%s1875] sm:$0xf]
  %v1877 = vld [vmem:[%s1875 + $0x4] sm:$0xf]
  %v1878 = vld [vmem:[%s1875 + $0x8] sm:$0xf]
  %v1879 = vld [vmem:[%s1875 + $0xc] sm:$0xf]
  %v1880 = vld [vmem:[%s1875 + $0x10] sm:$0xf]
  %v1881 = vld [vmem:[%s1875 + $0x14] sm:$0xf]
  %v1882 = vld [vmem:[%s1875 + $0x18] sm:$0xf]
  %v1883 = vld [vmem:[%s1875 + $0x1c] sm:$0xf]
  %v1892 = vunpack.c.l.b16 %v1876
  %v1893 = vunpack.c.l.b16 %v1877
  %v1894 = vunpack.c.l.b16 %v1878
  %v1895 = vunpack.c.l.b16 %v1879
  %v1896 = vunpack.c.l.b16 %v1880
  %v1897 = vunpack.c.l.b16 %v1881
  %v1898 = vunpack.c.l.b16 %v1882
  %v1899 = vunpack.c.l.b16 %v1883
  %v1900 = vpack.c.b16 %v1893, %v1892
  %v1901 = vpack.c.b16 %v1895, %v1894
  %v1902 = vpack.c.b16 %v1897, %v1896
  %v1903 = vpack.c.b16 %v1899, %v1898
  %1908 = vmatprep.subr.bf16.mxu0 0
  %1909 = vmatpush1.bf16.msra.mxu0 %v1900
  %1910 = vmatprep.subr.bf16.mxu0 0
  %1911 = vmatpush1.bf16.msra.mxu0 %v1901
  %1912 = vmatprep.subr.bf16.mxu0 0
  %1913 = vmatpush1.bf16.msra.mxu0 %v1902
  %1914 = vmatprep.subr.bf16.mxu0 0
  %1915 = vmatpush1.bf16.msra.mxu0 %v1903
  %1916 = vmatprep.subr.bf16.mxu0 0
  %1917 = vmatpush1.bf16.msra.mxu0 0
  %1918 = vmatprep.subr.bf16.mxu0 0
  %1919 = vmatpush1.bf16.msra.mxu0 0
  %1920 = vmatprep.subr.bf16.mxu0 0
  %1921 = vmatpush1.bf16.msra.mxu0 0
  %1922 = vmatprep.subr.bf16.mxu0 0
  %1923 = vmatpush1.bf16.msra.mxu0 0
  %1924 = vmatprep.subr.bf16.mxu0 0
  %1925 = vmatpush1.bf16.msra.mxu0 0
  %1926 = vmatprep.subr.bf16.mxu0 0
  %1927 = vmatpush1.bf16.msra.mxu0 0
  %1928 = vmatprep.subr.bf16.mxu0 0
  %1929 = vmatpush1.bf16.msra.mxu0 0
  %1930 = vmatprep.subr.bf16.mxu0 0
  %1931 = vmatpush1.bf16.msra.mxu0 0
  %1932 = vmatprep.subr.bf16.mxu0 0
  %1933 = vmatpush1.bf16.msra.mxu0 0
  %1934 = vmatprep.subr.bf16.mxu0 0
  %1935 = vmatpush1.bf16.msra.mxu0 0
  %1936 = vmatprep.subr.bf16.mxu0 0
  %1937 = vmatpush1.bf16.msra.mxu0 0
  %1938 = vmatprep.subr.bf16.mxu0 0
  %1939 = vmatpush1.bf16.msra.mxu0 0
  %1940 = vmatprep.mubr.bf16.mxu0 0
  %1941 = vmatmul.mubr.bf16.gmra.mrb[0].mxu0 %v1388
  %v1942 = vpop.f32.mrb[0].mxu0
  %v1943 = vadd.f32 0.0, %v1942
  %v1944 = vpop.f32.mrb[0].mxu0
  %v1945 = vpop.f32.mrb[0].mxu0
  %v1946 = vadd.f32 0.0, %v1945
  %v1947 = vpop.f32.mrb[0].mxu0
  %1948 = vdwg.mxu0
  %s1949 = scalar_lea.vmem %s5, 256
  %v1950 = vld [vmem:[%s1949] sm:$0xf]
  %v1951 = vld [vmem:[%s1949 + $0x4] sm:$0xf]
  %v1952 = vld [vmem:[%s1949 + $0x8] sm:$0xf]
  %v1953 = vld [vmem:[%s1949 + $0xc] sm:$0xf]
  %v1954 = vld [vmem:[%s1949 + $0x10] sm:$0xf]
  %v1955 = vld [vmem:[%s1949 + $0x14] sm:$0xf]
  %v1956 = vld [vmem:[%s1949 + $0x18] sm:$0xf]
  %v1957 = vld [vmem:[%s1949 + $0x1c] sm:$0xf]
  %v1966 = vunpack.c.l.b16 %v1950
  %v1967 = vunpack.c.l.b16 %v1951
  %v1968 = vunpack.c.l.b16 %v1952
  %v1969 = vunpack.c.l.b16 %v1953
  %v1970 = vunpack.c.l.b16 %v1954
  %v1971 = vunpack.c.l.b16 %v1955
  %v1972 = vunpack.c.l.b16 %v1956
  %v1973 = vunpack.c.l.b16 %v1957
  %v1974 = vpack.c.b16 %v1967, %v1966
  %v1975 = vpack.c.b16 %v1969, %v1968
  %v1976 = vpack.c.b16 %v1971, %v1970
  %v1977 = vpack.c.b16 %v1973, %v1972
  %1982 = vmatprep.subr.bf16.mxu0 0
  %1983 = vmatpush1.bf16.msra.mxu0 %v1974
  %1984 = vmatprep.subr.bf16.mxu0 0
  %1985 = vmatpush1.bf16.msra.mxu0 %v1975
  %1986 = vmatprep.subr.bf16.mxu0 0
  %1987 = vmatpush1.bf16.msra.mxu0 %v1976
  %1988 = vmatprep.subr.bf16.mxu0 0
  %1989 = vmatpush1.bf16.msra.mxu0 %v1977
  %1990 = vmatprep.subr.bf16.mxu0 0
  %1991 = vmatpush1.bf16.msra.mxu0 0
  %1992 = vmatprep.subr.bf16.mxu0 0
  %1993 = vmatpush1.bf16.msra.mxu0 0
  %1994 = vmatprep.subr.bf16.mxu0 0
  %1995 = vmatpush1.bf16.msra.mxu0 0
  %1996 = vmatprep.subr.bf16.mxu0 0
  %1997 = vmatpush1.bf16.msra.mxu0 0
  %1998 = vmatprep.subr.bf16.mxu0 0
  %1999 = vmatpush1.bf16.msra.mxu0 0
  %2000 = vmatprep.subr.bf16.mxu0 0
  %2001 = vmatpush1.bf16.msra.mxu0 0
  %2002 = vmatprep.subr.bf16.mxu0 0
  %2003 = vmatpush1.bf16.msra.mxu0 0
  %2004 = vmatprep.subr.bf16.mxu0 0
  %2005 = vmatpush1.bf16.msra.mxu0 0
  %2006 = vmatprep.subr.bf16.mxu0 0
  %2007 = vmatpush1.bf16.msra.mxu0 0
  %2008 = vmatprep.subr.bf16.mxu0 0
  %2009 = vmatpush1.bf16.msra.mxu0 0
  %2010 = vmatprep.subr.bf16.mxu0 0
  %2011 = vmatpush1.bf16.msra.mxu0 0
  %2012 = vmatprep.subr.bf16.mxu0 0
  %2013 = vmatpush1.bf16.msra.mxu0 0
  %2014 = vmatprep.mubr.bf16.mxu0 0
  %2015 = vmatmul.mubr.bf16.gmra.mrb[0].mxu0 %v1388
  %v2016 = vpop.f32.mrb[0].mxu0
  %v2017 = vadd.f32 0.0, %v2016
  %v2018 = vpop.f32.mrb[0].mxu0
  %v2019 = vpop.f32.mrb[0].mxu0
  %v2020 = vadd.f32 0.0, %v2019
  %v2021 = vpop.f32.mrb[0].mxu0
  %2022 = vdwg.mxu0
  %s2023 = scalar_lea.vmem %s5, 288
  %v2024 = vld [vmem:[%s2023] sm:$0xf]
  %v2025 = vld [vmem:[%s2023 + $0x4] sm:$0xf]
  %v2026 = vld [vmem:[%s2023 + $0x8] sm:$0xf]
  %v2027 = vld [vmem:[%s2023 + $0xc] sm:$0xf]
  %v2028 = vld [vmem:[%s2023 + $0x10] sm:$0xf]
  %v2029 = vld [vmem:[%s2023 + $0x14] sm:$0xf]
  %v2030 = vld [vmem:[%s2023 + $0x18] sm:$0xf]
  %v2031 = vld [vmem:[%s2023 + $0x1c] sm:$0xf]
  %v2040 = vunpack.c.l.b16 %v2024
  %v2041 = vunpack.c.l.b16 %v2025
  %v2042 = vunpack.c.l.b16 %v2026
  %v2043 = vunpack.c.l.b16 %v2027
  %v2044 = vunpack.c.l.b16 %v2028
  %v2045 = vunpack.c.l.b16 %v2029
  %v2046 = vunpack.c.l.b16 %v2030
  %v2047 = vunpack.c.l.b16 %v2031
  %v2048 = vpack.c.b16 %v2041, %v2040
  %v2049 = vpack.c.b16 %v2043, %v2042
  %v2050 = vpack.c.b16 %v2045, %v2044
  %v2051 = vpack.c.b16 %v2047, %v2046
  %2056 = vmatprep.subr.bf16.mxu0 0
  %2057 = vmatpush1.bf16.msra.mxu0 %v2048
  %2058 = vmatprep.subr.bf16.mxu0 0
  %2059 = vmatpush1.bf16.msra.mxu0 %v2049
  %2060 = vmatprep.subr.bf16.mxu0 0
  %2061 = vmatpush1.bf16.msra.mxu0 %v2050
  %2062 = vmatprep.subr.bf16.mxu0 0
  %2063 = vmatpush1.bf16.msra.mxu0 %v2051
  %2064 = vmatprep.subr.bf16.mxu0 0
  %2065 = vmatpush1.bf16.msra.mxu0 0
  %2066 = vmatprep.subr.bf16.mxu0 0
  %2067 = vmatpush1.bf16.msra.mxu0 0
  %2068 = vmatprep.subr.bf16.mxu0 0
  %2069 = vmatpush1.bf16.msra.mxu0 0
  %2070 = vmatprep.subr.bf16.mxu0 0
  %2071 = vmatpush1.bf16.msra.mxu0 0
  %2072 = vmatprep.subr.bf16.mxu0 0
  %2073 = vmatpush1.bf16.msra.mxu0 0
  %2074 = vmatprep.subr.bf16.mxu0 0
  %2075 = vmatpush1.bf16.msra.mxu0 0
  %2076 = vmatprep.subr.bf16.mxu0 0
  %2077 = vmatpush1.bf16.msra.mxu0 0
  %2078 = vmatprep.subr.bf16.mxu0 0
  %2079 = vmatpush1.bf16.msra.mxu0 0
  %2080 = vmatprep.subr.bf16.mxu0 0
  %2081 = vmatpush1.bf16.msra.mxu0 0
  %2082 = vmatprep.subr.bf16.mxu0 0
  %2083 = vmatpush1.bf16.msra.mxu0 0
  %2084 = vmatprep.subr.bf16.mxu0 0
  %2085 = vmatpush1.bf16.msra.mxu0 0
  %2086 = vmatprep.subr.bf16.mxu0 0
  %2087 = vmatpush1.bf16.msra.mxu0 0
  %2088 = vmatprep.mubr.bf16.mxu0 0
  %2089 = vmatmul.mubr.bf16.gmra.mrb[0].mxu0 %v1388
  %v2090 = vpop.f32.mrb[0].mxu0
  %v2091 = vadd.f32 0.0, %v2090
  %v2092 = vpop.f32.mrb[0].mxu0
  %v2093 = vpop.f32.mrb[0].mxu0
  %v2094 = vadd.f32 0.0, %v2093
  %v2095 = vpop.f32.mrb[0].mxu0
  %2096 = vdwg.mxu0
  %s2097 = scalar_lea.vmem %s5, 320
  %v2098 = vld [vmem:[%s2097] sm:$0xf]
  %v2099 = vld [vmem:[%s2097 + $0x4] sm:$0xf]
  %v2100 = vld [vmem:[%s2097 + $0x8] sm:$0xf]
  %v2101 = vld [vmem:[%s2097 + $0xc] sm:$0xf]
  %v2102 = vld [vmem:[%s2097 + $0x10] sm:$0xf]
  %v2103 = vld [vmem:[%s2097 + $0x14] sm:$0xf]
  %v2104 = vld [vmem:[%s2097 + $0x18] sm:$0xf]
  %v2105 = vld [vmem:[%s2097 + $0x1c] sm:$0xf]
  %v2114 = vunpack.c.l.b16 %v2098
  %v2115 = vunpack.c.l.b16 %v2099
  %v2116 = vunpack.c.l.b16 %v2100
  %v2117 = vunpack.c.l.b16 %v2101
  %v2118 = vunpack.c.l.b16 %v2102
  %v2119 = vunpack.c.l.b16 %v2103
  %v2120 = vunpack.c.l.b16 %v2104
  %v2121 = vunpack.c.l.b16 %v2105
  %v2122 = vpack.c.b16 %v2115, %v2114
  %v2123 = vpack.c.b16 %v2117, %v2116
  %v2124 = vpack.c.b16 %v2119, %v2118
  %v2125 = vpack.c.b16 %v2121, %v2120
  %2130 = vmatprep.subr.bf16.mxu0 0
  %2131 = vmatpush1.bf16.msra.mxu0 %v2122
  %2132 = vmatprep.subr.bf16.mxu0 0
  %2133 = vmatpush1.bf16.msra.mxu0 %v2123
  %2134 = vmatprep.subr.bf16.mxu0 0
  %2135 = vmatpush1.bf16.msra.mxu0 %v2124
  %2136 = vmatprep.subr.bf16.mxu0 0
  %2137 = vmatpush1.bf16.msra.mxu0 %v2125
  %2138 = vmatprep.subr.bf16.mxu0 0
  %2139 = vmatpush1.bf16.msra.mxu0 0
  %2140 = vmatprep.subr.bf16.mxu0 0
  %2141 = vmatpush1.bf16.msra.mxu0 0
  %2142 = vmatprep.subr.bf16.mxu0 0
  %2143 = vmatpush1.bf16.msra.mxu0 0
  %2144 = vmatprep.subr.bf16.mxu0 0
  %2145 = vmatpush1.bf16.msra.mxu0 0
  %2146 = vmatprep.subr.bf16.mxu0 0
  %2147 = vmatpush1.bf16.msra.mxu0 0
  %2148 = vmatprep.subr.bf16.mxu0 0
  %2149 = vmatpush1.bf16.msra.mxu0 0
  %2150 = vmatprep.subr.bf16.mxu0 0
  %2151 = vmatpush1.bf16.msra.mxu0 0
  %2152 = vmatprep.subr.bf16.mxu0 0
  %2153 = vmatpush1.bf16.msra.mxu0 0
  %2154 = vmatprep.subr.bf16.mxu0 0
  %2155 = vmatpush1.bf16.msra.mxu0 0
  %2156 = vmatprep.subr.bf16.mxu0 0
  %2157 = vmatpush1.bf16.msra.mxu0 0
  %2158 = vmatprep.subr.bf16.mxu0 0
  %2159 = vmatpush1.bf16.msra.mxu0 0
  %2160 = vmatprep.subr.bf16.mxu0 0
  %2161 = vmatpush1.bf16.msra.mxu0 0
  %2162 = vmatprep.mubr.bf16.mxu0 0
  %2163 = vmatmul.mubr.bf16.gmra.mrb[0].mxu0 %v1388
  %v2164 = vpop.f32.mrb[0].mxu0
  %v2165 = vadd.f32 0.0, %v2164
  %v2166 = vpop.f32.mrb[0].mxu0
  %v2167 = vpop.f32.mrb[0].mxu0
  %v2168 = vadd.f32 0.0, %v2167
  %v2169 = vpop.f32.mrb[0].mxu0
  %2170 = vdwg.mxu0
  %s2171 = scalar_lea.vmem %s5, 352
  %v2172 = vld [vmem:[%s2171] sm:$0xf]
  %v2173 = vld [vmem:[%s2171 + $0x4] sm:$0xf]
  %v2174 = vld [vmem:[%s2171 + $0x8] sm:$0xf]
  %v2175 = vld [vmem:[%s2171 + $0xc] sm:$0xf]
  %v2176 = vld [vmem:[%s2171 + $0x10] sm:$0xf]
  %v2177 = vld [vmem:[%s2171 + $0x14] sm:$0xf]
  %v2178 = vld [vmem:[%s2171 + $0x18] sm:$0xf]
  %v2179 = vld [vmem:[%s2171 + $0x1c] sm:$0xf]
  %v2188 = vunpack.c.l.b16 %v2172
  %v2189 = vunpack.c.l.b16 %v2173
  %v2190 = vunpack.c.l.b16 %v2174
  %v2191 = vunpack.c.l.b16 %v2175
  %v2192 = vunpack.c.l.b16 %v2176
  %v2193 = vunpack.c.l.b16 %v2177
  %v2194 = vunpack.c.l.b16 %v2178
  %v2195 = vunpack.c.l.b16 %v2179
  %v2196 = vpack.c.b16 %v2189, %v2188
  %v2197 = vpack.c.b16 %v2191, %v2190
  %v2198 = vpack.c.b16 %v2193, %v2192
  %v2199 = vpack.c.b16 %v2195, %v2194
  %2204 = vmatprep.subr.bf16.mxu0 0
  %2205 = vmatpush1.bf16.msra.mxu0 %v2196
  %2206 = vmatprep.subr.bf16.mxu0 0
  %2207 = vmatpush1.bf16.msra.mxu0 %v2197
  %2208 = vmatprep.subr.bf16.mxu0 0
  %2209 = vmatpush1.bf16.msra.mxu0 %v2198
  %2210 = vmatprep.subr.bf16.mxu0 0
  %2211 = vmatpush1.bf16.msra.mxu0 %v2199
  %2212 = vmatprep.subr.bf16.mxu0 0
  %2213 = vmatpush1.bf16.msra.mxu0 0
  %2214 = vmatprep.subr.bf16.mxu0 0
  %2215 = vmatpush1.bf16.msra.mxu0 0
  %2216 = vmatprep.subr.bf16.mxu0 0
  %2217 = vmatpush1.bf16.msra.mxu0 0
  %2218 = vmatprep.subr.bf16.mxu0 0
  %2219 = vmatpush1.bf16.msra.mxu0 0
  %2220 = vmatprep.subr.bf16.mxu0 0
  %2221 = vmatpush1.bf16.msra.mxu0 0
  %2222 = vmatprep.subr.bf16.mxu0 0
  %2223 = vmatpush1.bf16.msra.mxu0 0
  %2224 = vmatprep.subr.bf16.mxu0 0
  %2225 = vmatpush1.bf16.msra.mxu0 0
  %2226 = vmatprep.subr.bf16.mxu0 0
  %2227 = vmatpush1.bf16.msra.mxu0 0
  %2228 = vmatprep.subr.bf16.mxu0 0
  %2229 = vmatpush1.bf16.msra.mxu0 0
  %2230 = vmatprep.subr.bf16.mxu0 0
  %2231 = vmatpush1.bf16.msra.mxu0 0
  %2232 = vmatprep.subr.bf16.mxu0 0
  %2233 = vmatpush1.bf16.msra.mxu0 0
  %2234 = vmatprep.subr.bf16.mxu0 0
  %2235 = vmatpush1.bf16.msra.mxu0 0
  %2236 = vmatprep.mubr.bf16.mxu0 0
  %2237 = vmatmul.mubr.bf16.gmra.mrb[0].mxu0 %v1388
  %v2238 = vpop.f32.mrb[0].mxu0
  %v2239 = vadd.f32 0.0, %v2238
  %v2240 = vpop.f32.mrb[0].mxu0
  %v2241 = vpop.f32.mrb[0].mxu0
  %v2242 = vadd.f32 0.0, %v2241
  %v2243 = vpop.f32.mrb[0].mxu0
  %2244 = vdwg.mxu0
  %s2245 = scalar_lea.vmem %s5, 384
  %v2246 = vld [vmem:[%s2245] sm:$0xf]
  %v2247 = vld [vmem:[%s2245 + $0x4] sm:$0xf]
  %v2248 = vld [vmem:[%s2245 + $0x8] sm:$0xf]
  %v2249 = vld [vmem:[%s2245 + $0xc] sm:$0xf]
  %v2250 = vld [vmem:[%s2245 + $0x10] sm:$0xf]
  %v2251 = vld [vmem:[%s2245 + $0x14] sm:$0xf]
  %v2252 = vld [vmem:[%s2245 + $0x18] sm:$0xf]
  %v2253 = vld [vmem:[%s2245 + $0x1c] sm:$0xf]
  %v2262 = vunpack.c.l.b16 %v2246
  %v2263 = vunpack.c.l.b16 %v2247
  %v2264 = vunpack.c.l.b16 %v2248
  %v2265 = vunpack.c.l.b16 %v2249
  %v2266 = vunpack.c.l.b16 %v2250
  %v2267 = vunpack.c.l.b16 %v2251
  %v2268 = vunpack.c.l.b16 %v2252
  %v2269 = vunpack.c.l.b16 %v2253
  %v2270 = vpack.c.b16 %v2263, %v2262
  %v2271 = vpack.c.b16 %v2265, %v2264
  %v2272 = vpack.c.b16 %v2267, %v2266
  %v2273 = vpack.c.b16 %v2269, %v2268
  %2278 = vmatprep.subr.bf16.mxu0 0
  %2279 = vmatpush1.bf16.msra.mxu0 %v2270
  %2280 = vmatprep.subr.bf16.mxu0 0
  %2281 = vmatpush1.bf16.msra.mxu0 %v2271
  %2282 = vmatprep.subr.bf16.mxu0 0
  %2283 = vmatpush1.bf16.msra.mxu0 %v2272
  %2284 = vmatprep.subr.bf16.mxu0 0
  %2285 = vmatpush1.bf16.msra.mxu0 %v2273
  %2286 = vmatprep.subr.bf16.mxu0 0
  %2287 = vmatpush1.bf16.msra.mxu0 0
  %2288 = vmatprep.subr.bf16.mxu0 0
  %2289 = vmatpush1.bf16.msra.mxu0 0
  %2290 = vmatprep.subr.bf16.mxu0 0
  %2291 = vmatpush1.bf16.msra.mxu0 0
  %2292 = vmatprep.subr.bf16.mxu0 0
  %2293 = vmatpush1.bf16.msra.mxu0 0
  %2294 = vmatprep.subr.bf16.mxu0 0
  %2295 = vmatpush1.bf16.msra.mxu0 0
  %2296 = vmatprep.subr.bf16.mxu0 0
  %2297 = vmatpush1.bf16.msra.mxu0 0
  %2298 = vmatprep.subr.bf16.mxu0 0
  %2299 = vmatpush1.bf16.msra.mxu0 0
  %2300 = vmatprep.subr.bf16.mxu0 0
  %2301 = vmatpush1.bf16.msra.mxu0 0
  %2302 = vmatprep.subr.bf16.mxu0 0
  %2303 = vmatpush1.bf16.msra.mxu0 0
  %2304 = vmatprep.subr.bf16.mxu0 0
  %2305 = vmatpush1.bf16.msra.mxu0 0
  %2306 = vmatprep.subr.bf16.mxu0 0
  %2307 = vmatpush1.bf16.msra.mxu0 0
  %2308 = vmatprep.subr.bf16.mxu0 0
  %2309 = vmatpush1.bf16.msra.mxu0 0
  %2310 = vmatprep.mubr.bf16.mxu0 0
  %2311 = vmatmul.mubr.bf16.gmra.mrb[0].mxu0 %v1388
  %v2312 = vpop.f32.mrb[0].mxu0
  %v2313 = vadd.f32 0.0, %v2312
  %v2314 = vpop.f32.mrb[0].mxu0
  %v2315 = vpop.f32.mrb[0].mxu0
  %v2316 = vadd.f32 0.0, %v2315
  %v2317 = vpop.f32.mrb[0].mxu0
  %2318 = vdwg.mxu0
  %s2319 = scalar_lea.vmem %s5, 416
  %v2320 = vld [vmem:[%s2319] sm:$0xf]
  %v2321 = vld [vmem:[%s2319 + $0x4] sm:$0xf]
  %v2322 = vld [vmem:[%s2319 + $0x8] sm:$0xf]
  %v2323 = vld [vmem:[%s2319 + $0xc] sm:$0xf]
  %v2324 = vld [vmem:[%s2319 + $0x10] sm:$0xf]
  %v2325 = vld [vmem:[%s2319 + $0x14] sm:$0xf]
  %v2326 = vld [vmem:[%s2319 + $0x18] sm:$0xf]
  %v2327 = vld [vmem:[%s2319 + $0x1c] sm:$0xf]
  %v2336 = vunpack.c.l.b16 %v2320
  %v2337 = vunpack.c.l.b16 %v2321
  %v2338 = vunpack.c.l.b16 %v2322
  %v2339 = vunpack.c.l.b16 %v2323
  %v2340 = vunpack.c.l.b16 %v2324
  %v2341 = vunpack.c.l.b16 %v2325
  %v2342 = vunpack.c.l.b16 %v2326
  %v2343 = vunpack.c.l.b16 %v2327
  %v2344 = vpack.c.b16 %v2337, %v2336
  %v2345 = vpack.c.b16 %v2339, %v2338
  %v2346 = vpack.c.b16 %v2341, %v2340
  %v2347 = vpack.c.b16 %v2343, %v2342
  %2352 = vmatprep.subr.bf16.mxu0 0
  %2353 = vmatpush1.bf16.msra.mxu0 %v2344
  %2354 = vmatprep.subr.bf16.mxu0 0
  %2355 = vmatpush1.bf16.msra.mxu0 %v2345
  %2356 = vmatprep.subr.bf16.mxu0 0
  %2357 = vmatpush1.bf16.msra.mxu0 %v2346
  %2358 = vmatprep.subr.bf16.mxu0 0
  %2359 = vmatpush1.bf16.msra.mxu0 %v2347
  %2360 = vmatprep.subr.bf16.mxu0 0
  %2361 = vmatpush1.bf16.msra.mxu0 0
  %2362 = vmatprep.subr.bf16.mxu0 0
  %2363 = vmatpush1.bf16.msra.mxu0 0
  %2364 = vmatprep.subr.bf16.mxu0 0
  %2365 = vmatpush1.bf16.msra.mxu0 0
  %2366 = vmatprep.subr.bf16.mxu0 0
  %2367 = vmatpush1.bf16.msra.mxu0 0
  %2368 = vmatprep.subr.bf16.mxu0 0
  %2369 = vmatpush1.bf16.msra.mxu0 0
  %2370 = vmatprep.subr.bf16.mxu0 0
  %2371 = vmatpush1.bf16.msra.mxu0 0
  %2372 = vmatprep.subr.bf16.mxu0 0
  %2373 = vmatpush1.bf16.msra.mxu0 0
  %2374 = vmatprep.subr.bf16.mxu0 0
  %2375 = vmatpush1.bf16.msra.mxu0 0
  %2376 = vmatprep.subr.bf16.mxu0 0
  %2377 = vmatpush1.bf16.msra.mxu0 0
  %2378 = vmatprep.subr.bf16.mxu0 0
  %2379 = vmatpush1.bf16.msra.mxu0 0
  %2380 = vmatprep.subr.bf16.mxu0 0
  %2381 = vmatpush1.bf16.msra.mxu0 0
  %2382 = vmatprep.subr.bf16.mxu0 0
  %2383 = vmatpush1.bf16.msra.mxu0 0
  %2384 = vmatprep.mubr.bf16.mxu0 0
  %2385 = vmatmul.mubr.bf16.gmra.mrb[0].mxu0 %v1388
  %v2386 = vpop.f32.mrb[0].mxu0
  %v2387 = vadd.f32 0.0, %v2386
  %v2388 = vpop.f32.mrb[0].mxu0
  %v2389 = vpop.f32.mrb[0].mxu0
  %v2390 = vadd.f32 0.0, %v2389
  %v2391 = vpop.f32.mrb[0].mxu0
  %2392 = vdwg.mxu0
  %s2393 = scalar_lea.vmem %s5, 448
  %v2394 = vld [vmem:[%s2393] sm:$0xf]
  %v2395 = vld [vmem:[%s2393 + $0x4] sm:$0xf]
  %v2396 = vld [vmem:[%s2393 + $0x8] sm:$0xf]
  %v2397 = vld [vmem:[%s2393 + $0xc] sm:$0xf]
  %v2398 = vld [vmem:[%s2393 + $0x10] sm:$0xf]
  %v2399 = vld [vmem:[%s2393 + $0x14] sm:$0xf]
  %v2400 = vld [vmem:[%s2393 + $0x18] sm:$0xf]
  %v2401 = vld [vmem:[%s2393 + $0x1c] sm:$0xf]
  %v2410 = vunpack.c.l.b16 %v2394
  %v2411 = vunpack.c.l.b16 %v2395
  %v2412 = vunpack.c.l.b16 %v2396
  %v2413 = vunpack.c.l.b16 %v2397
  %v2414 = vunpack.c.l.b16 %v2398
  %v2415 = vunpack.c.l.b16 %v2399
  %v2416 = vunpack.c.l.b16 %v2400
  %v2417 = vunpack.c.l.b16 %v2401
  %v2418 = vpack.c.b16 %v2411, %v2410
  %v2419 = vpack.c.b16 %v2413, %v2412
  %v2420 = vpack.c.b16 %v2415, %v2414
  %v2421 = vpack.c.b16 %v2417, %v2416
  %2426 = vmatprep.subr.bf16.mxu0 0
  %2427 = vmatpush1.bf16.msra.mxu0 %v2418
  %2428 = vmatprep.subr.bf16.mxu0 0
  %2429 = vmatpush1.bf16.msra.mxu0 %v2419
  %2430 = vmatprep.subr.bf16.mxu0 0
  %2431 = vmatpush1.bf16.msra.mxu0 %v2420
  %2432 = vmatprep.subr.bf16.mxu0 0
  %2433 = vmatpush1.bf16.msra.mxu0 %v2421
  %2434 = vmatprep.subr.bf16.mxu0 0
  %2435 = vmatpush1.bf16.msra.mxu0 0
  %2436 = vmatprep.subr.bf16.mxu0 0
  %2437 = vmatpush1.bf16.msra.mxu0 0
  %2438 = vmatprep.subr.bf16.mxu0 0
  %2439 = vmatpush1.bf16.msra.mxu0 0
  %2440 = vmatprep.subr.bf16.mxu0 0
  %2441 = vmatpush1.bf16.msra.mxu0 0
  %2442 = vmatprep.subr.bf16.mxu0 0
  %2443 = vmatpush1.bf16.msra.mxu0 0
  %2444 = vmatprep.subr.bf16.mxu0 0
  %2445 = vmatpush1.bf16.msra.mxu0 0
  %2446 = vmatprep.subr.bf16.mxu0 0
  %2447 = vmatpush1.bf16.msra.mxu0 0
  %2448 = vmatprep.subr.bf16.mxu0 0
  %2449 = vmatpush1.bf16.msra.mxu0 0
  %2450 = vmatprep.subr.bf16.mxu0 0
  %2451 = vmatpush1.bf16.msra.mxu0 0
  %2452 = vmatprep.subr.bf16.mxu0 0
  %2453 = vmatpush1.bf16.msra.mxu0 0
  %2454 = vmatprep.subr.bf16.mxu0 0
  %2455 = vmatpush1.bf16.msra.mxu0 0
  %2456 = vmatprep.subr.bf16.mxu0 0
  %2457 = vmatpush1.bf16.msra.mxu0 0
  %2458 = vmatprep.mubr.bf16.mxu0 0
  %2459 = vmatmul.mubr.bf16.gmra.mrb[0].mxu0 %v1388
  %v2460 = vpop.f32.mrb[0].mxu0
  %v2461 = vadd.f32 0.0, %v2460
  %v2462 = vpop.f32.mrb[0].mxu0
  %v2463 = vpop.f32.mrb[0].mxu0
  %v2464 = vadd.f32 0.0, %v2463
  %v2465 = vpop.f32.mrb[0].mxu0
  %2466 = vdwg.mxu0
  %s2467 = scalar_lea.vmem %s5, 480
  %v2468 = vld [vmem:[%s2467] sm:$0xf]
  %v2469 = vld [vmem:[%s2467 + $0x4] sm:$0xf]
  %v2470 = vld [vmem:[%s2467 + $0x8] sm:$0xf]
  %v2471 = vld [vmem:[%s2467 + $0xc] sm:$0xf]
  %v2472 = vld [vmem:[%s2467 + $0x10] sm:$0xf]
  %v2473 = vld [vmem:[%s2467 + $0x14] sm:$0xf]
  %v2474 = vld [vmem:[%s2467 + $0x18] sm:$0xf]
  %v2475 = vld [vmem:[%s2467 + $0x1c] sm:$0xf]
  %v2484 = vunpack.c.l.b16 %v2468
  %v2485 = vunpack.c.l.b16 %v2469
  %v2486 = vunpack.c.l.b16 %v2470
  %v2487 = vunpack.c.l.b16 %v2471
  %v2488 = vunpack.c.l.b16 %v2472
  %v2489 = vunpack.c.l.b16 %v2473
  %v2490 = vunpack.c.l.b16 %v2474
  %v2491 = vunpack.c.l.b16 %v2475
  %v2492 = vpack.c.b16 %v2485, %v2484
  %v2493 = vpack.c.b16 %v2487, %v2486
  %v2494 = vpack.c.b16 %v2489, %v2488
  %v2495 = vpack.c.b16 %v2491, %v2490
  %2500 = vmatprep.subr.bf16.mxu0 0
  %2501 = vmatpush1.bf16.msra.mxu0 %v2492
  %2502 = vmatprep.subr.bf16.mxu0 0
  %2503 = vmatpush1.bf16.msra.mxu0 %v2493
  %2504 = vmatprep.subr.bf16.mxu0 0
  %2505 = vmatpush1.bf16.msra.mxu0 %v2494
  %2506 = vmatprep.subr.bf16.mxu0 0
  %2507 = vmatpush1.bf16.msra.mxu0 %v2495
  %2508 = vmatprep.subr.bf16.mxu0 0
  %2509 = vmatpush1.bf16.msra.mxu0 0
  %2510 = vmatprep.subr.bf16.mxu0 0
  %2511 = vmatpush1.bf16.msra.mxu0 0
  %2512 = vmatprep.subr.bf16.mxu0 0
  %2513 = vmatpush1.bf16.msra.mxu0 0
  %2514 = vmatprep.subr.bf16.mxu0 0
  %2515 = vmatpush1.bf16.msra.mxu0 0
  %2516 = vmatprep.subr.bf16.mxu0 0
  %2517 = vmatpush1.bf16.msra.mxu0 0
  %2518 = vmatprep.subr.bf16.mxu0 0
  %2519 = vmatpush1.bf16.msra.mxu0 0
  %2520 = vmatprep.subr.bf16.mxu0 0
  %2521 = vmatpush1.bf16.msra.mxu0 0
  %2522 = vmatprep.subr.bf16.mxu0 0
  %2523 = vmatpush1.bf16.msra.mxu0 0
  %2524 = vmatprep.subr.bf16.mxu0 0
  %2525 = vmatpush1.bf16.msra.mxu0 0
  %2526 = vmatprep.subr.bf16.mxu0 0
  %2527 = vmatpush1.bf16.msra.mxu0 0
  %2528 = vmatprep.subr.bf16.mxu0 0
  %2529 = vmatpush1.bf16.msra.mxu0 0
  %2530 = vmatprep.subr.bf16.mxu0 0
  %2531 = vmatpush1.bf16.msra.mxu0 0
  %2532 = vmatprep.mubr.bf16.mxu0 0
  %2533 = vmatmul.mubr.bf16.gmra.mrb[0].mxu0 %v1388
  %v2534 = vpop.f32.mrb[0].mxu0
  %v2535 = vadd.f32 0.0, %v2534
  %v2536 = vpop.f32.mrb[0].mxu0
  %v2537 = vpop.f32.mrb[0].mxu0
  %v2538 = vadd.f32 0.0, %v2537
  %v2539 = vpop.f32.mrb[0].mxu0
  %2540 = vdwg.mxu0
  %v2541 = vpack.c.bf16 %v1428, %v1425
  %v2542 = vpack.c.bf16 %v1502, %v1499
  %v2543 = vpack.c.bf16 %v1576, %v1573
  %v2544 = vpack.c.bf16 %v1650, %v1647
  %v2545 = vpack.c.bf16 %v1724, %v1721
  %v2546 = vpack.c.bf16 %v1798, %v1795
  %v2547 = vpack.c.bf16 %v1872, %v1869
  %v2548 = vpack.c.bf16 %v1946, %v1943
  %v2549 = vpack.c.bf16 %v2020, %v2017
  %v2550 = vpack.c.bf16 %v2094, %v2091
  %v2551 = vpack.c.bf16 %v2168, %v2165
  %v2552 = vpack.c.bf16 %v2242, %v2239
  %v2553 = vpack.c.bf16 %v2316, %v2313
  %v2554 = vpack.c.bf16 %v2390, %v2387
  %v2555 = vpack.c.bf16 %v2464, %v2461
  %v2556 = vpack.c.bf16 %v2538, %v2535
  %v2561 = vunpack.c.l.b16 %v1341
  %v2562 = vunpack.c.h.b16 %v1341
  %v2563 = vunpack.c.l.b16 %v1342
  %v2564 = vunpack.c.h.b16 %v1342
  %v2565 = vunpack.c.l.b16 %v1343
  %v2566 = vunpack.c.h.b16 %v1343
  %v2567 = vunpack.c.l.b16 %v1344
  %v2568 = vunpack.c.h.b16 %v1344
  %v2569 = vpack.c.b16 %v2563, %v2561
  %v2570 = vpack.c.b16 %v2564, %v2562
  %v2571 = vpack.c.b16 %v2567, %v2565
  %v2572 = vpack.c.b16 %v2568, %v2566
  %2577 = vmatprep.subr.bf16.mxu0 0
  %2578 = vmatpush1.bf16.msra.mxu0 %v2541
  %2579 = vmatprep.subr.bf16.mxu0 0
  %2580 = vmatpush1.bf16.msra.mxu0 %v2542
  %2581 = vmatprep.subr.bf16.mxu0 0
  %2582 = vmatpush1.bf16.msra.mxu0 %v2543
  %2583 = vmatprep.subr.bf16.mxu0 0
  %2584 = vmatpush1.bf16.msra.mxu0 %v2544
  %2585 = vmatprep.subr.bf16.mxu0 0
  %2586 = vmatpush1.bf16.msra.mxu0 %v2545
  %2587 = vmatprep.subr.bf16.mxu0 0
  %2588 = vmatpush1.bf16.msra.mxu0 %v2546
  %2589 = vmatprep.subr.bf16.mxu0 0
  %2590 = vmatpush1.bf16.msra.mxu0 %v2547
  %2591 = vmatprep.subr.bf16.mxu0 0
  %2592 = vmatpush1.bf16.msra.mxu0 %v2548
  %2593 = vmatprep.subr.bf16.mxu0 0
  %2594 = vmatpush1.bf16.msra.mxu0 %v2549
  %2595 = vmatprep.subr.bf16.mxu0 0
  %2596 = vmatpush1.bf16.msra.mxu0 %v2550
  %2597 = vmatprep.subr.bf16.mxu0 0
  %2598 = vmatpush1.bf16.msra.mxu0 %v2551
  %2599 = vmatprep.subr.bf16.mxu0 0
  %2600 = vmatpush1.bf16.msra.mxu0 %v2552
  %2601 = vmatprep.subr.bf16.mxu0 0
  %2602 = vmatpush1.bf16.msra.mxu0 %v2553
  %2603 = vmatprep.subr.bf16.mxu0 0
  %2604 = vmatpush1.bf16.msra.mxu0 %v2554
  %2605 = vmatprep.subr.bf16.mxu0 0
  %2606 = vmatpush1.bf16.msra.mxu0 %v2555
  %2607 = vmatprep.subr.bf16.mxu0 0
  %2608 = vmatpush1.bf16.msra.mxu0 %v2556
  %2609 = vmatprep.mubr.bf16.mxu0 %v2570
  %2610 = vmatmul.mubr.bf16.gmra.mrb[0].mxu0 %v2569
  %v2611 = vpop.f32.mrb[0].mxu0
  %v2612 = vadd.f32 0.0, %v2611
  %v2613 = vpop.f32.mrb[0].mxu0
  %v2614 = vpop.f32.mrb[0].mxu0
  %v2615 = vadd.f32 0.0, %v2614
  %v2616 = vpop.f32.mrb[0].mxu0
  %2617 = vmatprep.mubr.bf16.mxu0 %v2572
  %2618 = vmatmul.mubr.bf16.gmra.mrb[0].mxu0 %v2571
  %v2619 = vpop.f32.mrb[0].mxu0
  %v2620 = vadd.f32 0.0, %v2619
  %v2621 = vpop.f32.mrb[0].mxu0
  %v2622 = vpop.f32.mrb[0].mxu0
  %v2623 = vadd.f32 0.0, %v2622
  %v2624 = vpop.f32.mrb[0].mxu0
  %2625 = vdwg.mxu0
  %vm2626 = vcmask 130048
  %v2627 = vsel %vm2626, %v2612, 0.0
  %2628 = vadd.xlane.f32.xlu0 %v2627
  %v2629 = vpop.xlane.xlu0 %2628
  %v2630 = vsel %vm2626, %v2615, 0.0
  %2631 = vadd.xlane.f32.xlu0 %v2630
  %v2632 = vpop.xlane.xlu0 %2631
  %v2633 = vsel %vm2626, %v2620, 0.0
  %2634 = vadd.xlane.f32.xlu0 %v2633
  %v2635 = vpop.xlane.xlu0 %2634
  %v2636 = vsel %vm2626, %v2623, 0.0
  %2637 = vadd.xlane.f32.xlu0 %v2636
  %v2638 = vpop.xlane.xlu0 %2637
  %v2639 = vadd.f32 %v2629, %v2635
  %v2640 = vadd.f32 %v2632, %v2638
  %v2641 = vmul.f32 %v2639, 0.03125
  %v2642 = vmul.f32 %v2640, 0.03125
  %2644 = vset.pattern.permute.xlu0 0
  %2645 = vperm.xlu0 %2644, %v2641
  %v2646 = vpop.permute.xlu0 %2645
  %2649 = vset.pattern.permute.xlu0 0
  %2650 = vperm.xlu0 %2649, %v2642
  %v2651 = vpop.permute.xlu0 %2650
  %v2653 = vsub.f32 %v2612, %v2646
  %v2654 = vsub.f32 %v2615, %v2651
  %v2655 = vsub.f32 %v2620, %v2646
  %v2656 = vsub.f32 %v2623, %v2651
  %v2657 = vmul.f32 %v2653, %v2653
  %v2658 = vmul.f32 %v2654, %v2654
  %v2659 = vmul.f32 %v2655, %v2655
  %v2660 = vmul.f32 %v2656, %v2656
  %v2661 = vsel %vm2626, %v2657, 0.0
  %2662 = vadd.xlane.f32.xlu0 %v2661
  %v2663 = vpop.xlane.xlu0 %2662
  %v2664 = vsel %vm2626, %v2658, 0.0
  %2665 = vadd.xlane.f32.xlu0 %v2664
  %v2666 = vpop.xlane.xlu0 %2665
  %v2667 = vsel %vm2626, %v2659, 0.0
  %2668 = vadd.xlane.f32.xlu0 %v2667
  %v2669 = vpop.xlane.xlu0 %2668
  %v2670 = vsel %vm2626, %v2660, 0.0
  %2671 = vadd.xlane.f32.xlu0 %v2670
  %v2672 = vpop.xlane.xlu0 %2671
  %v2673 = vadd.f32 %v2663, %v2669
  %v2674 = vadd.f32 %v2666, %v2672
  %v2675 = vmul.f32 %v2673, 0.03125
  %v2676 = vmul.f32 %v2674, 0.03125
  %v2677 = vadd.f32 %v2675, 1e-05
  %v2678 = vadd.f32 %v2676, 1e-05
  %v2679 = vrsqrt.pop %v2677
  %v2680 = vrsqrt.pop %v2678
  %2682 = vset.pattern.permute.xlu0 0
  %2683 = vperm.xlu0 %2682, %v2679
  %v2684 = vpop.permute.xlu0 %2683
  %2687 = vset.pattern.permute.xlu0 0
  %2688 = vperm.xlu0 %2687, %v2680
  %v2689 = vpop.permute.xlu0 %2688
  %v2691 = vmul.f32 %v2653, %v2684
  %v2692 = vmul.f32 %v2654, %v2689
  %v2693 = vmul.f32 %v2655, %v2684
  %v2694 = vmul.f32 %v2656, %v2689
  %2696 = vset.pattern.permute.xlu0 0
  %2697 = vperm.xlu0 %2696, %v1345
  %v2698 = vpop.permute.xlu0 %2697
  %2701 = vset.pattern.permute.xlu0 0
  %2702 = vperm.xlu0 %2701, %v1346
  %v2703 = vpop.permute.xlu0 %2702
  %2706 = vset.pattern.permute.xlu0 0
  %2707 = vperm.xlu0 %2706, %v1347
  %v2708 = vpop.permute.xlu0 %2707
  %2711 = vset.pattern.permute.xlu0 0
  %2712 = vperm.xlu0 %2711, %v1348
  %v2713 = vpop.permute.xlu0 %2712
  %v2715 = vmul.f32 %v2691, %v2698
  %v2716 = vmul.f32 %v2692, %v2703
  %v2717 = vmul.f32 %v2693, %v2708
  %v2718 = vmul.f32 %v2694, %v2713
  %2720 = vset.pattern.permute.xlu0 0
  %2721 = vperm.xlu0 %2720, %v1349
  %v2722 = vpop.permute.xlu0 %2721
  %2725 = vset.pattern.permute.xlu0 0
  %2726 = vperm.xlu0 %2725, %v1350
  %v2727 = vpop.permute.xlu0 %2726
  %2730 = vset.pattern.permute.xlu0 0
  %2731 = vperm.xlu0 %2730, %v1351
  %v2732 = vpop.permute.xlu0 %2731
  %2735 = vset.pattern.permute.xlu0 0
  %2736 = vperm.xlu0 %2735, %v1352
  %v2737 = vpop.permute.xlu0 %2736
  %v2739 = vadd.f32 %v2715, %v2722
  %v2740 = vadd.f32 %v2716, %v2727
  %v2741 = vadd.f32 %v2717, %v2732
  %v2742 = vadd.f32 %v2718, %v2737
  %vm2743 = vcmp.ge.f32.partialorder %v2739, 0.0
  %vm2744 = vcmp.ge.f32.partialorder %v2740, 0.0
  %vm2745 = vcmp.ge.f32.partialorder %v2741, 0.0
  %vm2746 = vcmp.ge.f32.partialorder %v2742, 0.0
  %v2747 = vmul.f32 %v2739, 0.2
  %v2748 = vmul.f32 %v2740, 0.2
  %v2749 = vmul.f32 %v2741, 0.2
  %v2750 = vmul.f32 %v2742, 0.2
  %v2751 = vsel %vm2743, %v2739, %v2747
  %v2752 = vsel %vm2744, %v2740, %v2748
  %v2753 = vsel %vm2745, %v2741, %v2749
  %v2754 = vsel %vm2746, %v2742, %v2750
  %v2755 = vld [vmem:[%s8] sm:$0xff]
  %v2756 = vld [vmem:[%s8 + $0x8] sm:$0xff]
  %v2757 = vld [vmem:[%s8 + $0x10] sm:$0xff]
  %v2758 = vld [vmem:[%s8 + $0x18] sm:$0xff]
  %v2759 = vld [vmem:[%s8 + $0x20] sm:$0xff]
  %v2760 = vld [vmem:[%s8 + $0x28] sm:$0xff]
  %v2761 = vld [vmem:[%s8 + $0x30] sm:$0xff]
  %v2762 = vld [vmem:[%s8 + $0x38] sm:$0xff]
  %v2763 = vld [vmem:[%s8 + $0x40] sm:$0xff]
  %v2764 = vld [vmem:[%s8 + $0x48] sm:$0xff]
  %v2765 = vld [vmem:[%s8 + $0x50] sm:$0xff]
  %v2766 = vld [vmem:[%s8 + $0x58] sm:$0xff]
  %v2767 = vld [vmem:[%s8 + $0x60] sm:$0xff]
  %v2768 = vld [vmem:[%s8 + $0x68] sm:$0xff]
  %v2769 = vld [vmem:[%s8 + $0x70] sm:$0xff]
  %v2770 = vld [vmem:[%s8 + $0x78] sm:$0xff]
  %v2771 = vld [vmem:[%s10] sm:$0xff]
  %v2772 = vld [vmem:[%s10 + $0x8] sm:$0xff]
  %v2773 = vld [vmem:[%s10 + $0x10] sm:$0xff]
  %v2774 = vld [vmem:[%s10 + $0x18] sm:$0xff]
  %v2775 = vld [vmem:[%s10 + $0x20] sm:$0xff]
  %v2776 = vld [vmem:[%s10 + $0x28] sm:$0xff]
  %v2777 = vld [vmem:[%s10 + $0x30] sm:$0xff]
  %v2778 = vld [vmem:[%s10 + $0x38] sm:$0xff]
  %v2779 = vpack.c.bf16 %v2752, %v2751
  %v2780 = vpack.c.bf16 %v2754, %v2753
  %v2781 = vld [vmem:[%s9] sm:$0xf]
  %v2782 = vld [vmem:[%s9 + $0x4] sm:$0xf]
  %v2785 = vunpack.c.l.b16 %v2781
  %v2786 = vunpack.c.l.b16 %v2782
  %v2787 = vpack.c.b16 %v2786, %v2785
  %v2790 = vsel %vm2626, %v2779, 0
  %v2793 = vsel %vm2626, %v2780, 0
  %2795 = vmatprep.subr.bf16.mxu0 0
  %2796 = vmatpush1.bf16.msra.mxu0 %v2787
  %2797 = vmatprep.subr.bf16.mxu0 0
  %2798 = vmatpush1.bf16.msra.mxu0 0
  %2799 = vmatprep.subr.bf16.mxu0 0
  %2800 = vmatpush1.bf16.msra.mxu0 0
  %2801 = vmatprep.subr.bf16.mxu0 0
  %2802 = vmatpush1.bf16.msra.mxu0 0
  %2803 = vmatprep.subr.bf16.mxu0 0
  %2804 = vmatpush1.bf16.msra.mxu0 0
  %2805 = vmatprep.subr.bf16.mxu0 0
  %2806 = vmatpush1.bf16.msra.mxu0 0
  %2807 = vmatprep.subr.bf16.mxu0 0
  %2808 = vmatpush1.bf16.msra.mxu0 0
  %2809 = vmatprep.subr.bf16.mxu0 0
  %2810 = vmatpush1.bf16.msra.mxu0 0
  %2811 = vmatprep.subr.bf16.mxu0 0
  %2812 = vmatpush1.bf16.msra.mxu0 0
  %2813 = vmatprep.subr.bf16.mxu0 0
  %2814 = vmatpush1.bf16.msra.mxu0 0
  %2815 = vmatprep.subr.bf16.mxu0 0
  %2816 = vmatpush1.bf16.msra.mxu0 0
  %2817 = vmatprep.subr.bf16.mxu0 0
  %2818 = vmatpush1.bf16.msra.mxu0 0
  %2819 = vmatprep.subr.bf16.mxu0 0
  %2820 = vmatpush1.bf16.msra.mxu0 0
  %2821 = vmatprep.subr.bf16.mxu0 0
  %2822 = vmatpush1.bf16.msra.mxu0 0
  %2823 = vmatprep.subr.bf16.mxu0 0
  %2824 = vmatpush1.bf16.msra.mxu0 0
  %2825 = vmatprep.subr.bf16.mxu0 0
  %2826 = vmatpush1.bf16.msra.mxu0 0
  %2827 = vmatprep.mubr.bf16.mxu0 0
  %2828 = vmatmul.mubr.bf16.gmra.mrb[0].mxu0 %v2790
  %v2829 = vpop.f32.mrb[0].mxu0
  %v2830 = vadd.f32 0.0, %v2829
  %v2831 = vpop.f32.mrb[0].mxu0
  %v2832 = vpop.f32.mrb[0].mxu0
  %v2833 = vadd.f32 0.0, %v2832
  %v2834 = vpop.f32.mrb[0].mxu0
  %2835 = vmatprep.mubr.bf16.mxu0 0
  %2836 = vmatmul.mubr.bf16.gmra.mrb[0].mxu0 %v2793
  %v2837 = vpop.f32.mrb[0].mxu0
  %v2838 = vadd.f32 0.0, %v2837
  %v2839 = vpop.f32.mrb[0].mxu0
  %v2840 = vpop.f32.mrb[0].mxu0
  %v2841 = vadd.f32 0.0, %v2840
  %v2842 = vpop.f32.mrb[0].mxu0
  %2843 = vdwg.mxu0
  %s2844 = scalar_lea.vmem %s9, 8
  %v2845 = vld [vmem:[%s2844] sm:$0xf]
  %v2846 = vld [vmem:[%s2844 + $0x4] sm:$0xf]
  %v2849 = vunpack.c.l.b16 %v2845
  %v2850 = vunpack.c.l.b16 %v2846
  %v2851 = vpack.c.b16 %v2850, %v2849
  %2853 = vmatprep.subr.bf16.mxu0 0
  %2854 = vmatpush1.bf16.msra.mxu0 %v2851
  %2855 = vmatprep.subr.bf16.mxu0 0
  %2856 = vmatpush1.bf16.msra.mxu0 0
  %2857 = vmatprep.subr.bf16.mxu0 0
  %2858 = vmatpush1.bf16.msra.mxu0 0
  %2859 = vmatprep.subr.bf16.mxu0 0
  %2860 = vmatpush1.bf16.msra.mxu0 0
  %2861 = vmatprep.subr.bf16.mxu0 0
  %2862 = vmatpush1.bf16.msra.mxu0 0
  %2863 = vmatprep.subr.bf16.mxu0 0
  %2864 = vmatpush1.bf16.msra.mxu0 0
  %2865 = vmatprep.subr.bf16.mxu0 0
  %2866 = vmatpush1.bf16.msra.mxu0 0
  %2867 = vmatprep.subr.bf16.mxu0 0
  %2868 = vmatpush1.bf16.msra.mxu0 0
  %2869 = vmatprep.subr.bf16.mxu0 0
  %2870 = vmatpush1.bf16.msra.mxu0 0
  %2871 = vmatprep.subr.bf16.mxu0 0
  %2872 = vmatpush1.bf16.msra.mxu0 0
  %2873 = vmatprep.subr.bf16.mxu0 0
  %2874 = vmatpush1.bf16.msra.mxu0 0
  %2875 = vmatprep.subr.bf16.mxu0 0
  %2876 = vmatpush1.bf16.msra.mxu0 0
  %2877 = vmatprep.subr.bf16.mxu0 0
  %2878 = vmatpush1.bf16.msra.mxu0 0
  %2879 = vmatprep.subr.bf16.mxu0 0
  %2880 = vmatpush1.bf16.msra.mxu0 0
  %2881 = vmatprep.subr.bf16.mxu0 0
  %2882 = vmatpush1.bf16.msra.mxu0 0
  %2883 = vmatprep.subr.bf16.mxu0 0
  %2884 = vmatpush1.bf16.msra.mxu0 0
  %2885 = vmatprep.mubr.bf16.mxu0 0
  %2886 = vmatmul.mubr.bf16.gmra.mrb[0].mxu0 %v2790
  %v2887 = vpop.f32.mrb[0].mxu0
  %v2888 = vadd.f32 0.0, %v2887
  %v2889 = vpop.f32.mrb[0].mxu0
  %v2890 = vpop.f32.mrb[0].mxu0
  %v2891 = vadd.f32 0.0, %v2890
  %v2892 = vpop.f32.mrb[0].mxu0
  %2893 = vmatprep.mubr.bf16.mxu0 0
  %2894 = vmatmul.mubr.bf16.gmra.mrb[0].mxu0 %v2793
  %v2895 = vpop.f32.mrb[0].mxu0
  %v2896 = vadd.f32 0.0, %v2895
  %v2897 = vpop.f32.mrb[0].mxu0
  %v2898 = vpop.f32.mrb[0].mxu0
  %v2899 = vadd.f32 0.0, %v2898
  %v2900 = vpop.f32.mrb[0].mxu0
  %2901 = vdwg.mxu0
  %s2902 = scalar_lea.vmem %s9, 16
  %v2903 = vld [vmem:[%s2902] sm:$0xf]
  %v2904 = vld [vmem:[%s2902 + $0x4] sm:$0xf]
  %v2907 = vunpack.c.l.b16 %v2903
  %v2908 = vunpack.c.l.b16 %v2904
  %v2909 = vpack.c.b16 %v2908, %v2907
  %2911 = vmatprep.subr.bf16.mxu0 0
  %2912 = vmatpush1.bf16.msra.mxu0 %v2909
  %2913 = vmatprep.subr.bf16.mxu0 0
  %2914 = vmatpush1.bf16.msra.mxu0 0
  %2915 = vmatprep.subr.bf16.mxu0 0
  %2916 = vmatpush1.bf16.msra.mxu0 0
  %2917 = vmatprep.subr.bf16.mxu0 0
  %2918 = vmatpush1.bf16.msra.mxu0 0
  %2919 = vmatprep.subr.bf16.mxu0 0
  %2920 = vmatpush1.bf16.msra.mxu0 0
  %2921 = vmatprep.subr.bf16.mxu0 0
  %2922 = vmatpush1.bf16.msra.mxu0 0
  %2923 = vmatprep.subr.bf16.mxu0 0
  %2924 = vmatpush1.bf16.msra.mxu0 0
  %2925 = vmatprep.subr.bf16.mxu0 0
  %2926 = vmatpush1.bf16.msra.mxu0 0
  %2927 = vmatprep.subr.bf16.mxu0 0
  %2928 = vmatpush1.bf16.msra.mxu0 0
  %2929 = vmatprep.subr.bf16.mxu0 0
  %2930 = vmatpush1.bf16.msra.mxu0 0
  %2931 = vmatprep.subr.bf16.mxu0 0
  %2932 = vmatpush1.bf16.msra.mxu0 0
  %2933 = vmatprep.subr.bf16.mxu0 0
  %2934 = vmatpush1.bf16.msra.mxu0 0
  %2935 = vmatprep.subr.bf16.mxu0 0
  %2936 = vmatpush1.bf16.msra.mxu0 0
  %2937 = vmatprep.subr.bf16.mxu0 0
  %2938 = vmatpush1.bf16.msra.mxu0 0
  %2939 = vmatprep.subr.bf16.mxu0 0
  %2940 = vmatpush1.bf16.msra.mxu0 0
  %2941 = vmatprep.subr.bf16.mxu0 0
  %2942 = vmatpush1.bf16.msra.mxu0 0
  %2943 = vmatprep.mubr.bf16.mxu0 0
  %2944 = vmatmul.mubr.bf16.gmra.mrb[0].mxu0 %v2790
  %v2945 = vpop.f32.mrb[0].mxu0
  %v2946 = vadd.f32 0.0, %v2945
  %v2947 = vpop.f32.mrb[0].mxu0
  %v2948 = vpop.f32.mrb[0].mxu0
  %v2949 = vadd.f32 0.0, %v2948
  %v2950 = vpop.f32.mrb[0].mxu0
  %2951 = vmatprep.mubr.bf16.mxu0 0
  %2952 = vmatmul.mubr.bf16.gmra.mrb[0].mxu0 %v2793
  %v2953 = vpop.f32.mrb[0].mxu0
  %v2954 = vadd.f32 0.0, %v2953
  %v2955 = vpop.f32.mrb[0].mxu0
  %v2956 = vpop.f32.mrb[0].mxu0
  %v2957 = vadd.f32 0.0, %v2956
  %v2958 = vpop.f32.mrb[0].mxu0
  %2959 = vdwg.mxu0
  %s2960 = scalar_lea.vmem %s9, 24
  %v2961 = vld [vmem:[%s2960] sm:$0xf]
  %v2962 = vld [vmem:[%s2960 + $0x4] sm:$0xf]
  %v2965 = vunpack.c.l.b16 %v2961
  %v2966 = vunpack.c.l.b16 %v2962
  %v2967 = vpack.c.b16 %v2966, %v2965
  %2969 = vmatprep.subr.bf16.mxu0 0
  %2970 = vmatpush1.bf16.msra.mxu0 %v2967
  %2971 = vmatprep.subr.bf16.mxu0 0
  %2972 = vmatpush1.bf16.msra.mxu0 0
  %2973 = vmatprep.subr.bf16.mxu0 0
  %2974 = vmatpush1.bf16.msra.mxu0 0
  %2975 = vmatprep.subr.bf16.mxu0 0
  %2976 = vmatpush1.bf16.msra.mxu0 0
  %2977 = vmatprep.subr.bf16.mxu0 0
  %2978 = vmatpush1.bf16.msra.mxu0 0
  %2979 = vmatprep.subr.bf16.mxu0 0
  %2980 = vmatpush1.bf16.msra.mxu0 0
  %2981 = vmatprep.subr.bf16.mxu0 0
  %2982 = vmatpush1.bf16.msra.mxu0 0
  %2983 = vmatprep.subr.bf16.mxu0 0
  %2984 = vmatpush1.bf16.msra.mxu0 0
  %2985 = vmatprep.subr.bf16.mxu0 0
  %2986 = vmatpush1.bf16.msra.mxu0 0
  %2987 = vmatprep.subr.bf16.mxu0 0
  %2988 = vmatpush1.bf16.msra.mxu0 0
  %2989 = vmatprep.subr.bf16.mxu0 0
  %2990 = vmatpush1.bf16.msra.mxu0 0
  %2991 = vmatprep.subr.bf16.mxu0 0
  %2992 = vmatpush1.bf16.msra.mxu0 0
  %2993 = vmatprep.subr.bf16.mxu0 0
  %2994 = vmatpush1.bf16.msra.mxu0 0
  %2995 = vmatprep.subr.bf16.mxu0 0
  %2996 = vmatpush1.bf16.msra.mxu0 0
  %2997 = vmatprep.subr.bf16.mxu0 0
  %2998 = vmatpush1.bf16.msra.mxu0 0
  %2999 = vmatprep.subr.bf16.mxu0 0
  %3000 = vmatpush1.bf16.msra.mxu0 0
  %3001 = vmatprep.mubr.bf16.mxu0 0
  %3002 = vmatmul.mubr.bf16.gmra.mrb[0].mxu0 %v2790
  %v3003 = vpop.f32.mrb[0].mxu0
  %v3004 = vadd.f32 0.0, %v3003
  %v3005 = vpop.f32.mrb[0].mxu0
  %v3006 = vpop.f32.mrb[0].mxu0
  %v3007 = vadd.f32 0.0, %v3006
  %v3008 = vpop.f32.mrb[0].mxu0
  %3009 = vmatprep.mubr.bf16.mxu0 0
  %3010 = vmatmul.mubr.bf16.gmra.mrb[0].mxu0 %v2793
  %v3011 = vpop.f32.mrb[0].mxu0
  %v3012 = vadd.f32 0.0, %v3011
  %v3013 = vpop.f32.mrb[0].mxu0
  %v3014 = vpop.f32.mrb[0].mxu0
  %v3015 = vadd.f32 0.0, %v3014
  %v3016 = vpop.f32.mrb[0].mxu0
  %3017 = vdwg.mxu0
  %s3018 = scalar_lea.vmem %s9, 32
  %v3019 = vld [vmem:[%s3018] sm:$0xf]
  %v3020 = vld [vmem:[%s3018 + $0x4] sm:$0xf]
  %v3023 = vunpack.c.l.b16 %v3019
  %v3024 = vunpack.c.l.b16 %v3020
  %v3025 = vpack.c.b16 %v3024, %v3023
  %3027 = vmatprep.subr.bf16.mxu0 0
  %3028 = vmatpush1.bf16.msra.mxu0 %v3025
  %3029 = vmatprep.subr.bf16.mxu0 0
  %3030 = vmatpush1.bf16.msra.mxu0 0
  %3031 = vmatprep.subr.bf16.mxu0 0
  %3032 = vmatpush1.bf16.msra.mxu0 0
  %3033 = vmatprep.subr.bf16.mxu0 0
  %3034 = vmatpush1.bf16.msra.mxu0 0
  %3035 = vmatprep.subr.bf16.mxu0 0
  %3036 = vmatpush1.bf16.msra.mxu0 0
  %3037 = vmatprep.subr.bf16.mxu0 0
  %3038 = vmatpush1.bf16.msra.mxu0 0
  %3039 = vmatprep.subr.bf16.mxu0 0
  %3040 = vmatpush1.bf16.msra.mxu0 0
  %3041 = vmatprep.subr.bf16.mxu0 0
  %3042 = vmatpush1.bf16.msra.mxu0 0
  %3043 = vmatprep.subr.bf16.mxu0 0
  %3044 = vmatpush1.bf16.msra.mxu0 0
  %3045 = vmatprep.subr.bf16.mxu0 0
  %3046 = vmatpush1.bf16.msra.mxu0 0
  %3047 = vmatprep.subr.bf16.mxu0 0
  %3048 = vmatpush1.bf16.msra.mxu0 0
  %3049 = vmatprep.subr.bf16.mxu0 0
  %3050 = vmatpush1.bf16.msra.mxu0 0
  %3051 = vmatprep.subr.bf16.mxu0 0
  %3052 = vmatpush1.bf16.msra.mxu0 0
  %3053 = vmatprep.subr.bf16.mxu0 0
  %3054 = vmatpush1.bf16.msra.mxu0 0
  %3055 = vmatprep.subr.bf16.mxu0 0
  %3056 = vmatpush1.bf16.msra.mxu0 0
  %3057 = vmatprep.subr.bf16.mxu0 0
  %3058 = vmatpush1.bf16.msra.mxu0 0
  %3059 = vmatprep.mubr.bf16.mxu0 0
  %3060 = vmatmul.mubr.bf16.gmra.mrb[0].mxu0 %v2790
  %v3061 = vpop.f32.mrb[0].mxu0
  %v3062 = vadd.f32 0.0, %v3061
  %v3063 = vpop.f32.mrb[0].mxu0
  %v3064 = vpop.f32.mrb[0].mxu0
  %v3065 = vadd.f32 0.0, %v3064
  %v3066 = vpop.f32.mrb[0].mxu0
  %3067 = vmatprep.mubr.bf16.mxu0 0
  %3068 = vmatmul.mubr.bf16.gmra.mrb[0].mxu0 %v2793
  %v3069 = vpop.f32.mrb[0].mxu0
  %v3070 = vadd.f32 0.0, %v3069
  %v3071 = vpop.f32.mrb[0].mxu0
  %v3072 = vpop.f32.mrb[0].mxu0
  %v3073 = vadd.f32 0.0, %v3072
  %v3074 = vpop.f32.mrb[0].mxu0
  %3075 = vdwg.mxu0
  %s3076 = scalar_lea.vmem %s9, 40
  %v3077 = vld [vmem:[%s3076] sm:$0xf]
  %v3078 = vld [vmem:[%s3076 + $0x4] sm:$0xf]
  %v3081 = vunpack.c.l.b16 %v3077
  %v3082 = vunpack.c.l.b16 %v3078
  %v3083 = vpack.c.b16 %v3082, %v3081
  %3085 = vmatprep.subr.bf16.mxu0 0
  %3086 = vmatpush1.bf16.msra.mxu0 %v3083
  %3087 = vmatprep.subr.bf16.mxu0 0
  %3088 = vmatpush1.bf16.msra.mxu0 0
  %3089 = vmatprep.subr.bf16.mxu0 0
  %3090 = vmatpush1.bf16.msra.mxu0 0
  %3091 = vmatprep.subr.bf16.mxu0 0
  %3092 = vmatpush1.bf16.msra.mxu0 0
  %3093 = vmatprep.subr.bf16.mxu0 0
  %3094 = vmatpush1.bf16.msra.mxu0 0
  %3095 = vmatprep.subr.bf16.mxu0 0
  %3096 = vmatpush1.bf16.msra.mxu0 0
  %3097 = vmatprep.subr.bf16.mxu0 0
  %3098 = vmatpush1.bf16.msra.mxu0 0
  %3099 = vmatprep.subr.bf16.mxu0 0
  %3100 = vmatpush1.bf16.msra.mxu0 0
  %3101 = vmatprep.subr.bf16.mxu0 0
  %3102 = vmatpush1.bf16.msra.mxu0 0
  %3103 = vmatprep.subr.bf16.mxu0 0
  %3104 = vmatpush1.bf16.msra.mxu0 0
  %3105 = vmatprep.subr.bf16.mxu0 0
  %3106 = vmatpush1.bf16.msra.mxu0 0
  %3107 = vmatprep.subr.bf16.mxu0 0
  %3108 = vmatpush1.bf16.msra.mxu0 0
  %3109 = vmatprep.subr.bf16.mxu0 0
  %3110 = vmatpush1.bf16.msra.mxu0 0
  %3111 = vmatprep.subr.bf16.mxu0 0
  %3112 = vmatpush1.bf16.msra.mxu0 0
  %3113 = vmatprep.subr.bf16.mxu0 0
  %3114 = vmatpush1.bf16.msra.mxu0 0
  %3115 = vmatprep.subr.bf16.mxu0 0
  %3116 = vmatpush1.bf16.msra.mxu0 0
  %3117 = vmatprep.mubr.bf16.mxu0 0
  %3118 = vmatmul.mubr.bf16.gmra.mrb[0].mxu0 %v2790
  %v3119 = vpop.f32.mrb[0].mxu0
  %v3120 = vadd.f32 0.0, %v3119
  %v3121 = vpop.f32.mrb[0].mxu0
  %v3122 = vpop.f32.mrb[0].mxu0
  %v3123 = vadd.f32 0.0, %v3122
  %v3124 = vpop.f32.mrb[0].mxu0
  %3125 = vmatprep.mubr.bf16.mxu0 0
  %3126 = vmatmul.mubr.bf16.gmra.mrb[0].mxu0 %v2793
  %v3127 = vpop.f32.mrb[0].mxu0
  %v3128 = vadd.f32 0.0, %v3127
  %v3129 = vpop.f32.mrb[0].mxu0
  %v3130 = vpop.f32.mrb[0].mxu0
  %v3131 = vadd.f32 0.0, %v3130
  %v3132 = vpop.f32.mrb[0].mxu0
  %3133 = vdwg.mxu0
  %s3134 = scalar_lea.vmem %s9, 48
  %v3135 = vld [vmem:[%s3134] sm:$0xf]
  %v3136 = vld [vmem:[%s3134 + $0x4] sm:$0xf]
  %v3139 = vunpack.c.l.b16 %v3135
  %v3140 = vunpack.c.l.b16 %v3136
  %v3141 = vpack.c.b16 %v3140, %v3139
  %3143 = vmatprep.subr.bf16.mxu0 0
  %3144 = vmatpush1.bf16.msra.mxu0 %v3141
  %3145 = vmatprep.subr.bf16.mxu0 0
  %3146 = vmatpush1.bf16.msra.mxu0 0
  %3147 = vmatprep.subr.bf16.mxu0 0
  %3148 = vmatpush1.bf16.msra.mxu0 0
  %3149 = vmatprep.subr.bf16.mxu0 0
  %3150 = vmatpush1.bf16.msra.mxu0 0
  %3151 = vmatprep.subr.bf16.mxu0 0
  %3152 = vmatpush1.bf16.msra.mxu0 0
  %3153 = vmatprep.subr.bf16.mxu0 0
  %3154 = vmatpush1.bf16.msra.mxu0 0
  %3155 = vmatprep.subr.bf16.mxu0 0
  %3156 = vmatpush1.bf16.msra.mxu0 0
  %3157 = vmatprep.subr.bf16.mxu0 0
  %3158 = vmatpush1.bf16.msra.mxu0 0
  %3159 = vmatprep.subr.bf16.mxu0 0
  %3160 = vmatpush1.bf16.msra.mxu0 0
  %3161 = vmatprep.subr.bf16.mxu0 0
  %3162 = vmatpush1.bf16.msra.mxu0 0
  %3163 = vmatprep.subr.bf16.mxu0 0
  %3164 = vmatpush1.bf16.msra.mxu0 0
  %3165 = vmatprep.subr.bf16.mxu0 0
  %3166 = vmatpush1.bf16.msra.mxu0 0
  %3167 = vmatprep.subr.bf16.mxu0 0
  %3168 = vmatpush1.bf16.msra.mxu0 0
  %3169 = vmatprep.subr.bf16.mxu0 0
  %3170 = vmatpush1.bf16.msra.mxu0 0
  %3171 = vmatprep.subr.bf16.mxu0 0
  %3172 = vmatpush1.bf16.msra.mxu0 0
  %3173 = vmatprep.subr.bf16.mxu0 0
  %3174 = vmatpush1.bf16.msra.mxu0 0
  %3175 = vmatprep.mubr.bf16.mxu0 0
  %3176 = vmatmul.mubr.bf16.gmra.mrb[0].mxu0 %v2790
  %v3177 = vpop.f32.mrb[0].mxu0
  %v3178 = vadd.f32 0.0, %v3177
  %v3179 = vpop.f32.mrb[0].mxu0
  %v3180 = vpop.f32.mrb[0].mxu0
  %v3181 = vadd.f32 0.0, %v3180
  %v3182 = vpop.f32.mrb[0].mxu0
  %3183 = vmatprep.mubr.bf16.mxu0 0
  %3184 = vmatmul.mubr.bf16.gmra.mrb[0].mxu0 %v2793
  %v3185 = vpop.f32.mrb[0].mxu0
  %v3186 = vadd.f32 0.0, %v3185
  %v3187 = vpop.f32.mrb[0].mxu0
  %v3188 = vpop.f32.mrb[0].mxu0
  %v3189 = vadd.f32 0.0, %v3188
  %v3190 = vpop.f32.mrb[0].mxu0
  %3191 = vdwg.mxu0
  %s3192 = scalar_lea.vmem %s9, 56
  %v3193 = vld [vmem:[%s3192] sm:$0xf]
  %v3194 = vld [vmem:[%s3192 + $0x4] sm:$0xf]
  %v3197 = vunpack.c.l.b16 %v3193
  %v3198 = vunpack.c.l.b16 %v3194
  %v3199 = vpack.c.b16 %v3198, %v3197
  %3201 = vmatprep.subr.bf16.mxu0 0
  %3202 = vmatpush1.bf16.msra.mxu0 %v3199
  %3203 = vmatprep.subr.bf16.mxu0 0
  %3204 = vmatpush1.bf16.msra.mxu0 0
  %3205 = vmatprep.subr.bf16.mxu0 0
  %3206 = vmatpush1.bf16.msra.mxu0 0
  %3207 = vmatprep.subr.bf16.mxu0 0
  %3208 = vmatpush1.bf16.msra.mxu0 0
  %3209 = vmatprep.subr.bf16.mxu0 0
  %3210 = vmatpush1.bf16.msra.mxu0 0
  %3211 = vmatprep.subr.bf16.mxu0 0
  %3212 = vmatpush1.bf16.msra.mxu0 0
  %3213 = vmatprep.subr.bf16.mxu0 0
  %3214 = vmatpush1.bf16.msra.mxu0 0
  %3215 = vmatprep.subr.bf16.mxu0 0
  %3216 = vmatpush1.bf16.msra.mxu0 0
  %3217 = vmatprep.subr.bf16.mxu0 0
  %3218 = vmatpush1.bf16.msra.mxu0 0
  %3219 = vmatprep.subr.bf16.mxu0 0
  %3220 = vmatpush1.bf16.msra.mxu0 0
  %3221 = vmatprep.subr.bf16.mxu0 0
  %3222 = vmatpush1.bf16.msra.mxu0 0
  %3223 = vmatprep.subr.bf16.mxu0 0
  %3224 = vmatpush1.bf16.msra.mxu0 0
  %3225 = vmatprep.subr.bf16.mxu0 0
  %3226 = vmatpush1.bf16.msra.mxu0 0
  %3227 = vmatprep.subr.bf16.mxu0 0
  %3228 = vmatpush1.bf16.msra.mxu0 0
  %3229 = vmatprep.subr.bf16.mxu0 0
  %3230 = vmatpush1.bf16.msra.mxu0 0
  %3231 = vmatprep.subr.bf16.mxu0 0
  %3232 = vmatpush1.bf16.msra.mxu0 0
  %3233 = vmatprep.mubr.bf16.mxu0 0
  %3234 = vmatmul.mubr.bf16.gmra.mrb[0].mxu0 %v2790
  %v3235 = vpop.f32.mrb[0].mxu0
  %v3236 = vadd.f32 0.0, %v3235
  %v3237 = vpop.f32.mrb[0].mxu0
  %v3238 = vpop.f32.mrb[0].mxu0
  %v3239 = vadd.f32 0.0, %v3238
  %v3240 = vpop.f32.mrb[0].mxu0
  %3241 = vmatprep.mubr.bf16.mxu0 0
  %3242 = vmatmul.mubr.bf16.gmra.mrb[0].mxu0 %v2793
  %v3243 = vpop.f32.mrb[0].mxu0
  %v3244 = vadd.f32 0.0, %v3243
  %v3245 = vpop.f32.mrb[0].mxu0
  %v3246 = vpop.f32.mrb[0].mxu0
  %v3247 = vadd.f32 0.0, %v3246
  %v3248 = vpop.f32.mrb[0].mxu0
  %3249 = vdwg.mxu0
  %s3250 = scalar_lea.vmem %s9, 64
  %v3251 = vld [vmem:[%s3250] sm:$0xf]
  %v3252 = vld [vmem:[%s3250 + $0x4] sm:$0xf]
  %v3255 = vunpack.c.l.b16 %v3251
  %v3256 = vunpack.c.l.b16 %v3252
  %v3257 = vpack.c.b16 %v3256, %v3255
  %3259 = vmatprep.subr.bf16.mxu0 0
  %3260 = vmatpush1.bf16.msra.mxu0 %v3257
  %3261 = vmatprep.subr.bf16.mxu0 0
  %3262 = vmatpush1.bf16.msra.mxu0 0
  %3263 = vmatprep.subr.bf16.mxu0 0
  %3264 = vmatpush1.bf16.msra.mxu0 0
  %3265 = vmatprep.subr.bf16.mxu0 0
  %3266 = vmatpush1.bf16.msra.mxu0 0
  %3267 = vmatprep.subr.bf16.mxu0 0
  %3268 = vmatpush1.bf16.msra.mxu0 0
  %3269 = vmatprep.subr.bf16.mxu0 0
  %3270 = vmatpush1.bf16.msra.mxu0 0
  %3271 = vmatprep.subr.bf16.mxu0 0
  %3272 = vmatpush1.bf16.msra.mxu0 0
  %3273 = vmatprep.subr.bf16.mxu0 0
  %3274 = vmatpush1.bf16.msra.mxu0 0
  %3275 = vmatprep.subr.bf16.mxu0 0
  %3276 = vmatpush1.bf16.msra.mxu0 0
  %3277 = vmatprep.subr.bf16.mxu0 0
  %3278 = vmatpush1.bf16.msra.mxu0 0
  %3279 = vmatprep.subr.bf16.mxu0 0
  %3280 = vmatpush1.bf16.msra.mxu0 0
  %3281 = vmatprep.subr.bf16.mxu0 0
  %3282 = vmatpush1.bf16.msra.mxu0 0
  %3283 = vmatprep.subr.bf16.mxu0 0
  %3284 = vmatpush1.bf16.msra.mxu0 0
  %3285 = vmatprep.subr.bf16.mxu0 0
  %3286 = vmatpush1.bf16.msra.mxu0 0
  %3287 = vmatprep.subr.bf16.mxu0 0
  %3288 = vmatpush1.bf16.msra.mxu0 0
  %3289 = vmatprep.subr.bf16.mxu0 0
  %3290 = vmatpush1.bf16.msra.mxu0 0
  %3291 = vmatprep.mubr.bf16.mxu0 0
  %3292 = vmatmul.mubr.bf16.gmra.mrb[0].mxu0 %v2790
  %v3293 = vpop.f32.mrb[0].mxu0
  %v3294 = vadd.f32 0.0, %v3293
  %v3295 = vpop.f32.mrb[0].mxu0
  %v3296 = vpop.f32.mrb[0].mxu0
  %v3297 = vadd.f32 0.0, %v3296
  %v3298 = vpop.f32.mrb[0].mxu0
  %3299 = vmatprep.mubr.bf16.mxu0 0
  %3300 = vmatmul.mubr.bf16.gmra.mrb[0].mxu0 %v2793
  %v3301 = vpop.f32.mrb[0].mxu0
  %v3302 = vadd.f32 0.0, %v3301
  %v3303 = vpop.f32.mrb[0].mxu0
  %v3304 = vpop.f32.mrb[0].mxu0
  %v3305 = vadd.f32 0.0, %v3304
  %v3306 = vpop.f32.mrb[0].mxu0
  %3307 = vdwg.mxu0
  %s3308 = scalar_lea.vmem %s9, 72
  %v3309 = vld [vmem:[%s3308] sm:$0xf]
  %v3310 = vld [vmem:[%s3308 + $0x4] sm:$0xf]
  %v3313 = vunpack.c.l.b16 %v3309
  %v3314 = vunpack.c.l.b16 %v3310
  %v3315 = vpack.c.b16 %v3314, %v3313
  %3317 = vmatprep.subr.bf16.mxu0 0
  %3318 = vmatpush1.bf16.msra.mxu0 %v3315
  %3319 = vmatprep.subr.bf16.mxu0 0
  %3320 = vmatpush1.bf16.msra.mxu0 0
  %3321 = vmatprep.subr.bf16.mxu0 0
  %3322 = vmatpush1.bf16.msra.mxu0 0
  %3323 = vmatprep.subr.bf16.mxu0 0
  %3324 = vmatpush1.bf16.msra.mxu0 0
  %3325 = vmatprep.subr.bf16.mxu0 0
  %3326 = vmatpush1.bf16.msra.mxu0 0
  %3327 = vmatprep.subr.bf16.mxu0 0
  %3328 = vmatpush1.bf16.msra.mxu0 0
  %3329 = vmatprep.subr.bf16.mxu0 0
  %3330 = vmatpush1.bf16.msra.mxu0 0
  %3331 = vmatprep.subr.bf16.mxu0 0
  %3332 = vmatpush1.bf16.msra.mxu0 0
  %3333 = vmatprep.subr.bf16.mxu0 0
  %3334 = vmatpush1.bf16.msra.mxu0 0
  %3335 = vmatprep.subr.bf16.mxu0 0
  %3336 = vmatpush1.bf16.msra.mxu0 0
  %3337 = vmatprep.subr.bf16.mxu0 0
  %3338 = vmatpush1.bf16.msra.mxu0 0
  %3339 = vmatprep.subr.bf16.mxu0 0
  %3340 = vmatpush1.bf16.msra.mxu0 0
  %3341 = vmatprep.subr.bf16.mxu0 0
  %3342 = vmatpush1.bf16.msra.mxu0 0
  %3343 = vmatprep.subr.bf16.mxu0 0
  %3344 = vmatpush1.bf16.msra.mxu0 0
  %3345 = vmatprep.subr.bf16.mxu0 0
  %3346 = vmatpush1.bf16.msra.mxu0 0
  %3347 = vmatprep.subr.bf16.mxu0 0
  %3348 = vmatpush1.bf16.msra.mxu0 0
  %3349 = vmatprep.mubr.bf16.mxu0 0
  %3350 = vmatmul.mubr.bf16.gmra.mrb[0].mxu0 %v2790
  %v3351 = vpop.f32.mrb[0].mxu0
  %v3352 = vadd.f32 0.0, %v3351
  %v3353 = vpop.f32.mrb[0].mxu0
  %v3354 = vpop.f32.mrb[0].mxu0
  %v3355 = vadd.f32 0.0, %v3354
  %v3356 = vpop.f32.mrb[0].mxu0
  %3357 = vmatprep.mubr.bf16.mxu0 0
  %3358 = vmatmul.mubr.bf16.gmra.mrb[0].mxu0 %v2793
  %v3359 = vpop.f32.mrb[0].mxu0
  %v3360 = vadd.f32 0.0, %v3359
  %v3361 = vpop.f32.mrb[0].mxu0
  %v3362 = vpop.f32.mrb[0].mxu0
  %v3363 = vadd.f32 0.0, %v3362
  %v3364 = vpop.f32.mrb[0].mxu0
  %3365 = vdwg.mxu0
  %s3366 = scalar_lea.vmem %s9, 80
  %v3367 = vld [vmem:[%s3366] sm:$0xf]
  %v3368 = vld [vmem:[%s3366 + $0x4] sm:$0xf]
  %v3371 = vunpack.c.l.b16 %v3367
  %v3372 = vunpack.c.l.b16 %v3368
  %v3373 = vpack.c.b16 %v3372, %v3371
  %3375 = vmatprep.subr.bf16.mxu0 0
  %3376 = vmatpush1.bf16.msra.mxu0 %v3373
  %3377 = vmatprep.subr.bf16.mxu0 0
  %3378 = vmatpush1.bf16.msra.mxu0 0
  %3379 = vmatprep.subr.bf16.mxu0 0
  %3380 = vmatpush1.bf16.msra.mxu0 0
  %3381 = vmatprep.subr.bf16.mxu0 0
  %3382 = vmatpush1.bf16.msra.mxu0 0
  %3383 = vmatprep.subr.bf16.mxu0 0
  %3384 = vmatpush1.bf16.msra.mxu0 0
  %3385 = vmatprep.subr.bf16.mxu0 0
  %3386 = vmatpush1.bf16.msra.mxu0 0
  %3387 = vmatprep.subr.bf16.mxu0 0
  %3388 = vmatpush1.bf16.msra.mxu0 0
  %3389 = vmatprep.subr.bf16.mxu0 0
  %3390 = vmatpush1.bf16.msra.mxu0 0
  %3391 = vmatprep.subr.bf16.mxu0 0
  %3392 = vmatpush1.bf16.msra.mxu0 0
  %3393 = vmatprep.subr.bf16.mxu0 0
  %3394 = vmatpush1.bf16.msra.mxu0 0
  %3395 = vmatprep.subr.bf16.mxu0 0
  %3396 = vmatpush1.bf16.msra.mxu0 0
  %3397 = vmatprep.subr.bf16.mxu0 0
  %3398 = vmatpush1.bf16.msra.mxu0 0
  %3399 = vmatprep.subr.bf16.mxu0 0
  %3400 = vmatpush1.bf16.msra.mxu0 0
  %3401 = vmatprep.subr.bf16.mxu0 0
  %3402 = vmatpush1.bf16.msra.mxu0 0
  %3403 = vmatprep.subr.bf16.mxu0 0
  %3404 = vmatpush1.bf16.msra.mxu0 0
  %3405 = vmatprep.subr.bf16.mxu0 0
  %3406 = vmatpush1.bf16.msra.mxu0 0
  %3407 = vmatprep.mubr.bf16.mxu0 0
  %3408 = vmatmul.mubr.bf16.gmra.mrb[0].mxu0 %v2790
  %v3409 = vpop.f32.mrb[0].mxu0
  %v3410 = vadd.f32 0.0, %v3409
  %v3411 = vpop.f32.mrb[0].mxu0
  %v3412 = vpop.f32.mrb[0].mxu0
  %v3413 = vadd.f32 0.0, %v3412
  %v3414 = vpop.f32.mrb[0].mxu0
  %3415 = vmatprep.mubr.bf16.mxu0 0
  %3416 = vmatmul.mubr.bf16.gmra.mrb[0].mxu0 %v2793
  %v3417 = vpop.f32.mrb[0].mxu0
  %v3418 = vadd.f32 0.0, %v3417
  %v3419 = vpop.f32.mrb[0].mxu0
  %v3420 = vpop.f32.mrb[0].mxu0
  %v3421 = vadd.f32 0.0, %v3420
  %v3422 = vpop.f32.mrb[0].mxu0
  %3423 = vdwg.mxu0
  %s3424 = scalar_lea.vmem %s9, 88
  %v3425 = vld [vmem:[%s3424] sm:$0xf]
  %v3426 = vld [vmem:[%s3424 + $0x4] sm:$0xf]
  %v3429 = vunpack.c.l.b16 %v3425
  %v3430 = vunpack.c.l.b16 %v3426
  %v3431 = vpack.c.b16 %v3430, %v3429
  %3433 = vmatprep.subr.bf16.mxu0 0
  %3434 = vmatpush1.bf16.msra.mxu0 %v3431
  %3435 = vmatprep.subr.bf16.mxu0 0
  %3436 = vmatpush1.bf16.msra.mxu0 0
  %3437 = vmatprep.subr.bf16.mxu0 0
  %3438 = vmatpush1.bf16.msra.mxu0 0
  %3439 = vmatprep.subr.bf16.mxu0 0
  %3440 = vmatpush1.bf16.msra.mxu0 0
  %3441 = vmatprep.subr.bf16.mxu0 0
  %3442 = vmatpush1.bf16.msra.mxu0 0
  %3443 = vmatprep.subr.bf16.mxu0 0
  %3444 = vmatpush1.bf16.msra.mxu0 0
  %3445 = vmatprep.subr.bf16.mxu0 0
  %3446 = vmatpush1.bf16.msra.mxu0 0
  %3447 = vmatprep.subr.bf16.mxu0 0
  %3448 = vmatpush1.bf16.msra.mxu0 0
  %3449 = vmatprep.subr.bf16.mxu0 0
  %3450 = vmatpush1.bf16.msra.mxu0 0
  %3451 = vmatprep.subr.bf16.mxu0 0
  %3452 = vmatpush1.bf16.msra.mxu0 0
  %3453 = vmatprep.subr.bf16.mxu0 0
  %3454 = vmatpush1.bf16.msra.mxu0 0
  %3455 = vmatprep.subr.bf16.mxu0 0
  %3456 = vmatpush1.bf16.msra.mxu0 0
  %3457 = vmatprep.subr.bf16.mxu0 0
  %3458 = vmatpush1.bf16.msra.mxu0 0
  %3459 = vmatprep.subr.bf16.mxu0 0
  %3460 = vmatpush1.bf16.msra.mxu0 0
  %3461 = vmatprep.subr.bf16.mxu0 0
  %3462 = vmatpush1.bf16.msra.mxu0 0
  %3463 = vmatprep.subr.bf16.mxu0 0
  %3464 = vmatpush1.bf16.msra.mxu0 0
  %3465 = vmatprep.mubr.bf16.mxu0 0
  %3466 = vmatmul.mubr.bf16.gmra.mrb[0].mxu0 %v2790
  %v3467 = vpop.f32.mrb[0].mxu0
  %v3468 = vadd.f32 0.0, %v3467
  %v3469 = vpop.f32.mrb[0].mxu0
  %v3470 = vpop.f32.mrb[0].mxu0
  %v3471 = vadd.f32 0.0, %v3470
  %v3472 = vpop.f32.mrb[0].mxu0
  %3473 = vmatprep.mubr.bf16.mxu0 0
  %3474 = vmatmul.mubr.bf16.gmra.mrb[0].mxu0 %v2793
  %v3475 = vpop.f32.mrb[0].mxu0
  %v3476 = vadd.f32 0.0, %v3475
  %v3477 = vpop.f32.mrb[0].mxu0
  %v3478 = vpop.f32.mrb[0].mxu0
  %v3479 = vadd.f32 0.0, %v3478
  %v3480 = vpop.f32.mrb[0].mxu0
  %3481 = vdwg.mxu0
  %s3482 = scalar_lea.vmem %s9, 96
  %v3483 = vld [vmem:[%s3482] sm:$0xf]
  %v3484 = vld [vmem:[%s3482 + $0x4] sm:$0xf]
  %v3487 = vunpack.c.l.b16 %v3483
  %v3488 = vunpack.c.l.b16 %v3484
  %v3489 = vpack.c.b16 %v3488, %v3487
  %3491 = vmatprep.subr.bf16.mxu0 0
  %3492 = vmatpush1.bf16.msra.mxu0 %v3489
  %3493 = vmatprep.subr.bf16.mxu0 0
  %3494 = vmatpush1.bf16.msra.mxu0 0
  %3495 = vmatprep.subr.bf16.mxu0 0
  %3496 = vmatpush1.bf16.msra.mxu0 0
  %3497 = vmatprep.subr.bf16.mxu0 0
  %3498 = vmatpush1.bf16.msra.mxu0 0
  %3499 = vmatprep.subr.bf16.mxu0 0
  %3500 = vmatpush1.bf16.msra.mxu0 0
  %3501 = vmatprep.subr.bf16.mxu0 0
  %3502 = vmatpush1.bf16.msra.mxu0 0
  %3503 = vmatprep.subr.bf16.mxu0 0
  %3504 = vmatpush1.bf16.msra.mxu0 0
  %3505 = vmatprep.subr.bf16.mxu0 0
  %3506 = vmatpush1.bf16.msra.mxu0 0
  %3507 = vmatprep.subr.bf16.mxu0 0
  %3508 = vmatpush1.bf16.msra.mxu0 0
  %3509 = vmatprep.subr.bf16.mxu0 0
  %3510 = vmatpush1.bf16.msra.mxu0 0
  %3511 = vmatprep.subr.bf16.mxu0 0
  %3512 = vmatpush1.bf16.msra.mxu0 0
  %3513 = vmatprep.subr.bf16.mxu0 0
  %3514 = vmatpush1.bf16.msra.mxu0 0
  %3515 = vmatprep.subr.bf16.mxu0 0
  %3516 = vmatpush1.bf16.msra.mxu0 0
  %3517 = vmatprep.subr.bf16.mxu0 0
  %3518 = vmatpush1.bf16.msra.mxu0 0
  %3519 = vmatprep.subr.bf16.mxu0 0
  %3520 = vmatpush1.bf16.msra.mxu0 0
  %3521 = vmatprep.subr.bf16.mxu0 0
  %3522 = vmatpush1.bf16.msra.mxu0 0
  %3523 = vmatprep.mubr.bf16.mxu0 0
  %3524 = vmatmul.mubr.bf16.gmra.mrb[0].mxu0 %v2790
  %v3525 = vpop.f32.mrb[0].mxu0
  %v3526 = vadd.f32 0.0, %v3525
  %v3527 = vpop.f32.mrb[0].mxu0
  %v3528 = vpop.f32.mrb[0].mxu0
  %v3529 = vadd.f32 0.0, %v3528
  %v3530 = vpop.f32.mrb[0].mxu0
  %3531 = vmatprep.mubr.bf16.mxu0 0
  %3532 = vmatmul.mubr.bf16.gmra.mrb[0].mxu0 %v2793
  %v3533 = vpop.f32.mrb[0].mxu0
  %v3534 = vadd.f32 0.0, %v3533
  %v3535 = vpop.f32.mrb[0].mxu0
  %v3536 = vpop.f32.mrb[0].mxu0
  %v3537 = vadd.f32 0.0, %v3536
  %v3538 = vpop.f32.mrb[0].mxu0
  %3539 = vdwg.mxu0
  %s3540 = scalar_lea.vmem %s9, 104
  %v3541 = vld [vmem:[%s3540] sm:$0xf]
  %v3542 = vld [vmem:[%s3540 + $0x4] sm:$0xf]
  %v3545 = vunpack.c.l.b16 %v3541
  %v3546 = vunpack.c.l.b16 %v3542
  %v3547 = vpack.c.b16 %v3546, %v3545
  %3549 = vmatprep.subr.bf16.mxu0 0
  %3550 = vmatpush1.bf16.msra.mxu0 %v3547
  %3551 = vmatprep.subr.bf16.mxu0 0
  %3552 = vmatpush1.bf16.msra.mxu0 0
  %3553 = vmatprep.subr.bf16.mxu0 0
  %3554 = vmatpush1.bf16.msra.mxu0 0
  %3555 = vmatprep.subr.bf16.mxu0 0
  %3556 = vmatpush1.bf16.msra.mxu0 0
  %3557 = vmatprep.subr.bf16.mxu0 0
  %3558 = vmatpush1.bf16.msra.mxu0 0
  %3559 = vmatprep.subr.bf16.mxu0 0
  %3560 = vmatpush1.bf16.msra.mxu0 0
  %3561 = vmatprep.subr.bf16.mxu0 0
  %3562 = vmatpush1.bf16.msra.mxu0 0
  %3563 = vmatprep.subr.bf16.mxu0 0
  %3564 = vmatpush1.bf16.msra.mxu0 0
  %3565 = vmatprep.subr.bf16.mxu0 0
  %3566 = vmatpush1.bf16.msra.mxu0 0
  %3567 = vmatprep.subr.bf16.mxu0 0
  %3568 = vmatpush1.bf16.msra.mxu0 0
  %3569 = vmatprep.subr.bf16.mxu0 0
  %3570 = vmatpush1.bf16.msra.mxu0 0
  %3571 = vmatprep.subr.bf16.mxu0 0
  %3572 = vmatpush1.bf16.msra.mxu0 0
  %3573 = vmatprep.subr.bf16.mxu0 0
  %3574 = vmatpush1.bf16.msra.mxu0 0
  %3575 = vmatprep.subr.bf16.mxu0 0
  %3576 = vmatpush1.bf16.msra.mxu0 0
  %3577 = vmatprep.subr.bf16.mxu0 0
  %3578 = vmatpush1.bf16.msra.mxu0 0
  %3579 = vmatprep.subr.bf16.mxu0 0
  %3580 = vmatpush1.bf16.msra.mxu0 0
  %3581 = vmatprep.mubr.bf16.mxu0 0
  %3582 = vmatmul.mubr.bf16.gmra.mrb[0].mxu0 %v2790
  %v3583 = vpop.f32.mrb[0].mxu0
  %v3584 = vadd.f32 0.0, %v3583
  %v3585 = vpop.f32.mrb[0].mxu0
  %v3586 = vpop.f32.mrb[0].mxu0
  %v3587 = vadd.f32 0.0, %v3586
  %v3588 = vpop.f32.mrb[0].mxu0
  %3589 = vmatprep.mubr.bf16.mxu0 0
  %3590 = vmatmul.mubr.bf16.gmra.mrb[0].mxu0 %v2793
  %v3591 = vpop.f32.mrb[0].mxu0
  %v3592 = vadd.f32 0.0, %v3591
  %v3593 = vpop.f32.mrb[0].mxu0
  %v3594 = vpop.f32.mrb[0].mxu0
  %v3595 = vadd.f32 0.0, %v3594
  %v3596 = vpop.f32.mrb[0].mxu0
  %3597 = vdwg.mxu0
  %s3598 = scalar_lea.vmem %s9, 112
  %v3599 = vld [vmem:[%s3598] sm:$0xf]
  %v3600 = vld [vmem:[%s3598 + $0x4] sm:$0xf]
  %v3603 = vunpack.c.l.b16 %v3599
  %v3604 = vunpack.c.l.b16 %v3600
  %v3605 = vpack.c.b16 %v3604, %v3603
  %3607 = vmatprep.subr.bf16.mxu0 0
  %3608 = vmatpush1.bf16.msra.mxu0 %v3605
  %3609 = vmatprep.subr.bf16.mxu0 0
  %3610 = vmatpush1.bf16.msra.mxu0 0
  %3611 = vmatprep.subr.bf16.mxu0 0
  %3612 = vmatpush1.bf16.msra.mxu0 0
  %3613 = vmatprep.subr.bf16.mxu0 0
  %3614 = vmatpush1.bf16.msra.mxu0 0
  %3615 = vmatprep.subr.bf16.mxu0 0
  %3616 = vmatpush1.bf16.msra.mxu0 0
  %3617 = vmatprep.subr.bf16.mxu0 0
  %3618 = vmatpush1.bf16.msra.mxu0 0
  %3619 = vmatprep.subr.bf16.mxu0 0
  %3620 = vmatpush1.bf16.msra.mxu0 0
  %3621 = vmatprep.subr.bf16.mxu0 0
  %3622 = vmatpush1.bf16.msra.mxu0 0
  %3623 = vmatprep.subr.bf16.mxu0 0
  %3624 = vmatpush1.bf16.msra.mxu0 0
  %3625 = vmatprep.subr.bf16.mxu0 0
  %3626 = vmatpush1.bf16.msra.mxu0 0
  %3627 = vmatprep.subr.bf16.mxu0 0
  %3628 = vmatpush1.bf16.msra.mxu0 0
  %3629 = vmatprep.subr.bf16.mxu0 0
  %3630 = vmatpush1.bf16.msra.mxu0 0
  %3631 = vmatprep.subr.bf16.mxu0 0
  %3632 = vmatpush1.bf16.msra.mxu0 0
  %3633 = vmatprep.subr.bf16.mxu0 0
  %3634 = vmatpush1.bf16.msra.mxu0 0
  %3635 = vmatprep.subr.bf16.mxu0 0
  %3636 = vmatpush1.bf16.msra.mxu0 0
  %3637 = vmatprep.subr.bf16.mxu0 0
  %3638 = vmatpush1.bf16.msra.mxu0 0
  %3639 = vmatprep.mubr.bf16.mxu0 0
  %3640 = vmatmul.mubr.bf16.gmra.mrb[0].mxu0 %v2790
  %v3641 = vpop.f32.mrb[0].mxu0
  %v3642 = vadd.f32 0.0, %v3641
  %v3643 = vpop.f32.mrb[0].mxu0
  %v3644 = vpop.f32.mrb[0].mxu0
  %v3645 = vadd.f32 0.0, %v3644
  %v3646 = vpop.f32.mrb[0].mxu0
  %3647 = vmatprep.mubr.bf16.mxu0 0
  %3648 = vmatmul.mubr.bf16.gmra.mrb[0].mxu0 %v2793
  %v3649 = vpop.f32.mrb[0].mxu0
  %v3650 = vadd.f32 0.0, %v3649
  %v3651 = vpop.f32.mrb[0].mxu0
  %v3652 = vpop.f32.mrb[0].mxu0
  %v3653 = vadd.f32 0.0, %v3652
  %v3654 = vpop.f32.mrb[0].mxu0
  %3655 = vdwg.mxu0
  %s3656 = scalar_lea.vmem %s9, 120
  %v3657 = vld [vmem:[%s3656] sm:$0xf]
  %v3658 = vld [vmem:[%s3656 + $0x4] sm:$0xf]
  %v3661 = vunpack.c.l.b16 %v3657
  %v3662 = vunpack.c.l.b16 %v3658
  %v3663 = vpack.c.b16 %v3662, %v3661
  %3665 = vmatprep.subr.bf16.mxu0 0
  %3666 = vmatpush1.bf16.msra.mxu0 %v3663
  %3667 = vmatprep.subr.bf16.mxu0 0
  %3668 = vmatpush1.bf16.msra.mxu0 0
  %3669 = vmatprep.subr.bf16.mxu0 0
  %3670 = vmatpush1.bf16.msra.mxu0 0
  %3671 = vmatprep.subr.bf16.mxu0 0
  %3672 = vmatpush1.bf16.msra.mxu0 0
  %3673 = vmatprep.subr.bf16.mxu0 0
  %3674 = vmatpush1.bf16.msra.mxu0 0
  %3675 = vmatprep.subr.bf16.mxu0 0
  %3676 = vmatpush1.bf16.msra.mxu0 0
  %3677 = vmatprep.subr.bf16.mxu0 0
  %3678 = vmatpush1.bf16.msra.mxu0 0
  %3679 = vmatprep.subr.bf16.mxu0 0
  %3680 = vmatpush1.bf16.msra.mxu0 0
  %3681 = vmatprep.subr.bf16.mxu0 0
  %3682 = vmatpush1.bf16.msra.mxu0 0
  %3683 = vmatprep.subr.bf16.mxu0 0
  %3684 = vmatpush1.bf16.msra.mxu0 0
  %3685 = vmatprep.subr.bf16.mxu0 0
  %3686 = vmatpush1.bf16.msra.mxu0 0
  %3687 = vmatprep.subr.bf16.mxu0 0
  %3688 = vmatpush1.bf16.msra.mxu0 0
  %3689 = vmatprep.subr.bf16.mxu0 0
  %3690 = vmatpush1.bf16.msra.mxu0 0
  %3691 = vmatprep.subr.bf16.mxu0 0
  %3692 = vmatpush1.bf16.msra.mxu0 0
  %3693 = vmatprep.subr.bf16.mxu0 0
  %3694 = vmatpush1.bf16.msra.mxu0 0
  %3695 = vmatprep.subr.bf16.mxu0 0
  %3696 = vmatpush1.bf16.msra.mxu0 0
  %3697 = vmatprep.mubr.bf16.mxu0 0
  %3698 = vmatmul.mubr.bf16.gmra.mrb[0].mxu0 %v2790
  %v3699 = vpop.f32.mrb[0].mxu0
  %v3700 = vadd.f32 0.0, %v3699
  %v3701 = vpop.f32.mrb[0].mxu0
  %v3702 = vpop.f32.mrb[0].mxu0
  %v3703 = vadd.f32 0.0, %v3702
  %v3704 = vpop.f32.mrb[0].mxu0
  %3705 = vmatprep.mubr.bf16.mxu0 0
  %3706 = vmatmul.mubr.bf16.gmra.mrb[0].mxu0 %v2793
  %v3707 = vpop.f32.mrb[0].mxu0
  %v3708 = vadd.f32 0.0, %v3707
  %v3709 = vpop.f32.mrb[0].mxu0
  %v3710 = vpop.f32.mrb[0].mxu0
  %v3711 = vadd.f32 0.0, %v3710
  %v3712 = vpop.f32.mrb[0].mxu0
  %3713 = vdwg.mxu0
  %v3714 = vpack.c.bf16 %v2833, %v2830
  %v3715 = vpack.c.bf16 %v2841, %v2838
  %v3716 = vpack.c.bf16 %v2891, %v2888
  %v3717 = vpack.c.bf16 %v2899, %v2896
  %v3718 = vpack.c.bf16 %v2949, %v2946
  %v3719 = vpack.c.bf16 %v2957, %v2954
  %v3720 = vpack.c.bf16 %v3007, %v3004
  %v3721 = vpack.c.bf16 %v3015, %v3012
  %v3722 = vpack.c.bf16 %v3065, %v3062
  %v3723 = vpack.c.bf16 %v3073, %v3070
  %v3724 = vpack.c.bf16 %v3123, %v3120
  %v3725 = vpack.c.bf16 %v3131, %v3128
  %v3726 = vpack.c.bf16 %v3181, %v3178
  %v3727 = vpack.c.bf16 %v3189, %v3186
  %v3728 = vpack.c.bf16 %v3239, %v3236
  %v3729 = vpack.c.bf16 %v3247, %v3244
  %v3730 = vpack.c.bf16 %v3297, %v3294
  %v3731 = vpack.c.bf16 %v3305, %v3302
  %v3732 = vpack.c.bf16 %v3355, %v3352
  %v3733 = vpack.c.bf16 %v3363, %v3360
  %v3734 = vpack.c.bf16 %v3413, %v3410
  %v3735 = vpack.c.bf16 %v3421, %v3418
  %v3736 = vpack.c.bf16 %v3471, %v3468
  %v3737 = vpack.c.bf16 %v3479, %v3476
  %v3738 = vpack.c.bf16 %v3529, %v3526
  %v3739 = vpack.c.bf16 %v3537, %v3534
  %v3740 = vpack.c.bf16 %v3587, %v3584
  %v3741 = vpack.c.bf16 %v3595, %v3592
  %v3742 = vpack.c.bf16 %v3645, %v3642
  %v3743 = vpack.c.bf16 %v3653, %v3650
  %v3744 = vpack.c.bf16 %v3703, %v3700
  %v3745 = vpack.c.bf16 %v3711, %v3708
  %v3762 = vunpack.c.l.b16 %v2755
  %v3763 = vunpack.c.h.b16 %v2755
  %v3764 = vunpack.c.l.b16 %v2756
  %v3765 = vunpack.c.h.b16 %v2756
  %v3766 = vunpack.c.l.b16 %v2757
  %v3767 = vunpack.c.h.b16 %v2757
  %v3768 = vunpack.c.l.b16 %v2758
  %v3769 = vunpack.c.h.b16 %v2758
  %v3770 = vunpack.c.l.b16 %v2759
  %v3771 = vunpack.c.h.b16 %v2759
  %v3772 = vunpack.c.l.b16 %v2760
  %v3773 = vunpack.c.h.b16 %v2760
  %v3774 = vunpack.c.l.b16 %v2761
  %v3775 = vunpack.c.h.b16 %v2761
  %v3776 = vunpack.c.l.b16 %v2762
  %v3777 = vunpack.c.h.b16 %v2762
  %v3778 = vunpack.c.l.b16 %v2763
  %v3779 = vunpack.c.h.b16 %v2763
  %v3780 = vunpack.c.l.b16 %v2764
  %v3781 = vunpack.c.h.b16 %v2764
  %v3782 = vunpack.c.l.b16 %v2765
  %v3783 = vunpack.c.h.b16 %v2765
  %v3784 = vunpack.c.l.b16 %v2766
  %v3785 = vunpack.c.h.b16 %v2766
  %v3786 = vunpack.c.l.b16 %v2767
  %v3787 = vunpack.c.h.b16 %v2767
  %v3788 = vunpack.c.l.b16 %v2768
  %v3789 = vunpack.c.h.b16 %v2768
  %v3790 = vunpack.c.l.b16 %v2769
  %v3791 = vunpack.c.h.b16 %v2769
  %v3792 = vunpack.c.l.b16 %v2770
  %v3793 = vunpack.c.h.b16 %v2770
  %v3794 = vpack.c.b16 %v3766, %v3762
  %v3795 = vpack.c.b16 %v3767, %v3763
  %v3796 = vpack.c.b16 %v3768, %v3764
  %v3797 = vpack.c.b16 %v3769, %v3765
  %v3798 = vpack.c.b16 %v3774, %v3770
  %v3799 = vpack.c.b16 %v3775, %v3771
  %v3800 = vpack.c.b16 %v3776, %v3772
  %v3801 = vpack.c.b16 %v3777, %v3773
  %v3802 = vpack.c.b16 %v3782, %v3778
  %v3803 = vpack.c.b16 %v3783, %v3779
  %v3804 = vpack.c.b16 %v3784, %v3780
  %v3805 = vpack.c.b16 %v3785, %v3781
  %v3806 = vpack.c.b16 %v3790, %v3786
  %v3807 = vpack.c.b16 %v3791, %v3787
  %v3808 = vpack.c.b16 %v3792, %v3788
  %v3809 = vpack.c.b16 %v3793, %v3789
  %3826 = vmatprep.subr.bf16.mxu0 0
  %3827 = vmatpush1.bf16.msra.mxu0 %v3714
  %3828 = vmatprep.subr.bf16.mxu0 0
  %3829 = vmatpush1.bf16.msra.mxu0 %v3715
  %3830 = vmatprep.subr.bf16.mxu0 0
  %3831 = vmatpush1.bf16.msra.mxu0 %v3716
  %3832 = vmatprep.subr.bf16.mxu0 0
  %3833 = vmatpush1.bf16.msra.mxu0 %v3717
  %3834 = vmatprep.subr.bf16.mxu0 0
  %3835 = vmatpush1.bf16.msra.mxu0 %v3718
  %3836 = vmatprep.subr.bf16.mxu0 0
  %3837 = vmatpush1.bf16.msra.mxu0 %v3719
  %3838 = vmatprep.subr.bf16.mxu0 0
  %3839 = vmatpush1.bf16.msra.mxu0 %v3720
  %3840 = vmatprep.subr.bf16.mxu0 0
  %3841 = vmatpush1.bf16.msra.mxu0 %v3721
  %3842 = vmatprep.subr.bf16.mxu0 0
  %3843 = vmatpush1.bf16.msra.mxu0 %v3722
  %3844 = vmatprep.subr.bf16.mxu0 0
  %3845 = vmatpush1.bf16.msra.mxu0 %v3723
  %3846 = vmatprep.subr.bf16.mxu0 0
  %3847 = vmatpush1.bf16.msra.mxu0 %v3724
  %3848 = vmatprep.subr.bf16.mxu0 0
  %3849 = vmatpush1.bf16.msra.mxu0 %v3725
  %3850 = vmatprep.subr.bf16.mxu0 0
  %3851 = vmatpush1.bf16.msra.mxu0 %v3726
  %3852 = vmatprep.subr.bf16.mxu0 0
  %3853 = vmatpush1.bf16.msra.mxu0 %v3727
  %3854 = vmatprep.subr.bf16.mxu0 0
  %3855 = vmatpush1.bf16.msra.mxu0 %v3728
  %3856 = vmatprep.subr.bf16.mxu0 0
  %3857 = vmatpush1.bf16.msra.mxu0 %v3729
  %3858 = vmatprep.mubr.bf16.mxu0 %v3795
  %3859 = vmatmul.mubr.bf16.gmra.mrb[0].mxu0 %v3794
  %v3860 = vpop.f32.mrb[0].mxu0
  %v3861 = vadd.f32 %v2771, %v3860
  %v3862 = vpop.f32.mrb[0].mxu0
  %v3863 = vpop.f32.mrb[0].mxu0
  %v3864 = vadd.f32 %v2772, %v3863
  %v3865 = vpop.f32.mrb[0].mxu0
  %3866 = vmatprep.mubr.bf16.mxu0 %v3799
  %3867 = vmatmul.mubr.bf16.gmra.mrb[0].mxu0 %v3798
  %v3868 = vpop.f32.mrb[0].mxu0
  %v3869 = vadd.f32 %v2773, %v3868
  %v3870 = vpop.f32.mrb[0].mxu0
  %v3871 = vpop.f32.mrb[0].mxu0
  %v3872 = vadd.f32 %v2774, %v3871
  %v3873 = vpop.f32.mrb[0].mxu0
  %3874 = vmatprep.mubr.bf16.mxu0 %v3803
  %3875 = vmatmul.mubr.bf16.gmra.mrb[0].mxu0 %v3802
  %v3876 = vpop.f32.mrb[0].mxu0
  %v3877 = vadd.f32 %v2775, %v3876
  %v3878 = vpop.f32.mrb[0].mxu0
  %v3879 = vpop.f32.mrb[0].mxu0
  %v3880 = vadd.f32 %v2776, %v3879
  %v3881 = vpop.f32.mrb[0].mxu0
  %3882 = vmatprep.mubr.bf16.mxu0 %v3807
  %3883 = vmatmul.mubr.bf16.gmra.mrb[0].mxu0 %v3806
  %v3884 = vpop.f32.mrb[0].mxu0
  %v3885 = vadd.f32 %v2777, %v3884
  %v3886 = vpop.f32.mrb[0].mxu0
  %v3887 = vpop.f32.mrb[0].mxu0
  %v3888 = vadd.f32 %v2778, %v3887
  %v3889 = vpop.f32.mrb[0].mxu0
  %3890 = vdwg.mxu0
  %3891 = vmatprep.subr.bf16.mxu0 0
  %3892 = vmatpush1.bf16.msra.mxu0 %v3730
  %3893 = vmatprep.subr.bf16.mxu0 0
  %3894 = vmatpush1.bf16.msra.mxu0 %v3731
  %3895 = vmatprep.subr.bf16.mxu0 0
  %3896 = vmatpush1.bf16.msra.mxu0 %v3732
  %3897 = vmatprep.subr.bf16.mxu0 0
  %3898 = vmatpush1.bf16.msra.mxu0 %v3733
  %3899 = vmatprep.subr.bf16.mxu0 0
  %3900 = vmatpush1.bf16.msra.mxu0 %v3734
  %3901 = vmatprep.subr.bf16.mxu0 0
  %3902 = vmatpush1.bf16.msra.mxu0 %v3735
  %3903 = vmatprep.subr.bf16.mxu0 0
  %3904 = vmatpush1.bf16.msra.mxu0 %v3736
  %3905 = vmatprep.subr.bf16.mxu0 0
  %3906 = vmatpush1.bf16.msra.mxu0 %v3737
  %3907 = vmatprep.subr.bf16.mxu0 0
  %3908 = vmatpush1.bf16.msra.mxu0 %v3738
  %3909 = vmatprep.subr.bf16.mxu0 0
  %3910 = vmatpush1.bf16.msra.mxu0 %v3739
  %3911 = vmatprep.subr.bf16.mxu0 0
  %3912 = vmatpush1.bf16.msra.mxu0 %v3740
  %3913 = vmatprep.subr.bf16.mxu0 0
  %3914 = vmatpush1.bf16.msra.mxu0 %v3741
  %3915 = vmatprep.subr.bf16.mxu0 0
  %3916 = vmatpush1.bf16.msra.mxu0 %v3742
  %3917 = vmatprep.subr.bf16.mxu0 0
  %3918 = vmatpush1.bf16.msra.mxu0 %v3743
  %3919 = vmatprep.subr.bf16.mxu0 0
  %3920 = vmatpush1.bf16.msra.mxu0 %v3744
  %3921 = vmatprep.subr.bf16.mxu0 0
  %3922 = vmatpush1.bf16.msra.mxu0 %v3745
  %3923 = vmatprep.mubr.bf16.mxu0 %v3797
  %3924 = vmatmul.mubr.bf16.gmra.mrb[0].mxu0 %v3796
  %v3925 = vpop.f32.mrb[0].mxu0
  %v3926 = vadd.f32 %v3861, %v3925
  %v3927 = vpop.f32.mrb[0].mxu0
  %v3928 = vpop.f32.mrb[0].mxu0
  %v3929 = vadd.f32 %v3864, %v3928
  %v3930 = vpop.f32.mrb[0].mxu0
  %3931 = vmatprep.mubr.bf16.mxu0 %v3801
  %3932 = vmatmul.mubr.bf16.gmra.mrb[0].mxu0 %v3800
  %v3933 = vpop.f32.mrb[0].mxu0
  %v3934 = vadd.f32 %v3869, %v3933
  %v3935 = vpop.f32.mrb[0].mxu0
  %v3936 = vpop.f32.mrb[0].mxu0
  %v3937 = vadd.f32 %v3872, %v3936
  %v3938 = vpop.f32.mrb[0].mxu0
  %3939 = vmatprep.mubr.bf16.mxu0 %v3805
  %3940 = vmatmul.mubr.bf16.gmra.mrb[0].mxu0 %v3804
  %v3941 = vpop.f32.mrb[0].mxu0
  %v3942 = vadd.f32 %v3877, %v3941
  %v3943 = vpop.f32.mrb[0].mxu0
  %v3944 = vpop.f32.mrb[0].mxu0
  %v3945 = vadd.f32 %v3880, %v3944
  %v3946 = vpop.f32.mrb[0].mxu0
  %3947 = vmatprep.mubr.bf16.mxu0 %v3809
  %3948 = vmatmul.mubr.bf16.gmra.mrb[0].mxu0 %v3808
  %v3949 = vpop.f32.mrb[0].mxu0
  %v3950 = vadd.f32 %v3885, %v3949
  %v3951 = vpop.f32.mrb[0].mxu0
  %v3952 = vpop.f32.mrb[0].mxu0
  %v3953 = vadd.f32 %v3888, %v3952
  %v3954 = vpop.f32.mrb[0].mxu0
  %3955 = vdwg.mxu0
  %v3956 = vld [vmem:[%s1] sm:$0xff]
  %v3957 = vld [vmem:[%s1 + $0x8] sm:$0xff]
  %v3958 = vld [vmem:[%s1 + $0x10] sm:$0xff]
  %v3959 = vld [vmem:[%s1 + $0x18] sm:$0xff]
  %v3960 = vmul.f32 %v3934, 0.5
  %v3961 = vmul.f32 %v3937, 0.5
  %v3962 = vmul.f32 %v3960, 1.442695
  %v3963 = vpow.pop %v3962
  %v3964 = vmul.f32 %v3961, 1.442695
  %v3965 = vpow.pop %v3964
  %v3966 = vmul.f32 %v3956, %v3963
  %v3967 = vmul.f32 %v3957, %v3965
  %v3968 = vadd.f32 %v3966, %v3926
  %v3969 = vadd.f32 %v3967, %v3929
  %v3970 = vmul.f32 %v3950, 0.5
  %v3971 = vmul.f32 %v3953, 0.5
  %v3972 = vmul.f32 %v3970, 1.442695
  %v3973 = vpow.pop %v3972
  %v3974 = vmul.f32 %v3971, 1.442695
  %v3975 = vpow.pop %v3974
  %v3976 = vmul.f32 %v3958, %v3973
  %v3977 = vmul.f32 %v3959, %v3975
  %v3978 = vadd.f32 %v3976, %v3942
  %v3979 = vadd.f32 %v3977, %v3945
  %v3980 = vld [vmem:[%s11] sm:$0xff]
  %v3981 = vld [vmem:[%s11 + $0x8] sm:$0xff]
  %v3982 = vld [vmem:[%s11 + $0x10] sm:$0xff]
  %v3983 = vld [vmem:[%s11 + $0x18] sm:$0xff]
  %v3984 = vld [vmem:[%s11 + $0x20] sm:$0xff]
  %v3985 = vld [vmem:[%s11 + $0x28] sm:$0xff]
  %v3986 = vld [vmem:[%s11 + $0x30] sm:$0xff]
  %v3987 = vld [vmem:[%s11 + $0x38] sm:$0xff]
  %v3988 = vld [vmem:[%s13] sm:$0xff]
  %v3989 = vld [vmem:[%s13 + $0x8] sm:$0xff]
  %v3990 = vld [vmem:[%s13 + $0x10] sm:$0xff]
  %v3991 = vld [vmem:[%s13 + $0x18] sm:$0xff]
  %v3992 = vld [vmem:[%s14] sm:$0xff]
  %v3993 = vld [vmem:[%s14 + $0x8] sm:$0xff]
  %v3994 = vld [vmem:[%s14 + $0x10] sm:$0xff]
  %v3995 = vld [vmem:[%s14 + $0x18] sm:$0xff]
  %v3996 = vpack.c.bf16 %v3969, %v3968
  %v3997 = vpack.c.bf16 %v3979, %v3978
  %v3998 = vld [vmem:[%s12] sm:$0x1]
  %vm3999 = vcmask 7168
  %v4001 = vsel %vm3999, %v3996, 0
  %v4004 = vsel %vm3999, %v3997, 0
  %vm4006 = vcmask 1040384
  %v4007 = vsel 0, 4294967295, 65535
  %v4008 = vsel %vm4006, %v4007, 0
  %v4010 = vand.u32 %v3998, %v4008
  %4012 = vmatprep.subr.bf16.mxu0 0
  %4013 = vmatpush1.bf16.msra.mxu0 %v4010
  %4014 = vmatprep.subr.bf16.mxu0 0
  %4015 = vmatpush1.bf16.msra.mxu0 0
  %4016 = vmatprep.subr.bf16.mxu0 0
  %4017 = vmatpush1.bf16.msra.mxu0 0
  %4018 = vmatprep.subr.bf16.mxu0 0
  %4019 = vmatpush1.bf16.msra.mxu0 0
  %4020 = vmatprep.subr.bf16.mxu0 0
  %4021 = vmatpush1.bf16.msra.mxu0 0
  %4022 = vmatprep.subr.bf16.mxu0 0
  %4023 = vmatpush1.bf16.msra.mxu0 0
  %4024 = vmatprep.subr.bf16.mxu0 0
  %4025 = vmatpush1.bf16.msra.mxu0 0
  %4026 = vmatprep.subr.bf16.mxu0 0
  %4027 = vmatpush1.bf16.msra.mxu0 0
  %4028 = vmatprep.subr.bf16.mxu0 0
  %4029 = vmatpush1.bf16.msra.mxu0 0
  %4030 = vmatprep.subr.bf16.mxu0 0
  %4031 = vmatpush1.bf16.msra.mxu0 0
  %4032 = vmatprep.subr.bf16.mxu0 0
  %4033 = vmatpush1.bf16.msra.mxu0 0
  %4034 = vmatprep.subr.bf16.mxu0 0
  %4035 = vmatpush1.bf16.msra.mxu0 0
  %4036 = vmatprep.subr.bf16.mxu0 0
  %4037 = vmatpush1.bf16.msra.mxu0 0
  %4038 = vmatprep.subr.bf16.mxu0 0
  %4039 = vmatpush1.bf16.msra.mxu0 0
  %4040 = vmatprep.subr.bf16.mxu0 0
  %4041 = vmatpush1.bf16.msra.mxu0 0
  %4042 = vmatprep.subr.bf16.mxu0 0
  %4043 = vmatpush1.bf16.msra.mxu0 0
  %4044 = vmatprep.mubr.bf16.mxu0 0
  %4045 = vmatmul.mubr.bf16.gmra.mrb[0].mxu0 %v4001
  %v4046 = vpop.f32.mrb[0].mxu0
  %v4047 = vadd.f32 0.0, %v4046
  %v4048 = vpop.f32.mrb[0].mxu0
  %v4049 = vpop.f32.mrb[0].mxu0
  %v4050 = vadd.f32 0.0, %v4049
  %v4051 = vpop.f32.mrb[0].mxu0
  %4052 = vmatprep.mubr.bf16.mxu0 0
  %4053 = vmatmul.mubr.bf16.gmra.mrb[0].mxu0 %v4004
  %v4054 = vpop.f32.mrb[0].mxu0
  %v4055 = vadd.f32 0.0, %v4054
  %v4056 = vpop.f32.mrb[0].mxu0
  %v4057 = vpop.f32.mrb[0].mxu0
  %v4058 = vadd.f32 0.0, %v4057
  %v4059 = vpop.f32.mrb[0].mxu0
  %4060 = vdwg.mxu0
  %s4061 = scalar_lea.vmem %s12, 1
  %v4062 = vld [vmem:[%s4061] sm:$0x1]
  %v4064 = vand.u32 %v4062, %v4008
  %4066 = vmatprep.subr.bf16.mxu0 0
  %4067 = vmatpush1.bf16.msra.mxu0 %v4064
  %4068 = vmatprep.subr.bf16.mxu0 0
  %4069 = vmatpush1.bf16.msra.mxu0 0
  %4070 = vmatprep.subr.bf16.mxu0 0
  %4071 = vmatpush1.bf16.msra.mxu0 0
  %4072 = vmatprep.subr.bf16.mxu0 0
  %4073 = vmatpush1.bf16.msra.mxu0 0
  %4074 = vmatprep.subr.bf16.mxu0 0
  %4075 = vmatpush1.bf16.msra.mxu0 0
  %4076 = vmatprep.subr.bf16.mxu0 0
  %4077 = vmatpush1.bf16.msra.mxu0 0
  %4078 = vmatprep.subr.bf16.mxu0 0
  %4079 = vmatpush1.bf16.msra.mxu0 0
  %4080 = vmatprep.subr.bf16.mxu0 0
  %4081 = vmatpush1.bf16.msra.mxu0 0
  %4082 = vmatprep.subr.bf16.mxu0 0
  %4083 = vmatpush1.bf16.msra.mxu0 0
  %4084 = vmatprep.subr.bf16.mxu0 0
  %4085 = vmatpush1.bf16.msra.mxu0 0
  %4086 = vmatprep.subr.bf16.mxu0 0
  %4087 = vmatpush1.bf16.msra.mxu0 0
  %4088 = vmatprep.subr.bf16.mxu0 0
  %4089 = vmatpush1.bf16.msra.mxu0 0
  %4090 = vmatprep.subr.bf16.mxu0 0
  %4091 = vmatpush1.bf16.msra.mxu0 0
  %4092 = vmatprep.subr.bf16.mxu0 0
  %4093 = vmatpush1.bf16.msra.mxu0 0
  %4094 = vmatprep.subr.bf16.mxu0 0
  %4095 = vmatpush1.bf16.msra.mxu0 0
  %4096 = vmatprep.subr.bf16.mxu0 0
  %4097 = vmatpush1.bf16.msra.mxu0 0
  %4098 = vmatprep.mubr.bf16.mxu0 0
  %4099 = vmatmul.mubr.bf16.gmra.mrb[0].mxu0 %v4001
  %v4100 = vpop.f32.mrb[0].mxu0
  %v4101 = vadd.f32 0.0, %v4100
  %v4102 = vpop.f32.mrb[0].mxu0
  %v4103 = vpop.f32.mrb[0].mxu0
  %v4104 = vadd.f32 0.0, %v4103
  %v4105 = vpop.f32.mrb[0].mxu0
  %4106 = vmatprep.mubr.bf16.mxu0 0
  %4107 = vmatmul.mubr.bf16.gmra.mrb[0].mxu0 %v4004
  %v4108 = vpop.f32.mrb[0].mxu0
  %v4109 = vadd.f32 0.0, %v4108
  %v4110 = vpop.f32.mrb[0].mxu0
  %v4111 = vpop.f32.mrb[0].mxu0
  %v4112 = vadd.f32 0.0, %v4111
  %v4113 = vpop.f32.mrb[0].mxu0
  %4114 = vdwg.mxu0
  %s4115 = scalar_lea.vmem %s12, 2
  %v4116 = vld [vmem:[%s4115] sm:$0x1]
  %v4118 = vand.u32 %v4116, %v4008
  %4120 = vmatprep.subr.bf16.mxu0 0
  %4121 = vmatpush1.bf16.msra.mxu0 %v4118
  %4122 = vmatprep.subr.bf16.mxu0 0
  %4123 = vmatpush1.bf16.msra.mxu0 0
  %4124 = vmatprep.subr.bf16.mxu0 0
  %4125 = vmatpush1.bf16.msra.mxu0 0
  %4126 = vmatprep.subr.bf16.mxu0 0
  %4127 = vmatpush1.bf16.msra.mxu0 0
  %4128 = vmatprep.subr.bf16.mxu0 0
  %4129 = vmatpush1.bf16.msra.mxu0 0
  %4130 = vmatprep.subr.bf16.mxu0 0
  %4131 = vmatpush1.bf16.msra.mxu0 0
  %4132 = vmatprep.subr.bf16.mxu0 0
  %4133 = vmatpush1.bf16.msra.mxu0 0
  %4134 = vmatprep.subr.bf16.mxu0 0
  %4135 = vmatpush1.bf16.msra.mxu0 0
  %4136 = vmatprep.subr.bf16.mxu0 0
  %4137 = vmatpush1.bf16.msra.mxu0 0
  %4138 = vmatprep.subr.bf16.mxu0 0
  %4139 = vmatpush1.bf16.msra.mxu0 0
  %4140 = vmatprep.subr.bf16.mxu0 0
  %4141 = vmatpush1.bf16.msra.mxu0 0
  %4142 = vmatprep.subr.bf16.mxu0 0
  %4143 = vmatpush1.bf16.msra.mxu0 0
  %4144 = vmatprep.subr.bf16.mxu0 0
  %4145 = vmatpush1.bf16.msra.mxu0 0
  %4146 = vmatprep.subr.bf16.mxu0 0
  %4147 = vmatpush1.bf16.msra.mxu0 0
  %4148 = vmatprep.subr.bf16.mxu0 0
  %4149 = vmatpush1.bf16.msra.mxu0 0
  %4150 = vmatprep.subr.bf16.mxu0 0
  %4151 = vmatpush1.bf16.msra.mxu0 0
  %4152 = vmatprep.mubr.bf16.mxu0 0
  %4153 = vmatmul.mubr.bf16.gmra.mrb[0].mxu0 %v4001
  %v4154 = vpop.f32.mrb[0].mxu0
  %v4155 = vadd.f32 0.0, %v4154
  %v4156 = vpop.f32.mrb[0].mxu0
  %v4157 = vpop.f32.mrb[0].mxu0
  %v4158 = vadd.f32 0.0, %v4157
  %v4159 = vpop.f32.mrb[0].mxu0
  %4160 = vmatprep.mubr.bf16.mxu0 0
  %4161 = vmatmul.mubr.bf16.gmra.mrb[0].mxu0 %v4004
  %v4162 = vpop.f32.mrb[0].mxu0
  %v4163 = vadd.f32 0.0, %v4162
  %v4164 = vpop.f32.mrb[0].mxu0
  %v4165 = vpop.f32.mrb[0].mxu0
  %v4166 = vadd.f32 0.0, %v4165
  %v4167 = vpop.f32.mrb[0].mxu0
  %4168 = vdwg.mxu0
  %s4169 = scalar_lea.vmem %s12, 3
  %v4170 = vld [vmem:[%s4169] sm:$0x1]
  %v4172 = vand.u32 %v4170, %v4008
  %4174 = vmatprep.subr.bf16.mxu0 0
  %4175 = vmatpush1.bf16.msra.mxu0 %v4172
  %4176 = vmatprep.subr.bf16.mxu0 0
  %4177 = vmatpush1.bf16.msra.mxu0 0
  %4178 = vmatprep.subr.bf16.mxu0 0
  %4179 = vmatpush1.bf16.msra.mxu0 0
  %4180 = vmatprep.subr.bf16.mxu0 0
  %4181 = vmatpush1.bf16.msra.mxu0 0
  %4182 = vmatprep.subr.bf16.mxu0 0
  %4183 = vmatpush1.bf16.msra.mxu0 0
  %4184 = vmatprep.subr.bf16.mxu0 0
  %4185 = vmatpush1.bf16.msra.mxu0 0
  %4186 = vmatprep.subr.bf16.mxu0 0
  %4187 = vmatpush1.bf16.msra.mxu0 0
  %4188 = vmatprep.subr.bf16.mxu0 0
  %4189 = vmatpush1.bf16.msra.mxu0 0
  %4190 = vmatprep.subr.bf16.mxu0 0
  %4191 = vmatpush1.bf16.msra.mxu0 0
  %4192 = vmatprep.subr.bf16.mxu0 0
  %4193 = vmatpush1.bf16.msra.mxu0 0
  %4194 = vmatprep.subr.bf16.mxu0 0
  %4195 = vmatpush1.bf16.msra.mxu0 0
  %4196 = vmatprep.subr.bf16.mxu0 0
  %4197 = vmatpush1.bf16.msra.mxu0 0
  %4198 = vmatprep.subr.bf16.mxu0 0
  %4199 = vmatpush1.bf16.msra.mxu0 0
  %4200 = vmatprep.subr.bf16.mxu0 0
  %4201 = vmatpush1.bf16.msra.mxu0 0
  %4202 = vmatprep.subr.bf16.mxu0 0
  %4203 = vmatpush1.bf16.msra.mxu0 0
  %4204 = vmatprep.subr.bf16.mxu0 0
  %4205 = vmatpush1.bf16.msra.mxu0 0
  %4206 = vmatprep.mubr.bf16.mxu0 0
  %4207 = vmatmul.mubr.bf16.gmra.mrb[0].mxu0 %v4001
  %v4208 = vpop.f32.mrb[0].mxu0
  %v4209 = vadd.f32 0.0, %v4208
  %v4210 = vpop.f32.mrb[0].mxu0
  %v4211 = vpop.f32.mrb[0].mxu0
  %v4212 = vadd.f32 0.0, %v4211
  %v4213 = vpop.f32.mrb[0].mxu0
  %4214 = vmatprep.mubr.bf16.mxu0 0
  %4215 = vmatmul.mubr.bf16.gmra.mrb[0].mxu0 %v4004
  %v4216 = vpop.f32.mrb[0].mxu0
  %v4217 = vadd.f32 0.0, %v4216
  %v4218 = vpop.f32.mrb[0].mxu0
  %v4219 = vpop.f32.mrb[0].mxu0
  %v4220 = vadd.f32 0.0, %v4219
  %v4221 = vpop.f32.mrb[0].mxu0
  %4222 = vdwg.mxu0
  %s4223 = scalar_lea.vmem %s12, 4
  %v4224 = vld [vmem:[%s4223] sm:$0x1]
  %v4226 = vand.u32 %v4224, %v4008
  %4228 = vmatprep.subr.bf16.mxu0 0
  %4229 = vmatpush1.bf16.msra.mxu0 %v4226
  %4230 = vmatprep.subr.bf16.mxu0 0
  %4231 = vmatpush1.bf16.msra.mxu0 0
  %4232 = vmatprep.subr.bf16.mxu0 0
  %4233 = vmatpush1.bf16.msra.mxu0 0
  %4234 = vmatprep.subr.bf16.mxu0 0
  %4235 = vmatpush1.bf16.msra.mxu0 0
  %4236 = vmatprep.subr.bf16.mxu0 0
  %4237 = vmatpush1.bf16.msra.mxu0 0
  %4238 = vmatprep.subr.bf16.mxu0 0
  %4239 = vmatpush1.bf16.msra.mxu0 0
  %4240 = vmatprep.subr.bf16.mxu0 0
  %4241 = vmatpush1.bf16.msra.mxu0 0
  %4242 = vmatprep.subr.bf16.mxu0 0
  %4243 = vmatpush1.bf16.msra.mxu0 0
  %4244 = vmatprep.subr.bf16.mxu0 0
  %4245 = vmatpush1.bf16.msra.mxu0 0
  %4246 = vmatprep.subr.bf16.mxu0 0
  %4247 = vmatpush1.bf16.msra.mxu0 0
  %4248 = vmatprep.subr.bf16.mxu0 0
  %4249 = vmatpush1.bf16.msra.mxu0 0
  %4250 = vmatprep.subr.bf16.mxu0 0
  %4251 = vmatpush1.bf16.msra.mxu0 0
  %4252 = vmatprep.subr.bf16.mxu0 0
  %4253 = vmatpush1.bf16.msra.mxu0 0
  %4254 = vmatprep.subr.bf16.mxu0 0
  %4255 = vmatpush1.bf16.msra.mxu0 0
  %4256 = vmatprep.subr.bf16.mxu0 0
  %4257 = vmatpush1.bf16.msra.mxu0 0
  %4258 = vmatprep.subr.bf16.mxu0 0
  %4259 = vmatpush1.bf16.msra.mxu0 0
  %4260 = vmatprep.mubr.bf16.mxu0 0
  %4261 = vmatmul.mubr.bf16.gmra.mrb[0].mxu0 %v4001
  %v4262 = vpop.f32.mrb[0].mxu0
  %v4263 = vadd.f32 0.0, %v4262
  %v4264 = vpop.f32.mrb[0].mxu0
  %v4265 = vpop.f32.mrb[0].mxu0
  %v4266 = vadd.f32 0.0, %v4265
  %v4267 = vpop.f32.mrb[0].mxu0
  %4268 = vmatprep.mubr.bf16.mxu0 0
  %4269 = vmatmul.mubr.bf16.gmra.mrb[0].mxu0 %v4004
  %v4270 = vpop.f32.mrb[0].mxu0
  %v4271 = vadd.f32 0.0, %v4270
  %v4272 = vpop.f32.mrb[0].mxu0
  %v4273 = vpop.f32.mrb[0].mxu0
  %v4274 = vadd.f32 0.0, %v4273
  %v4275 = vpop.f32.mrb[0].mxu0
  %4276 = vdwg.mxu0
  %s4277 = scalar_lea.vmem %s12, 5
  %v4278 = vld [vmem:[%s4277] sm:$0x1]
  %v4280 = vand.u32 %v4278, %v4008
  %4282 = vmatprep.subr.bf16.mxu0 0
  %4283 = vmatpush1.bf16.msra.mxu0 %v4280
  %4284 = vmatprep.subr.bf16.mxu0 0
  %4285 = vmatpush1.bf16.msra.mxu0 0
  %4286 = vmatprep.subr.bf16.mxu0 0
  %4287 = vmatpush1.bf16.msra.mxu0 0
  %4288 = vmatprep.subr.bf16.mxu0 0
  %4289 = vmatpush1.bf16.msra.mxu0 0
  %4290 = vmatprep.subr.bf16.mxu0 0
  %4291 = vmatpush1.bf16.msra.mxu0 0
  %4292 = vmatprep.subr.bf16.mxu0 0
  %4293 = vmatpush1.bf16.msra.mxu0 0
  %4294 = vmatprep.subr.bf16.mxu0 0
  %4295 = vmatpush1.bf16.msra.mxu0 0
  %4296 = vmatprep.subr.bf16.mxu0 0
  %4297 = vmatpush1.bf16.msra.mxu0 0
  %4298 = vmatprep.subr.bf16.mxu0 0
  %4299 = vmatpush1.bf16.msra.mxu0 0
  %4300 = vmatprep.subr.bf16.mxu0 0
  %4301 = vmatpush1.bf16.msra.mxu0 0
  %4302 = vmatprep.subr.bf16.mxu0 0
  %4303 = vmatpush1.bf16.msra.mxu0 0
  %4304 = vmatprep.subr.bf16.mxu0 0
  %4305 = vmatpush1.bf16.msra.mxu0 0
  %4306 = vmatprep.subr.bf16.mxu0 0
  %4307 = vmatpush1.bf16.msra.mxu0 0
  %4308 = vmatprep.subr.bf16.mxu0 0
  %4309 = vmatpush1.bf16.msra.mxu0 0
  %4310 = vmatprep.subr.bf16.mxu0 0
  %4311 = vmatpush1.bf16.msra.mxu0 0
  %4312 = vmatprep.subr.bf16.mxu0 0
  %4313 = vmatpush1.bf16.msra.mxu0 0
  %4314 = vmatprep.mubr.bf16.mxu0 0
  %4315 = vmatmul.mubr.bf16.gmra.mrb[0].mxu0 %v4001
  %v4316 = vpop.f32.mrb[0].mxu0
  %v4317 = vadd.f32 0.0, %v4316
  %v4318 = vpop.f32.mrb[0].mxu0
  %v4319 = vpop.f32.mrb[0].mxu0
  %v4320 = vadd.f32 0.0, %v4319
  %v4321 = vpop.f32.mrb[0].mxu0
  %4322 = vmatprep.mubr.bf16.mxu0 0
  %4323 = vmatmul.mubr.bf16.gmra.mrb[0].mxu0 %v4004
  %v4324 = vpop.f32.mrb[0].mxu0
  %v4325 = vadd.f32 0.0, %v4324
  %v4326 = vpop.f32.mrb[0].mxu0
  %v4327 = vpop.f32.mrb[0].mxu0
  %v4328 = vadd.f32 0.0, %v4327
  %v4329 = vpop.f32.mrb[0].mxu0
  %4330 = vdwg.mxu0
  %s4331 = scalar_lea.vmem %s12, 6
  %v4332 = vld [vmem:[%s4331] sm:$0x1]
  %v4334 = vand.u32 %v4332, %v4008
  %4336 = vmatprep.subr.bf16.mxu0 0
  %4337 = vmatpush1.bf16.msra.mxu0 %v4334
  %4338 = vmatprep.subr.bf16.mxu0 0
  %4339 = vmatpush1.bf16.msra.mxu0 0
  %4340 = vmatprep.subr.bf16.mxu0 0
  %4341 = vmatpush1.bf16.msra.mxu0 0
  %4342 = vmatprep.subr.bf16.mxu0 0
  %4343 = vmatpush1.bf16.msra.mxu0 0
  %4344 = vmatprep.subr.bf16.mxu0 0
  %4345 = vmatpush1.bf16.msra.mxu0 0
  %4346 = vmatprep.subr.bf16.mxu0 0
  %4347 = vmatpush1.bf16.msra.mxu0 0
  %4348 = vmatprep.subr.bf16.mxu0 0
  %4349 = vmatpush1.bf16.msra.mxu0 0
  %4350 = vmatprep.subr.bf16.mxu0 0
  %4351 = vmatpush1.bf16.msra.mxu0 0
  %4352 = vmatprep.subr.bf16.mxu0 0
  %4353 = vmatpush1.bf16.msra.mxu0 0
  %4354 = vmatprep.subr.bf16.mxu0 0
  %4355 = vmatpush1.bf16.msra.mxu0 0
  %4356 = vmatprep.subr.bf16.mxu0 0
  %4357 = vmatpush1.bf16.msra.mxu0 0
  %4358 = vmatprep.subr.bf16.mxu0 0
  %4359 = vmatpush1.bf16.msra.mxu0 0
  %4360 = vmatprep.subr.bf16.mxu0 0
  %4361 = vmatpush1.bf16.msra.mxu0 0
  %4362 = vmatprep.subr.bf16.mxu0 0
  %4363 = vmatpush1.bf16.msra.mxu0 0
  %4364 = vmatprep.subr.bf16.mxu0 0
  %4365 = vmatpush1.bf16.msra.mxu0 0
  %4366 = vmatprep.subr.bf16.mxu0 0
  %4367 = vmatpush1.bf16.msra.mxu0 0
  %4368 = vmatprep.mubr.bf16.mxu0 0
  %4369 = vmatmul.mubr.bf16.gmra.mrb[0].mxu0 %v4001
  %v4370 = vpop.f32.mrb[0].mxu0
  %v4371 = vadd.f32 0.0, %v4370
  %v4372 = vpop.f32.mrb[0].mxu0
  %v4373 = vpop.f32.mrb[0].mxu0
  %v4374 = vadd.f32 0.0, %v4373
  %v4375 = vpop.f32.mrb[0].mxu0
  %4376 = vmatprep.mubr.bf16.mxu0 0
  %4377 = vmatmul.mubr.bf16.gmra.mrb[0].mxu0 %v4004
  %v4378 = vpop.f32.mrb[0].mxu0
  %v4379 = vadd.f32 0.0, %v4378
  %v4380 = vpop.f32.mrb[0].mxu0
  %v4381 = vpop.f32.mrb[0].mxu0
  %v4382 = vadd.f32 0.0, %v4381
  %v4383 = vpop.f32.mrb[0].mxu0
  %4384 = vdwg.mxu0
  %s4385 = scalar_lea.vmem %s12, 7
  %v4386 = vld [vmem:[%s4385] sm:$0x1]
  %v4388 = vand.u32 %v4386, %v4008
  %4390 = vmatprep.subr.bf16.mxu0 0
  %4391 = vmatpush1.bf16.msra.mxu0 %v4388
  %4392 = vmatprep.subr.bf16.mxu0 0
  %4393 = vmatpush1.bf16.msra.mxu0 0
  %4394 = vmatprep.subr.bf16.mxu0 0
  %4395 = vmatpush1.bf16.msra.mxu0 0
  %4396 = vmatprep.subr.bf16.mxu0 0
  %4397 = vmatpush1.bf16.msra.mxu0 0
  %4398 = vmatprep.subr.bf16.mxu0 0
  %4399 = vmatpush1.bf16.msra.mxu0 0
  %4400 = vmatprep.subr.bf16.mxu0 0
  %4401 = vmatpush1.bf16.msra.mxu0 0
  %4402 = vmatprep.subr.bf16.mxu0 0
  %4403 = vmatpush1.bf16.msra.mxu0 0
  %4404 = vmatprep.subr.bf16.mxu0 0
  %4405 = vmatpush1.bf16.msra.mxu0 0
  %4406 = vmatprep.subr.bf16.mxu0 0
  %4407 = vmatpush1.bf16.msra.mxu0 0
  %4408 = vmatprep.subr.bf16.mxu0 0
  %4409 = vmatpush1.bf16.msra.mxu0 0
  %4410 = vmatprep.subr.bf16.mxu0 0
  %4411 = vmatpush1.bf16.msra.mxu0 0
  %4412 = vmatprep.subr.bf16.mxu0 0
  %4413 = vmatpush1.bf16.msra.mxu0 0
  %4414 = vmatprep.subr.bf16.mxu0 0
  %4415 = vmatpush1.bf16.msra.mxu0 0
  %4416 = vmatprep.subr.bf16.mxu0 0
  %4417 = vmatpush1.bf16.msra.mxu0 0
  %4418 = vmatprep.subr.bf16.mxu0 0
  %4419 = vmatpush1.bf16.msra.mxu0 0
  %4420 = vmatprep.subr.bf16.mxu0 0
  %4421 = vmatpush1.bf16.msra.mxu0 0
  %4422 = vmatprep.mubr.bf16.mxu0 0
  %4423 = vmatmul.mubr.bf16.gmra.mrb[0].mxu0 %v4001
  %v4424 = vpop.f32.mrb[0].mxu0
  %v4425 = vadd.f32 0.0, %v4424
  %v4426 = vpop.f32.mrb[0].mxu0
  %v4427 = vpop.f32.mrb[0].mxu0
  %v4428 = vadd.f32 0.0, %v4427
  %v4429 = vpop.f32.mrb[0].mxu0
  %4430 = vmatprep.mubr.bf16.mxu0 0
  %4431 = vmatmul.mubr.bf16.gmra.mrb[0].mxu0 %v4004
  %v4432 = vpop.f32.mrb[0].mxu0
  %v4433 = vadd.f32 0.0, %v4432
  %v4434 = vpop.f32.mrb[0].mxu0
  %v4435 = vpop.f32.mrb[0].mxu0
  %v4436 = vadd.f32 0.0, %v4435
  %v4437 = vpop.f32.mrb[0].mxu0
  %4438 = vdwg.mxu0
  %s4439 = scalar_lea.vmem %s12, 8
  %v4440 = vld [vmem:[%s4439] sm:$0x1]
  %v4442 = vand.u32 %v4440, %v4008
  %4444 = vmatprep.subr.bf16.mxu0 0
  %4445 = vmatpush1.bf16.msra.mxu0 %v4442
  %4446 = vmatprep.subr.bf16.mxu0 0
  %4447 = vmatpush1.bf16.msra.mxu0 0
  %4448 = vmatprep.subr.bf16.mxu0 0
  %4449 = vmatpush1.bf16.msra.mxu0 0
  %4450 = vmatprep.subr.bf16.mxu0 0
  %4451 = vmatpush1.bf16.msra.mxu0 0
  %4452 = vmatprep.subr.bf16.mxu0 0
  %4453 = vmatpush1.bf16.msra.mxu0 0
  %4454 = vmatprep.subr.bf16.mxu0 0
  %4455 = vmatpush1.bf16.msra.mxu0 0
  %4456 = vmatprep.subr.bf16.mxu0 0
  %4457 = vmatpush1.bf16.msra.mxu0 0
  %4458 = vmatprep.subr.bf16.mxu0 0
  %4459 = vmatpush1.bf16.msra.mxu0 0
  %4460 = vmatprep.subr.bf16.mxu0 0
  %4461 = vmatpush1.bf16.msra.mxu0 0
  %4462 = vmatprep.subr.bf16.mxu0 0
  %4463 = vmatpush1.bf16.msra.mxu0 0
  %4464 = vmatprep.subr.bf16.mxu0 0
  %4465 = vmatpush1.bf16.msra.mxu0 0
  %4466 = vmatprep.subr.bf16.mxu0 0
  %4467 = vmatpush1.bf16.msra.mxu0 0
  %4468 = vmatprep.subr.bf16.mxu0 0
  %4469 = vmatpush1.bf16.msra.mxu0 0
  %4470 = vmatprep.subr.bf16.mxu0 0
  %4471 = vmatpush1.bf16.msra.mxu0 0
  %4472 = vmatprep.subr.bf16.mxu0 0
  %4473 = vmatpush1.bf16.msra.mxu0 0
  %4474 = vmatprep.subr.bf16.mxu0 0
  %4475 = vmatpush1.bf16.msra.mxu0 0
  %4476 = vmatprep.mubr.bf16.mxu0 0
  %4477 = vmatmul.mubr.bf16.gmra.mrb[0].mxu0 %v4001
  %v4478 = vpop.f32.mrb[0].mxu0
  %v4479 = vadd.f32 0.0, %v4478
  %v4480 = vpop.f32.mrb[0].mxu0
  %v4481 = vpop.f32.mrb[0].mxu0
  %v4482 = vadd.f32 0.0, %v4481
  %v4483 = vpop.f32.mrb[0].mxu0
  %4484 = vmatprep.mubr.bf16.mxu0 0
  %4485 = vmatmul.mubr.bf16.gmra.mrb[0].mxu0 %v4004
  %v4486 = vpop.f32.mrb[0].mxu0
  %v4487 = vadd.f32 0.0, %v4486
  %v4488 = vpop.f32.mrb[0].mxu0
  %v4489 = vpop.f32.mrb[0].mxu0
  %v4490 = vadd.f32 0.0, %v4489
  %v4491 = vpop.f32.mrb[0].mxu0
  %4492 = vdwg.mxu0
  %s4493 = scalar_lea.vmem %s12, 9
  %v4494 = vld [vmem:[%s4493] sm:$0x1]
  %v4496 = vand.u32 %v4494, %v4008
  %4498 = vmatprep.subr.bf16.mxu0 0
  %4499 = vmatpush1.bf16.msra.mxu0 %v4496
  %4500 = vmatprep.subr.bf16.mxu0 0
  %4501 = vmatpush1.bf16.msra.mxu0 0
  %4502 = vmatprep.subr.bf16.mxu0 0
  %4503 = vmatpush1.bf16.msra.mxu0 0
  %4504 = vmatprep.subr.bf16.mxu0 0
  %4505 = vmatpush1.bf16.msra.mxu0 0
  %4506 = vmatprep.subr.bf16.mxu0 0
  %4507 = vmatpush1.bf16.msra.mxu0 0
  %4508 = vmatprep.subr.bf16.mxu0 0
  %4509 = vmatpush1.bf16.msra.mxu0 0
  %4510 = vmatprep.subr.bf16.mxu0 0
  %4511 = vmatpush1.bf16.msra.mxu0 0
  %4512 = vmatprep.subr.bf16.mxu0 0
  %4513 = vmatpush1.bf16.msra.mxu0 0
  %4514 = vmatprep.subr.bf16.mxu0 0
  %4515 = vmatpush1.bf16.msra.mxu0 0
  %4516 = vmatprep.subr.bf16.mxu0 0
  %4517 = vmatpush1.bf16.msra.mxu0 0
  %4518 = vmatprep.subr.bf16.mxu0 0
  %4519 = vmatpush1.bf16.msra.mxu0 0
  %4520 = vmatprep.subr.bf16.mxu0 0
  %4521 = vmatpush1.bf16.msra.mxu0 0
  %4522 = vmatprep.subr.bf16.mxu0 0
  %4523 = vmatpush1.bf16.msra.mxu0 0
  %4524 = vmatprep.subr.bf16.mxu0 0
  %4525 = vmatpush1.bf16.msra.mxu0 0
  %4526 = vmatprep.subr.bf16.mxu0 0
  %4527 = vmatpush1.bf16.msra.mxu0 0
  %4528 = vmatprep.subr.bf16.mxu0 0
  %4529 = vmatpush1.bf16.msra.mxu0 0
  %4530 = vmatprep.mubr.bf16.mxu0 0
  %4531 = vmatmul.mubr.bf16.gmra.mrb[0].mxu0 %v4001
  %v4532 = vpop.f32.mrb[0].mxu0
  %v4533 = vadd.f32 0.0, %v4532
  %v4534 = vpop.f32.mrb[0].mxu0
  %v4535 = vpop.f32.mrb[0].mxu0
  %v4536 = vadd.f32 0.0, %v4535
  %v4537 = vpop.f32.mrb[0].mxu0
  %4538 = vmatprep.mubr.bf16.mxu0 0
  %4539 = vmatmul.mubr.bf16.gmra.mrb[0].mxu0 %v4004
  %v4540 = vpop.f32.mrb[0].mxu0
  %v4541 = vadd.f32 0.0, %v4540
  %v4542 = vpop.f32.mrb[0].mxu0
  %v4543 = vpop.f32.mrb[0].mxu0
  %v4544 = vadd.f32 0.0, %v4543
  %v4545 = vpop.f32.mrb[0].mxu0
  %4546 = vdwg.mxu0
  %s4547 = scalar_lea.vmem %s12, 10
  %v4548 = vld [vmem:[%s4547] sm:$0x1]
  %v4550 = vand.u32 %v4548, %v4008
  %4552 = vmatprep.subr.bf16.mxu0 0
  %4553 = vmatpush1.bf16.msra.mxu0 %v4550
  %4554 = vmatprep.subr.bf16.mxu0 0
  %4555 = vmatpush1.bf16.msra.mxu0 0
  %4556 = vmatprep.subr.bf16.mxu0 0
  %4557 = vmatpush1.bf16.msra.mxu0 0
  %4558 = vmatprep.subr.bf16.mxu0 0
  %4559 = vmatpush1.bf16.msra.mxu0 0
  %4560 = vmatprep.subr.bf16.mxu0 0
  %4561 = vmatpush1.bf16.msra.mxu0 0
  %4562 = vmatprep.subr.bf16.mxu0 0
  %4563 = vmatpush1.bf16.msra.mxu0 0
  %4564 = vmatprep.subr.bf16.mxu0 0
  %4565 = vmatpush1.bf16.msra.mxu0 0
  %4566 = vmatprep.subr.bf16.mxu0 0
  %4567 = vmatpush1.bf16.msra.mxu0 0
  %4568 = vmatprep.subr.bf16.mxu0 0
  %4569 = vmatpush1.bf16.msra.mxu0 0
  %4570 = vmatprep.subr.bf16.mxu0 0
  %4571 = vmatpush1.bf16.msra.mxu0 0
  %4572 = vmatprep.subr.bf16.mxu0 0
  %4573 = vmatpush1.bf16.msra.mxu0 0
  %4574 = vmatprep.subr.bf16.mxu0 0
  %4575 = vmatpush1.bf16.msra.mxu0 0
  %4576 = vmatprep.subr.bf16.mxu0 0
  %4577 = vmatpush1.bf16.msra.mxu0 0
  %4578 = vmatprep.subr.bf16.mxu0 0
  %4579 = vmatpush1.bf16.msra.mxu0 0
  %4580 = vmatprep.subr.bf16.mxu0 0
  %4581 = vmatpush1.bf16.msra.mxu0 0
  %4582 = vmatprep.subr.bf16.mxu0 0
  %4583 = vmatpush1.bf16.msra.mxu0 0
  %4584 = vmatprep.mubr.bf16.mxu0 0
  %4585 = vmatmul.mubr.bf16.gmra.mrb[0].mxu0 %v4001
  %v4586 = vpop.f32.mrb[0].mxu0
  %v4587 = vadd.f32 0.0, %v4586
  %v4588 = vpop.f32.mrb[0].mxu0
  %v4589 = vpop.f32.mrb[0].mxu0
  %v4590 = vadd.f32 0.0, %v4589
  %v4591 = vpop.f32.mrb[0].mxu0
  %4592 = vmatprep.mubr.bf16.mxu0 0
  %4593 = vmatmul.mubr.bf16.gmra.mrb[0].mxu0 %v4004
  %v4594 = vpop.f32.mrb[0].mxu0
  %v4595 = vadd.f32 0.0, %v4594
  %v4596 = vpop.f32.mrb[0].mxu0
  %v4597 = vpop.f32.mrb[0].mxu0
  %v4598 = vadd.f32 0.0, %v4597
  %v4599 = vpop.f32.mrb[0].mxu0
  %4600 = vdwg.mxu0
  %s4601 = scalar_lea.vmem %s12, 11
  %v4602 = vld [vmem:[%s4601] sm:$0x1]
  %v4604 = vand.u32 %v4602, %v4008
  %4606 = vmatprep.subr.bf16.mxu0 0
  %4607 = vmatpush1.bf16.msra.mxu0 %v4604
  %4608 = vmatprep.subr.bf16.mxu0 0
  %4609 = vmatpush1.bf16.msra.mxu0 0
  %4610 = vmatprep.subr.bf16.mxu0 0
  %4611 = vmatpush1.bf16.msra.mxu0 0
  %4612 = vmatprep.subr.bf16.mxu0 0
  %4613 = vmatpush1.bf16.msra.mxu0 0
  %4614 = vmatprep.subr.bf16.mxu0 0
  %4615 = vmatpush1.bf16.msra.mxu0 0
  %4616 = vmatprep.subr.bf16.mxu0 0
  %4617 = vmatpush1.bf16.msra.mxu0 0
  %4618 = vmatprep.subr.bf16.mxu0 0
  %4619 = vmatpush1.bf16.msra.mxu0 0
  %4620 = vmatprep.subr.bf16.mxu0 0
  %4621 = vmatpush1.bf16.msra.mxu0 0
  %4622 = vmatprep.subr.bf16.mxu0 0
  %4623 = vmatpush1.bf16.msra.mxu0 0
  %4624 = vmatprep.subr.bf16.mxu0 0
  %4625 = vmatpush1.bf16.msra.mxu0 0
  %4626 = vmatprep.subr.bf16.mxu0 0
  %4627 = vmatpush1.bf16.msra.mxu0 0
  %4628 = vmatprep.subr.bf16.mxu0 0
  %4629 = vmatpush1.bf16.msra.mxu0 0
  %4630 = vmatprep.subr.bf16.mxu0 0
  %4631 = vmatpush1.bf16.msra.mxu0 0
  %4632 = vmatprep.subr.bf16.mxu0 0
  %4633 = vmatpush1.bf16.msra.mxu0 0
  %4634 = vmatprep.subr.bf16.mxu0 0
  %4635 = vmatpush1.bf16.msra.mxu0 0
  %4636 = vmatprep.subr.bf16.mxu0 0
  %4637 = vmatpush1.bf16.msra.mxu0 0
  %4638 = vmatprep.mubr.bf16.mxu0 0
  %4639 = vmatmul.mubr.bf16.gmra.mrb[0].mxu0 %v4001
  %v4640 = vpop.f32.mrb[0].mxu0
  %v4641 = vadd.f32 0.0, %v4640
  %v4642 = vpop.f32.mrb[0].mxu0
  %v4643 = vpop.f32.mrb[0].mxu0
  %v4644 = vadd.f32 0.0, %v4643
  %v4645 = vpop.f32.mrb[0].mxu0
  %4646 = vmatprep.mubr.bf16.mxu0 0
  %4647 = vmatmul.mubr.bf16.gmra.mrb[0].mxu0 %v4004
  %v4648 = vpop.f32.mrb[0].mxu0
  %v4649 = vadd.f32 0.0, %v4648
  %v4650 = vpop.f32.mrb[0].mxu0
  %v4651 = vpop.f32.mrb[0].mxu0
  %v4652 = vadd.f32 0.0, %v4651
  %v4653 = vpop.f32.mrb[0].mxu0
  %4654 = vdwg.mxu0
  %s4655 = scalar_lea.vmem %s12, 12
  %v4656 = vld [vmem:[%s4655] sm:$0x1]
  %v4658 = vand.u32 %v4656, %v4008
  %4660 = vmatprep.subr.bf16.mxu0 0
  %4661 = vmatpush1.bf16.msra.mxu0 %v4658
  %4662 = vmatprep.subr.bf16.mxu0 0
  %4663 = vmatpush1.bf16.msra.mxu0 0
  %4664 = vmatprep.subr.bf16.mxu0 0
  %4665 = vmatpush1.bf16.msra.mxu0 0
  %4666 = vmatprep.subr.bf16.mxu0 0
  %4667 = vmatpush1.bf16.msra.mxu0 0
  %4668 = vmatprep.subr.bf16.mxu0 0
  %4669 = vmatpush1.bf16.msra.mxu0 0
  %4670 = vmatprep.subr.bf16.mxu0 0
  %4671 = vmatpush1.bf16.msra.mxu0 0
  %4672 = vmatprep.subr.bf16.mxu0 0
  %4673 = vmatpush1.bf16.msra.mxu0 0
  %4674 = vmatprep.subr.bf16.mxu0 0
  %4675 = vmatpush1.bf16.msra.mxu0 0
  %4676 = vmatprep.subr.bf16.mxu0 0
  %4677 = vmatpush1.bf16.msra.mxu0 0
  %4678 = vmatprep.subr.bf16.mxu0 0
  %4679 = vmatpush1.bf16.msra.mxu0 0
  %4680 = vmatprep.subr.bf16.mxu0 0
  %4681 = vmatpush1.bf16.msra.mxu0 0
  %4682 = vmatprep.subr.bf16.mxu0 0
  %4683 = vmatpush1.bf16.msra.mxu0 0
  %4684 = vmatprep.subr.bf16.mxu0 0
  %4685 = vmatpush1.bf16.msra.mxu0 0
  %4686 = vmatprep.subr.bf16.mxu0 0
  %4687 = vmatpush1.bf16.msra.mxu0 0
  %4688 = vmatprep.subr.bf16.mxu0 0
  %4689 = vmatpush1.bf16.msra.mxu0 0
  %4690 = vmatprep.subr.bf16.mxu0 0
  %4691 = vmatpush1.bf16.msra.mxu0 0
  %4692 = vmatprep.mubr.bf16.mxu0 0
  %4693 = vmatmul.mubr.bf16.gmra.mrb[0].mxu0 %v4001
  %v4694 = vpop.f32.mrb[0].mxu0
  %v4695 = vadd.f32 0.0, %v4694
  %v4696 = vpop.f32.mrb[0].mxu0
  %v4697 = vpop.f32.mrb[0].mxu0
  %v4698 = vadd.f32 0.0, %v4697
  %v4699 = vpop.f32.mrb[0].mxu0
  %4700 = vmatprep.mubr.bf16.mxu0 0
  %4701 = vmatmul.mubr.bf16.gmra.mrb[0].mxu0 %v4004
  %v4702 = vpop.f32.mrb[0].mxu0
  %v4703 = vadd.f32 0.0, %v4702
  %v4704 = vpop.f32.mrb[0].mxu0
  %v4705 = vpop.f32.mrb[0].mxu0
  %v4706 = vadd.f32 0.0, %v4705
  %v4707 = vpop.f32.mrb[0].mxu0
  %4708 = vdwg.mxu0
  %s4709 = scalar_lea.vmem %s12, 13
  %v4710 = vld [vmem:[%s4709] sm:$0x1]
  %v4712 = vand.u32 %v4710, %v4008
  %4714 = vmatprep.subr.bf16.mxu0 0
  %4715 = vmatpush1.bf16.msra.mxu0 %v4712
  %4716 = vmatprep.subr.bf16.mxu0 0
  %4717 = vmatpush1.bf16.msra.mxu0 0
  %4718 = vmatprep.subr.bf16.mxu0 0
  %4719 = vmatpush1.bf16.msra.mxu0 0
  %4720 = vmatprep.subr.bf16.mxu0 0
  %4721 = vmatpush1.bf16.msra.mxu0 0
  %4722 = vmatprep.subr.bf16.mxu0 0
  %4723 = vmatpush1.bf16.msra.mxu0 0
  %4724 = vmatprep.subr.bf16.mxu0 0
  %4725 = vmatpush1.bf16.msra.mxu0 0
  %4726 = vmatprep.subr.bf16.mxu0 0
  %4727 = vmatpush1.bf16.msra.mxu0 0
  %4728 = vmatprep.subr.bf16.mxu0 0
  %4729 = vmatpush1.bf16.msra.mxu0 0
  %4730 = vmatprep.subr.bf16.mxu0 0
  %4731 = vmatpush1.bf16.msra.mxu0 0
  %4732 = vmatprep.subr.bf16.mxu0 0
  %4733 = vmatpush1.bf16.msra.mxu0 0
  %4734 = vmatprep.subr.bf16.mxu0 0
  %4735 = vmatpush1.bf16.msra.mxu0 0
  %4736 = vmatprep.subr.bf16.mxu0 0
  %4737 = vmatpush1.bf16.msra.mxu0 0
  %4738 = vmatprep.subr.bf16.mxu0 0
  %4739 = vmatpush1.bf16.msra.mxu0 0
  %4740 = vmatprep.subr.bf16.mxu0 0
  %4741 = vmatpush1.bf16.msra.mxu0 0
  %4742 = vmatprep.subr.bf16.mxu0 0
  %4743 = vmatpush1.bf16.msra.mxu0 0
  %4744 = vmatprep.subr.bf16.mxu0 0
  %4745 = vmatpush1.bf16.msra.mxu0 0
  %4746 = vmatprep.mubr.bf16.mxu0 0
  %4747 = vmatmul.mubr.bf16.gmra.mrb[0].mxu0 %v4001
  %v4748 = vpop.f32.mrb[0].mxu0
  %v4749 = vadd.f32 0.0, %v4748
  %v4750 = vpop.f32.mrb[0].mxu0
  %v4751 = vpop.f32.mrb[0].mxu0
  %v4752 = vadd.f32 0.0, %v4751
  %v4753 = vpop.f32.mrb[0].mxu0
  %4754 = vmatprep.mubr.bf16.mxu0 0
  %4755 = vmatmul.mubr.bf16.gmra.mrb[0].mxu0 %v4004
  %v4756 = vpop.f32.mrb[0].mxu0
  %v4757 = vadd.f32 0.0, %v4756
  %v4758 = vpop.f32.mrb[0].mxu0
  %v4759 = vpop.f32.mrb[0].mxu0
  %v4760 = vadd.f32 0.0, %v4759
  %v4761 = vpop.f32.mrb[0].mxu0
  %4762 = vdwg.mxu0
  %s4763 = scalar_lea.vmem %s12, 14
  %v4764 = vld [vmem:[%s4763] sm:$0x1]
  %v4766 = vand.u32 %v4764, %v4008
  %4768 = vmatprep.subr.bf16.mxu0 0
  %4769 = vmatpush1.bf16.msra.mxu0 %v4766
  %4770 = vmatprep.subr.bf16.mxu0 0
  %4771 = vmatpush1.bf16.msra.mxu0 0
  %4772 = vmatprep.subr.bf16.mxu0 0
  %4773 = vmatpush1.bf16.msra.mxu0 0
  %4774 = vmatprep.subr.bf16.mxu0 0
  %4775 = vmatpush1.bf16.msra.mxu0 0
  %4776 = vmatprep.subr.bf16.mxu0 0
  %4777 = vmatpush1.bf16.msra.mxu0 0
  %4778 = vmatprep.subr.bf16.mxu0 0
  %4779 = vmatpush1.bf16.msra.mxu0 0
  %4780 = vmatprep.subr.bf16.mxu0 0
  %4781 = vmatpush1.bf16.msra.mxu0 0
  %4782 = vmatprep.subr.bf16.mxu0 0
  %4783 = vmatpush1.bf16.msra.mxu0 0
  %4784 = vmatprep.subr.bf16.mxu0 0
  %4785 = vmatpush1.bf16.msra.mxu0 0
  %4786 = vmatprep.subr.bf16.mxu0 0
  %4787 = vmatpush1.bf16.msra.mxu0 0
  %4788 = vmatprep.subr.bf16.mxu0 0
  %4789 = vmatpush1.bf16.msra.mxu0 0
  %4790 = vmatprep.subr.bf16.mxu0 0
  %4791 = vmatpush1.bf16.msra.mxu0 0
  %4792 = vmatprep.subr.bf16.mxu0 0
  %4793 = vmatpush1.bf16.msra.mxu0 0
  %4794 = vmatprep.subr.bf16.mxu0 0
  %4795 = vmatpush1.bf16.msra.mxu0 0
  %4796 = vmatprep.subr.bf16.mxu0 0
  %4797 = vmatpush1.bf16.msra.mxu0 0
  %4798 = vmatprep.subr.bf16.mxu0 0
  %4799 = vmatpush1.bf16.msra.mxu0 0
  %4800 = vmatprep.mubr.bf16.mxu0 0
  %4801 = vmatmul.mubr.bf16.gmra.mrb[0].mxu0 %v4001
  %v4802 = vpop.f32.mrb[0].mxu0
  %v4803 = vadd.f32 0.0, %v4802
  %v4804 = vpop.f32.mrb[0].mxu0
  %v4805 = vpop.f32.mrb[0].mxu0
  %v4806 = vadd.f32 0.0, %v4805
  %v4807 = vpop.f32.mrb[0].mxu0
  %4808 = vmatprep.mubr.bf16.mxu0 0
  %4809 = vmatmul.mubr.bf16.gmra.mrb[0].mxu0 %v4004
  %v4810 = vpop.f32.mrb[0].mxu0
  %v4811 = vadd.f32 0.0, %v4810
  %v4812 = vpop.f32.mrb[0].mxu0
  %v4813 = vpop.f32.mrb[0].mxu0
  %v4814 = vadd.f32 0.0, %v4813
  %v4815 = vpop.f32.mrb[0].mxu0
  %4816 = vdwg.mxu0
  %s4817 = scalar_lea.vmem %s12, 15
  %v4818 = vld [vmem:[%s4817] sm:$0x1]
  %v4820 = vand.u32 %v4818, %v4008
  %4822 = vmatprep.subr.bf16.mxu0 0
  %4823 = vmatpush1.bf16.msra.mxu0 %v4820
  %4824 = vmatprep.subr.bf16.mxu0 0
  %4825 = vmatpush1.bf16.msra.mxu0 0
  %4826 = vmatprep.subr.bf16.mxu0 0
  %4827 = vmatpush1.bf16.msra.mxu0 0
  %4828 = vmatprep.subr.bf16.mxu0 0
  %4829 = vmatpush1.bf16.msra.mxu0 0
  %4830 = vmatprep.subr.bf16.mxu0 0
  %4831 = vmatpush1.bf16.msra.mxu0 0
  %4832 = vmatprep.subr.bf16.mxu0 0
  %4833 = vmatpush1.bf16.msra.mxu0 0
  %4834 = vmatprep.subr.bf16.mxu0 0
  %4835 = vmatpush1.bf16.msra.mxu0 0
  %4836 = vmatprep.subr.bf16.mxu0 0
  %4837 = vmatpush1.bf16.msra.mxu0 0
  %4838 = vmatprep.subr.bf16.mxu0 0
  %4839 = vmatpush1.bf16.msra.mxu0 0
  %4840 = vmatprep.subr.bf16.mxu0 0
  %4841 = vmatpush1.bf16.msra.mxu0 0
  %4842 = vmatprep.subr.bf16.mxu0 0
  %4843 = vmatpush1.bf16.msra.mxu0 0
  %4844 = vmatprep.subr.bf16.mxu0 0
  %4845 = vmatpush1.bf16.msra.mxu0 0
  %4846 = vmatprep.subr.bf16.mxu0 0
  %4847 = vmatpush1.bf16.msra.mxu0 0
  %4848 = vmatprep.subr.bf16.mxu0 0
  %4849 = vmatpush1.bf16.msra.mxu0 0
  %4850 = vmatprep.subr.bf16.mxu0 0
  %4851 = vmatpush1.bf16.msra.mxu0 0
  %4852 = vmatprep.subr.bf16.mxu0 0
  %4853 = vmatpush1.bf16.msra.mxu0 0
  %4854 = vmatprep.mubr.bf16.mxu0 0
  %4855 = vmatmul.mubr.bf16.gmra.mrb[0].mxu0 %v4001
  %v4856 = vpop.f32.mrb[0].mxu0
  %v4857 = vadd.f32 0.0, %v4856
  %v4858 = vpop.f32.mrb[0].mxu0
  %v4859 = vpop.f32.mrb[0].mxu0
  %v4860 = vadd.f32 0.0, %v4859
  %v4861 = vpop.f32.mrb[0].mxu0
  %4862 = vmatprep.mubr.bf16.mxu0 0
  %4863 = vmatmul.mubr.bf16.gmra.mrb[0].mxu0 %v4004
  %v4864 = vpop.f32.mrb[0].mxu0
  %v4865 = vadd.f32 0.0, %v4864
  %v4866 = vpop.f32.mrb[0].mxu0
  %v4867 = vpop.f32.mrb[0].mxu0
  %v4868 = vadd.f32 0.0, %v4867
  %v4869 = vpop.f32.mrb[0].mxu0
  %4870 = vdwg.mxu0
  %v4871 = vpack.c.bf16 %v4050, %v4047
  %v4872 = vpack.c.bf16 %v4058, %v4055
  %v4873 = vpack.c.bf16 %v4104, %v4101
  %v4874 = vpack.c.bf16 %v4112, %v4109
  %v4875 = vpack.c.bf16 %v4158, %v4155
  %v4876 = vpack.c.bf16 %v4166, %v4163
  %v4877 = vpack.c.bf16 %v4212, %v4209
  %v4878 = vpack.c.bf16 %v4220, %v4217
  %v4879 = vpack.c.bf16 %v4266, %v4263
  %v4880 = vpack.c.bf16 %v4274, %v4271
  %v4881 = vpack.c.bf16 %v4320, %v4317
  %v4882 = vpack.c.bf16 %v4328, %v4325
  %v4883 = vpack.c.bf16 %v4374, %v4371
  %v4884 = vpack.c.bf16 %v4382, %v4379
  %v4885 = vpack.c.bf16 %v4428, %v4425
  %v4886 = vpack.c.bf16 %v4436, %v4433
  %v4887 = vpack.c.bf16 %v4482, %v4479
  %v4888 = vpack.c.bf16 %v4490, %v4487
  %v4889 = vpack.c.bf16 %v4536, %v4533
  %v4890 = vpack.c.bf16 %v4544, %v4541
  %v4891 = vpack.c.bf16 %v4590, %v4587
  %v4892 = vpack.c.bf16 %v4598, %v4595
  %v4893 = vpack.c.bf16 %v4644, %v4641
  %v4894 = vpack.c.bf16 %v4652, %v4649
  %v4895 = vpack.c.bf16 %v4698, %v4695
  %v4896 = vpack.c.bf16 %v4706, %v4703
  %v4897 = vpack.c.bf16 %v4752, %v4749
  %v4898 = vpack.c.bf16 %v4760, %v4757
  %v4899 = vpack.c.bf16 %v4806, %v4803
  %v4900 = vpack.c.bf16 %v4814, %v4811
  %v4901 = vpack.c.bf16 %v4860, %v4857
  %v4902 = vpack.c.bf16 %v4868, %v4865
  %v4911 = vunpack.c.l.b16 %v3980
  %v4912 = vunpack.c.h.b16 %v3980
  %v4913 = vunpack.c.l.b16 %v3981
  %v4914 = vunpack.c.h.b16 %v3981
  %v4915 = vunpack.c.l.b16 %v3982
  %v4916 = vunpack.c.h.b16 %v3982
  %v4917 = vunpack.c.l.b16 %v3983
  %v4918 = vunpack.c.h.b16 %v3983
  %v4919 = vunpack.c.l.b16 %v3984
  %v4920 = vunpack.c.h.b16 %v3984
  %v4921 = vunpack.c.l.b16 %v3985
  %v4922 = vunpack.c.h.b16 %v3985
  %v4923 = vunpack.c.l.b16 %v3986
  %v4924 = vunpack.c.h.b16 %v3986
  %v4925 = vunpack.c.l.b16 %v3987
  %v4926 = vunpack.c.h.b16 %v3987
  %v4927 = vpack.c.b16 %v4915, %v4911
  %v4928 = vpack.c.b16 %v4916, %v4912
  %v4929 = vpack.c.b16 %v4917, %v4913
  %v4930 = vpack.c.b16 %v4918, %v4914
  %v4931 = vpack.c.b16 %v4923, %v4919
  %v4932 = vpack.c.b16 %v4924, %v4920
  %v4933 = vpack.c.b16 %v4925, %v4921
  %v4934 = vpack.c.b16 %v4926, %v4922
  %4943 = vmatprep.subr.bf16.mxu0 0
  %4944 = vmatpush1.bf16.msra.mxu0 %v4871
  %4945 = vmatprep.subr.bf16.mxu0 0
  %4946 = vmatpush1.bf16.msra.mxu0 %v4872
  %4947 = vmatprep.subr.bf16.mxu0 0
  %4948 = vmatpush1.bf16.msra.mxu0 %v4873
  %4949 = vmatprep.subr.bf16.mxu0 0
  %4950 = vmatpush1.bf16.msra.mxu0 %v4874
  %4951 = vmatprep.subr.bf16.mxu0 0
  %4952 = vmatpush1.bf16.msra.mxu0 %v4875
  %4953 = vmatprep.subr.bf16.mxu0 0
  %4954 = vmatpush1.bf16.msra.mxu0 %v4876
  %4955 = vmatprep.subr.bf16.mxu0 0
  %4956 = vmatpush1.bf16.msra.mxu0 %v4877
  %4957 = vmatprep.subr.bf16.mxu0 0
  %4958 = vmatpush1.bf16.msra.mxu0 %v4878
  %4959 = vmatprep.subr.bf16.mxu0 0
  %4960 = vmatpush1.bf16.msra.mxu0 %v4879
  %4961 = vmatprep.subr.bf16.mxu0 0
  %4962 = vmatpush1.bf16.msra.mxu0 %v4880
  %4963 = vmatprep.subr.bf16.mxu0 0
  %4964 = vmatpush1.bf16.msra.mxu0 %v4881
  %4965 = vmatprep.subr.bf16.mxu0 0
  %4966 = vmatpush1.bf16.msra.mxu0 %v4882
  %4967 = vmatprep.subr.bf16.mxu0 0
  %4968 = vmatpush1.bf16.msra.mxu0 %v4883
  %4969 = vmatprep.subr.bf16.mxu0 0
  %4970 = vmatpush1.bf16.msra.mxu0 %v4884
  %4971 = vmatprep.subr.bf16.mxu0 0
  %4972 = vmatpush1.bf16.msra.mxu0 %v4885
  %4973 = vmatprep.subr.bf16.mxu0 0
  %4974 = vmatpush1.bf16.msra.mxu0 %v4886
  %4975 = vmatprep.mubr.bf16.mxu0 %v4928
  %4976 = vmatmul.mubr.bf16.gmra.mrb[0].mxu0 %v4927
  %v4977 = vpop.f32.mrb[0].mxu0
  %v4978 = vadd.f32 0.0, %v4977
  %v4979 = vpop.f32.mrb[0].mxu0
  %v4980 = vpop.f32.mrb[0].mxu0
  %v4981 = vadd.f32 0.0, %v4980
  %v4982 = vpop.f32.mrb[0].mxu0
  %4983 = vmatprep.mubr.bf16.mxu0 %v4932
  %4984 = vmatmul.mubr.bf16.gmra.mrb[0].mxu0 %v4931
  %v4985 = vpop.f32.mrb[0].mxu0
  %v4986 = vadd.f32 0.0, %v4985
  %v4987 = vpop.f32.mrb[0].mxu0
  %v4988 = vpop.f32.mrb[0].mxu0
  %v4989 = vadd.f32 0.0, %v4988
  %v4990 = vpop.f32.mrb[0].mxu0
  %4991 = vdwg.mxu0
  %4992 = vmatprep.subr.bf16.mxu0 0
  %4993 = vmatpush1.bf16.msra.mxu0 %v4887
  %4994 = vmatprep.subr.bf16.mxu0 0
  %4995 = vmatpush1.bf16.msra.mxu0 %v4888
  %4996 = vmatprep.subr.bf16.mxu0 0
  %4997 = vmatpush1.bf16.msra.mxu0 %v4889
  %4998 = vmatprep.subr.bf16.mxu0 0
  %4999 = vmatpush1.bf16.msra.mxu0 %v4890
  %5000 = vmatprep.subr.bf16.mxu0 0
  %5001 = vmatpush1.bf16.msra.mxu0 %v4891
  %5002 = vmatprep.subr.bf16.mxu0 0
  %5003 = vmatpush1.bf16.msra.mxu0 %v4892
  %5004 = vmatprep.subr.bf16.mxu0 0
  %5005 = vmatpush1.bf16.msra.mxu0 %v4893
  %5006 = vmatprep.subr.bf16.mxu0 0
  %5007 = vmatpush1.bf16.msra.mxu0 %v4894
  %5008 = vmatprep.subr.bf16.mxu0 0
  %5009 = vmatpush1.bf16.msra.mxu0 %v4895
  %5010 = vmatprep.subr.bf16.mxu0 0
  %5011 = vmatpush1.bf16.msra.mxu0 %v4896
  %5012 = vmatprep.subr.bf16.mxu0 0
  %5013 = vmatpush1.bf16.msra.mxu0 %v4897
  %5014 = vmatprep.subr.bf16.mxu0 0
  %5015 = vmatpush1.bf16.msra.mxu0 %v4898
  %5016 = vmatprep.subr.bf16.mxu0 0
  %5017 = vmatpush1.bf16.msra.mxu0 %v4899
  %5018 = vmatprep.subr.bf16.mxu0 0
  %5019 = vmatpush1.bf16.msra.mxu0 %v4900
  %5020 = vmatprep.subr.bf16.mxu0 0
  %5021 = vmatpush1.bf16.msra.mxu0 %v4901
  %5022 = vmatprep.subr.bf16.mxu0 0
  %5023 = vmatpush1.bf16.msra.mxu0 %v4902
  %5024 = vmatprep.mubr.bf16.mxu0 %v4930
  %5025 = vmatmul.mubr.bf16.gmra.mrb[0].mxu0 %v4929
  %v5026 = vpop.f32.mrb[0].mxu0
  %v5027 = vadd.f32 %v4978, %v5026
  %v5028 = vpop.f32.mrb[0].mxu0
  %v5029 = vpop.f32.mrb[0].mxu0
  %v5030 = vadd.f32 %v4981, %v5029
  %v5031 = vpop.f32.mrb[0].mxu0
  %5032 = vmatprep.mubr.bf16.mxu0 %v4934
  %5033 = vmatmul.mubr.bf16.gmra.mrb[0].mxu0 %v4933
  %v5034 = vpop.f32.mrb[0].mxu0
  %v5035 = vadd.f32 %v4986, %v5034
  %v5036 = vpop.f32.mrb[0].mxu0
  %v5037 = vpop.f32.mrb[0].mxu0
  %v5038 = vadd.f32 %v4989, %v5037
  %v5039 = vpop.f32.mrb[0].mxu0
  %5040 = vdwg.mxu0
  %v5041 = vsel %vm2626, %v5027, 0.0
  %5042 = vadd.xlane.f32.xlu0 %v5041
  %v5043 = vpop.xlane.xlu0 %5042
  %v5044 = vsel %vm2626, %v5030, 0.0
  %5045 = vadd.xlane.f32.xlu0 %v5044
  %v5046 = vpop.xlane.xlu0 %5045
  %v5047 = vsel %vm2626, %v5035, 0.0
  %5048 = vadd.xlane.f32.xlu0 %v5047
  %v5049 = vpop.xlane.xlu0 %5048
  %v5050 = vsel %vm2626, %v5038, 0.0
  %5051 = vadd.xlane.f32.xlu0 %v5050
  %v5052 = vpop.xlane.xlu0 %5051
  %v5053 = vadd.f32 %v5043, %v5049
  %v5054 = vadd.f32 %v5046, %v5052
  %v5055 = vmul.f32 %v5053, 0.03125
  %v5056 = vmul.f32 %v5054, 0.03125
  %5058 = vset.pattern.permute.xlu0 0
  %5059 = vperm.xlu0 %5058, %v5055
  %v5060 = vpop.permute.xlu0 %5059
  %5063 = vset.pattern.permute.xlu0 0
  %5064 = vperm.xlu0 %5063, %v5056
  %v5065 = vpop.permute.xlu0 %5064
  %v5067 = vsub.f32 %v5027, %v5060
  %v5068 = vsub.f32 %v5030, %v5065
  %v5069 = vsub.f32 %v5035, %v5060
  %v5070 = vsub.f32 %v5038, %v5065
  %v5071 = vmul.f32 %v5067, %v5067
  %v5072 = vmul.f32 %v5068, %v5068
  %v5073 = vmul.f32 %v5069, %v5069
  %v5074 = vmul.f32 %v5070, %v5070
  %v5075 = vsel %vm2626, %v5071, 0.0
  %5076 = vadd.xlane.f32.xlu0 %v5075
  %v5077 = vpop.xlane.xlu0 %5076
  %v5078 = vsel %vm2626, %v5072, 0.0
  %5079 = vadd.xlane.f32.xlu0 %v5078
  %v5080 = vpop.xlane.xlu0 %5079
  %v5081 = vsel %vm2626, %v5073, 0.0
  %5082 = vadd.xlane.f32.xlu0 %v5081
  %v5083 = vpop.xlane.xlu0 %5082
  %v5084 = vsel %vm2626, %v5074, 0.0
  %5085 = vadd.xlane.f32.xlu0 %v5084
  %v5086 = vpop.xlane.xlu0 %5085
  %v5087 = vadd.f32 %v5077, %v5083
  %v5088 = vadd.f32 %v5080, %v5086
  %v5089 = vmul.f32 %v5087, 0.03125
  %v5090 = vmul.f32 %v5088, 0.03125
  %v5091 = vadd.f32 %v5089, 1e-05
  %v5092 = vadd.f32 %v5090, 1e-05
  %v5093 = vrsqrt.pop %v5091
  %v5094 = vrsqrt.pop %v5092
  %5096 = vset.pattern.permute.xlu0 0
  %5097 = vperm.xlu0 %5096, %v5093
  %v5098 = vpop.permute.xlu0 %5097
  %5101 = vset.pattern.permute.xlu0 0
  %5102 = vperm.xlu0 %5101, %v5094
  %v5103 = vpop.permute.xlu0 %5102
  %v5105 = vmul.f32 %v5067, %v5098
  %v5106 = vmul.f32 %v5068, %v5103
  %v5107 = vmul.f32 %v5069, %v5098
  %v5108 = vmul.f32 %v5070, %v5103
  %5110 = vset.pattern.permute.xlu0 0
  %5111 = vperm.xlu0 %5110, %v3988
  %v5112 = vpop.permute.xlu0 %5111
  %5115 = vset.pattern.permute.xlu0 0
  %5116 = vperm.xlu0 %5115, %v3989
  %v5117 = vpop.permute.xlu0 %5116
  %5120 = vset.pattern.permute.xlu0 0
  %5121 = vperm.xlu0 %5120, %v3990
  %v5122 = vpop.permute.xlu0 %5121
  %5125 = vset.pattern.permute.xlu0 0
  %5126 = vperm.xlu0 %5125, %v3991
  %v5127 = vpop.permute.xlu0 %5126
  %v5129 = vmul.f32 %v5105, %v5112
  %v5130 = vmul.f32 %v5106, %v5117
  %v5131 = vmul.f32 %v5107, %v5122
  %v5132 = vmul.f32 %v5108, %v5127
  %5134 = vset.pattern.permute.xlu0 0
  %5135 = vperm.xlu0 %5134, %v3992
  %v5136 = vpop.permute.xlu0 %5135
  %5139 = vset.pattern.permute.xlu0 0
  %5140 = vperm.xlu0 %5139, %v3993
  %v5141 = vpop.permute.xlu0 %5140
  %5144 = vset.pattern.permute.xlu0 0
  %5145 = vperm.xlu0 %5144, %v3994
  %v5146 = vpop.permute.xlu0 %5145
  %5149 = vset.pattern.permute.xlu0 0
  %5150 = vperm.xlu0 %5149, %v3995
  %v5151 = vpop.permute.xlu0 %5150
  %v5153 = vadd.f32 %v5129, %v5136
  %v5154 = vadd.f32 %v5130, %v5141
  %v5155 = vadd.f32 %v5131, %v5146
  %v5156 = vadd.f32 %v5132, %v5151
  %vm5157 = vcmp.ge.f32.partialorder %v5153, 0.0
  %vm5158 = vcmp.ge.f32.partialorder %v5154, 0.0
  %vm5159 = vcmp.ge.f32.partialorder %v5155, 0.0
  %vm5160 = vcmp.ge.f32.partialorder %v5156, 0.0
  %v5161 = vmul.f32 %v5153, 0.2
  %v5162 = vmul.f32 %v5154, 0.2
  %v5163 = vmul.f32 %v5155, 0.2
  %v5164 = vmul.f32 %v5156, 0.2
  %v5165 = vsel %vm5157, %v5153, %v5161
  %v5166 = vsel %vm5158, %v5154, %v5162
  %v5167 = vsel %vm5159, %v5155, %v5163
  %v5168 = vsel %vm5160, %v5156, %v5164
  %v5169 = vld [vmem:[%s15] sm:$0xff]
  %v5170 = vld [vmem:[%s15 + $0x8] sm:$0xff]
  %v5171 = vld [vmem:[%s15 + $0x10] sm:$0xff]
  %v5172 = vld [vmem:[%s15 + $0x18] sm:$0xff]
  %v5173 = vld [vmem:[%s17] sm:$0xff]
  %v5174 = vld [vmem:[%s17 + $0x8] sm:$0xff]
  %v5175 = vld [vmem:[%s18] sm:$0xff]
  %v5176 = vld [vmem:[%s18 + $0x8] sm:$0xff]
  %v5177 = vpack.c.bf16 %v5166, %v5165
  %v5178 = vpack.c.bf16 %v5168, %v5167
  %v5179 = vld [vmem:[%s16] sm:$0xf]
  %v5180 = vld [vmem:[%s16 + $0x4] sm:$0xf]
  %v5183 = vunpack.c.l.b16 %v5179
  %v5184 = vunpack.c.l.b16 %v5180
  %v5185 = vpack.c.b16 %v5184, %v5183
  %v5188 = vsel %vm2626, %v5177, 0
  %v5191 = vsel %vm2626, %v5178, 0
  %5193 = vmatprep.subr.bf16.mxu0 0
  %5194 = vmatpush1.bf16.msra.mxu0 %v5185
  %5195 = vmatprep.subr.bf16.mxu0 0
  %5196 = vmatpush1.bf16.msra.mxu0 0
  %5197 = vmatprep.subr.bf16.mxu0 0
  %5198 = vmatpush1.bf16.msra.mxu0 0
  %5199 = vmatprep.subr.bf16.mxu0 0
  %5200 = vmatpush1.bf16.msra.mxu0 0
  %5201 = vmatprep.subr.bf16.mxu0 0
  %5202 = vmatpush1.bf16.msra.mxu0 0
  %5203 = vmatprep.subr.bf16.mxu0 0
  %5204 = vmatpush1.bf16.msra.mxu0 0
  %5205 = vmatprep.subr.bf16.mxu0 0
  %5206 = vmatpush1.bf16.msra.mxu0 0
  %5207 = vmatprep.subr.bf16.mxu0 0
  %5208 = vmatpush1.bf16.msra.mxu0 0
  %5209 = vmatprep.subr.bf16.mxu0 0
  %5210 = vmatpush1.bf16.msra.mxu0 0
  %5211 = vmatprep.subr.bf16.mxu0 0
  %5212 = vmatpush1.bf16.msra.mxu0 0
  %5213 = vmatprep.subr.bf16.mxu0 0
  %5214 = vmatpush1.bf16.msra.mxu0 0
  %5215 = vmatprep.subr.bf16.mxu0 0
  %5216 = vmatpush1.bf16.msra.mxu0 0
  %5217 = vmatprep.subr.bf16.mxu0 0
  %5218 = vmatpush1.bf16.msra.mxu0 0
  %5219 = vmatprep.subr.bf16.mxu0 0
  %5220 = vmatpush1.bf16.msra.mxu0 0
  %5221 = vmatprep.subr.bf16.mxu0 0
  %5222 = vmatpush1.bf16.msra.mxu0 0
  %5223 = vmatprep.subr.bf16.mxu0 0
  %5224 = vmatpush1.bf16.msra.mxu0 0
  %5225 = vmatprep.mubr.bf16.mxu0 0
  %5226 = vmatmul.mubr.bf16.gmra.mrb[0].mxu0 %v5188
  %v5227 = vpop.f32.mrb[0].mxu0
  %v5228 = vadd.f32 0.0, %v5227
  %v5229 = vpop.f32.mrb[0].mxu0
  %v5230 = vpop.f32.mrb[0].mxu0
  %v5231 = vadd.f32 0.0, %v5230
  %v5232 = vpop.f32.mrb[0].mxu0
  %5233 = vmatprep.mubr.bf16.mxu0 0
  %5234 = vmatmul.mubr.bf16.gmra.mrb[0].mxu0 %v5191
  %v5235 = vpop.f32.mrb[0].mxu0
  %v5236 = vadd.f32 0.0, %v5235
  %v5237 = vpop.f32.mrb[0].mxu0
  %v5238 = vpop.f32.mrb[0].mxu0
  %v5239 = vadd.f32 0.0, %v5238
  %v5240 = vpop.f32.mrb[0].mxu0
  %5241 = vdwg.mxu0
  %s5242 = scalar_lea.vmem %s16, 8
  %v5243 = vld [vmem:[%s5242] sm:$0xf]
  %v5244 = vld [vmem:[%s5242 + $0x4] sm:$0xf]
  %v5247 = vunpack.c.l.b16 %v5243
  %v5248 = vunpack.c.l.b16 %v5244
  %v5249 = vpack.c.b16 %v5248, %v5247
  %5251 = vmatprep.subr.bf16.mxu0 0
  %5252 = vmatpush1.bf16.msra.mxu0 %v5249
  %5253 = vmatprep.subr.bf16.mxu0 0
  %5254 = vmatpush1.bf16.msra.mxu0 0
  %5255 = vmatprep.subr.bf16.mxu0 0
  %5256 = vmatpush1.bf16.msra.mxu0 0
  %5257 = vmatprep.subr.bf16.mxu0 0
  %5258 = vmatpush1.bf16.msra.mxu0 0
  %5259 = vmatprep.subr.bf16.mxu0 0
  %5260 = vmatpush1.bf16.msra.mxu0 0
  %5261 = vmatprep.subr.bf16.mxu0 0
  %5262 = vmatpush1.bf16.msra.mxu0 0
  %5263 = vmatprep.subr.bf16.mxu0 0
  %5264 = vmatpush1.bf16.msra.mxu0 0
  %5265 = vmatprep.subr.bf16.mxu0 0
  %5266 = vmatpush1.bf16.msra.mxu0 0
  %5267 = vmatprep.subr.bf16.mxu0 0
  %5268 = vmatpush1.bf16.msra.mxu0 0
  %5269 = vmatprep.subr.bf16.mxu0 0
  %5270 = vmatpush1.bf16.msra.mxu0 0
  %5271 = vmatprep.subr.bf16.mxu0 0
  %5272 = vmatpush1.bf16.msra.mxu0 0
  %5273 = vmatprep.subr.bf16.mxu0 0
  %5274 = vmatpush1.bf16.msra.mxu0 0
  %5275 = vmatprep.subr.bf16.mxu0 0
  %5276 = vmatpush1.bf16.msra.mxu0 0
  %5277 = vmatprep.subr.bf16.mxu0 0
  %5278 = vmatpush1.bf16.msra.mxu0 0
  %5279 = vmatprep.subr.bf16.mxu0 0
  %5280 = vmatpush1.bf16.msra.mxu0 0
  %5281 = vmatprep.subr.bf16.mxu0 0
  %5282 = vmatpush1.bf16.msra.mxu0 0
  %5283 = vmatprep.mubr.bf16.mxu0 0
  %5284 = vmatmul.mubr.bf16.gmra.mrb[0].mxu0 %v5188
  %v5285 = vpop.f32.mrb[0].mxu0
  %v5286 = vadd.f32 0.0, %v5285
  %v5287 = vpop.f32.mrb[0].mxu0
  %v5288 = vpop.f32.mrb[0].mxu0
  %v5289 = vadd.f32 0.0, %v5288
  %v5290 = vpop.f32.mrb[0].mxu0
  %5291 = vmatprep.mubr.bf16.mxu0 0
  %5292 = vmatmul.mubr.bf16.gmra.mrb[0].mxu0 %v5191
  %v5293 = vpop.f32.mrb[0].mxu0
  %v5294 = vadd.f32 0.0, %v5293
  %v5295 = vpop.f32.mrb[0].mxu0
  %v5296 = vpop.f32.mrb[0].mxu0
  %v5297 = vadd.f32 0.0, %v5296
  %v5298 = vpop.f32.mrb[0].mxu0
  %5299 = vdwg.mxu0
  %s5300 = scalar_lea.vmem %s16, 16
  %v5301 = vld [vmem:[%s5300] sm:$0xf]
  %v5302 = vld [vmem:[%s5300 + $0x4] sm:$0xf]
  %v5305 = vunpack.c.l.b16 %v5301
  %v5306 = vunpack.c.l.b16 %v5302
  %v5307 = vpack.c.b16 %v5306, %v5305
  %5309 = vmatprep.subr.bf16.mxu0 0
  %5310 = vmatpush1.bf16.msra.mxu0 %v5307
  %5311 = vmatprep.subr.bf16.mxu0 0
  %5312 = vmatpush1.bf16.msra.mxu0 0
  %5313 = vmatprep.subr.bf16.mxu0 0
  %5314 = vmatpush1.bf16.msra.mxu0 0
  %5315 = vmatprep.subr.bf16.mxu0 0
  %5316 = vmatpush1.bf16.msra.mxu0 0
  %5317 = vmatprep.subr.bf16.mxu0 0
  %5318 = vmatpush1.bf16.msra.mxu0 0
  %5319 = vmatprep.subr.bf16.mxu0 0
  %5320 = vmatpush1.bf16.msra.mxu0 0
  %5321 = vmatprep.subr.bf16.mxu0 0
  %5322 = vmatpush1.bf16.msra.mxu0 0
  %5323 = vmatprep.subr.bf16.mxu0 0
  %5324 = vmatpush1.bf16.msra.mxu0 0
  %5325 = vmatprep.subr.bf16.mxu0 0
  %5326 = vmatpush1.bf16.msra.mxu0 0
  %5327 = vmatprep.subr.bf16.mxu0 0
  %5328 = vmatpush1.bf16.msra.mxu0 0
  %5329 = vmatprep.subr.bf16.mxu0 0
  %5330 = vmatpush1.bf16.msra.mxu0 0
  %5331 = vmatprep.subr.bf16.mxu0 0
  %5332 = vmatpush1.bf16.msra.mxu0 0
  %5333 = vmatprep.subr.bf16.mxu0 0
  %5334 = vmatpush1.bf16.msra.mxu0 0
  %5335 = vmatprep.subr.bf16.mxu0 0
  %5336 = vmatpush1.bf16.msra.mxu0 0
  %5337 = vmatprep.subr.bf16.mxu0 0
  %5338 = vmatpush1.bf16.msra.mxu0 0
  %5339 = vmatprep.subr.bf16.mxu0 0
  %5340 = vmatpush1.bf16.msra.mxu0 0
  %5341 = vmatprep.mubr.bf16.mxu0 0
  %5342 = vmatmul.mubr.bf16.gmra.mrb[0].mxu0 %v5188
  %v5343 = vpop.f32.mrb[0].mxu0
  %v5344 = vadd.f32 0.0, %v5343
  %v5345 = vpop.f32.mrb[0].mxu0
  %v5346 = vpop.f32.mrb[0].mxu0
  %v5347 = vadd.f32 0.0, %v5346
  %v5348 = vpop.f32.mrb[0].mxu0
  %5349 = vmatprep.mubr.bf16.mxu0 0
  %5350 = vmatmul.mubr.bf16.gmra.mrb[0].mxu0 %v5191
  %v5351 = vpop.f32.mrb[0].mxu0
  %v5352 = vadd.f32 0.0, %v5351
  %v5353 = vpop.f32.mrb[0].mxu0
  %v5354 = vpop.f32.mrb[0].mxu0
  %v5355 = vadd.f32 0.0, %v5354
  %v5356 = vpop.f32.mrb[0].mxu0
  %5357 = vdwg.mxu0
  %s5358 = scalar_lea.vmem %s16, 24
  %v5359 = vld [vmem:[%s5358] sm:$0xf]
  %v5360 = vld [vmem:[%s5358 + $0x4] sm:$0xf]
  %v5363 = vunpack.c.l.b16 %v5359
  %v5364 = vunpack.c.l.b16 %v5360
  %v5365 = vpack.c.b16 %v5364, %v5363
  %5367 = vmatprep.subr.bf16.mxu0 0
  %5368 = vmatpush1.bf16.msra.mxu0 %v5365
  %5369 = vmatprep.subr.bf16.mxu0 0
  %5370 = vmatpush1.bf16.msra.mxu0 0
  %5371 = vmatprep.subr.bf16.mxu0 0
  %5372 = vmatpush1.bf16.msra.mxu0 0
  %5373 = vmatprep.subr.bf16.mxu0 0
  %5374 = vmatpush1.bf16.msra.mxu0 0
  %5375 = vmatprep.subr.bf16.mxu0 0
  %5376 = vmatpush1.bf16.msra.mxu0 0
  %5377 = vmatprep.subr.bf16.mxu0 0
  %5378 = vmatpush1.bf16.msra.mxu0 0
  %5379 = vmatprep.subr.bf16.mxu0 0
  %5380 = vmatpush1.bf16.msra.mxu0 0
  %5381 = vmatprep.subr.bf16.mxu0 0
  %5382 = vmatpush1.bf16.msra.mxu0 0
  %5383 = vmatprep.subr.bf16.mxu0 0
  %5384 = vmatpush1.bf16.msra.mxu0 0
  %5385 = vmatprep.subr.bf16.mxu0 0
  %5386 = vmatpush1.bf16.msra.mxu0 0
  %5387 = vmatprep.subr.bf16.mxu0 0
  %5388 = vmatpush1.bf16.msra.mxu0 0
  %5389 = vmatprep.subr.bf16.mxu0 0
  %5390 = vmatpush1.bf16.msra.mxu0 0
  %5391 = vmatprep.subr.bf16.mxu0 0
  %5392 = vmatpush1.bf16.msra.mxu0 0
  %5393 = vmatprep.subr.bf16.mxu0 0
  %5394 = vmatpush1.bf16.msra.mxu0 0
  %5395 = vmatprep.subr.bf16.mxu0 0
  %5396 = vmatpush1.bf16.msra.mxu0 0
  %5397 = vmatprep.subr.bf16.mxu0 0
  %5398 = vmatpush1.bf16.msra.mxu0 0
  %5399 = vmatprep.mubr.bf16.mxu0 0
  %5400 = vmatmul.mubr.bf16.gmra.mrb[0].mxu0 %v5188
  %v5401 = vpop.f32.mrb[0].mxu0
  %v5402 = vadd.f32 0.0, %v5401
  %v5403 = vpop.f32.mrb[0].mxu0
  %v5404 = vpop.f32.mrb[0].mxu0
  %v5405 = vadd.f32 0.0, %v5404
  %v5406 = vpop.f32.mrb[0].mxu0
  %5407 = vmatprep.mubr.bf16.mxu0 0
  %5408 = vmatmul.mubr.bf16.gmra.mrb[0].mxu0 %v5191
  %v5409 = vpop.f32.mrb[0].mxu0
  %v5410 = vadd.f32 0.0, %v5409
  %v5411 = vpop.f32.mrb[0].mxu0
  %v5412 = vpop.f32.mrb[0].mxu0
  %v5413 = vadd.f32 0.0, %v5412
  %v5414 = vpop.f32.mrb[0].mxu0
  %5415 = vdwg.mxu0
  %s5416 = scalar_lea.vmem %s16, 32
  %v5417 = vld [vmem:[%s5416] sm:$0xf]
  %v5418 = vld [vmem:[%s5416 + $0x4] sm:$0xf]
  %v5421 = vunpack.c.l.b16 %v5417
  %v5422 = vunpack.c.l.b16 %v5418
  %v5423 = vpack.c.b16 %v5422, %v5421
  %5425 = vmatprep.subr.bf16.mxu0 0
  %5426 = vmatpush1.bf16.msra.mxu0 %v5423
  %5427 = vmatprep.subr.bf16.mxu0 0
  %5428 = vmatpush1.bf16.msra.mxu0 0
  %5429 = vmatprep.subr.bf16.mxu0 0
  %5430 = vmatpush1.bf16.msra.mxu0 0
  %5431 = vmatprep.subr.bf16.mxu0 0
  %5432 = vmatpush1.bf16.msra.mxu0 0
  %5433 = vmatprep.subr.bf16.mxu0 0
  %5434 = vmatpush1.bf16.msra.mxu0 0
  %5435 = vmatprep.subr.bf16.mxu0 0
  %5436 = vmatpush1.bf16.msra.mxu0 0
  %5437 = vmatprep.subr.bf16.mxu0 0
  %5438 = vmatpush1.bf16.msra.mxu0 0
  %5439 = vmatprep.subr.bf16.mxu0 0
  %5440 = vmatpush1.bf16.msra.mxu0 0
  %5441 = vmatprep.subr.bf16.mxu0 0
  %5442 = vmatpush1.bf16.msra.mxu0 0
  %5443 = vmatprep.subr.bf16.mxu0 0
  %5444 = vmatpush1.bf16.msra.mxu0 0
  %5445 = vmatprep.subr.bf16.mxu0 0
  %5446 = vmatpush1.bf16.msra.mxu0 0
  %5447 = vmatprep.subr.bf16.mxu0 0
  %5448 = vmatpush1.bf16.msra.mxu0 0
  %5449 = vmatprep.subr.bf16.mxu0 0
  %5450 = vmatpush1.bf16.msra.mxu0 0
  %5451 = vmatprep.subr.bf16.mxu0 0
  %5452 = vmatpush1.bf16.msra.mxu0 0
  %5453 = vmatprep.subr.bf16.mxu0 0
  %5454 = vmatpush1.bf16.msra.mxu0 0
  %5455 = vmatprep.subr.bf16.mxu0 0
  %5456 = vmatpush1.bf16.msra.mxu0 0
  %5457 = vmatprep.mubr.bf16.mxu0 0
  %5458 = vmatmul.mubr.bf16.gmra.mrb[0].mxu0 %v5188
  %v5459 = vpop.f32.mrb[0].mxu0
  %v5460 = vadd.f32 0.0, %v5459
  %v5461 = vpop.f32.mrb[0].mxu0
  %v5462 = vpop.f32.mrb[0].mxu0
  %v5463 = vadd.f32 0.0, %v5462
  %v5464 = vpop.f32.mrb[0].mxu0
  %5465 = vmatprep.mubr.bf16.mxu0 0
  %5466 = vmatmul.mubr.bf16.gmra.mrb[0].mxu0 %v5191
  %v5467 = vpop.f32.mrb[0].mxu0
  %v5468 = vadd.f32 0.0, %v5467
  %v5469 = vpop.f32.mrb[0].mxu0
  %v5470 = vpop.f32.mrb[0].mxu0
  %v5471 = vadd.f32 0.0, %v5470
  %v5472 = vpop.f32.mrb[0].mxu0
  %5473 = vdwg.mxu0
  %s5474 = scalar_lea.vmem %s16, 40
  %v5475 = vld [vmem:[%s5474] sm:$0xf]
  %v5476 = vld [vmem:[%s5474 + $0x4] sm:$0xf]
  %v5479 = vunpack.c.l.b16 %v5475
  %v5480 = vunpack.c.l.b16 %v5476
  %v5481 = vpack.c.b16 %v5480, %v5479
  %5483 = vmatprep.subr.bf16.mxu0 0
  %5484 = vmatpush1.bf16.msra.mxu0 %v5481
  %5485 = vmatprep.subr.bf16.mxu0 0
  %5486 = vmatpush1.bf16.msra.mxu0 0
  %5487 = vmatprep.subr.bf16.mxu0 0
  %5488 = vmatpush1.bf16.msra.mxu0 0
  %5489 = vmatprep.subr.bf16.mxu0 0
  %5490 = vmatpush1.bf16.msra.mxu0 0
  %5491 = vmatprep.subr.bf16.mxu0 0
  %5492 = vmatpush1.bf16.msra.mxu0 0
  %5493 = vmatprep.subr.bf16.mxu0 0
  %5494 = vmatpush1.bf16.msra.mxu0 0
  %5495 = vmatprep.subr.bf16.mxu0 0
  %5496 = vmatpush1.bf16.msra.mxu0 0
  %5497 = vmatprep.subr.bf16.mxu0 0
  %5498 = vmatpush1.bf16.msra.mxu0 0
  %5499 = vmatprep.subr.bf16.mxu0 0
  %5500 = vmatpush1.bf16.msra.mxu0 0
  %5501 = vmatprep.subr.bf16.mxu0 0
  %5502 = vmatpush1.bf16.msra.mxu0 0
  %5503 = vmatprep.subr.bf16.mxu0 0
  %5504 = vmatpush1.bf16.msra.mxu0 0
  %5505 = vmatprep.subr.bf16.mxu0 0
  %5506 = vmatpush1.bf16.msra.mxu0 0
  %5507 = vmatprep.subr.bf16.mxu0 0
  %5508 = vmatpush1.bf16.msra.mxu0 0
  %5509 = vmatprep.subr.bf16.mxu0 0
  %5510 = vmatpush1.bf16.msra.mxu0 0
  %5511 = vmatprep.subr.bf16.mxu0 0
  %5512 = vmatpush1.bf16.msra.mxu0 0
  %5513 = vmatprep.subr.bf16.mxu0 0
  %5514 = vmatpush1.bf16.msra.mxu0 0
  %5515 = vmatprep.mubr.bf16.mxu0 0
  %5516 = vmatmul.mubr.bf16.gmra.mrb[0].mxu0 %v5188
  %v5517 = vpop.f32.mrb[0].mxu0
  %v5518 = vadd.f32 0.0, %v5517
  %v5519 = vpop.f32.mrb[0].mxu0
  %v5520 = vpop.f32.mrb[0].mxu0
  %v5521 = vadd.f32 0.0, %v5520
  %v5522 = vpop.f32.mrb[0].mxu0
  %5523 = vmatprep.mubr.bf16.mxu0 0
  %5524 = vmatmul.mubr.bf16.gmra.mrb[0].mxu0 %v5191
  %v5525 = vpop.f32.mrb[0].mxu0
  %v5526 = vadd.f32 0.0, %v5525
  %v5527 = vpop.f32.mrb[0].mxu0
  %v5528 = vpop.f32.mrb[0].mxu0
  %v5529 = vadd.f32 0.0, %v5528
  %v5530 = vpop.f32.mrb[0].mxu0
  %5531 = vdwg.mxu0
  %s5532 = scalar_lea.vmem %s16, 48
  %v5533 = vld [vmem:[%s5532] sm:$0xf]
  %v5534 = vld [vmem:[%s5532 + $0x4] sm:$0xf]
  %v5537 = vunpack.c.l.b16 %v5533
  %v5538 = vunpack.c.l.b16 %v5534
  %v5539 = vpack.c.b16 %v5538, %v5537
  %5541 = vmatprep.subr.bf16.mxu0 0
  %5542 = vmatpush1.bf16.msra.mxu0 %v5539
  %5543 = vmatprep.subr.bf16.mxu0 0
  %5544 = vmatpush1.bf16.msra.mxu0 0
  %5545 = vmatprep.subr.bf16.mxu0 0
  %5546 = vmatpush1.bf16.msra.mxu0 0
  %5547 = vmatprep.subr.bf16.mxu0 0
  %5548 = vmatpush1.bf16.msra.mxu0 0
  %5549 = vmatprep.subr.bf16.mxu0 0
  %5550 = vmatpush1.bf16.msra.mxu0 0
  %5551 = vmatprep.subr.bf16.mxu0 0
  %5552 = vmatpush1.bf16.msra.mxu0 0
  %5553 = vmatprep.subr.bf16.mxu0 0
  %5554 = vmatpush1.bf16.msra.mxu0 0
  %5555 = vmatprep.subr.bf16.mxu0 0
  %5556 = vmatpush1.bf16.msra.mxu0 0
  %5557 = vmatprep.subr.bf16.mxu0 0
  %5558 = vmatpush1.bf16.msra.mxu0 0
  %5559 = vmatprep.subr.bf16.mxu0 0
  %5560 = vmatpush1.bf16.msra.mxu0 0
  %5561 = vmatprep.subr.bf16.mxu0 0
  %5562 = vmatpush1.bf16.msra.mxu0 0
  %5563 = vmatprep.subr.bf16.mxu0 0
  %5564 = vmatpush1.bf16.msra.mxu0 0
  %5565 = vmatprep.subr.bf16.mxu0 0
  %5566 = vmatpush1.bf16.msra.mxu0 0
  %5567 = vmatprep.subr.bf16.mxu0 0
  %5568 = vmatpush1.bf16.msra.mxu0 0
  %5569 = vmatprep.subr.bf16.mxu0 0
  %5570 = vmatpush1.bf16.msra.mxu0 0
  %5571 = vmatprep.subr.bf16.mxu0 0
  %5572 = vmatpush1.bf16.msra.mxu0 0
  %5573 = vmatprep.mubr.bf16.mxu0 0
  %5574 = vmatmul.mubr.bf16.gmra.mrb[0].mxu0 %v5188
  %v5575 = vpop.f32.mrb[0].mxu0
  %v5576 = vadd.f32 0.0, %v5575
  %v5577 = vpop.f32.mrb[0].mxu0
  %v5578 = vpop.f32.mrb[0].mxu0
  %v5579 = vadd.f32 0.0, %v5578
  %v5580 = vpop.f32.mrb[0].mxu0
  %5581 = vmatprep.mubr.bf16.mxu0 0
  %5582 = vmatmul.mubr.bf16.gmra.mrb[0].mxu0 %v5191
  %v5583 = vpop.f32.mrb[0].mxu0
  %v5584 = vadd.f32 0.0, %v5583
  %v5585 = vpop.f32.mrb[0].mxu0
  %v5586 = vpop.f32.mrb[0].mxu0
  %v5587 = vadd.f32 0.0, %v5586
  %v5588 = vpop.f32.mrb[0].mxu0
  %5589 = vdwg.mxu0
  %s5590 = scalar_lea.vmem %s16, 56
  %v5591 = vld [vmem:[%s5590] sm:$0xf]
  %v5592 = vld [vmem:[%s5590 + $0x4] sm:$0xf]
  %v5595 = vunpack.c.l.b16 %v5591
  %v5596 = vunpack.c.l.b16 %v5592
  %v5597 = vpack.c.b16 %v5596, %v5595
  %5599 = vmatprep.subr.bf16.mxu0 0
  %5600 = vmatpush1.bf16.msra.mxu0 %v5597
  %5601 = vmatprep.subr.bf16.mxu0 0
  %5602 = vmatpush1.bf16.msra.mxu0 0
  %5603 = vmatprep.subr.bf16.mxu0 0
  %5604 = vmatpush1.bf16.msra.mxu0 0
  %5605 = vmatprep.subr.bf16.mxu0 0
  %5606 = vmatpush1.bf16.msra.mxu0 0
  %5607 = vmatprep.subr.bf16.mxu0 0
  %5608 = vmatpush1.bf16.msra.mxu0 0
  %5609 = vmatprep.subr.bf16.mxu0 0
  %5610 = vmatpush1.bf16.msra.mxu0 0
  %5611 = vmatprep.subr.bf16.mxu0 0
  %5612 = vmatpush1.bf16.msra.mxu0 0
  %5613 = vmatprep.subr.bf16.mxu0 0
  %5614 = vmatpush1.bf16.msra.mxu0 0
  %5615 = vmatprep.subr.bf16.mxu0 0
  %5616 = vmatpush1.bf16.msra.mxu0 0
  %5617 = vmatprep.subr.bf16.mxu0 0
  %5618 = vmatpush1.bf16.msra.mxu0 0
  %5619 = vmatprep.subr.bf16.mxu0 0
  %5620 = vmatpush1.bf16.msra.mxu0 0
  %5621 = vmatprep.subr.bf16.mxu0 0
  %5622 = vmatpush1.bf16.msra.mxu0 0
  %5623 = vmatprep.subr.bf16.mxu0 0
  %5624 = vmatpush1.bf16.msra.mxu0 0
  %5625 = vmatprep.subr.bf16.mxu0 0
  %5626 = vmatpush1.bf16.msra.mxu0 0
  %5627 = vmatprep.subr.bf16.mxu0 0
  %5628 = vmatpush1.bf16.msra.mxu0 0
  %5629 = vmatprep.subr.bf16.mxu0 0
  %5630 = vmatpush1.bf16.msra.mxu0 0
  %5631 = vmatprep.mubr.bf16.mxu0 0
  %5632 = vmatmul.mubr.bf16.gmra.mrb[0].mxu0 %v5188
  %v5633 = vpop.f32.mrb[0].mxu0
  %v5634 = vadd.f32 0.0, %v5633
  %v5635 = vpop.f32.mrb[0].mxu0
  %v5636 = vpop.f32.mrb[0].mxu0
  %v5637 = vadd.f32 0.0, %v5636
  %v5638 = vpop.f32.mrb[0].mxu0
  %5639 = vmatprep.mubr.bf16.mxu0 0
  %5640 = vmatmul.mubr.bf16.gmra.mrb[0].mxu0 %v5191
  %v5641 = vpop.f32.mrb[0].mxu0
  %v5642 = vadd.f32 0.0, %v5641
  %v5643 = vpop.f32.mrb[0].mxu0
  %v5644 = vpop.f32.mrb[0].mxu0
  %v5645 = vadd.f32 0.0, %v5644
  %v5646 = vpop.f32.mrb[0].mxu0
  %5647 = vdwg.mxu0
  %s5648 = scalar_lea.vmem %s16, 64
  %v5649 = vld [vmem:[%s5648] sm:$0xf]
  %v5650 = vld [vmem:[%s5648 + $0x4] sm:$0xf]
  %v5653 = vunpack.c.l.b16 %v5649
  %v5654 = vunpack.c.l.b16 %v5650
  %v5655 = vpack.c.b16 %v5654, %v5653
  %5657 = vmatprep.subr.bf16.mxu0 0
  %5658 = vmatpush1.bf16.msra.mxu0 %v5655
  %5659 = vmatprep.subr.bf16.mxu0 0
  %5660 = vmatpush1.bf16.msra.mxu0 0
  %5661 = vmatprep.subr.bf16.mxu0 0
  %5662 = vmatpush1.bf16.msra.mxu0 0
  %5663 = vmatprep.subr.bf16.mxu0 0
  %5664 = vmatpush1.bf16.msra.mxu0 0
  %5665 = vmatprep.subr.bf16.mxu0 0
  %5666 = vmatpush1.bf16.msra.mxu0 0
  %5667 = vmatprep.subr.bf16.mxu0 0
  %5668 = vmatpush1.bf16.msra.mxu0 0
  %5669 = vmatprep.subr.bf16.mxu0 0
  %5670 = vmatpush1.bf16.msra.mxu0 0
  %5671 = vmatprep.subr.bf16.mxu0 0
  %5672 = vmatpush1.bf16.msra.mxu0 0
  %5673 = vmatprep.subr.bf16.mxu0 0
  %5674 = vmatpush1.bf16.msra.mxu0 0
  %5675 = vmatprep.subr.bf16.mxu0 0
  %5676 = vmatpush1.bf16.msra.mxu0 0
  %5677 = vmatprep.subr.bf16.mxu0 0
  %5678 = vmatpush1.bf16.msra.mxu0 0
  %5679 = vmatprep.subr.bf16.mxu0 0
  %5680 = vmatpush1.bf16.msra.mxu0 0
  %5681 = vmatprep.subr.bf16.mxu0 0
  %5682 = vmatpush1.bf16.msra.mxu0 0
  %5683 = vmatprep.subr.bf16.mxu0 0
  %5684 = vmatpush1.bf16.msra.mxu0 0
  %5685 = vmatprep.subr.bf16.mxu0 0
  %5686 = vmatpush1.bf16.msra.mxu0 0
  %5687 = vmatprep.subr.bf16.mxu0 0
  %5688 = vmatpush1.bf16.msra.mxu0 0
  %5689 = vmatprep.mubr.bf16.mxu0 0
  %5690 = vmatmul.mubr.bf16.gmra.mrb[0].mxu0 %v5188
  %v5691 = vpop.f32.mrb[0].mxu0
  %v5692 = vadd.f32 0.0, %v5691
  %v5693 = vpop.f32.mrb[0].mxu0
  %v5694 = vpop.f32.mrb[0].mxu0
  %v5695 = vadd.f32 0.0, %v5694
  %v5696 = vpop.f32.mrb[0].mxu0
  %5697 = vmatprep.mubr.bf16.mxu0 0
  %5698 = vmatmul.mubr.bf16.gmra.mrb[0].mxu0 %v5191
  %v5699 = vpop.f32.mrb[0].mxu0
  %v5700 = vadd.f32 0.0, %v5699
  %v5701 = vpop.f32.mrb[0].mxu0
  %v5702 = vpop.f32.mrb[0].mxu0
  %v5703 = vadd.f32 0.0, %v5702
  %v5704 = vpop.f32.mrb[0].mxu0
  %5705 = vdwg.mxu0
  %s5706 = scalar_lea.vmem %s16, 72
  %v5707 = vld [vmem:[%s5706] sm:$0xf]
  %v5708 = vld [vmem:[%s5706 + $0x4] sm:$0xf]
  %v5711 = vunpack.c.l.b16 %v5707
  %v5712 = vunpack.c.l.b16 %v5708
  %v5713 = vpack.c.b16 %v5712, %v5711
  %5715 = vmatprep.subr.bf16.mxu0 0
  %5716 = vmatpush1.bf16.msra.mxu0 %v5713
  %5717 = vmatprep.subr.bf16.mxu0 0
  %5718 = vmatpush1.bf16.msra.mxu0 0
  %5719 = vmatprep.subr.bf16.mxu0 0
  %5720 = vmatpush1.bf16.msra.mxu0 0
  %5721 = vmatprep.subr.bf16.mxu0 0
  %5722 = vmatpush1.bf16.msra.mxu0 0
  %5723 = vmatprep.subr.bf16.mxu0 0
  %5724 = vmatpush1.bf16.msra.mxu0 0
  %5725 = vmatprep.subr.bf16.mxu0 0
  %5726 = vmatpush1.bf16.msra.mxu0 0
  %5727 = vmatprep.subr.bf16.mxu0 0
  %5728 = vmatpush1.bf16.msra.mxu0 0
  %5729 = vmatprep.subr.bf16.mxu0 0
  %5730 = vmatpush1.bf16.msra.mxu0 0
  %5731 = vmatprep.subr.bf16.mxu0 0
  %5732 = vmatpush1.bf16.msra.mxu0 0
  %5733 = vmatprep.subr.bf16.mxu0 0
  %5734 = vmatpush1.bf16.msra.mxu0 0
  %5735 = vmatprep.subr.bf16.mxu0 0
  %5736 = vmatpush1.bf16.msra.mxu0 0
  %5737 = vmatprep.subr.bf16.mxu0 0
  %5738 = vmatpush1.bf16.msra.mxu0 0
  %5739 = vmatprep.subr.bf16.mxu0 0
  %5740 = vmatpush1.bf16.msra.mxu0 0
  %5741 = vmatprep.subr.bf16.mxu0 0
  %5742 = vmatpush1.bf16.msra.mxu0 0
  %5743 = vmatprep.subr.bf16.mxu0 0
  %5744 = vmatpush1.bf16.msra.mxu0 0
  %5745 = vmatprep.subr.bf16.mxu0 0
  %5746 = vmatpush1.bf16.msra.mxu0 0
  %5747 = vmatprep.mubr.bf16.mxu0 0
  %5748 = vmatmul.mubr.bf16.gmra.mrb[0].mxu0 %v5188
  %v5749 = vpop.f32.mrb[0].mxu0
  %v5750 = vadd.f32 0.0, %v5749
  %v5751 = vpop.f32.mrb[0].mxu0
  %v5752 = vpop.f32.mrb[0].mxu0
  %v5753 = vadd.f32 0.0, %v5752
  %v5754 = vpop.f32.mrb[0].mxu0
  %5755 = vmatprep.mubr.bf16.mxu0 0
  %5756 = vmatmul.mubr.bf16.gmra.mrb[0].mxu0 %v5191
  %v5757 = vpop.f32.mrb[0].mxu0
  %v5758 = vadd.f32 0.0, %v5757
  %v5759 = vpop.f32.mrb[0].mxu0
  %v5760 = vpop.f32.mrb[0].mxu0
  %v5761 = vadd.f32 0.0, %v5760
  %v5762 = vpop.f32.mrb[0].mxu0
  %5763 = vdwg.mxu0
  %s5764 = scalar_lea.vmem %s16, 80
  %v5765 = vld [vmem:[%s5764] sm:$0xf]
  %v5766 = vld [vmem:[%s5764 + $0x4] sm:$0xf]
  %v5769 = vunpack.c.l.b16 %v5765
  %v5770 = vunpack.c.l.b16 %v5766
  %v5771 = vpack.c.b16 %v5770, %v5769
  %5773 = vmatprep.subr.bf16.mxu0 0
  %5774 = vmatpush1.bf16.msra.mxu0 %v5771
  %5775 = vmatprep.subr.bf16.mxu0 0
  %5776 = vmatpush1.bf16.msra.mxu0 0
  %5777 = vmatprep.subr.bf16.mxu0 0
  %5778 = vmatpush1.bf16.msra.mxu0 0
  %5779 = vmatprep.subr.bf16.mxu0 0
  %5780 = vmatpush1.bf16.msra.mxu0 0
  %5781 = vmatprep.subr.bf16.mxu0 0
  %5782 = vmatpush1.bf16.msra.mxu0 0
  %5783 = vmatprep.subr.bf16.mxu0 0
  %5784 = vmatpush1.bf16.msra.mxu0 0
  %5785 = vmatprep.subr.bf16.mxu0 0
  %5786 = vmatpush1.bf16.msra.mxu0 0
  %5787 = vmatprep.subr.bf16.mxu0 0
  %5788 = vmatpush1.bf16.msra.mxu0 0
  %5789 = vmatprep.subr.bf16.mxu0 0
  %5790 = vmatpush1.bf16.msra.mxu0 0
  %5791 = vmatprep.subr.bf16.mxu0 0
  %5792 = vmatpush1.bf16.msra.mxu0 0
  %5793 = vmatprep.subr.bf16.mxu0 0
  %5794 = vmatpush1.bf16.msra.mxu0 0
  %5795 = vmatprep.subr.bf16.mxu0 0
  %5796 = vmatpush1.bf16.msra.mxu0 0
  %5797 = vmatprep.subr.bf16.mxu0 0
  %5798 = vmatpush1.bf16.msra.mxu0 0
  %5799 = vmatprep.subr.bf16.mxu0 0
  %5800 = vmatpush1.bf16.msra.mxu0 0
  %5801 = vmatprep.subr.bf16.mxu0 0
  %5802 = vmatpush1.bf16.msra.mxu0 0
  %5803 = vmatprep.subr.bf16.mxu0 0
  %5804 = vmatpush1.bf16.msra.mxu0 0
  %5805 = vmatprep.mubr.bf16.mxu0 0
  %5806 = vmatmul.mubr.bf16.gmra.mrb[0].mxu0 %v5188
  %v5807 = vpop.f32.mrb[0].mxu0
  %v5808 = vadd.f32 0.0, %v5807
  %v5809 = vpop.f32.mrb[0].mxu0
  %v5810 = vpop.f32.mrb[0].mxu0
  %v5811 = vadd.f32 0.0, %v5810
  %v5812 = vpop.f32.mrb[0].mxu0
  %5813 = vmatprep.mubr.bf16.mxu0 0
  %5814 = vmatmul.mubr.bf16.gmra.mrb[0].mxu0 %v5191
  %v5815 = vpop.f32.mrb[0].mxu0
  %v5816 = vadd.f32 0.0, %v5815
  %v5817 = vpop.f32.mrb[0].mxu0
  %v5818 = vpop.f32.mrb[0].mxu0
  %v5819 = vadd.f32 0.0, %v5818
  %v5820 = vpop.f32.mrb[0].mxu0
  %5821 = vdwg.mxu0
  %s5822 = scalar_lea.vmem %s16, 88
  %v5823 = vld [vmem:[%s5822] sm:$0xf]
  %v5824 = vld [vmem:[%s5822 + $0x4] sm:$0xf]
  %v5827 = vunpack.c.l.b16 %v5823
  %v5828 = vunpack.c.l.b16 %v5824
  %v5829 = vpack.c.b16 %v5828, %v5827
  %5831 = vmatprep.subr.bf16.mxu0 0
  %5832 = vmatpush1.bf16.msra.mxu0 %v5829
  %5833 = vmatprep.subr.bf16.mxu0 0
  %5834 = vmatpush1.bf16.msra.mxu0 0
  %5835 = vmatprep.subr.bf16.mxu0 0
  %5836 = vmatpush1.bf16.msra.mxu0 0
  %5837 = vmatprep.subr.bf16.mxu0 0
  %5838 = vmatpush1.bf16.msra.mxu0 0
  %5839 = vmatprep.subr.bf16.mxu0 0
  %5840 = vmatpush1.bf16.msra.mxu0 0
  %5841 = vmatprep.subr.bf16.mxu0 0
  %5842 = vmatpush1.bf16.msra.mxu0 0
  %5843 = vmatprep.subr.bf16.mxu0 0
  %5844 = vmatpush1.bf16.msra.mxu0 0
  %5845 = vmatprep.subr.bf16.mxu0 0
  %5846 = vmatpush1.bf16.msra.mxu0 0
  %5847 = vmatprep.subr.bf16.mxu0 0
  %5848 = vmatpush1.bf16.msra.mxu0 0
  %5849 = vmatprep.subr.bf16.mxu0 0
  %5850 = vmatpush1.bf16.msra.mxu0 0
  %5851 = vmatprep.subr.bf16.mxu0 0
  %5852 = vmatpush1.bf16.msra.mxu0 0
  %5853 = vmatprep.subr.bf16.mxu0 0
  %5854 = vmatpush1.bf16.msra.mxu0 0
  %5855 = vmatprep.subr.bf16.mxu0 0
  %5856 = vmatpush1.bf16.msra.mxu0 0
  %5857 = vmatprep.subr.bf16.mxu0 0
  %5858 = vmatpush1.bf16.msra.mxu0 0
  %5859 = vmatprep.subr.bf16.mxu0 0
  %5860 = vmatpush1.bf16.msra.mxu0 0
  %5861 = vmatprep.subr.bf16.mxu0 0
  %5862 = vmatpush1.bf16.msra.mxu0 0
  %5863 = vmatprep.mubr.bf16.mxu0 0
  %5864 = vmatmul.mubr.bf16.gmra.mrb[0].mxu0 %v5188
  %v5865 = vpop.f32.mrb[0].mxu0
  %v5866 = vadd.f32 0.0, %v5865
  %v5867 = vpop.f32.mrb[0].mxu0
  %v5868 = vpop.f32.mrb[0].mxu0
  %v5869 = vadd.f32 0.0, %v5868
  %v5870 = vpop.f32.mrb[0].mxu0
  %5871 = vmatprep.mubr.bf16.mxu0 0
  %5872 = vmatmul.mubr.bf16.gmra.mrb[0].mxu0 %v5191
  %v5873 = vpop.f32.mrb[0].mxu0
  %v5874 = vadd.f32 0.0, %v5873
  %v5875 = vpop.f32.mrb[0].mxu0
  %v5876 = vpop.f32.mrb[0].mxu0
  %v5877 = vadd.f32 0.0, %v5876
  %v5878 = vpop.f32.mrb[0].mxu0
  %5879 = vdwg.mxu0
  %s5880 = scalar_lea.vmem %s16, 96
  %v5881 = vld [vmem:[%s5880] sm:$0xf]
  %v5882 = vld [vmem:[%s5880 + $0x4] sm:$0xf]
  %v5885 = vunpack.c.l.b16 %v5881
  %v5886 = vunpack.c.l.b16 %v5882
  %v5887 = vpack.c.b16 %v5886, %v5885
  %5889 = vmatprep.subr.bf16.mxu0 0
  %5890 = vmatpush1.bf16.msra.mxu0 %v5887
  %5891 = vmatprep.subr.bf16.mxu0 0
  %5892 = vmatpush1.bf16.msra.mxu0 0
  %5893 = vmatprep.subr.bf16.mxu0 0
  %5894 = vmatpush1.bf16.msra.mxu0 0
  %5895 = vmatprep.subr.bf16.mxu0 0
  %5896 = vmatpush1.bf16.msra.mxu0 0
  %5897 = vmatprep.subr.bf16.mxu0 0
  %5898 = vmatpush1.bf16.msra.mxu0 0
  %5899 = vmatprep.subr.bf16.mxu0 0
  %5900 = vmatpush1.bf16.msra.mxu0 0
  %5901 = vmatprep.subr.bf16.mxu0 0
  %5902 = vmatpush1.bf16.msra.mxu0 0
  %5903 = vmatprep.subr.bf16.mxu0 0
  %5904 = vmatpush1.bf16.msra.mxu0 0
  %5905 = vmatprep.subr.bf16.mxu0 0
  %5906 = vmatpush1.bf16.msra.mxu0 0
  %5907 = vmatprep.subr.bf16.mxu0 0
  %5908 = vmatpush1.bf16.msra.mxu0 0
  %5909 = vmatprep.subr.bf16.mxu0 0
  %5910 = vmatpush1.bf16.msra.mxu0 0
  %5911 = vmatprep.subr.bf16.mxu0 0
  %5912 = vmatpush1.bf16.msra.mxu0 0
  %5913 = vmatprep.subr.bf16.mxu0 0
  %5914 = vmatpush1.bf16.msra.mxu0 0
  %5915 = vmatprep.subr.bf16.mxu0 0
  %5916 = vmatpush1.bf16.msra.mxu0 0
  %5917 = vmatprep.subr.bf16.mxu0 0
  %5918 = vmatpush1.bf16.msra.mxu0 0
  %5919 = vmatprep.subr.bf16.mxu0 0
  %5920 = vmatpush1.bf16.msra.mxu0 0
  %5921 = vmatprep.mubr.bf16.mxu0 0
  %5922 = vmatmul.mubr.bf16.gmra.mrb[0].mxu0 %v5188
  %v5923 = vpop.f32.mrb[0].mxu0
  %v5924 = vadd.f32 0.0, %v5923
  %v5925 = vpop.f32.mrb[0].mxu0
  %v5926 = vpop.f32.mrb[0].mxu0
  %v5927 = vadd.f32 0.0, %v5926
  %v5928 = vpop.f32.mrb[0].mxu0
  %5929 = vmatprep.mubr.bf16.mxu0 0
  %5930 = vmatmul.mubr.bf16.gmra.mrb[0].mxu0 %v5191
  %v5931 = vpop.f32.mrb[0].mxu0
  %v5932 = vadd.f32 0.0, %v5931
  %v5933 = vpop.f32.mrb[0].mxu0
  %v5934 = vpop.f32.mrb[0].mxu0
  %v5935 = vadd.f32 0.0, %v5934
  %v5936 = vpop.f32.mrb[0].mxu0
  %5937 = vdwg.mxu0
  %s5938 = scalar_lea.vmem %s16, 104
  %v5939 = vld [vmem:[%s5938] sm:$0xf]
  %v5940 = vld [vmem:[%s5938 + $0x4] sm:$0xf]
  %v5943 = vunpack.c.l.b16 %v5939
  %v5944 = vunpack.c.l.b16 %v5940
  %v5945 = vpack.c.b16 %v5944, %v5943
  %5947 = vmatprep.subr.bf16.mxu0 0
  %5948 = vmatpush1.bf16.msra.mxu0 %v5945
  %5949 = vmatprep.subr.bf16.mxu0 0
  %5950 = vmatpush1.bf16.msra.mxu0 0
  %5951 = vmatprep.subr.bf16.mxu0 0
  %5952 = vmatpush1.bf16.msra.mxu0 0
  %5953 = vmatprep.subr.bf16.mxu0 0
  %5954 = vmatpush1.bf16.msra.mxu0 0
  %5955 = vmatprep.subr.bf16.mxu0 0
  %5956 = vmatpush1.bf16.msra.mxu0 0
  %5957 = vmatprep.subr.bf16.mxu0 0
  %5958 = vmatpush1.bf16.msra.mxu0 0
  %5959 = vmatprep.subr.bf16.mxu0 0
  %5960 = vmatpush1.bf16.msra.mxu0 0
  %5961 = vmatprep.subr.bf16.mxu0 0
  %5962 = vmatpush1.bf16.msra.mxu0 0
  %5963 = vmatprep.subr.bf16.mxu0 0
  %5964 = vmatpush1.bf16.msra.mxu0 0
  %5965 = vmatprep.subr.bf16.mxu0 0
  %5966 = vmatpush1.bf16.msra.mxu0 0
  %5967 = vmatprep.subr.bf16.mxu0 0
  %5968 = vmatpush1.bf16.msra.mxu0 0
  %5969 = vmatprep.subr.bf16.mxu0 0
  %5970 = vmatpush1.bf16.msra.mxu0 0
  %5971 = vmatprep.subr.bf16.mxu0 0
  %5972 = vmatpush1.bf16.msra.mxu0 0
  %5973 = vmatprep.subr.bf16.mxu0 0
  %5974 = vmatpush1.bf16.msra.mxu0 0
  %5975 = vmatprep.subr.bf16.mxu0 0
  %5976 = vmatpush1.bf16.msra.mxu0 0
  %5977 = vmatprep.subr.bf16.mxu0 0
  %5978 = vmatpush1.bf16.msra.mxu0 0
  %5979 = vmatprep.mubr.bf16.mxu0 0
  %5980 = vmatmul.mubr.bf16.gmra.mrb[0].mxu0 %v5188
  %v5981 = vpop.f32.mrb[0].mxu0
  %v5982 = vadd.f32 0.0, %v5981
  %v5983 = vpop.f32.mrb[0].mxu0
  %v5984 = vpop.f32.mrb[0].mxu0
  %v5985 = vadd.f32 0.0, %v5984
  %v5986 = vpop.f32.mrb[0].mxu0
  %5987 = vmatprep.mubr.bf16.mxu0 0
  %5988 = vmatmul.mubr.bf16.gmra.mrb[0].mxu0 %v5191
  %v5989 = vpop.f32.mrb[0].mxu0
  %v5990 = vadd.f32 0.0, %v5989
  %v5991 = vpop.f32.mrb[0].mxu0
  %v5992 = vpop.f32.mrb[0].mxu0
  %v5993 = vadd.f32 0.0, %v5992
  %v5994 = vpop.f32.mrb[0].mxu0
  %5995 = vdwg.mxu0
  %s5996 = scalar_lea.vmem %s16, 112
  %v5997 = vld [vmem:[%s5996] sm:$0xf]
  %v5998 = vld [vmem:[%s5996 + $0x4] sm:$0xf]
  %v6001 = vunpack.c.l.b16 %v5997
  %v6002 = vunpack.c.l.b16 %v5998
  %v6003 = vpack.c.b16 %v6002, %v6001
  %6005 = vmatprep.subr.bf16.mxu0 0
  %6006 = vmatpush1.bf16.msra.mxu0 %v6003
  %6007 = vmatprep.subr.bf16.mxu0 0
  %6008 = vmatpush1.bf16.msra.mxu0 0
  %6009 = vmatprep.subr.bf16.mxu0 0
  %6010 = vmatpush1.bf16.msra.mxu0 0
  %6011 = vmatprep.subr.bf16.mxu0 0
  %6012 = vmatpush1.bf16.msra.mxu0 0
  %6013 = vmatprep.subr.bf16.mxu0 0
  %6014 = vmatpush1.bf16.msra.mxu0 0
  %6015 = vmatprep.subr.bf16.mxu0 0
  %6016 = vmatpush1.bf16.msra.mxu0 0
  %6017 = vmatprep.subr.bf16.mxu0 0
  %6018 = vmatpush1.bf16.msra.mxu0 0
  %6019 = vmatprep.subr.bf16.mxu0 0
  %6020 = vmatpush1.bf16.msra.mxu0 0
  %6021 = vmatprep.subr.bf16.mxu0 0
  %6022 = vmatpush1.bf16.msra.mxu0 0
  %6023 = vmatprep.subr.bf16.mxu0 0
  %6024 = vmatpush1.bf16.msra.mxu0 0
  %6025 = vmatprep.subr.bf16.mxu0 0
  %6026 = vmatpush1.bf16.msra.mxu0 0
  %6027 = vmatprep.subr.bf16.mxu0 0
  %6028 = vmatpush1.bf16.msra.mxu0 0
  %6029 = vmatprep.subr.bf16.mxu0 0
  %6030 = vmatpush1.bf16.msra.mxu0 0
  %6031 = vmatprep.subr.bf16.mxu0 0
  %6032 = vmatpush1.bf16.msra.mxu0 0
  %6033 = vmatprep.subr.bf16.mxu0 0
  %6034 = vmatpush1.bf16.msra.mxu0 0
  %6035 = vmatprep.subr.bf16.mxu0 0
  %6036 = vmatpush1.bf16.msra.mxu0 0
  %6037 = vmatprep.mubr.bf16.mxu0 0
  %6038 = vmatmul.mubr.bf16.gmra.mrb[0].mxu0 %v5188
  %v6039 = vpop.f32.mrb[0].mxu0
  %v6040 = vadd.f32 0.0, %v6039
  %v6041 = vpop.f32.mrb[0].mxu0
  %v6042 = vpop.f32.mrb[0].mxu0
  %v6043 = vadd.f32 0.0, %v6042
  %v6044 = vpop.f32.mrb[0].mxu0
  %6045 = vmatprep.mubr.bf16.mxu0 0
  %6046 = vmatmul.mubr.bf16.gmra.mrb[0].mxu0 %v5191
  %v6047 = vpop.f32.mrb[0].mxu0
  %v6048 = vadd.f32 0.0, %v6047
  %v6049 = vpop.f32.mrb[0].mxu0
  %v6050 = vpop.f32.mrb[0].mxu0
  %v6051 = vadd.f32 0.0, %v6050
  %v6052 = vpop.f32.mrb[0].mxu0
  %6053 = vdwg.mxu0
  %s6054 = scalar_lea.vmem %s16, 120
  %v6055 = vld [vmem:[%s6054] sm:$0xf]
  %v6056 = vld [vmem:[%s6054 + $0x4] sm:$0xf]
  %v6059 = vunpack.c.l.b16 %v6055
  %v6060 = vunpack.c.l.b16 %v6056
  %v6061 = vpack.c.b16 %v6060, %v6059
  %6063 = vmatprep.subr.bf16.mxu0 0
  %6064 = vmatpush1.bf16.msra.mxu0 %v6061
  %6065 = vmatprep.subr.bf16.mxu0 0
  %6066 = vmatpush1.bf16.msra.mxu0 0
  %6067 = vmatprep.subr.bf16.mxu0 0
  %6068 = vmatpush1.bf16.msra.mxu0 0
  %6069 = vmatprep.subr.bf16.mxu0 0
  %6070 = vmatpush1.bf16.msra.mxu0 0
  %6071 = vmatprep.subr.bf16.mxu0 0
  %6072 = vmatpush1.bf16.msra.mxu0 0
  %6073 = vmatprep.subr.bf16.mxu0 0
  %6074 = vmatpush1.bf16.msra.mxu0 0
  %6075 = vmatprep.subr.bf16.mxu0 0
  %6076 = vmatpush1.bf16.msra.mxu0 0
  %6077 = vmatprep.subr.bf16.mxu0 0
  %6078 = vmatpush1.bf16.msra.mxu0 0
  %6079 = vmatprep.subr.bf16.mxu0 0
  %6080 = vmatpush1.bf16.msra.mxu0 0
  %6081 = vmatprep.subr.bf16.mxu0 0
  %6082 = vmatpush1.bf16.msra.mxu0 0
  %6083 = vmatprep.subr.bf16.mxu0 0
  %6084 = vmatpush1.bf16.msra.mxu0 0
  %6085 = vmatprep.subr.bf16.mxu0 0
  %6086 = vmatpush1.bf16.msra.mxu0 0
  %6087 = vmatprep.subr.bf16.mxu0 0
  %6088 = vmatpush1.bf16.msra.mxu0 0
  %6089 = vmatprep.subr.bf16.mxu0 0
  %6090 = vmatpush1.bf16.msra.mxu0 0
  %6091 = vmatprep.subr.bf16.mxu0 0
  %6092 = vmatpush1.bf16.msra.mxu0 0
  %6093 = vmatprep.subr.bf16.mxu0 0
  %6094 = vmatpush1.bf16.msra.mxu0 0
  %6095 = vmatprep.mubr.bf16.mxu0 0
  %6096 = vmatmul.mubr.bf16.gmra.mrb[0].mxu0 %v5188
  %v6097 = vpop.f32.mrb[0].mxu0
  %v6098 = vadd.f32 0.0, %v6097
  %v6099 = vpop.f32.mrb[0].mxu0
  %v6100 = vpop.f32.mrb[0].mxu0
  %v6101 = vadd.f32 0.0, %v6100
  %v6102 = vpop.f32.mrb[0].mxu0
  %6103 = vmatprep.mubr.bf16.mxu0 0
  %6104 = vmatmul.mubr.bf16.gmra.mrb[0].mxu0 %v5191
  %v6105 = vpop.f32.mrb[0].mxu0
  %v6106 = vadd.f32 0.0, %v6105
  %v6107 = vpop.f32.mrb[0].mxu0
  %v6108 = vpop.f32.mrb[0].mxu0
  %v6109 = vadd.f32 0.0, %v6108
  %v6110 = vpop.f32.mrb[0].mxu0
  %6111 = vdwg.mxu0
  %v6112 = vpack.c.bf16 %v5231, %v5228
  %v6113 = vpack.c.bf16 %v5239, %v5236
  %v6114 = vpack.c.bf16 %v5289, %v5286
  %v6115 = vpack.c.bf16 %v5297, %v5294
  %v6116 = vpack.c.bf16 %v5347, %v5344
  %v6117 = vpack.c.bf16 %v5355, %v5352
  %v6118 = vpack.c.bf16 %v5405, %v5402
  %v6119 = vpack.c.bf16 %v5413, %v5410
  %v6120 = vpack.c.bf16 %v5463, %v5460
  %v6121 = vpack.c.bf16 %v5471, %v5468
  %v6122 = vpack.c.bf16 %v5521, %v5518
  %v6123 = vpack.c.bf16 %v5529, %v5526
  %v6124 = vpack.c.bf16 %v5579, %v5576
  %v6125 = vpack.c.bf16 %v5587, %v5584
  %v6126 = vpack.c.bf16 %v5637, %v5634
  %v6127 = vpack.c.bf16 %v5645, %v5642
  %v6128 = vpack.c.bf16 %v5695, %v5692
  %v6129 = vpack.c.bf16 %v5703, %v5700
  %v6130 = vpack.c.bf16 %v5753, %v5750
  %v6131 = vpack.c.bf16 %v5761, %v5758
  %v6132 = vpack.c.bf16 %v5811, %v5808
  %v6133 = vpack.c.bf16 %v5819, %v5816
  %v6134 = vpack.c.bf16 %v5869, %v5866
  %v6135 = vpack.c.bf16 %v5877, %v5874
  %v6136 = vpack.c.bf16 %v5927, %v5924
  %v6137 = vpack.c.bf16 %v5935, %v5932
  %v6138 = vpack.c.bf16 %v5985, %v5982
  %v6139 = vpack.c.bf16 %v5993, %v5990
  %v6140 = vpack.c.bf16 %v6043, %v6040
  %v6141 = vpack.c.bf16 %v6051, %v6048
  %v6142 = vpack.c.bf16 %v6101, %v6098
  %v6143 = vpack.c.bf16 %v6109, %v6106
  %v6148 = vunpack.c.l.b16 %v5169
  %v6149 = vunpack.c.h.b16 %v5169
  %v6150 = vunpack.c.l.b16 %v5170
  %v6151 = vunpack.c.h.b16 %v5170
  %v6152 = vunpack.c.l.b16 %v5171
  %v6153 = vunpack.c.h.b16 %v5171
  %v6154 = vunpack.c.l.b16 %v5172
  %v6155 = vunpack.c.h.b16 %v5172
  %v6156 = vpack.c.b16 %v6152, %v6148
  %v6157 = vpack.c.b16 %v6153, %v6149
  %v6158 = vpack.c.b16 %v6154, %v6150
  %v6159 = vpack.c.b16 %v6155, %v6151
  %6164 = vmatprep.subr.bf16.mxu0 0
  %6165 = vmatpush1.bf16.msra.mxu0 %v6112
  %6166 = vmatprep.subr.bf16.mxu0 0
  %6167 = vmatpush1.bf16.msra.mxu0 %v6113
  %6168 = vmatprep.subr.bf16.mxu0 0
  %6169 = vmatpush1.bf16.msra.mxu0 %v6114
  %6170 = vmatprep.subr.bf16.mxu0 0
  %6171 = vmatpush1.bf16.msra.mxu0 %v6115
  %6172 = vmatprep.subr.bf16.mxu0 0
  %6173 = vmatpush1.bf16.msra.mxu0 %v6116
  %6174 = vmatprep.subr.bf16.mxu0 0
  %6175 = vmatpush1.bf16.msra.mxu0 %v6117
  %6176 = vmatprep.subr.bf16.mxu0 0
  %6177 = vmatpush1.bf16.msra.mxu0 %v6118
  %6178 = vmatprep.subr.bf16.mxu0 0
  %6179 = vmatpush1.bf16.msra.mxu0 %v6119
  %6180 = vmatprep.subr.bf16.mxu0 0
  %6181 = vmatpush1.bf16.msra.mxu0 %v6120
  %6182 = vmatprep.subr.bf16.mxu0 0
  %6183 = vmatpush1.bf16.msra.mxu0 %v6121
  %6184 = vmatprep.subr.bf16.mxu0 0
  %6185 = vmatpush1.bf16.msra.mxu0 %v6122
  %6186 = vmatprep.subr.bf16.mxu0 0
  %6187 = vmatpush1.bf16.msra.mxu0 %v6123
  %6188 = vmatprep.subr.bf16.mxu0 0
  %6189 = vmatpush1.bf16.msra.mxu0 %v6124
  %6190 = vmatprep.subr.bf16.mxu0 0
  %6191 = vmatpush1.bf16.msra.mxu0 %v6125
  %6192 = vmatprep.subr.bf16.mxu0 0
  %6193 = vmatpush1.bf16.msra.mxu0 %v6126
  %6194 = vmatprep.subr.bf16.mxu0 0
  %6195 = vmatpush1.bf16.msra.mxu0 %v6127
  %6196 = vmatprep.mubr.bf16.mxu0 %v6157
  %6197 = vmatmul.mubr.bf16.gmra.mrb[0].mxu0 %v6156
  %v6198 = vpop.f32.mrb[0].mxu0
  %v6199 = vadd.f32 0.0, %v6198
  %v6200 = vpop.f32.mrb[0].mxu0
  %v6201 = vpop.f32.mrb[0].mxu0
  %v6202 = vadd.f32 0.0, %v6201
  %v6203 = vpop.f32.mrb[0].mxu0
  %6204 = vdwg.mxu0
  %6205 = vmatprep.subr.bf16.mxu0 0
  %6206 = vmatpush1.bf16.msra.mxu0 %v6128
  %6207 = vmatprep.subr.bf16.mxu0 0
  %6208 = vmatpush1.bf16.msra.mxu0 %v6129
  %6209 = vmatprep.subr.bf16.mxu0 0
  %6210 = vmatpush1.bf16.msra.mxu0 %v6130
  %6211 = vmatprep.subr.bf16.mxu0 0
  %6212 = vmatpush1.bf16.msra.mxu0 %v6131
  %6213 = vmatprep.subr.bf16.mxu0 0
  %6214 = vmatpush1.bf16.msra.mxu0 %v6132
  %6215 = vmatprep.subr.bf16.mxu0 0
  %6216 = vmatpush1.bf16.msra.mxu0 %v6133
  %6217 = vmatprep.subr.bf16.mxu0 0
  %6218 = vmatpush1.bf16.msra.mxu0 %v6134
  %6219 = vmatprep.subr.bf16.mxu0 0
  %6220 = vmatpush1.bf16.msra.mxu0 %v6135
  %6221 = vmatprep.subr.bf16.mxu0 0
  %6222 = vmatpush1.bf16.msra.mxu0 %v6136
  %6223 = vmatprep.subr.bf16.mxu0 0
  %6224 = vmatpush1.bf16.msra.mxu0 %v6137
  %6225 = vmatprep.subr.bf16.mxu0 0
  %6226 = vmatpush1.bf16.msra.mxu0 %v6138
  %6227 = vmatprep.subr.bf16.mxu0 0
  %6228 = vmatpush1.bf16.msra.mxu0 %v6139
  %6229 = vmatprep.subr.bf16.mxu0 0
  %6230 = vmatpush1.bf16.msra.mxu0 %v6140
  %6231 = vmatprep.subr.bf16.mxu0 0
  %6232 = vmatpush1.bf16.msra.mxu0 %v6141
  %6233 = vmatprep.subr.bf16.mxu0 0
  %6234 = vmatpush1.bf16.msra.mxu0 %v6142
  %6235 = vmatprep.subr.bf16.mxu0 0
  %6236 = vmatpush1.bf16.msra.mxu0 %v6143
  %6237 = vmatprep.mubr.bf16.mxu0 %v6159
  %6238 = vmatmul.mubr.bf16.gmra.mrb[0].mxu0 %v6158
  %v6239 = vpop.f32.mrb[0].mxu0
  %v6240 = vadd.f32 %v6199, %v6239
  %v6241 = vpop.f32.mrb[0].mxu0
  %v6242 = vpop.f32.mrb[0].mxu0
  %v6243 = vadd.f32 %v6202, %v6242
  %v6244 = vpop.f32.mrb[0].mxu0
  %6245 = vdwg.mxu0
  %v6246 = vsel %vm1386, %v6240, 0.0
  %6247 = vadd.xlane.f32.xlu0 %v6246
  %v6248 = vpop.xlane.xlu0 %6247
  %v6249 = vsel %vm1386, %v6243, 0.0
  %6250 = vadd.xlane.f32.xlu0 %v6249
  %v6251 = vpop.xlane.xlu0 %6250
  %v6252 = vadd.f32 %v6248, %v6251
  %v6253 = vmul.f32 %v6252, 0.0078125
  %6255 = vset.pattern.permute.xlu0 0
  %6256 = vperm.xlu0 %6255, %v6253
  %v6257 = vpop.permute.xlu0 %6256
  %v6259 = vsub.f32 %v6240, %v6257
  %v6260 = vsub.f32 %v6243, %v6257
  %v6261 = vmul.f32 %v6259, %v6259
  %v6262 = vmul.f32 %v6260, %v6260
  %v6263 = vsel %vm1386, %v6261, 0.0
  %6264 = vadd.xlane.f32.xlu0 %v6263
  %v6265 = vpop.xlane.xlu0 %6264
  %v6266 = vsel %vm1386, %v6262, 0.0
  %6267 = vadd.xlane.f32.xlu0 %v6266
  %v6268 = vpop.xlane.xlu0 %6267
  %v6269 = vadd.f32 %v6265, %v6268
  %v6270 = vmul.f32 %v6269, 0.0078125
  %v6271 = vadd.f32 %v6270, 1e-05
  %v6272 = vrsqrt.pop %v6271
  %6274 = vset.pattern.permute.xlu0 0
  %6275 = vperm.xlu0 %6274, %v6272
  %v6276 = vpop.permute.xlu0 %6275
  %v6278 = vmul.f32 %v6259, %v6276
  %v6279 = vmul.f32 %v6260, %v6276
  %6281 = vset.pattern.permute.xlu0 0
  %6282 = vperm.xlu0 %6281, %v5173
  %v6283 = vpop.permute.xlu0 %6282
  %6286 = vset.pattern.permute.xlu0 0
  %6287 = vperm.xlu0 %6286, %v5174
  %v6288 = vpop.permute.xlu0 %6287
  %v6290 = vmul.f32 %v6278, %v6283
  %v6291 = vmul.f32 %v6279, %v6288
  %6293 = vset.pattern.permute.xlu0 0
  %6294 = vperm.xlu0 %6293, %v5175
  %v6295 = vpop.permute.xlu0 %6294
  %6298 = vset.pattern.permute.xlu0 0
  %6299 = vperm.xlu0 %6298, %v5176
  %v6300 = vpop.permute.xlu0 %6299
  %v6302 = vadd.f32 %v6290, %v6295
  %v6303 = vadd.f32 %v6291, %v6300
  %vm6304 = vcmp.ge.f32.partialorder %v6302, 0.0
  %vm6305 = vcmp.ge.f32.partialorder %v6303, 0.0
  %v6306 = vmul.f32 %v6302, 0.2
  %v6307 = vmul.f32 %v6303, 0.2
  %v6308 = vsel %vm6304, %v6302, %v6306
  %v6309 = vsel %vm6305, %v6303, %v6307
  %v6310 = vld [vmem:[%s19] sm:$0x77]
  %s6311 = smul.u32 2, 16
  %s6312 = smul.u32 %s6311, 8
  %s6313 = smul.u32 %s6312, 2
  %s6314 = sshll.u32 %s6313, 4
  %6315 = dma.done [#allocation3], %s6314
  %v6316 = vpack.c.bf16 %v6309, %v6308
  %v6317 = vld [vmem:[#allocation2] sm:$0xff]
  %v6318 = vld [vmem:[#allocation2 + $0x8] sm:$0xff]
  %v6319 = vld [vmem:[#allocation2 + $0x10] sm:$0xff]
  %v6320 = vld [vmem:[#allocation2 + $0x18] sm:$0xff]
  %v6321 = vunpack.c.l.s8.bf16 %v6317
  %v6322 = vunpack.c.l.s8.bf16 %v6318
  %v6323 = vunpack.c.h.s8.bf16 %v6317
  %v6324 = vunpack.c.h.s8.bf16 %v6318
  %v6325 = vunpack.c.l.s8.bf16 %v6319
  %v6326 = vunpack.c.l.s8.bf16 %v6320
  %v6327 = vunpack.c.h.s8.bf16 %v6319
  %v6328 = vunpack.c.h.s8.bf16 %v6320
  %v6330 = vsel %vm1386, %v6316, 0
  %6332 = vmatprep.subr.bf16.mxu0 %v6322
  %6333 = vmatpush1.bf16.msra.mxu0 %v6321
  %6334 = vmatprep.subr.bf16.mxu0 %v6324
  %6335 = vmatpush1.bf16.msra.mxu0 %v6323
  %6336 = vmatprep.subr.bf16.mxu0 %v6326
  %6337 = vmatpush1.bf16.msra.mxu0 %v6325
  %6338 = vmatprep.subr.bf16.mxu0 %v6328
  %6339 = vmatpush1.bf16.msra.mxu0 %v6327
  %6340 = vmatprep.subr.bf16.mxu0 0
  %6341 = vmatpush1.bf16.msra.mxu0 0
  %6342 = vmatprep.subr.bf16.mxu0 0
  %6343 = vmatpush1.bf16.msra.mxu0 0
  %6344 = vmatprep.subr.bf16.mxu0 0
  %6345 = vmatpush1.bf16.msra.mxu0 0
  %6346 = vmatprep.subr.bf16.mxu0 0
  %6347 = vmatpush1.bf16.msra.mxu0 0
  %6348 = vmatprep.subr.bf16.mxu0 0
  %6349 = vmatpush1.bf16.msra.mxu0 0
  %6350 = vmatprep.subr.bf16.mxu0 0
  %6351 = vmatpush1.bf16.msra.mxu0 0
  %6352 = vmatprep.subr.bf16.mxu0 0
  %6353 = vmatpush1.bf16.msra.mxu0 0
  %6354 = vmatprep.subr.bf16.mxu0 0
  %6355 = vmatpush1.bf16.msra.mxu0 0
  %6356 = vmatprep.subr.bf16.mxu0 0
  %6357 = vmatpush1.bf16.msra.mxu0 0
  %6358 = vmatprep.subr.bf16.mxu0 0
  %6359 = vmatpush1.bf16.msra.mxu0 0
  %6360 = vmatprep.subr.bf16.mxu0 0
  %6361 = vmatpush1.bf16.msra.mxu0 0
  %6362 = vmatprep.subr.bf16.mxu0 0
  %6363 = vmatpush1.bf16.msra.mxu0 0
  %6364 = vmatprep.mubr.bf16.mxu0 0
  %6365 = vmatmul.mubr.bf16.gmra.mrb[0].mxu0 %v6330
  %v6366 = vpop.f32.mrb[0].mxu0
  %v6367 = vadd.f32 0.0, %v6366
  %v6368 = vpop.f32.mrb[0].mxu0
  %v6369 = vadd.f32 0.0, %v6368
  %v6370 = vpop.f32.mrb[0].mxu0
  %v6371 = vadd.f32 0.0, %v6370
  %v6372 = vpop.f32.mrb[0].mxu0
  %v6373 = vadd.f32 0.0, %v6372
  %6374 = vdwg.mxu0
  %s6375 = scalar_lea.vmem [#allocation2], 32
  %v6376 = vld [vmem:[%s6375] sm:$0xff]
  %v6377 = vld [vmem:[%s6375 + $0x8] sm:$0xff]
  %v6378 = vld [vmem:[%s6375 + $0x10] sm:$0xff]
  %v6379 = vld [vmem:[%s6375 + $0x18] sm:$0xff]
  %v6380 = vunpack.c.l.s8.bf16 %v6376
  %v6381 = vunpack.c.l.s8.bf16 %v6377
  %v6382 = vunpack.c.h.s8.bf16 %v6376
  %v6383 = vunpack.c.h.s8.bf16 %v6377
  %v6384 = vunpack.c.l.s8.bf16 %v6378
  %v6385 = vunpack.c.l.s8.bf16 %v6379
  %v6386 = vunpack.c.h.s8.bf16 %v6378
  %v6387 = vunpack.c.h.s8.bf16 %v6379
  %6388 = vmatprep.subr.bf16.mxu0 %v6381
  %6389 = vmatpush1.bf16.msra.mxu0 %v6380
  %6390 = vmatprep.subr.bf16.mxu0 %v6383
  %6391 = vmatpush1.bf16.msra.mxu0 %v6382
  %6392 = vmatprep.subr.bf16.mxu0 %v6385
  %6393 = vmatpush1.bf16.msra.mxu0 %v6384
  %6394 = vmatprep.subr.bf16.mxu0 %v6387
  %6395 = vmatpush1.bf16.msra.mxu0 %v6386
  %6396 = vmatprep.subr.bf16.mxu0 0
  %6397 = vmatpush1.bf16.msra.mxu0 0
  %6398 = vmatprep.subr.bf16.mxu0 0
  %6399 = vmatpush1.bf16.msra.mxu0 0
  %6400 = vmatprep.subr.bf16.mxu0 0
  %6401 = vmatpush1.bf16.msra.mxu0 0
  %6402 = vmatprep.subr.bf16.mxu0 0
  %6403 = vmatpush1.bf16.msra.mxu0 0
  %6404 = vmatprep.subr.bf16.mxu0 0
  %6405 = vmatpush1.bf16.msra.mxu0 0
  %6406 = vmatprep.subr.bf16.mxu0 0
  %6407 = vmatpush1.bf16.msra.mxu0 0
  %6408 = vmatprep.subr.bf16.mxu0 0
  %6409 = vmatpush1.bf16.msra.mxu0 0
  %6410 = vmatprep.subr.bf16.mxu0 0
  %6411 = vmatpush1.bf16.msra.mxu0 0
  %6412 = vmatprep.subr.bf16.mxu0 0
  %6413 = vmatpush1.bf16.msra.mxu0 0
  %6414 = vmatprep.subr.bf16.mxu0 0
  %6415 = vmatpush1.bf16.msra.mxu0 0
  %6416 = vmatprep.subr.bf16.mxu0 0
  %6417 = vmatpush1.bf16.msra.mxu0 0
  %6418 = vmatprep.subr.bf16.mxu0 0
  %6419 = vmatpush1.bf16.msra.mxu0 0
  %6420 = vmatprep.mubr.bf16.mxu0 0
  %6421 = vmatmul.mubr.bf16.gmra.mrb[0].mxu0 %v6330
  %v6422 = vpop.f32.mrb[0].mxu0
  %v6423 = vadd.f32 0.0, %v6422
  %v6424 = vpop.f32.mrb[0].mxu0
  %v6425 = vadd.f32 0.0, %v6424
  %v6426 = vpop.f32.mrb[0].mxu0
  %v6427 = vadd.f32 0.0, %v6426
  %v6428 = vpop.f32.mrb[0].mxu0
  %v6429 = vadd.f32 0.0, %v6428
  %6430 = vdwg.mxu0
  %s6431 = scalar_lea.vmem [#allocation2], 64
  %v6432 = vld [vmem:[%s6431] sm:$0xff]
  %v6433 = vld [vmem:[%s6431 + $0x8] sm:$0xff]
  %v6434 = vld [vmem:[%s6431 + $0x10] sm:$0xff]
  %v6435 = vld [vmem:[%s6431 + $0x18] sm:$0xff]
  %v6436 = vunpack.c.l.s8.bf16 %v6432
  %v6437 = vunpack.c.l.s8.bf16 %v6433
  %v6438 = vunpack.c.h.s8.bf16 %v6432
  %v6439 = vunpack.c.h.s8.bf16 %v6433
  %v6440 = vunpack.c.l.s8.bf16 %v6434
  %v6441 = vunpack.c.l.s8.bf16 %v6435
  %v6442 = vunpack.c.h.s8.bf16 %v6434
  %v6443 = vunpack.c.h.s8.bf16 %v6435
  %6444 = vmatprep.subr.bf16.mxu0 %v6437
  %6445 = vmatpush1.bf16.msra.mxu0 %v6436
  %6446 = vmatprep.subr.bf16.mxu0 %v6439
  %6447 = vmatpush1.bf16.msra.mxu0 %v6438
  %6448 = vmatprep.subr.bf16.mxu0 %v6441
  %6449 = vmatpush1.bf16.msra.mxu0 %v6440
  %6450 = vmatprep.subr.bf16.mxu0 %v6443
  %6451 = vmatpush1.bf16.msra.mxu0 %v6442
  %6452 = vmatprep.subr.bf16.mxu0 0
  %6453 = vmatpush1.bf16.msra.mxu0 0
  %6454 = vmatprep.subr.bf16.mxu0 0
  %6455 = vmatpush1.bf16.msra.mxu0 0
  %6456 = vmatprep.subr.bf16.mxu0 0
  %6457 = vmatpush1.bf16.msra.mxu0 0
  %6458 = vmatprep.subr.bf16.mxu0 0
  %6459 = vmatpush1.bf16.msra.mxu0 0
  %6460 = vmatprep.subr.bf16.mxu0 0
  %6461 = vmatpush1.bf16.msra.mxu0 0
  %6462 = vmatprep.subr.bf16.mxu0 0
  %6463 = vmatpush1.bf16.msra.mxu0 0
  %6464 = vmatprep.subr.bf16.mxu0 0
  %6465 = vmatpush1.bf16.msra.mxu0 0
  %6466 = vmatprep.subr.bf16.mxu0 0
  %6467 = vmatpush1.bf16.msra.mxu0 0
  %6468 = vmatprep.subr.bf16.mxu0 0
  %6469 = vmatpush1.bf16.msra.mxu0 0
  %6470 = vmatprep.subr.bf16.mxu0 0
  %6471 = vmatpush1.bf16.msra.mxu0 0
  %6472 = vmatprep.subr.bf16.mxu0 0
  %6473 = vmatpush1.bf16.msra.mxu0 0
  %6474 = vmatprep.subr.bf16.mxu0 0
  %6475 = vmatpush1.bf16.msra.mxu0 0
  %6476 = vmatprep.mubr.bf16.mxu0 0
  %6477 = vmatmul.mubr.bf16.gmra.mrb[0].mxu0 %v6330
  %v6478 = vpop.f32.mrb[0].mxu0
  %v6479 = vadd.f32 0.0, %v6478
  %v6480 = vpop.f32.mrb[0].mxu0
  %v6481 = vadd.f32 0.0, %v6480
  %v6482 = vpop.f32.mrb[0].mxu0
  %v6483 = vadd.f32 0.0, %v6482
  %v6484 = vpop.f32.mrb[0].mxu0
  %v6485 = vadd.f32 0.0, %v6484
  %6486 = vdwg.mxu0
  %s6487 = scalar_lea.vmem [#allocation2], 96
  %v6488 = vld [vmem:[%s6487] sm:$0xff]
  %v6489 = vld [vmem:[%s6487 + $0x8] sm:$0xff]
  %v6490 = vld [vmem:[%s6487 + $0x10] sm:$0xff]
  %v6491 = vld [vmem:[%s6487 + $0x18] sm:$0xff]
  %v6492 = vunpack.c.l.s8.bf16 %v6488
  %v6493 = vunpack.c.l.s8.bf16 %v6489
  %v6494 = vunpack.c.h.s8.bf16 %v6488
  %v6495 = vunpack.c.h.s8.bf16 %v6489
  %v6496 = vunpack.c.l.s8.bf16 %v6490
  %v6497 = vunpack.c.l.s8.bf16 %v6491
  %v6498 = vunpack.c.h.s8.bf16 %v6490
  %v6499 = vunpack.c.h.s8.bf16 %v6491
  %6500 = vmatprep.subr.bf16.mxu0 %v6493
  %6501 = vmatpush1.bf16.msra.mxu0 %v6492
  %6502 = vmatprep.subr.bf16.mxu0 %v6495
  %6503 = vmatpush1.bf16.msra.mxu0 %v6494
  %6504 = vmatprep.subr.bf16.mxu0 %v6497
  %6505 = vmatpush1.bf16.msra.mxu0 %v6496
  %6506 = vmatprep.subr.bf16.mxu0 %v6499
  %6507 = vmatpush1.bf16.msra.mxu0 %v6498
  %6508 = vmatprep.subr.bf16.mxu0 0
  %6509 = vmatpush1.bf16.msra.mxu0 0
  %6510 = vmatprep.subr.bf16.mxu0 0
  %6511 = vmatpush1.bf16.msra.mxu0 0
  %6512 = vmatprep.subr.bf16.mxu0 0
  %6513 = vmatpush1.bf16.msra.mxu0 0
  %6514 = vmatprep.subr.bf16.mxu0 0
  %6515 = vmatpush1.bf16.msra.mxu0 0
  %6516 = vmatprep.subr.bf16.mxu0 0
  %6517 = vmatpush1.bf16.msra.mxu0 0
  %6518 = vmatprep.subr.bf16.mxu0 0
  %6519 = vmatpush1.bf16.msra.mxu0 0
  %6520 = vmatprep.subr.bf16.mxu0 0
  %6521 = vmatpush1.bf16.msra.mxu0 0
  %6522 = vmatprep.subr.bf16.mxu0 0
  %6523 = vmatpush1.bf16.msra.mxu0 0
  %6524 = vmatprep.subr.bf16.mxu0 0
  %6525 = vmatpush1.bf16.msra.mxu0 0
  %6526 = vmatprep.subr.bf16.mxu0 0
  %6527 = vmatpush1.bf16.msra.mxu0 0
  %6528 = vmatprep.subr.bf16.mxu0 0
  %6529 = vmatpush1.bf16.msra.mxu0 0
  %6530 = vmatprep.subr.bf16.mxu0 0
  %6531 = vmatpush1.bf16.msra.mxu0 0
  %6532 = vmatprep.mubr.bf16.mxu0 0
  %6533 = vmatmul.mubr.bf16.gmra.mrb[0].mxu0 %v6330
  %v6534 = vpop.f32.mrb[0].mxu0
  %v6535 = vadd.f32 0.0, %v6534
  %v6536 = vpop.f32.mrb[0].mxu0
  %v6537 = vadd.f32 0.0, %v6536
  %v6538 = vpop.f32.mrb[0].mxu0
  %v6539 = vadd.f32 0.0, %v6538
  %v6540 = vpop.f32.mrb[0].mxu0
  %v6541 = vadd.f32 0.0, %v6540
  %6542 = vdwg.mxu0
  %s6543 = scalar_lea.vmem [#allocation2], 128
  %v6544 = vld [vmem:[%s6543] sm:$0xff]
  %v6545 = vld [vmem:[%s6543 + $0x8] sm:$0xff]
  %v6546 = vld [vmem:[%s6543 + $0x10] sm:$0xff]
  %v6547 = vld [vmem:[%s6543 + $0x18] sm:$0xff]
  %v6548 = vunpack.c.l.s8.bf16 %v6544
  %v6549 = vunpack.c.l.s8.bf16 %v6545
  %v6550 = vunpack.c.h.s8.bf16 %v6544
  %v6551 = vunpack.c.h.s8.bf16 %v6545
  %v6552 = vunpack.c.l.s8.bf16 %v6546
  %v6553 = vunpack.c.l.s8.bf16 %v6547
  %v6554 = vunpack.c.h.s8.bf16 %v6546
  %v6555 = vunpack.c.h.s8.bf16 %v6547
  %6556 = vmatprep.subr.bf16.mxu0 %v6549
  %6557 = vmatpush1.bf16.msra.mxu0 %v6548
  %6558 = vmatprep.subr.bf16.mxu0 %v6551
  %6559 = vmatpush1.bf16.msra.mxu0 %v6550
  %6560 = vmatprep.subr.bf16.mxu0 %v6553
  %6561 = vmatpush1.bf16.msra.mxu0 %v6552
  %6562 = vmatprep.subr.bf16.mxu0 %v6555
  %6563 = vmatpush1.bf16.msra.mxu0 %v6554
  %6564 = vmatprep.subr.bf16.mxu0 0
  %6565 = vmatpush1.bf16.msra.mxu0 0
  %6566 = vmatprep.subr.bf16.mxu0 0
  %6567 = vmatpush1.bf16.msra.mxu0 0
  %6568 = vmatprep.subr.bf16.mxu0 0
  %6569 = vmatpush1.bf16.msra.mxu0 0
  %6570 = vmatprep.subr.bf16.mxu0 0
  %6571 = vmatpush1.bf16.msra.mxu0 0
  %6572 = vmatprep.subr.bf16.mxu0 0
  %6573 = vmatpush1.bf16.msra.mxu0 0
  %6574 = vmatprep.subr.bf16.mxu0 0
  %6575 = vmatpush1.bf16.msra.mxu0 0
  %6576 = vmatprep.subr.bf16.mxu0 0
  %6577 = vmatpush1.bf16.msra.mxu0 0
  %6578 = vmatprep.subr.bf16.mxu0 0
  %6579 = vmatpush1.bf16.msra.mxu0 0
  %6580 = vmatprep.subr.bf16.mxu0 0
  %6581 = vmatpush1.bf16.msra.mxu0 0
  %6582 = vmatprep.subr.bf16.mxu0 0
  %6583 = vmatpush1.bf16.msra.mxu0 0
  %6584 = vmatprep.subr.bf16.mxu0 0
  %6585 = vmatpush1.bf16.msra.mxu0 0
  %6586 = vmatprep.subr.bf16.mxu0 0
  %6587 = vmatpush1.bf16.msra.mxu0 0
  %6588 = vmatprep.mubr.bf16.mxu0 0
  %6589 = vmatmul.mubr.bf16.gmra.mrb[0].mxu0 %v6330
  %v6590 = vpop.f32.mrb[0].mxu0
  %v6591 = vadd.f32 0.0, %v6590
  %v6592 = vpop.f32.mrb[0].mxu0
  %v6593 = vadd.f32 0.0, %v6592
  %v6594 = vpop.f32.mrb[0].mxu0
  %v6595 = vadd.f32 0.0, %v6594
  %v6596 = vpop.f32.mrb[0].mxu0
  %v6597 = vadd.f32 0.0, %v6596
  %6598 = vdwg.mxu0
  %s6599 = scalar_lea.vmem [#allocation2], 160
  %v6600 = vld [vmem:[%s6599] sm:$0xff]
  %v6601 = vld [vmem:[%s6599 + $0x8] sm:$0xff]
  %v6602 = vld [vmem:[%s6599 + $0x10] sm:$0xff]
  %v6603 = vld [vmem:[%s6599 + $0x18] sm:$0xff]
  %v6604 = vunpack.c.l.s8.bf16 %v6600
  %v6605 = vunpack.c.l.s8.bf16 %v6601
  %v6606 = vunpack.c.h.s8.bf16 %v6600
  %v6607 = vunpack.c.h.s8.bf16 %v6601
  %v6608 = vunpack.c.l.s8.bf16 %v6602
  %v6609 = vunpack.c.l.s8.bf16 %v6603
  %v6610 = vunpack.c.h.s8.bf16 %v6602
  %v6611 = vunpack.c.h.s8.bf16 %v6603
  %6612 = vmatprep.subr.bf16.mxu0 %v6605
  %6613 = vmatpush1.bf16.msra.mxu0 %v6604
  %6614 = vmatprep.subr.bf16.mxu0 %v6607
  %6615 = vmatpush1.bf16.msra.mxu0 %v6606
  %6616 = vmatprep.subr.bf16.mxu0 %v6609
  %6617 = vmatpush1.bf16.msra.mxu0 %v6608
  %6618 = vmatprep.subr.bf16.mxu0 %v6611
  %6619 = vmatpush1.bf16.msra.mxu0 %v6610
  %6620 = vmatprep.subr.bf16.mxu0 0
  %6621 = vmatpush1.bf16.msra.mxu0 0
  %6622 = vmatprep.subr.bf16.mxu0 0
  %6623 = vmatpush1.bf16.msra.mxu0 0
  %6624 = vmatprep.subr.bf16.mxu0 0
  %6625 = vmatpush1.bf16.msra.mxu0 0
  %6626 = vmatprep.subr.bf16.mxu0 0
  %6627 = vmatpush1.bf16.msra.mxu0 0
  %6628 = vmatprep.subr.bf16.mxu0 0
  %6629 = vmatpush1.bf16.msra.mxu0 0
  %6630 = vmatprep.subr.bf16.mxu0 0
  %6631 = vmatpush1.bf16.msra.mxu0 0
  %6632 = vmatprep.subr.bf16.mxu0 0
  %6633 = vmatpush1.bf16.msra.mxu0 0
  %6634 = vmatprep.subr.bf16.mxu0 0
  %6635 = vmatpush1.bf16.msra.mxu0 0
  %6636 = vmatprep.subr.bf16.mxu0 0
  %6637 = vmatpush1.bf16.msra.mxu0 0
  %6638 = vmatprep.subr.bf16.mxu0 0
  %6639 = vmatpush1.bf16.msra.mxu0 0
  %6640 = vmatprep.subr.bf16.mxu0 0
  %6641 = vmatpush1.bf16.msra.mxu0 0
  %6642 = vmatprep.subr.bf16.mxu0 0
  %6643 = vmatpush1.bf16.msra.mxu0 0
  %6644 = vmatprep.mubr.bf16.mxu0 0
  %6645 = vmatmul.mubr.bf16.gmra.mrb[0].mxu0 %v6330
  %v6646 = vpop.f32.mrb[0].mxu0
  %v6647 = vadd.f32 0.0, %v6646
  %v6648 = vpop.f32.mrb[0].mxu0
  %v6649 = vadd.f32 0.0, %v6648
  %v6650 = vpop.f32.mrb[0].mxu0
  %v6651 = vadd.f32 0.0, %v6650
  %v6652 = vpop.f32.mrb[0].mxu0
  %v6653 = vadd.f32 0.0, %v6652
  %6654 = vdwg.mxu0
  %s6655 = scalar_lea.vmem [#allocation2], 192
  %v6656 = vld [vmem:[%s6655] sm:$0xff]
  %v6657 = vld [vmem:[%s6655 + $0x8] sm:$0xff]
  %v6658 = vld [vmem:[%s6655 + $0x10] sm:$0xff]
  %v6659 = vld [vmem:[%s6655 + $0x18] sm:$0xff]
  %v6660 = vunpack.c.l.s8.bf16 %v6656
  %v6661 = vunpack.c.l.s8.bf16 %v6657
  %v6662 = vunpack.c.h.s8.bf16 %v6656
  %v6663 = vunpack.c.h.s8.bf16 %v6657
  %v6664 = vunpack.c.l.s8.bf16 %v6658
  %v6665 = vunpack.c.l.s8.bf16 %v6659
  %v6666 = vunpack.c.h.s8.bf16 %v6658
  %v6667 = vunpack.c.h.s8.bf16 %v6659
  %6668 = vmatprep.subr.bf16.mxu0 %v6661
  %6669 = vmatpush1.bf16.msra.mxu0 %v6660
  %6670 = vmatprep.subr.bf16.mxu0 %v6663
  %6671 = vmatpush1.bf16.msra.mxu0 %v6662
  %6672 = vmatprep.subr.bf16.mxu0 %v6665
  %6673 = vmatpush1.bf16.msra.mxu0 %v6664
  %6674 = vmatprep.subr.bf16.mxu0 %v6667
  %6675 = vmatpush1.bf16.msra.mxu0 %v6666
  %6676 = vmatprep.subr.bf16.mxu0 0
  %6677 = vmatpush1.bf16.msra.mxu0 0
  %6678 = vmatprep.subr.bf16.mxu0 0
  %6679 = vmatpush1.bf16.msra.mxu0 0
  %6680 = vmatprep.subr.bf16.mxu0 0
  %6681 = vmatpush1.bf16.msra.mxu0 0
  %6682 = vmatprep.subr.bf16.mxu0 0
  %6683 = vmatpush1.bf16.msra.mxu0 0
  %6684 = vmatprep.subr.bf16.mxu0 0
  %6685 = vmatpush1.bf16.msra.mxu0 0
  %6686 = vmatprep.subr.bf16.mxu0 0
  %6687 = vmatpush1.bf16.msra.mxu0 0
  %6688 = vmatprep.subr.bf16.mxu0 0
  %6689 = vmatpush1.bf16.msra.mxu0 0
  %6690 = vmatprep.subr.bf16.mxu0 0
  %6691 = vmatpush1.bf16.msra.mxu0 0
  %6692 = vmatprep.subr.bf16.mxu0 0
  %6693 = vmatpush1.bf16.msra.mxu0 0
  %6694 = vmatprep.subr.bf16.mxu0 0
  %6695 = vmatpush1.bf16.msra.mxu0 0
  %6696 = vmatprep.subr.bf16.mxu0 0
  %6697 = vmatpush1.bf16.msra.mxu0 0
  %6698 = vmatprep.subr.bf16.mxu0 0
  %6699 = vmatpush1.bf16.msra.mxu0 0
  %6700 = vmatprep.mubr.bf16.mxu0 0
  %6701 = vmatmul.mubr.bf16.gmra.mrb[0].mxu0 %v6330
  %v6702 = vpop.f32.mrb[0].mxu0
  %v6703 = vadd.f32 0.0, %v6702
  %v6704 = vpop.f32.mrb[0].mxu0
  %v6705 = vadd.f32 0.0, %v6704
  %v6706 = vpop.f32.mrb[0].mxu0
  %v6707 = vadd.f32 0.0, %v6706
  %v6708 = vpop.f32.mrb[0].mxu0
  %v6709 = vadd.f32 0.0, %v6708
  %6710 = vdwg.mxu0
  %s6711 = scalar_lea.vmem [#allocation2], 224
  %v6712 = vld [vmem:[%s6711] sm:$0xff]
  %v6713 = vld [vmem:[%s6711 + $0x8] sm:$0xff]
  %v6714 = vld [vmem:[%s6711 + $0x10] sm:$0xff]
  %v6715 = vld [vmem:[%s6711 + $0x18] sm:$0xff]
  %v6716 = vunpack.c.l.s8.bf16 %v6712
  %v6717 = vunpack.c.l.s8.bf16 %v6713
  %v6718 = vunpack.c.h.s8.bf16 %v6712
  %v6719 = vunpack.c.h.s8.bf16 %v6713
  %v6720 = vunpack.c.l.s8.bf16 %v6714
  %v6721 = vunpack.c.l.s8.bf16 %v6715
  %v6722 = vunpack.c.h.s8.bf16 %v6714
  %v6723 = vunpack.c.h.s8.bf16 %v6715
  %6724 = vmatprep.subr.bf16.mxu0 %v6717
  %6725 = vmatpush1.bf16.msra.mxu0 %v6716
  %6726 = vmatprep.subr.bf16.mxu0 %v6719
  %6727 = vmatpush1.bf16.msra.mxu0 %v6718
  %6728 = vmatprep.subr.bf16.mxu0 %v6721
  %6729 = vmatpush1.bf16.msra.mxu0 %v6720
  %6730 = vmatprep.subr.bf16.mxu0 %v6723
  %6731 = vmatpush1.bf16.msra.mxu0 %v6722
  %6732 = vmatprep.subr.bf16.mxu0 0
  %6733 = vmatpush1.bf16.msra.mxu0 0
  %6734 = vmatprep.subr.bf16.mxu0 0
  %6735 = vmatpush1.bf16.msra.mxu0 0
  %6736 = vmatprep.subr.bf16.mxu0 0
  %6737 = vmatpush1.bf16.msra.mxu0 0
  %6738 = vmatprep.subr.bf16.mxu0 0
  %6739 = vmatpush1.bf16.msra.mxu0 0
  %6740 = vmatprep.subr.bf16.mxu0 0
  %6741 = vmatpush1.bf16.msra.mxu0 0
  %6742 = vmatprep.subr.bf16.mxu0 0
  %6743 = vmatpush1.bf16.msra.mxu0 0
  %6744 = vmatprep.subr.bf16.mxu0 0
  %6745 = vmatpush1.bf16.msra.mxu0 0
  %6746 = vmatprep.subr.bf16.mxu0 0
  %6747 = vmatpush1.bf16.msra.mxu0 0
  %6748 = vmatprep.subr.bf16.mxu0 0
  %6749 = vmatpush1.bf16.msra.mxu0 0
  %6750 = vmatprep.subr.bf16.mxu0 0
  %6751 = vmatpush1.bf16.msra.mxu0 0
  %6752 = vmatprep.subr.bf16.mxu0 0
  %6753 = vmatpush1.bf16.msra.mxu0 0
  %6754 = vmatprep.subr.bf16.mxu0 0
  %6755 = vmatpush1.bf16.msra.mxu0 0
  %6756 = vmatprep.mubr.bf16.mxu0 0
  %6757 = vmatmul.mubr.bf16.gmra.mrb[0].mxu0 %v6330
  %v6758 = vpop.f32.mrb[0].mxu0
  %v6759 = vadd.f32 0.0, %v6758
  %v6760 = vpop.f32.mrb[0].mxu0
  %v6761 = vadd.f32 0.0, %v6760
  %v6762 = vpop.f32.mrb[0].mxu0
  %v6763 = vadd.f32 0.0, %v6762
  %v6764 = vpop.f32.mrb[0].mxu0
  %v6765 = vadd.f32 0.0, %v6764
  %6766 = vdwg.mxu0
  %s6767 = scalar_lea.vmem [#allocation2], 256
  %v6768 = vld [vmem:[%s6767] sm:$0xff]
  %v6769 = vld [vmem:[%s6767 + $0x8] sm:$0xff]
  %v6770 = vld [vmem:[%s6767 + $0x10] sm:$0xff]
  %v6771 = vld [vmem:[%s6767 + $0x18] sm:$0xff]
  %v6772 = vunpack.c.l.s8.bf16 %v6768
  %v6773 = vunpack.c.l.s8.bf16 %v6769
  %v6774 = vunpack.c.h.s8.bf16 %v6768
  %v6775 = vunpack.c.h.s8.bf16 %v6769
  %v6776 = vunpack.c.l.s8.bf16 %v6770
  %v6777 = vunpack.c.l.s8.bf16 %v6771
  %v6778 = vunpack.c.h.s8.bf16 %v6770
  %v6779 = vunpack.c.h.s8.bf16 %v6771
  %6780 = vmatprep.subr.bf16.mxu0 %v6773
  %6781 = vmatpush1.bf16.msra.mxu0 %v6772
  %6782 = vmatprep.subr.bf16.mxu0 %v6775
  %6783 = vmatpush1.bf16.msra.mxu0 %v6774
  %6784 = vmatprep.subr.bf16.mxu0 %v6777
  %6785 = vmatpush1.bf16.msra.mxu0 %v6776
  %6786 = vmatprep.subr.bf16.mxu0 %v6779
  %6787 = vmatpush1.bf16.msra.mxu0 %v6778
  %6788 = vmatprep.subr.bf16.mxu0 0
  %6789 = vmatpush1.bf16.msra.mxu0 0
  %6790 = vmatprep.subr.bf16.mxu0 0
  %6791 = vmatpush1.bf16.msra.mxu0 0
  %6792 = vmatprep.subr.bf16.mxu0 0
  %6793 = vmatpush1.bf16.msra.mxu0 0
  %6794 = vmatprep.subr.bf16.mxu0 0
  %6795 = vmatpush1.bf16.msra.mxu0 0
  %6796 = vmatprep.subr.bf16.mxu0 0
  %6797 = vmatpush1.bf16.msra.mxu0 0
  %6798 = vmatprep.subr.bf16.mxu0 0
  %6799 = vmatpush1.bf16.msra.mxu0 0
  %6800 = vmatprep.subr.bf16.mxu0 0
  %6801 = vmatpush1.bf16.msra.mxu0 0
  %6802 = vmatprep.subr.bf16.mxu0 0
  %6803 = vmatpush1.bf16.msra.mxu0 0
  %6804 = vmatprep.subr.bf16.mxu0 0
  %6805 = vmatpush1.bf16.msra.mxu0 0
  %6806 = vmatprep.subr.bf16.mxu0 0
  %6807 = vmatpush1.bf16.msra.mxu0 0
  %6808 = vmatprep.subr.bf16.mxu0 0
  %6809 = vmatpush1.bf16.msra.mxu0 0
  %6810 = vmatprep.subr.bf16.mxu0 0
  %6811 = vmatpush1.bf16.msra.mxu0 0
  %6812 = vmatprep.mubr.bf16.mxu0 0
  %6813 = vmatmul.mubr.bf16.gmra.mrb[0].mxu0 %v6330
  %v6814 = vpop.f32.mrb[0].mxu0
  %v6815 = vadd.f32 0.0, %v6814
  %v6816 = vpop.f32.mrb[0].mxu0
  %v6817 = vadd.f32 0.0, %v6816
  %v6818 = vpop.f32.mrb[0].mxu0
  %v6819 = vadd.f32 0.0, %v6818
  %v6820 = vpop.f32.mrb[0].mxu0
  %v6821 = vadd.f32 0.0, %v6820
  %6822 = vdwg.mxu0
  %s6823 = scalar_lea.vmem [#allocation2], 288
  %v6824 = vld [vmem:[%s6823] sm:$0xff]
  %v6825 = vld [vmem:[%s6823 + $0x8] sm:$0xff]
  %v6826 = vld [vmem:[%s6823 + $0x10] sm:$0xff]
  %v6827 = vld [vmem:[%s6823 + $0x18] sm:$0xff]
  %v6828 = vunpack.c.l.s8.bf16 %v6824
  %v6829 = vunpack.c.l.s8.bf16 %v6825
  %v6830 = vunpack.c.h.s8.bf16 %v6824
  %v6831 = vunpack.c.h.s8.bf16 %v6825
  %v6832 = vunpack.c.l.s8.bf16 %v6826
  %v6833 = vunpack.c.l.s8.bf16 %v6827
  %v6834 = vunpack.c.h.s8.bf16 %v6826
  %v6835 = vunpack.c.h.s8.bf16 %v6827
  %6836 = vmatprep.subr.bf16.mxu0 %v6829
  %6837 = vmatpush1.bf16.msra.mxu0 %v6828
  %6838 = vmatprep.subr.bf16.mxu0 %v6831
  %6839 = vmatpush1.bf16.msra.mxu0 %v6830
  %6840 = vmatprep.subr.bf16.mxu0 %v6833
  %6841 = vmatpush1.bf16.msra.mxu0 %v6832
  %6842 = vmatprep.subr.bf16.mxu0 %v6835
  %6843 = vmatpush1.bf16.msra.mxu0 %v6834
  %6844 = vmatprep.subr.bf16.mxu0 0
  %6845 = vmatpush1.bf16.msra.mxu0 0
  %6846 = vmatprep.subr.bf16.mxu0 0
  %6847 = vmatpush1.bf16.msra.mxu0 0
  %6848 = vmatprep.subr.bf16.mxu0 0
  %6849 = vmatpush1.bf16.msra.mxu0 0
  %6850 = vmatprep.subr.bf16.mxu0 0
  %6851 = vmatpush1.bf16.msra.mxu0 0
  %6852 = vmatprep.subr.bf16.mxu0 0
  %6853 = vmatpush1.bf16.msra.mxu0 0
  %6854 = vmatprep.subr.bf16.mxu0 0
  %6855 = vmatpush1.bf16.msra.mxu0 0
  %6856 = vmatprep.subr.bf16.mxu0 0
  %6857 = vmatpush1.bf16.msra.mxu0 0
  %6858 = vmatprep.subr.bf16.mxu0 0
  %6859 = vmatpush1.bf16.msra.mxu0 0
  %6860 = vmatprep.subr.bf16.mxu0 0
  %6861 = vmatpush1.bf16.msra.mxu0 0
  %6862 = vmatprep.subr.bf16.mxu0 0
  %6863 = vmatpush1.bf16.msra.mxu0 0
  %6864 = vmatprep.subr.bf16.mxu0 0
  %6865 = vmatpush1.bf16.msra.mxu0 0
  %6866 = vmatprep.subr.bf16.mxu0 0
  %6867 = vmatpush1.bf16.msra.mxu0 0
  %6868 = vmatprep.mubr.bf16.mxu0 0
  %6869 = vmatmul.mubr.bf16.gmra.mrb[0].mxu0 %v6330
  %v6870 = vpop.f32.mrb[0].mxu0
  %v6871 = vadd.f32 0.0, %v6870
  %v6872 = vpop.f32.mrb[0].mxu0
  %v6873 = vadd.f32 0.0, %v6872
  %v6874 = vpop.f32.mrb[0].mxu0
  %v6875 = vadd.f32 0.0, %v6874
  %v6876 = vpop.f32.mrb[0].mxu0
  %v6877 = vadd.f32 0.0, %v6876
  %6878 = vdwg.mxu0
  %s6879 = scalar_lea.vmem [#allocation2], 320
  %v6880 = vld [vmem:[%s6879] sm:$0xff]
  %v6881 = vld [vmem:[%s6879 + $0x8] sm:$0xff]
  %v6882 = vld [vmem:[%s6879 + $0x10] sm:$0xff]
  %v6883 = vld [vmem:[%s6879 + $0x18] sm:$0xff]
  %v6884 = vunpack.c.l.s8.bf16 %v6880
  %v6885 = vunpack.c.l.s8.bf16 %v6881
  %v6886 = vunpack.c.h.s8.bf16 %v6880
  %v6887 = vunpack.c.h.s8.bf16 %v6881
  %v6888 = vunpack.c.l.s8.bf16 %v6882
  %v6889 = vunpack.c.l.s8.bf16 %v6883
  %v6890 = vunpack.c.h.s8.bf16 %v6882
  %v6891 = vunpack.c.h.s8.bf16 %v6883
  %6892 = vmatprep.subr.bf16.mxu0 %v6885
  %6893 = vmatpush1.bf16.msra.mxu0 %v6884
  %6894 = vmatprep.subr.bf16.mxu0 %v6887
  %6895 = vmatpush1.bf16.msra.mxu0 %v6886
  %6896 = vmatprep.subr.bf16.mxu0 %v6889
  %6897 = vmatpush1.bf16.msra.mxu0 %v6888
  %6898 = vmatprep.subr.bf16.mxu0 %v6891
  %6899 = vmatpush1.bf16.msra.mxu0 %v6890
  %6900 = vmatprep.subr.bf16.mxu0 0
  %6901 = vmatpush1.bf16.msra.mxu0 0
  %6902 = vmatprep.subr.bf16.mxu0 0
  %6903 = vmatpush1.bf16.msra.mxu0 0
  %6904 = vmatprep.subr.bf16.mxu0 0
  %6905 = vmatpush1.bf16.msra.mxu0 0
  %6906 = vmatprep.subr.bf16.mxu0 0
  %6907 = vmatpush1.bf16.msra.mxu0 0
  %6908 = vmatprep.subr.bf16.mxu0 0
  %6909 = vmatpush1.bf16.msra.mxu0 0
  %6910 = vmatprep.subr.bf16.mxu0 0
  %6911 = vmatpush1.bf16.msra.mxu0 0
  %6912 = vmatprep.subr.bf16.mxu0 0
  %6913 = vmatpush1.bf16.msra.mxu0 0
  %6914 = vmatprep.subr.bf16.mxu0 0
  %6915 = vmatpush1.bf16.msra.mxu0 0
  %6916 = vmatprep.subr.bf16.mxu0 0
  %6917 = vmatpush1.bf16.msra.mxu0 0
  %6918 = vmatprep.subr.bf16.mxu0 0
  %6919 = vmatpush1.bf16.msra.mxu0 0
  %6920 = vmatprep.subr.bf16.mxu0 0
  %6921 = vmatpush1.bf16.msra.mxu0 0
  %6922 = vmatprep.subr.bf16.mxu0 0
  %6923 = vmatpush1.bf16.msra.mxu0 0
  %6924 = vmatprep.mubr.bf16.mxu0 0
  %6925 = vmatmul.mubr.bf16.gmra.mrb[0].mxu0 %v6330
  %v6926 = vpop.f32.mrb[0].mxu0
  %v6927 = vadd.f32 0.0, %v6926
  %v6928 = vpop.f32.mrb[0].mxu0
  %v6929 = vadd.f32 0.0, %v6928
  %v6930 = vpop.f32.mrb[0].mxu0
  %v6931 = vadd.f32 0.0, %v6930
  %v6932 = vpop.f32.mrb[0].mxu0
  %v6933 = vadd.f32 0.0, %v6932
  %6934 = vdwg.mxu0
  %s6935 = scalar_lea.vmem [#allocation2], 352
  %v6936 = vld [vmem:[%s6935] sm:$0xff]
  %v6937 = vld [vmem:[%s6935 + $0x8] sm:$0xff]
  %v6938 = vld [vmem:[%s6935 + $0x10] sm:$0xff]
  %v6939 = vld [vmem:[%s6935 + $0x18] sm:$0xff]
  %v6940 = vunpack.c.l.s8.bf16 %v6936
  %v6941 = vunpack.c.l.s8.bf16 %v6937
  %v6942 = vunpack.c.h.s8.bf16 %v6936
  %v6943 = vunpack.c.h.s8.bf16 %v6937
  %v6944 = vunpack.c.l.s8.bf16 %v6938
  %v6945 = vunpack.c.l.s8.bf16 %v6939
  %v6946 = vunpack.c.h.s8.bf16 %v6938
  %v6947 = vunpack.c.h.s8.bf16 %v6939
  %6948 = vmatprep.subr.bf16.mxu0 %v6941
  %6949 = vmatpush1.bf16.msra.mxu0 %v6940
  %6950 = vmatprep.subr.bf16.mxu0 %v6943
  %6951 = vmatpush1.bf16.msra.mxu0 %v6942
  %6952 = vmatprep.subr.bf16.mxu0 %v6945
  %6953 = vmatpush1.bf16.msra.mxu0 %v6944
  %6954 = vmatprep.subr.bf16.mxu0 %v6947
  %6955 = vmatpush1.bf16.msra.mxu0 %v6946
  %6956 = vmatprep.subr.bf16.mxu0 0
  %6957 = vmatpush1.bf16.msra.mxu0 0
  %6958 = vmatprep.subr.bf16.mxu0 0
  %6959 = vmatpush1.bf16.msra.mxu0 0
  %6960 = vmatprep.subr.bf16.mxu0 0
  %6961 = vmatpush1.bf16.msra.mxu0 0
  %6962 = vmatprep.subr.bf16.mxu0 0
  %6963 = vmatpush1.bf16.msra.mxu0 0
  %6964 = vmatprep.subr.bf16.mxu0 0
  %6965 = vmatpush1.bf16.msra.mxu0 0
  %6966 = vmatprep.subr.bf16.mxu0 0
  %6967 = vmatpush1.bf16.msra.mxu0 0
  %6968 = vmatprep.subr.bf16.mxu0 0
  %6969 = vmatpush1.bf16.msra.mxu0 0
  %6970 = vmatprep.subr.bf16.mxu0 0
  %6971 = vmatpush1.bf16.msra.mxu0 0
  %6972 = vmatprep.subr.bf16.mxu0 0
  %6973 = vmatpush1.bf16.msra.mxu0 0
  %6974 = vmatprep.subr.bf16.mxu0 0
  %6975 = vmatpush1.bf16.msra.mxu0 0
  %6976 = vmatprep.subr.bf16.mxu0 0
  %6977 = vmatpush1.bf16.msra.mxu0 0
  %6978 = vmatprep.subr.bf16.mxu0 0
  %6979 = vmatpush1.bf16.msra.mxu0 0
  %6980 = vmatprep.mubr.bf16.mxu0 0
  %6981 = vmatmul.mubr.bf16.gmra.mrb[0].mxu0 %v6330
  %v6982 = vpop.f32.mrb[0].mxu0
  %v6983 = vadd.f32 0.0, %v6982
  %v6984 = vpop.f32.mrb[0].mxu0
  %v6985 = vadd.f32 0.0, %v6984
  %v6986 = vpop.f32.mrb[0].mxu0
  %v6987 = vadd.f32 0.0, %v6986
  %v6988 = vpop.f32.mrb[0].mxu0
  %v6989 = vadd.f32 0.0, %v6988
  %6990 = vdwg.mxu0
  %s6991 = scalar_lea.vmem [#allocation2], 384
  %v6992 = vld [vmem:[%s6991] sm:$0xff]
  %v6993 = vld [vmem:[%s6991 + $0x8] sm:$0xff]
  %v6994 = vld [vmem:[%s6991 + $0x10] sm:$0xff]
  %v6995 = vld [vmem:[%s6991 + $0x18] sm:$0xff]
  %v6996 = vunpack.c.l.s8.bf16 %v6992
  %v6997 = vunpack.c.l.s8.bf16 %v6993
  %v6998 = vunpack.c.h.s8.bf16 %v6992
  %v6999 = vunpack.c.h.s8.bf16 %v6993
  %v7000 = vunpack.c.l.s8.bf16 %v6994
  %v7001 = vunpack.c.l.s8.bf16 %v6995
  %v7002 = vunpack.c.h.s8.bf16 %v6994
  %v7003 = vunpack.c.h.s8.bf16 %v6995
  %7004 = vmatprep.subr.bf16.mxu0 %v6997
  %7005 = vmatpush1.bf16.msra.mxu0 %v6996
  %7006 = vmatprep.subr.bf16.mxu0 %v6999
  %7007 = vmatpush1.bf16.msra.mxu0 %v6998
  %7008 = vmatprep.subr.bf16.mxu0 %v7001
  %7009 = vmatpush1.bf16.msra.mxu0 %v7000
  %7010 = vmatprep.subr.bf16.mxu0 %v7003
  %7011 = vmatpush1.bf16.msra.mxu0 %v7002
  %7012 = vmatprep.subr.bf16.mxu0 0
  %7013 = vmatpush1.bf16.msra.mxu0 0
  %7014 = vmatprep.subr.bf16.mxu0 0
  %7015 = vmatpush1.bf16.msra.mxu0 0
  %7016 = vmatprep.subr.bf16.mxu0 0
  %7017 = vmatpush1.bf16.msra.mxu0 0
  %7018 = vmatprep.subr.bf16.mxu0 0
  %7019 = vmatpush1.bf16.msra.mxu0 0
  %7020 = vmatprep.subr.bf16.mxu0 0
  %7021 = vmatpush1.bf16.msra.mxu0 0
  %7022 = vmatprep.subr.bf16.mxu0 0
  %7023 = vmatpush1.bf16.msra.mxu0 0
  %7024 = vmatprep.subr.bf16.mxu0 0
  %7025 = vmatpush1.bf16.msra.mxu0 0
  %7026 = vmatprep.subr.bf16.mxu0 0
  %7027 = vmatpush1.bf16.msra.mxu0 0
  %7028 = vmatprep.subr.bf16.mxu0 0
  %7029 = vmatpush1.bf16.msra.mxu0 0
  %7030 = vmatprep.subr.bf16.mxu0 0
  %7031 = vmatpush1.bf16.msra.mxu0 0
  %7032 = vmatprep.subr.bf16.mxu0 0
  %7033 = vmatpush1.bf16.msra.mxu0 0
  %7034 = vmatprep.subr.bf16.mxu0 0
  %7035 = vmatpush1.bf16.msra.mxu0 0
  %7036 = vmatprep.mubr.bf16.mxu0 0
  %7037 = vmatmul.mubr.bf16.gmra.mrb[0].mxu0 %v6330
  %v7038 = vpop.f32.mrb[0].mxu0
  %v7039 = vadd.f32 0.0, %v7038
  %v7040 = vpop.f32.mrb[0].mxu0
  %v7041 = vadd.f32 0.0, %v7040
  %v7042 = vpop.f32.mrb[0].mxu0
  %v7043 = vadd.f32 0.0, %v7042
  %v7044 = vpop.f32.mrb[0].mxu0
  %v7045 = vadd.f32 0.0, %v7044
  %7046 = vdwg.mxu0
  %s7047 = scalar_lea.vmem [#allocation2], 416
  %v7048 = vld [vmem:[%s7047] sm:$0xff]
  %v7049 = vld [vmem:[%s7047 + $0x8] sm:$0xff]
  %v7050 = vld [vmem:[%s7047 + $0x10] sm:$0xff]
  %v7051 = vld [vmem:[%s7047 + $0x18] sm:$0xff]
  %v7052 = vunpack.c.l.s8.bf16 %v7048
  %v7053 = vunpack.c.l.s8.bf16 %v7049
  %v7054 = vunpack.c.h.s8.bf16 %v7048
  %v7055 = vunpack.c.h.s8.bf16 %v7049
  %v7056 = vunpack.c.l.s8.bf16 %v7050
  %v7057 = vunpack.c.l.s8.bf16 %v7051
  %v7058 = vunpack.c.h.s8.bf16 %v7050
  %v7059 = vunpack.c.h.s8.bf16 %v7051
  %7060 = vmatprep.subr.bf16.mxu0 %v7053
  %7061 = vmatpush1.bf16.msra.mxu0 %v7052
  %7062 = vmatprep.subr.bf16.mxu0 %v7055
  %7063 = vmatpush1.bf16.msra.mxu0 %v7054
  %7064 = vmatprep.subr.bf16.mxu0 %v7057
  %7065 = vmatpush1.bf16.msra.mxu0 %v7056
  %7066 = vmatprep.subr.bf16.mxu0 %v7059
  %7067 = vmatpush1.bf16.msra.mxu0 %v7058
  %7068 = vmatprep.subr.bf16.mxu0 0
  %7069 = vmatpush1.bf16.msra.mxu0 0
  %7070 = vmatprep.subr.bf16.mxu0 0
  %7071 = vmatpush1.bf16.msra.mxu0 0
  %7072 = vmatprep.subr.bf16.mxu0 0
  %7073 = vmatpush1.bf16.msra.mxu0 0
  %7074 = vmatprep.subr.bf16.mxu0 0
  %7075 = vmatpush1.bf16.msra.mxu0 0
  %7076 = vmatprep.subr.bf16.mxu0 0
  %7077 = vmatpush1.bf16.msra.mxu0 0
  %7078 = vmatprep.subr.bf16.mxu0 0
  %7079 = vmatpush1.bf16.msra.mxu0 0
  %7080 = vmatprep.subr.bf16.mxu0 0
  %7081 = vmatpush1.bf16.msra.mxu0 0
  %7082 = vmatprep.subr.bf16.mxu0 0
  %7083 = vmatpush1.bf16.msra.mxu0 0
  %7084 = vmatprep.subr.bf16.mxu0 0
  %7085 = vmatpush1.bf16.msra.mxu0 0
  %7086 = vmatprep.subr.bf16.mxu0 0
  %7087 = vmatpush1.bf16.msra.mxu0 0
  %7088 = vmatprep.subr.bf16.mxu0 0
  %7089 = vmatpush1.bf16.msra.mxu0 0
  %7090 = vmatprep.subr.bf16.mxu0 0
  %7091 = vmatpush1.bf16.msra.mxu0 0
  %7092 = vmatprep.mubr.bf16.mxu0 0
  %7093 = vmatmul.mubr.bf16.gmra.mrb[0].mxu0 %v6330
  %v7094 = vpop.f32.mrb[0].mxu0
  %v7095 = vadd.f32 0.0, %v7094
  %v7096 = vpop.f32.mrb[0].mxu0
  %v7097 = vadd.f32 0.0, %v7096
  %v7098 = vpop.f32.mrb[0].mxu0
  %v7099 = vadd.f32 0.0, %v7098
  %v7100 = vpop.f32.mrb[0].mxu0
  %v7101 = vadd.f32 0.0, %v7100
  %7102 = vdwg.mxu0
  %s7103 = scalar_lea.vmem [#allocation2], 448
  %v7104 = vld [vmem:[%s7103] sm:$0xff]
  %v7105 = vld [vmem:[%s7103 + $0x8] sm:$0xff]
  %v7106 = vld [vmem:[%s7103 + $0x10] sm:$0xff]
  %v7107 = vld [vmem:[%s7103 + $0x18] sm:$0xff]
  %v7108 = vunpack.c.l.s8.bf16 %v7104
  %v7109 = vunpack.c.l.s8.bf16 %v7105
  %v7110 = vunpack.c.h.s8.bf16 %v7104
  %v7111 = vunpack.c.h.s8.bf16 %v7105
  %v7112 = vunpack.c.l.s8.bf16 %v7106
  %v7113 = vunpack.c.l.s8.bf16 %v7107
  %v7114 = vunpack.c.h.s8.bf16 %v7106
  %v7115 = vunpack.c.h.s8.bf16 %v7107
  %7116 = vmatprep.subr.bf16.mxu0 %v7109
  %7117 = vmatpush1.bf16.msra.mxu0 %v7108
  %7118 = vmatprep.subr.bf16.mxu0 %v7111
  %7119 = vmatpush1.bf16.msra.mxu0 %v7110
  %7120 = vmatprep.subr.bf16.mxu0 %v7113
  %7121 = vmatpush1.bf16.msra.mxu0 %v7112
  %7122 = vmatprep.subr.bf16.mxu0 %v7115
  %7123 = vmatpush1.bf16.msra.mxu0 %v7114
  %7124 = vmatprep.subr.bf16.mxu0 0
  %7125 = vmatpush1.bf16.msra.mxu0 0
  %7126 = vmatprep.subr.bf16.mxu0 0
  %7127 = vmatpush1.bf16.msra.mxu0 0
  %7128 = vmatprep.subr.bf16.mxu0 0
  %7129 = vmatpush1.bf16.msra.mxu0 0
  %7130 = vmatprep.subr.bf16.mxu0 0
  %7131 = vmatpush1.bf16.msra.mxu0 0
  %7132 = vmatprep.subr.bf16.mxu0 0
  %7133 = vmatpush1.bf16.msra.mxu0 0
  %7134 = vmatprep.subr.bf16.mxu0 0
  %7135 = vmatpush1.bf16.msra.mxu0 0
  %7136 = vmatprep.subr.bf16.mxu0 0
  %7137 = vmatpush1.bf16.msra.mxu0 0
  %7138 = vmatprep.subr.bf16.mxu0 0
  %7139 = vmatpush1.bf16.msra.mxu0 0
  %7140 = vmatprep.subr.bf16.mxu0 0
  %7141 = vmatpush1.bf16.msra.mxu0 0
  %7142 = vmatprep.subr.bf16.mxu0 0
  %7143 = vmatpush1.bf16.msra.mxu0 0
  %7144 = vmatprep.subr.bf16.mxu0 0
  %7145 = vmatpush1.bf16.msra.mxu0 0
  %7146 = vmatprep.subr.bf16.mxu0 0
  %7147 = vmatpush1.bf16.msra.mxu0 0
  %7148 = vmatprep.mubr.bf16.mxu0 0
  %7149 = vmatmul.mubr.bf16.gmra.mrb[0].mxu0 %v6330
  %v7150 = vpop.f32.mrb[0].mxu0
  %v7151 = vadd.f32 0.0, %v7150
  %v7152 = vpop.f32.mrb[0].mxu0
  %v7153 = vadd.f32 0.0, %v7152
  %v7154 = vpop.f32.mrb[0].mxu0
  %v7155 = vadd.f32 0.0, %v7154
  %v7156 = vpop.f32.mrb[0].mxu0
  %v7157 = vadd.f32 0.0, %v7156
  %7158 = vdwg.mxu0
  %s7159 = scalar_lea.vmem [#allocation2], 480
  %v7160 = vld [vmem:[%s7159] sm:$0xff]
  %v7161 = vld [vmem:[%s7159 + $0x8] sm:$0xff]
  %v7162 = vld [vmem:[%s7159 + $0x10] sm:$0xff]
  %v7163 = vld [vmem:[%s7159 + $0x18] sm:$0xff]
  %v7164 = vunpack.c.l.s8.bf16 %v7160
  %v7165 = vunpack.c.l.s8.bf16 %v7161
  %v7166 = vunpack.c.h.s8.bf16 %v7160
  %v7167 = vunpack.c.h.s8.bf16 %v7161
  %v7168 = vunpack.c.l.s8.bf16 %v7162
  %v7169 = vunpack.c.l.s8.bf16 %v7163
  %v7170 = vunpack.c.h.s8.bf16 %v7162
  %v7171 = vunpack.c.h.s8.bf16 %v7163
  %7172 = vmatprep.subr.bf16.mxu0 %v7165
  %7173 = vmatpush1.bf16.msra.mxu0 %v7164
  %7174 = vmatprep.subr.bf16.mxu0 %v7167
  %7175 = vmatpush1.bf16.msra.mxu0 %v7166
  %7176 = vmatprep.subr.bf16.mxu0 %v7169
  %7177 = vmatpush1.bf16.msra.mxu0 %v7168
  %7178 = vmatprep.subr.bf16.mxu0 %v7171
  %7179 = vmatpush1.bf16.msra.mxu0 %v7170
  %7180 = vmatprep.subr.bf16.mxu0 0
  %7181 = vmatpush1.bf16.msra.mxu0 0
  %7182 = vmatprep.subr.bf16.mxu0 0
  %7183 = vmatpush1.bf16.msra.mxu0 0
  %7184 = vmatprep.subr.bf16.mxu0 0
  %7185 = vmatpush1.bf16.msra.mxu0 0
  %7186 = vmatprep.subr.bf16.mxu0 0
  %7187 = vmatpush1.bf16.msra.mxu0 0
  %7188 = vmatprep.subr.bf16.mxu0 0
  %7189 = vmatpush1.bf16.msra.mxu0 0
  %7190 = vmatprep.subr.bf16.mxu0 0
  %7191 = vmatpush1.bf16.msra.mxu0 0
  %7192 = vmatprep.subr.bf16.mxu0 0
  %7193 = vmatpush1.bf16.msra.mxu0 0
  %7194 = vmatprep.subr.bf16.mxu0 0
  %7195 = vmatpush1.bf16.msra.mxu0 0
  %7196 = vmatprep.subr.bf16.mxu0 0
  %7197 = vmatpush1.bf16.msra.mxu0 0
  %7198 = vmatprep.subr.bf16.mxu0 0
  %7199 = vmatpush1.bf16.msra.mxu0 0
  %7200 = vmatprep.subr.bf16.mxu0 0
  %7201 = vmatpush1.bf16.msra.mxu0 0
  %7202 = vmatprep.subr.bf16.mxu0 0
  %7203 = vmatpush1.bf16.msra.mxu0 0
  %7204 = vmatprep.mubr.bf16.mxu0 0
  %7205 = vmatmul.mubr.bf16.gmra.mrb[0].mxu0 %v6330
  %v7206 = vpop.f32.mrb[0].mxu0
  %v7207 = vadd.f32 0.0, %v7206
  %v7208 = vpop.f32.mrb[0].mxu0
  %v7209 = vadd.f32 0.0, %v7208
  %v7210 = vpop.f32.mrb[0].mxu0
  %v7211 = vadd.f32 0.0, %v7210
  %v7212 = vpop.f32.mrb[0].mxu0
  %v7213 = vadd.f32 0.0, %v7212
  %7214 = vdwg.mxu0
  %v7215 = vpack.c.bf16 %v6371, %v6367
  %v7216 = vpack.c.bf16 %v6373, %v6369
  %v7217 = vpack.c.bf16 %v6427, %v6423
  %v7218 = vpack.c.bf16 %v6429, %v6425
  %v7219 = vpack.c.bf16 %v6483, %v6479
  %v7220 = vpack.c.bf16 %v6485, %v6481
  %v7221 = vpack.c.bf16 %v6539, %v6535
  %v7222 = vpack.c.bf16 %v6541, %v6537
  %v7223 = vpack.c.bf16 %v6595, %v6591
  %v7224 = vpack.c.bf16 %v6597, %v6593
  %v7225 = vpack.c.bf16 %v6651, %v6647
  %v7226 = vpack.c.bf16 %v6653, %v6649
  %v7227 = vpack.c.bf16 %v6707, %v6703
  %v7228 = vpack.c.bf16 %v6709, %v6705
  %v7229 = vpack.c.bf16 %v6763, %v6759
  %v7230 = vpack.c.bf16 %v6765, %v6761
  %v7231 = vpack.c.bf16 %v6819, %v6815
  %v7232 = vpack.c.bf16 %v6821, %v6817
  %v7233 = vpack.c.bf16 %v6875, %v6871
  %v7234 = vpack.c.bf16 %v6877, %v6873
  %v7235 = vpack.c.bf16 %v6931, %v6927
  %v7236 = vpack.c.bf16 %v6933, %v6929
  %v7237 = vpack.c.bf16 %v6987, %v6983
  %v7238 = vpack.c.bf16 %v6989, %v6985
  %v7239 = vpack.c.bf16 %v7043, %v7039
  %v7240 = vpack.c.bf16 %v7045, %v7041
  %v7241 = vpack.c.bf16 %v7099, %v7095
  %v7242 = vpack.c.bf16 %v7101, %v7097
  %v7243 = vpack.c.bf16 %v7155, %v7151
  %v7244 = vpack.c.bf16 %v7157, %v7153
  %v7245 = vpack.c.bf16 %v7211, %v7207
  %v7246 = vpack.c.bf16 %v7213, %v7209
  %v7248 = vunpack.c.l.b16 %v6310
  %v7249 = vunpack.c.h.b16 %v6310
  %v7250 = vpack.c.b16 %v7248, %v7248
  %v7251 = vpack.c.b16 %v7249, %v7249
  %7254 = vmatprep.subr.bf16.mxu0 %v7216
  %7255 = vmatpush1.bf16.msra.mxu0 %v7215
  %7256 = vmatprep.subr.bf16.mxu0 %v7218
  %7257 = vmatpush1.bf16.msra.mxu0 %v7217
  %7258 = vmatprep.subr.bf16.mxu0 %v7220
  %7259 = vmatpush1.bf16.msra.mxu0 %v7219
  %7260 = vmatprep.subr.bf16.mxu0 %v7222
  %7261 = vmatpush1.bf16.msra.mxu0 %v7221
  %7262 = vmatprep.subr.bf16.mxu0 %v7224
  %7263 = vmatpush1.bf16.msra.mxu0 %v7223
  %7264 = vmatprep.subr.bf16.mxu0 %v7226
  %7265 = vmatpush1.bf16.msra.mxu0 %v7225
  %7266 = vmatprep.subr.bf16.mxu0 %v7228
  %7267 = vmatpush1.bf16.msra.mxu0 %v7227
  %7268 = vmatprep.subr.bf16.mxu0 %v7230
  %7269 = vmatpush1.bf16.msra.mxu0 %v7229
  %7270 = vmatprep.subr.bf16.mxu0 %v7232
  %7271 = vmatpush1.bf16.msra.mxu0 %v7231
  %7272 = vmatprep.subr.bf16.mxu0 %v7234
  %7273 = vmatpush1.bf16.msra.mxu0 %v7233
  %7274 = vmatprep.subr.bf16.mxu0 %v7236
  %7275 = vmatpush1.bf16.msra.mxu0 %v7235
  %7276 = vmatprep.subr.bf16.mxu0 %v7238
  %7277 = vmatpush1.bf16.msra.mxu0 %v7237
  %7278 = vmatprep.subr.bf16.mxu0 %v7240
  %7279 = vmatpush1.bf16.msra.mxu0 %v7239
  %7280 = vmatprep.subr.bf16.mxu0 %v7242
  %7281 = vmatpush1.bf16.msra.mxu0 %v7241
  %7282 = vmatprep.subr.bf16.mxu0 %v7244
  %7283 = vmatpush1.bf16.msra.mxu0 %v7243
  %7284 = vmatprep.subr.bf16.mxu0 %v7246
  %7285 = vmatpush1.bf16.msra.mxu0 %v7245
  %7286 = vmatprep.mubr.bf16.mxu0 %v7251
  %7287 = vmatmul.mubr.bf16.gmra.mrb[0].mxu0 %v7250
  %v7288 = vpop.f32.mrb[0].mxu0
  %v7289 = vadd.f32 0.0, %v7288
  %v7290 = vpop.f32.mrb[0].mxu0
  %v7291 = vadd.f32 0.0, %v7290
  %v7292 = vpop.f32.mrb[0].mxu0
  %v7293 = vpop.f32.mrb[0].mxu0
  %7294 = vdwg.mxu0
  %v7295 = vtanh.pop %v7289
  %v7296 = vtanh.pop %v7291
  %7297 = vst [vmem:[%s21] sm:$0x3f] %v7295
  %7298 = vst [vmem:[%s21 + $0x8] sm:$0x3f] %v7296
  // Predicated region
  $region116: #{netG_forward.1} parent=0 // pred_check
    _
  $region117: #{netG_forward.1} parent=0 // pred_check_branch
    %7300 = sbr.rel (0) target = $region119
  $region118: #{netG_forward.1} parent=0 // pred_region
    _
  $region119: #{netG_forward.1} parent=0 // pred_fallthru
    _
  // Predicated region
  $region120: #{netG_forward.1} parent=0 // pred_check
    _
  $region121: #{netG_forward.1} parent=0 // pred_check_branch
    %7302 = sbr.rel (0) target = $region123
  $region122: #{netG_forward.1} parent=0 // pred_region
    _
  $region123: #{netG_forward.1} parent=0 // pred_fallthru
    _
  %7303 = vsyncmov [#allocation3]
  %s7304 = vpop.sfrf %7303
  %p7305 = scmp.eq.s32.totalorder %s7304, 0
  %p7306 = pneg %p7305
  %7308 = shalt.err (%p7306)

</llo_original>
